<compile_context>
chip_gen: v7x
topology: tpu7x:2x2x1
jax: 0.10.0
libtpu: 0.0.40
codegen_flags: <defaults>
</compile_context>

<pallas_src>
import functools
from math import exp

import numpy as np
import jax
import jax.numpy as jnp
from jax.experimental import pallas as pl
from jax.experimental.pallas import tpu as pltpu

SIGMAS = (0.5, 1.0, 2.0, 4.0, 8.0)


def gaussian_1d(window_size, sigma):
    g = np.array(
        [exp(-(x - window_size // 2) ** 2 / float(2 * sigma ** 2)) for x in range(window_size)],
        dtype=np.float64,
    )
    return (g / g.sum()).astype(np.float32)


def _round_up(x, m):
    return ((x + m - 1) // m) * m


def _band_matrices(ws, H, W, sigmas, hout_pad, wout_pad):
    """Banded matrices: separable 'valid' Gaussian conv as 2 MXU matmuls.

    GH_all : (nsig*hout_pad, H)  stacked H-pass bands (sigmas fused in M dim,
                                  each sigma block padded to a multiple of 8).
    GW     : (nsig, W, wout_pad) per-sigma W-pass bands, lane-padded to 128.
    """
    nsig = len(sigmas)
    hout, wout = H - ws + 1, W - ws + 1
    GH = np.zeros((nsig * hout_pad, H), np.float32)
    GW = np.zeros((nsig, W, wout_pad), np.float32)
    for si, sigma in enumerate(sigmas):
        g = gaussian_1d(ws, sigma)
        base = si * hout_pad
        for o in range(hout):
            GH[base + o, o:o + ws] = g
        for o in range(wout):
            GW[si, o:o + ws, o] = g
    return jnp.asarray(GH), jnp.asarray(GW)


def _probe_kernel(x_ref, y_ref, o_ref):
    o_ref[...] = jnp.dot(x_ref[...], y_ref[...],
                         precision=jax.lax.Precision.HIGH,
                         preferred_element_type=jnp.float32)


@functools.lru_cache(maxsize=None)
def _high_precision_supported():
    """One-time probe: does this Mosaic build lower Precision.HIGH dots?"""
    try:
        x = jnp.zeros((8, 128), jnp.float32)
        y = jnp.zeros((128, 128), jnp.float32)
        jax.block_until_ready(
            pl.pallas_call(_probe_kernel,
                           out_shape=jax.ShapeDtypeStruct((8, 128), jnp.float32))(x, y))
        return True
    except Exception:
        return False


def _msssim_kernel(consts_ref, gh_ref, gw_ref, img1_ref, img2_ref,
                   pcs_ref, l_ref, *, n_sigmas, hout_pad, precision):
    # consts_ref: SMEM (2,)                     C1, C2 (data-dependent range)
    # gh_ref:     VMEM (nsig*hout_pad, H)       stacked H-pass bands
    # gw_ref:     VMEM (nsig, W, Wout_pad)      per-sigma W-pass bands
    # img*_ref:   VMEM (C, H, W)                one batch element
    # pcs_ref:    VMEM (hout_pad, Wout_pad)     prod_sigma cs (padded)
    # l_ref:      VMEM (hout_pad, Wout_pad)     l map of the LAST sigma (padded)
    C1 = consts_ref[0]
    C2 = consts_ref[1]
    C = img1_ref.shape[0]

    # Channel-summed statistics, computed ONCE per batch element.
    for c in range(C):
        a = img1_ref[c]
        b = img2_ref[c]
        if c == 0:
            sx1, sx2 = a, b
            s11, s22, s12 = a * a, b * b, a * b
        else:
            sx1 = sx1 + a
            sx2 = sx2 + b
            s11 = s11 + a * a
            s22 = s22 + b * b
            s12 = s12 + a * b

    gh = gh_ref[...]                                   # (nsig*hout_pad, H)

    def hpass(m):
        # One fat matmul per statistic: all sigmas fused in the M dim.
        return jnp.dot(gh, m, precision=precision,
                       preferred_element_type=jnp.float32)

    t1, t2 = hpass(sx1), hpass(sx2)                    # (nsig*hout_pad, W)
    t11, t22, t12 = hpass(s11), hpass(s22), hpass(s12)

    def newton_recip(d):
        # EUP approx reciprocal + one Newton step (well within f32 tolerance).
        r = pl.reciprocal(d, approx=True)
        return r * (2.0 - d * r)

    pcs = None
    l = None
    for si in range(n_sigmas):                         # static unroll over sigmas
        lo, hi = si * hout_pad, (si + 1) * hout_pad
        # One fat W-pass matmul per sigma: all 5 statistics fused in the M dim.
        lhs = jnp.concatenate(
            [t1[lo:hi], t2[lo:hi], t11[lo:hi], t22[lo:hi], t12[lo:hi]], axis=0)
        r = jnp.dot(lhs, gw_ref[si], precision=precision,
                    preferred_element_type=jnp.float32)   # (5*hout_pad, Wout_pad)

        mu1 = r[0 * hout_pad:1 * hout_pad]
        mu2 = r[1 * hout_pad:2 * hout_pad]
        e11 = r[2 * hout_pad:3 * hout_pad]
        e22 = r[3 * hout_pad:4 * hout_pad]
        e12 = r[4 * hout_pad:5 * hout_pad]

        mu1_sq = mu1 * mu1
        mu2_sq = mu2 * mu2
        mu1_mu2 = mu1 * mu2
        sigma1_sq = e11 - mu1_sq
        sigma2_sq = e22 - mu2_sq
        sigma12 = e12 - mu1_mu2

        cs = (2.0 * sigma12 + C2) * newton_recip(sigma1_sq + sigma2_sq + C2)
        pcs = cs if pcs is None else pcs * cs
        if si == n_sigmas - 1:                         # l only consumed at last sigma
            l = (2.0 * mu1_mu2 + C1) * newton_recip(mu1_sq + mu2_sq + C1)

    pcs_ref[...] = pcs
    l_ref[...] = l


def msssim_pallas(img1, img2, window_size=11, sigmas=SIGMAS):
    img1 = img1.astype(jnp.float32)
    img2 = img2.astype(jnp.float32)
    N, C, H, W = img1.shape
    ws = min(window_size, H, W)
    Hout, Wout = H - ws + 1, W - ws + 1
    nsig = len(sigmas)
    Hout_pad = _round_up(Hout, 8)        # sublane-dense per-sigma row blocks
    Wout_pad = _round_up(Wout, 128)      # lane-dense outputs (unmasked vst)

    GH, GW = _band_matrices(ws, H, W, sigmas, Hout_pad, Wout_pad)

    # Data-dependent dynamic range L, as in the reference.
    max_val = jnp.where(jnp.max(img1) > 128, 255.0, 1.0)
    min_val = jnp.where(jnp.min(img1) < -0.5, -1.0, 0.0)
    Lr = max_val - min_val
    consts = jnp.stack([(0.01 * Lr) ** 2, (0.03 * Lr) ** 2]).astype(jnp.float32)  # (2,)

    precision = (jax.lax.Precision.HIGH if _high_precision_supported()
                 else jax.lax.Precision.HIGHEST)

    cost = pl.CostEstimate(
        flops=int(N * (5 * 2 * nsig * Hout_pad * H * W          # H-pass matmuls
                       + nsig * 2 * 5 * Hout_pad * W * Wout_pad  # W-pass matmuls
                       + 5 * C * H * W                           # stat maps
                       + 16 * nsig * Hout_pad * Wout_pad)),      # elementwise
        transcendentals=int(2 * N * nsig * Hout_pad * Wout_pad),  # approx recips
        bytes_accessed=int(4 * (2 * N * C * H * W
                                + nsig * Hout_pad * H + nsig * W * Wout_pad
                                + 2 * N * Hout_pad * Wout_pad + 2)),
    )

    kernel = functools.partial(_msssim_kernel, n_sigmas=nsig,
                               hout_pad=Hout_pad, precision=precision)
    pcs, l_map = pl.pallas_call(
        kernel,
        out_shape=(jax.ShapeDtypeStruct((N, Hout_pad, Wout_pad), jnp.float32),
                   jax.ShapeDtypeStruct((N, Hout_pad, Wout_pad), jnp.float32)),
        grid_spec=pltpu.PrefetchScalarGridSpec(
            num_scalar_prefetch=0,
            grid=(N,),
            in_specs=[
                pl.BlockSpec(memory_space=pltpu.MemorySpace.SMEM),          # C1, C2
                pl.BlockSpec((nsig * Hout_pad, H), lambda b: (0, 0)),       # GH_all (resident)
                pl.BlockSpec((nsig, W, Wout_pad), lambda b: (0, 0, 0)),     # GW (resident)
                pl.BlockSpec((None, C, H, W), lambda b: (b, 0, 0, 0)),      # img1[b]
                pl.BlockSpec((None, C, H, W), lambda b: (b, 0, 0, 0)),      # img2[b]
            ],
            out_specs=[
                pl.BlockSpec((None, Hout_pad, Wout_pad), lambda b: (b, 0, 0)),  # Pcs[b]
                pl.BlockSpec((None, Hout_pad, Wout_pad), lambda b: (b, 0, 0)),  # l_last[b]
            ],
        ),
        compiler_params=pltpu.CompilerParams(
            dimension_semantics=("parallel",),
            vmem_limit_bytes=48 * 1024 * 1024,   # fits all generations (v7x phys = 64 MiB)
        ),
        cost_estimate=cost,
    )(consts, GH, GW, img1, img2)

    # Tiny finalize outside the kernel (keeps the batch axis parallel).
    pcs = pcs[:, :Hout, :Wout]
    l_last = l_map[N - 1, :Hout, :Wout]
    # Reference quirk (reproduced exactly): `1 - l[-1] * Pcs` broadcasts the
    # LAST batch element's last-sigma luminance map over the whole batch.
    ssim_map = 1.0 - l_last[None, :, :] * pcs
    return jnp.mean(ssim_map)


def msssim_ref(img1, img2, window_size=11, sigmas=SIGMAS):
    """Pure-JAX reference mirroring the PyTorch msssim (for verification)."""
    img1 = img1.astype(jnp.float32)
    img2 = img2.astype(jnp.float32)
    N, C, H, W = img1.shape
    max_val = jnp.where(jnp.max(img1) > 128, 255.0, 1.0)
    min_val = jnp.where(jnp.min(img1) < -0.5, -1.0, 0.0)
    Lr = max_val - min_val
    C1 = (0.01 * Lr) ** 2
    C2 = (0.03 * Lr) ** 2
    ws = min(window_size, H, W)

    ml, mcs = [], []
    for sigma in sigmas:
        g = gaussian_1d(ws, sigma)
        w2d = np.outer(g, g).astype(np.float32)
        window = jnp.asarray(np.broadcast_to(w2d, (1, C, ws, ws)).copy())  # OIHW, like torch

        def conv(x):
            return jax.lax.conv_general_dilated(
                x, window, window_strides=(1, 1), padding="VALID",
                dimension_numbers=("NCHW", "OIHW", "NCHW"),
                precision=jax.lax.Precision.HIGHEST)

        mu1, mu2 = conv(img1), conv(img2)
        mu1_sq, mu2_sq, mu1_mu2 = mu1 * mu1, mu2 * mu2, mu1 * mu2
        s1 = conv(img1 * img1) - mu1_sq
        s2 = conv(img2 * img2) - mu2_sq
        s12 = conv(img1 * img2) - mu1_mu2
        l = (2.0 * mu1_mu2 + C1) / (mu1_sq + mu2_sq + C1)
        cs = (2.0 * s12 + C2) / (s1 + s2 + C2)
        ml.append(l)
        mcs.append(cs)

    Pcs = jnp.prod(jnp.stack(mcs, axis=0), axis=0)
    l_last = ml[-1]                    # (N, 1, H', W')
    ssim_map = 1.0 - l_last[-1] * Pcs  # l_last[-1]: (1, H', W') broadcast, as in reference
    return jnp.mean(ssim_map)


if __name__ == "__main__":
    key = jax.random.PRNGKey(0)
    k1, k2 = jax.random.split(key)
    # channel must be 3 (create_window expands the Gaussian to 3 input channels)
    img1 = jax.random.uniform(k1, (2, 3, 16, 16), dtype=jnp.float32)
    img2 = jax.random.uniform(k2, (2, 3, 16, 16), dtype=jnp.float32)

    out = msssim_pallas(img1, img2)
    out = jax.block_until_ready(out)

    ref = msssim_ref(img1, img2)
    # Tolerance covers the Precision.HIGH (bf16x3) matmuls + NR-refined approx
    # reciprocal vs the HIGHEST-precision reference.
    assert jnp.allclose(out, ref, rtol=5e-4, atol=5e-5), (float(out), float(ref))
    print("KERNEL_OK")
</pallas_src>

<mosaic_0001>
module attributes {stable_mosaic.version = 11 : i64} {
  func.func @_msssim_kernel(%arg0: i32, %arg1: memref<2xf32, #tpu.memory_space<smem>>, %arg2: memref<40x16xf32, #tpu.memory_space<vmem>>, %arg3: memref<5x16x128xf32, #tpu.memory_space<vmem>>, %arg4: memref<1x3x16x16xf32, #tpu.memory_space<vmem>>, %arg5: memref<1x3x16x16xf32, #tpu.memory_space<vmem>>, %arg6: memref<1x8x128xf32, #tpu.memory_space<vmem>>, %arg7: memref<1x8x128xf32, #tpu.memory_space<vmem>>) attributes {dimension_semantics = [#tpu.dimension_semantics<parallel>], iteration_bounds = array<i64: 2>, scalar_prefetch = 0 : i64, scratch_operands = 0 : i64, tpu.core_type = #tpu.core_type<tc>, window_params = [{transform_indices = @transform_0, window_bounds = array<i64: 2>}, {pipeline_mode = #tpu.pipeline_mode<synchronous>, transform_indices = @transform_1, window_bounds = array<i64: 40, 16>}, {pipeline_mode = #tpu.pipeline_mode<synchronous>, transform_indices = @transform_2, window_bounds = array<i64: 5, 16, 128>}, {transform_indices = @transform_3, window_bounds = array<i64: 1, 3, 16, 16>}, {transform_indices = @transform_4, window_bounds = array<i64: 1, 3, 16, 16>}, {transform_indices = @transform_5, window_bounds = array<i64: 1, 8, 128>}, {transform_indices = @transform_6, window_bounds = array<i64: 1, 8, 128>}]} {
    %c0 = arith.constant 0 : index
    %0 = memref.load %arg1[%c0] : memref<2xf32, #tpu.memory_space<smem>>
    %c1 = arith.constant 1 : index
    %1 = memref.load %arg1[%c1] : memref<2xf32, #tpu.memory_space<smem>>
    %c0_0 = arith.constant 0 : index
    %c0_1 = arith.constant 0 : index
    %c0_2 = arith.constant 0 : index
    %c0_3 = arith.constant 0 : index
    %2 = vector.load %arg4[%c0_0, %c0_1, %c0_2, %c0_3] : memref<1x3x16x16xf32, #tpu.memory_space<vmem>>, vector<1x1x16x16xf32>
    %3 = vector.shape_cast %2 : vector<1x1x16x16xf32> to vector<16x16xf32>
    %c0_4 = arith.constant 0 : index
    %c0_5 = arith.constant 0 : index
    %c0_6 = arith.constant 0 : index
    %c0_7 = arith.constant 0 : index
    %4 = vector.load %arg5[%c0_4, %c0_5, %c0_6, %c0_7] : memref<1x3x16x16xf32, #tpu.memory_space<vmem>>, vector<1x1x16x16xf32>
    %5 = vector.shape_cast %4 : vector<1x1x16x16xf32> to vector<16x16xf32>
    %6 = arith.mulf %3, %3 : vector<16x16xf32>
    %7 = arith.mulf %5, %5 : vector<16x16xf32>
    %8 = arith.mulf %3, %5 : vector<16x16xf32>
    %c0_8 = arith.constant 0 : index
    %c1_9 = arith.constant 1 : index
    %c0_10 = arith.constant 0 : index
    %c0_11 = arith.constant 0 : index
    %9 = vector.load %arg4[%c0_8, %c1_9, %c0_10, %c0_11] : memref<1x3x16x16xf32, #tpu.memory_space<vmem>>, vector<1x1x16x16xf32>
    %10 = vector.shape_cast %9 : vector<1x1x16x16xf32> to vector<16x16xf32>
    %c0_12 = arith.constant 0 : index
    %c1_13 = arith.constant 1 : index
    %c0_14 = arith.constant 0 : index
    %c0_15 = arith.constant 0 : index
    %11 = vector.load %arg5[%c0_12, %c1_13, %c0_14, %c0_15] : memref<1x3x16x16xf32, #tpu.memory_space<vmem>>, vector<1x1x16x16xf32>
    %12 = vector.shape_cast %11 : vector<1x1x16x16xf32> to vector<16x16xf32>
    %13 = arith.addf %3, %10 : vector<16x16xf32>
    %14 = arith.addf %5, %12 : vector<16x16xf32>
    %15 = arith.mulf %10, %10 : vector<16x16xf32>
    %16 = arith.addf %6, %15 : vector<16x16xf32>
    %17 = arith.mulf %12, %12 : vector<16x16xf32>
    %18 = arith.addf %7, %17 : vector<16x16xf32>
    %19 = arith.mulf %10, %12 : vector<16x16xf32>
    %20 = arith.addf %8, %19 : vector<16x16xf32>
    %c0_16 = arith.constant 0 : index
    %c2 = arith.constant 2 : index
    %c0_17 = arith.constant 0 : index
    %c0_18 = arith.constant 0 : index
    %21 = vector.load %arg4[%c0_16, %c2, %c0_17, %c0_18] : memref<1x3x16x16xf32, #tpu.memory_space<vmem>>, vector<1x1x16x16xf32>
    %22 = vector.shape_cast %21 : vector<1x1x16x16xf32> to vector<16x16xf32>
    %c0_19 = arith.constant 0 : index
    %c2_20 = arith.constant 2 : index
    %c0_21 = arith.constant 0 : index
    %c0_22 = arith.constant 0 : index
    %23 = vector.load %arg5[%c0_19, %c2_20, %c0_21, %c0_22] : memref<1x3x16x16xf32, #tpu.memory_space<vmem>>, vector<1x1x16x16xf32>
    %24 = vector.shape_cast %23 : vector<1x1x16x16xf32> to vector<16x16xf32>
    %25 = arith.addf %13, %22 : vector<16x16xf32>
    %26 = arith.addf %14, %24 : vector<16x16xf32>
    %27 = arith.mulf %22, %22 : vector<16x16xf32>
    %28 = arith.addf %16, %27 : vector<16x16xf32>
    %29 = arith.mulf %24, %24 : vector<16x16xf32>
    %30 = arith.addf %18, %29 : vector<16x16xf32>
    %31 = arith.mulf %22, %24 : vector<16x16xf32>
    %32 = arith.addf %20, %31 : vector<16x16xf32>
    %c0_23 = arith.constant 0 : index
    %c0_24 = arith.constant 0 : index
    %33 = vector.load %arg2[%c0_23, %c0_24] : memref<40x16xf32, #tpu.memory_space<vmem>>, vector<40x16xf32>
    %cst = arith.constant dense<0.000000e+00> : vector<40x16xf32>
    %34 = tpu.matmul %33, %25, %cst {dimension_numbers = #tpu.dot_dimension_numbers<[1], [0], [0], [1], [0, 0, 1, 1], [], []>, precision = #tpu.contract_precision<fp32>} : vector<40x16xf32>, vector<16x16xf32>, vector<40x16xf32> -> vector<40x16xf32>
    %cst_25 = arith.constant dense<0.000000e+00> : vector<40x16xf32>
    %35 = tpu.matmul %33, %26, %cst_25 {dimension_numbers = #tpu.dot_dimension_numbers<[1], [0], [0], [1], [0, 0, 1, 1], [], []>, precision = #tpu.contract_precision<fp32>} : vector<40x16xf32>, vector<16x16xf32>, vector<40x16xf32> -> vector<40x16xf32>
    %cst_26 = arith.constant dense<0.000000e+00> : vector<40x16xf32>
    %36 = tpu.matmul %33, %28, %cst_26 {dimension_numbers = #tpu.dot_dimension_numbers<[1], [0], [0], [1], [0, 0, 1, 1], [], []>, precision = #tpu.contract_precision<fp32>} : vector<40x16xf32>, vector<16x16xf32>, vector<40x16xf32> -> vector<40x16xf32>
    %cst_27 = arith.constant dense<0.000000e+00> : vector<40x16xf32>
    %37 = tpu.matmul %33, %30, %cst_27 {dimension_numbers = #tpu.dot_dimension_numbers<[1], [0], [0], [1], [0, 0, 1, 1], [], []>, precision = #tpu.contract_precision<fp32>} : vector<40x16xf32>, vector<16x16xf32>, vector<40x16xf32> -> vector<40x16xf32>
    %cst_28 = arith.constant dense<0.000000e+00> : vector<40x16xf32>
    %38 = tpu.matmul %33, %32, %cst_28 {dimension_numbers = #tpu.dot_dimension_numbers<[1], [0], [0], [1], [0, 0, 1, 1], [], []>, precision = #tpu.contract_precision<fp32>} : vector<40x16xf32>, vector<16x16xf32>, vector<40x16xf32> -> vector<40x16xf32>
    %39 = vector.extract_strided_slice %34 {offsets = [0, 0], sizes = [8, 16], strides = [1, 1]} : vector<40x16xf32> to vector<8x16xf32>
    %40 = vector.extract_strided_slice %35 {offsets = [0, 0], sizes = [8, 16], strides = [1, 1]} : vector<40x16xf32> to vector<8x16xf32>
    %41 = vector.extract_strided_slice %36 {offsets = [0, 0], sizes = [8, 16], strides = [1, 1]} : vector<40x16xf32> to vector<8x16xf32>
    %42 = vector.extract_strided_slice %37 {offsets = [0, 0], sizes = [8, 16], strides = [1, 1]} : vector<40x16xf32> to vector<8x16xf32>
    %43 = vector.extract_strided_slice %38 {offsets = [0, 0], sizes = [8, 16], strides = [1, 1]} : vector<40x16xf32> to vector<8x16xf32>
    %44 = tpu.concatenate %39, %40, %41, %42, %43 in 0 : vector<8x16xf32>, vector<8x16xf32>, vector<8x16xf32>, vector<8x16xf32>, vector<8x16xf32> -> vector<40x16xf32>
    %c0_29 = arith.constant 0 : index
    %c0_30 = arith.constant 0 : index
    %c0_31 = arith.constant 0 : index
    %45 = vector.load %arg3[%c0_29, %c0_30, %c0_31] : memref<5x16x128xf32, #tpu.memory_space<vmem>>, vector<1x16x128xf32>
    %46 = vector.shape_cast %45 : vector<1x16x128xf32> to vector<16x128xf32>
    %cst_32 = arith.constant dense<0.000000e+00> : vector<40x128xf32>
    %47 = tpu.matmul %44, %46, %cst_32 {dimension_numbers = #tpu.dot_dimension_numbers<[1], [0], [0], [1], [0, 0, 1, 1], [], []>, precision = #tpu.contract_precision<fp32>} : vector<40x16xf32>, vector<16x128xf32>, vector<40x128xf32> -> vector<40x128xf32>
    %48 = vector.extract_strided_slice %47 {offsets = [0, 0], sizes = [8, 128], strides = [1, 1]} : vector<40x128xf32> to vector<8x128xf32>
    %49 = vector.extract_strided_slice %47 {offsets = [8, 0], sizes = [8, 128], strides = [1, 1]} : vector<40x128xf32> to vector<8x128xf32>
    %50 = vector.extract_strided_slice %47 {offsets = [16, 0], sizes = [8, 128], strides = [1, 1]} : vector<40x128xf32> to vector<8x128xf32>
    %51 = vector.extract_strided_slice %47 {offsets = [24, 0], sizes = [8, 128], strides = [1, 1]} : vector<40x128xf32> to vector<8x128xf32>
    %52 = vector.extract_strided_slice %47 {offsets = [32, 0], sizes = [8, 128], strides = [1, 1]} : vector<40x128xf32> to vector<8x128xf32>
    %53 = arith.mulf %48, %48 : vector<8x128xf32>
    %54 = arith.mulf %49, %49 : vector<8x128xf32>
    %55 = arith.mulf %48, %49 : vector<8x128xf32>
    %56 = arith.subf %50, %53 : vector<8x128xf32>
    %57 = arith.subf %51, %54 : vector<8x128xf32>
    %58 = arith.subf %52, %55 : vector<8x128xf32>
    %cst_33 = arith.constant 2.000000e+00 : f32
    %59 = vector.broadcast %cst_33 : f32 to vector<8x128xf32>
    %60 = arith.mulf %59, %58 : vector<8x128xf32>
    %61 = vector.broadcast %1 : f32 to vector<8x128xf32>
    %62 = arith.addf %60, %61 : vector<8x128xf32>
    %63 = arith.addf %56, %57 : vector<8x128xf32>
    %64 = vector.broadcast %1 : f32 to vector<8x128xf32>
    %65 = arith.addf %63, %64 : vector<8x128xf32>
    %66 = tpu.reciprocal %65 {approx = true} : vector<8x128xf32> -> vector<8x128xf32>
    %67 = arith.mulf %65, %66 : vector<8x128xf32>
    %cst_34 = arith.constant 2.000000e+00 : f32
    %68 = vector.broadcast %cst_34 : f32 to vector<8x128xf32>
    %69 = arith.subf %68, %67 : vector<8x128xf32>
    %70 = arith.mulf %66, %69 : vector<8x128xf32>
    %71 = arith.mulf %62, %70 : vector<8x128xf32>
    %72 = vector.extract_strided_slice %34 {offsets = [8, 0], sizes = [8, 16], strides = [1, 1]} : vector<40x16xf32> to vector<8x16xf32>
    %73 = vector.extract_strided_slice %35 {offsets = [8, 0], sizes = [8, 16], strides = [1, 1]} : vector<40x16xf32> to vector<8x16xf32>
    %74 = vector.extract_strided_slice %36 {offsets = [8, 0], sizes = [8, 16], strides = [1, 1]} : vector<40x16xf32> to vector<8x16xf32>
    %75 = vector.extract_strided_slice %37 {offsets = [8, 0], sizes = [8, 16], strides = [1, 1]} : vector<40x16xf32> to vector<8x16xf32>
    %76 = vector.extract_strided_slice %38 {offsets = [8, 0], sizes = [8, 16], strides = [1, 1]} : vector<40x16xf32> to vector<8x16xf32>
    %77 = tpu.concatenate %72, %73, %74, %75, %76 in 0 : vector<8x16xf32>, vector<8x16xf32>, vector<8x16xf32>, vector<8x16xf32>, vector<8x16xf32> -> vector<40x16xf32>
    %c1_35 = arith.constant 1 : index
    %c0_36 = arith.constant 0 : index
    %c0_37 = arith.constant 0 : index
    %78 = vector.load %arg3[%c1_35, %c0_36, %c0_37] : memref<5x16x128xf32, #tpu.memory_space<vmem>>, vector<1x16x128xf32>
    %79 = vector.shape_cast %78 : vector<1x16x128xf32> to vector<16x128xf32>
    %cst_38 = arith.constant dense<0.000000e+00> : vector<40x128xf32>
    %80 = tpu.matmul %77, %79, %cst_38 {dimension_numbers = #tpu.dot_dimension_numbers<[1], [0], [0], [1], [0, 0, 1, 1], [], []>, precision = #tpu.contract_precision<fp32>} : vector<40x16xf32>, vector<16x128xf32>, vector<40x128xf32> -> vector<40x128xf32>
    %81 = vector.extract_strided_slice %80 {offsets = [0, 0], sizes = [8, 128], strides = [1, 1]} : vector<40x128xf32> to vector<8x128xf32>
    %82 = vector.extract_strided_slice %80 {offsets = [8, 0], sizes = [8, 128], strides = [1, 1]} : vector<40x128xf32> to vector<8x128xf32>
    %83 = vector.extract_strided_slice %80 {offsets = [16, 0], sizes = [8, 128], strides = [1, 1]} : vector<40x128xf32> to vector<8x128xf32>
    %84 = vector.extract_strided_slice %80 {offsets = [24, 0], sizes = [8, 128], strides = [1, 1]} : vector<40x128xf32> to vector<8x128xf32>
    %85 = vector.extract_strided_slice %80 {offsets = [32, 0], sizes = [8, 128], strides = [1, 1]} : vector<40x128xf32> to vector<8x128xf32>
    %86 = arith.mulf %81, %81 : vector<8x128xf32>
    %87 = arith.mulf %82, %82 : vector<8x128xf32>
    %88 = arith.mulf %81, %82 : vector<8x128xf32>
    %89 = arith.subf %83, %86 : vector<8x128xf32>
    %90 = arith.subf %84, %87 : vector<8x128xf32>
    %91 = arith.subf %85, %88 : vector<8x128xf32>
    %cst_39 = arith.constant 2.000000e+00 : f32
    %92 = vector.broadcast %cst_39 : f32 to vector<8x128xf32>
    %93 = arith.mulf %92, %91 : vector<8x128xf32>
    %94 = vector.broadcast %1 : f32 to vector<8x128xf32>
    %95 = arith.addf %93, %94 : vector<8x128xf32>
    %96 = arith.addf %89, %90 : vector<8x128xf32>
    %97 = vector.broadcast %1 : f32 to vector<8x128xf32>
    %98 = arith.addf %96, %97 : vector<8x128xf32>
    %99 = tpu.reciprocal %98 {approx = true} : vector<8x128xf32> -> vector<8x128xf32>
    %100 = arith.mulf %98, %99 : vector<8x128xf32>
    %cst_40 = arith.constant 2.000000e+00 : f32
    %101 = vector.broadcast %cst_40 : f32 to vector<8x128xf32>
    %102 = arith.subf %101, %100 : vector<8x128xf32>
    %103 = arith.mulf %99, %102 : vector<8x128xf32>
    %104 = arith.mulf %95, %103 : vector<8x128xf32>
    %105 = arith.mulf %71, %104 : vector<8x128xf32>
    %106 = vector.extract_strided_slice %34 {offsets = [16, 0], sizes = [8, 16], strides = [1, 1]} : vector<40x16xf32> to vector<8x16xf32>
    %107 = vector.extract_strided_slice %35 {offsets = [16, 0], sizes = [8, 16], strides = [1, 1]} : vector<40x16xf32> to vector<8x16xf32>
    %108 = vector.extract_strided_slice %36 {offsets = [16, 0], sizes = [8, 16], strides = [1, 1]} : vector<40x16xf32> to vector<8x16xf32>
    %109 = vector.extract_strided_slice %37 {offsets = [16, 0], sizes = [8, 16], strides = [1, 1]} : vector<40x16xf32> to vector<8x16xf32>
    %110 = vector.extract_strided_slice %38 {offsets = [16, 0], sizes = [8, 16], strides = [1, 1]} : vector<40x16xf32> to vector<8x16xf32>
    %111 = tpu.concatenate %106, %107, %108, %109, %110 in 0 : vector<8x16xf32>, vector<8x16xf32>, vector<8x16xf32>, vector<8x16xf32>, vector<8x16xf32> -> vector<40x16xf32>
    %c2_41 = arith.constant 2 : index
    %c0_42 = arith.constant 0 : index
    %c0_43 = arith.constant 0 : index
    %112 = vector.load %arg3[%c2_41, %c0_42, %c0_43] : memref<5x16x128xf32, #tpu.memory_space<vmem>>, vector<1x16x128xf32>
    %113 = vector.shape_cast %112 : vector<1x16x128xf32> to vector<16x128xf32>
    %cst_44 = arith.constant dense<0.000000e+00> : vector<40x128xf32>
    %114 = tpu.matmul %111, %113, %cst_44 {dimension_numbers = #tpu.dot_dimension_numbers<[1], [0], [0], [1], [0, 0, 1, 1], [], []>, precision = #tpu.contract_precision<fp32>} : vector<40x16xf32>, vector<16x128xf32>, vector<40x128xf32> -> vector<40x128xf32>
    %115 = vector.extract_strided_slice %114 {offsets = [0, 0], sizes = [8, 128], strides = [1, 1]} : vector<40x128xf32> to vector<8x128xf32>
    %116 = vector.extract_strided_slice %114 {offsets = [8, 0], sizes = [8, 128], strides = [1, 1]} : vector<40x128xf32> to vector<8x128xf32>
    %117 = vector.extract_strided_slice %114 {offsets = [16, 0], sizes = [8, 128], strides = [1, 1]} : vector<40x128xf32> to vector<8x128xf32>
    %118 = vector.extract_strided_slice %114 {offsets = [24, 0], sizes = [8, 128], strides = [1, 1]} : vector<40x128xf32> to vector<8x128xf32>
    %119 = vector.extract_strided_slice %114 {offsets = [32, 0], sizes = [8, 128], strides = [1, 1]} : vector<40x128xf32> to vector<8x128xf32>
    %120 = arith.mulf %115, %115 : vector<8x128xf32>
    %121 = arith.mulf %116, %116 : vector<8x128xf32>
    %122 = arith.mulf %115, %116 : vector<8x128xf32>
    %123 = arith.subf %117, %120 : vector<8x128xf32>
    %124 = arith.subf %118, %121 : vector<8x128xf32>
    %125 = arith.subf %119, %122 : vector<8x128xf32>
    %cst_45 = arith.constant 2.000000e+00 : f32
    %126 = vector.broadcast %cst_45 : f32 to vector<8x128xf32>
    %127 = arith.mulf %126, %125 : vector<8x128xf32>
    %128 = vector.broadcast %1 : f32 to vector<8x128xf32>
    %129 = arith.addf %127, %128 : vector<8x128xf32>
    %130 = arith.addf %123, %124 : vector<8x128xf32>
    %131 = vector.broadcast %1 : f32 to vector<8x128xf32>
    %132 = arith.addf %130, %131 : vector<8x128xf32>
    %133 = tpu.reciprocal %132 {approx = true} : vector<8x128xf32> -> vector<8x128xf32>
    %134 = arith.mulf %132, %133 : vector<8x128xf32>
    %cst_46 = arith.constant 2.000000e+00 : f32
    %135 = vector.broadcast %cst_46 : f32 to vector<8x128xf32>
    %136 = arith.subf %135, %134 : vector<8x128xf32>
    %137 = arith.mulf %133, %136 : vector<8x128xf32>
    %138 = arith.mulf %129, %137 : vector<8x128xf32>
    %139 = arith.mulf %105, %138 : vector<8x128xf32>
    %140 = vector.extract_strided_slice %34 {offsets = [24, 0], sizes = [8, 16], strides = [1, 1]} : vector<40x16xf32> to vector<8x16xf32>
    %141 = vector.extract_strided_slice %35 {offsets = [24, 0], sizes = [8, 16], strides = [1, 1]} : vector<40x16xf32> to vector<8x16xf32>
    %142 = vector.extract_strided_slice %36 {offsets = [24, 0], sizes = [8, 16], strides = [1, 1]} : vector<40x16xf32> to vector<8x16xf32>
    %143 = vector.extract_strided_slice %37 {offsets = [24, 0], sizes = [8, 16], strides = [1, 1]} : vector<40x16xf32> to vector<8x16xf32>
    %144 = vector.extract_strided_slice %38 {offsets = [24, 0], sizes = [8, 16], strides = [1, 1]} : vector<40x16xf32> to vector<8x16xf32>
    %145 = tpu.concatenate %140, %141, %142, %143, %144 in 0 : vector<8x16xf32>, vector<8x16xf32>, vector<8x16xf32>, vector<8x16xf32>, vector<8x16xf32> -> vector<40x16xf32>
    %c3 = arith.constant 3 : index
    %c0_47 = arith.constant 0 : index
    %c0_48 = arith.constant 0 : index
    %146 = vector.load %arg3[%c3, %c0_47, %c0_48] : memref<5x16x128xf32, #tpu.memory_space<vmem>>, vector<1x16x128xf32>
    %147 = vector.shape_cast %146 : vector<1x16x128xf32> to vector<16x128xf32>
    %cst_49 = arith.constant dense<0.000000e+00> : vector<40x128xf32>
    %148 = tpu.matmul %145, %147, %cst_49 {dimension_numbers = #tpu.dot_dimension_numbers<[1], [0], [0], [1], [0, 0, 1, 1], [], []>, precision = #tpu.contract_precision<fp32>} : vector<40x16xf32>, vector<16x128xf32>, vector<40x128xf32> -> vector<40x128xf32>
    %149 = vector.extract_strided_slice %148 {offsets = [0, 0], sizes = [8, 128], strides = [1, 1]} : vector<40x128xf32> to vector<8x128xf32>
    %150 = vector.extract_strided_slice %148 {offsets = [8, 0], sizes = [8, 128], strides = [1, 1]} : vector<40x128xf32> to vector<8x128xf32>
    %151 = vector.extract_strided_slice %148 {offsets = [16, 0], sizes = [8, 128], strides = [1, 1]} : vector<40x128xf32> to vector<8x128xf32>
    %152 = vector.extract_strided_slice %148 {offsets = [24, 0], sizes = [8, 128], strides = [1, 1]} : vector<40x128xf32> to vector<8x128xf32>
    %153 = vector.extract_strided_slice %148 {offsets = [32, 0], sizes = [8, 128], strides = [1, 1]} : vector<40x128xf32> to vector<8x128xf32>
    %154 = arith.mulf %149, %149 : vector<8x128xf32>
    %155 = arith.mulf %150, %150 : vector<8x128xf32>
    %156 = arith.mulf %149, %150 : vector<8x128xf32>
    %157 = arith.subf %151, %154 : vector<8x128xf32>
    %158 = arith.subf %152, %155 : vector<8x128xf32>
    %159 = arith.subf %153, %156 : vector<8x128xf32>
    %cst_50 = arith.constant 2.000000e+00 : f32
    %160 = vector.broadcast %cst_50 : f32 to vector<8x128xf32>
    %161 = arith.mulf %160, %159 : vector<8x128xf32>
    %162 = vector.broadcast %1 : f32 to vector<8x128xf32>
    %163 = arith.addf %161, %162 : vector<8x128xf32>
    %164 = arith.addf %157, %158 : vector<8x128xf32>
    %165 = vector.broadcast %1 : f32 to vector<8x128xf32>
    %166 = arith.addf %164, %165 : vector<8x128xf32>
    %167 = tpu.reciprocal %166 {approx = true} : vector<8x128xf32> -> vector<8x128xf32>
    %168 = arith.mulf %166, %167 : vector<8x128xf32>
    %cst_51 = arith.constant 2.000000e+00 : f32
    %169 = vector.broadcast %cst_51 : f32 to vector<8x128xf32>
    %170 = arith.subf %169, %168 : vector<8x128xf32>
    %171 = arith.mulf %167, %170 : vector<8x128xf32>
    %172 = arith.mulf %163, %171 : vector<8x128xf32>
    %173 = arith.mulf %139, %172 : vector<8x128xf32>
    %174 = vector.extract_strided_slice %34 {offsets = [32, 0], sizes = [8, 16], strides = [1, 1]} : vector<40x16xf32> to vector<8x16xf32>
    %175 = vector.extract_strided_slice %35 {offsets = [32, 0], sizes = [8, 16], strides = [1, 1]} : vector<40x16xf32> to vector<8x16xf32>
    %176 = vector.extract_strided_slice %36 {offsets = [32, 0], sizes = [8, 16], strides = [1, 1]} : vector<40x16xf32> to vector<8x16xf32>
    %177 = vector.extract_strided_slice %37 {offsets = [32, 0], sizes = [8, 16], strides = [1, 1]} : vector<40x16xf32> to vector<8x16xf32>
    %178 = vector.extract_strided_slice %38 {offsets = [32, 0], sizes = [8, 16], strides = [1, 1]} : vector<40x16xf32> to vector<8x16xf32>
    %179 = tpu.concatenate %174, %175, %176, %177, %178 in 0 : vector<8x16xf32>, vector<8x16xf32>, vector<8x16xf32>, vector<8x16xf32>, vector<8x16xf32> -> vector<40x16xf32>
    %c4 = arith.constant 4 : index
    %c0_52 = arith.constant 0 : index
    %c0_53 = arith.constant 0 : index
    %180 = vector.load %arg3[%c4, %c0_52, %c0_53] : memref<5x16x128xf32, #tpu.memory_space<vmem>>, vector<1x16x128xf32>
    %181 = vector.shape_cast %180 : vector<1x16x128xf32> to vector<16x128xf32>
    %cst_54 = arith.constant dense<0.000000e+00> : vector<40x128xf32>
    %182 = tpu.matmul %179, %181, %cst_54 {dimension_numbers = #tpu.dot_dimension_numbers<[1], [0], [0], [1], [0, 0, 1, 1], [], []>, precision = #tpu.contract_precision<fp32>} : vector<40x16xf32>, vector<16x128xf32>, vector<40x128xf32> -> vector<40x128xf32>
    %183 = vector.extract_strided_slice %182 {offsets = [0, 0], sizes = [8, 128], strides = [1, 1]} : vector<40x128xf32> to vector<8x128xf32>
    %184 = vector.extract_strided_slice %182 {offsets = [8, 0], sizes = [8, 128], strides = [1, 1]} : vector<40x128xf32> to vector<8x128xf32>
    %185 = vector.extract_strided_slice %182 {offsets = [16, 0], sizes = [8, 128], strides = [1, 1]} : vector<40x128xf32> to vector<8x128xf32>
    %186 = vector.extract_strided_slice %182 {offsets = [24, 0], sizes = [8, 128], strides = [1, 1]} : vector<40x128xf32> to vector<8x128xf32>
    %187 = vector.extract_strided_slice %182 {offsets = [32, 0], sizes = [8, 128], strides = [1, 1]} : vector<40x128xf32> to vector<8x128xf32>
    %188 = arith.mulf %183, %183 : vector<8x128xf32>
    %189 = arith.mulf %184, %184 : vector<8x128xf32>
    %190 = arith.mulf %183, %184 : vector<8x128xf32>
    %191 = arith.subf %185, %188 : vector<8x128xf32>
    %192 = arith.subf %186, %189 : vector<8x128xf32>
    %193 = arith.subf %187, %190 : vector<8x128xf32>
    %cst_55 = arith.constant 2.000000e+00 : f32
    %194 = vector.broadcast %cst_55 : f32 to vector<8x128xf32>
    %195 = arith.mulf %194, %193 : vector<8x128xf32>
    %196 = vector.broadcast %1 : f32 to vector<8x128xf32>
    %197 = arith.addf %195, %196 : vector<8x128xf32>
    %198 = arith.addf %191, %192 : vector<8x128xf32>
    %199 = vector.broadcast %1 : f32 to vector<8x128xf32>
    %200 = arith.addf %198, %199 : vector<8x128xf32>
    %201 = tpu.reciprocal %200 {approx = true} : vector<8x128xf32> -> vector<8x128xf32>
    %202 = arith.mulf %200, %201 : vector<8x128xf32>
    %cst_56 = arith.constant 2.000000e+00 : f32
    %203 = vector.broadcast %cst_56 : f32 to vector<8x128xf32>
    %204 = arith.subf %203, %202 : vector<8x128xf32>
    %205 = arith.mulf %201, %204 : vector<8x128xf32>
    %206 = arith.mulf %197, %205 : vector<8x128xf32>
    %207 = arith.mulf %173, %206 : vector<8x128xf32>
    %cst_57 = arith.constant 2.000000e+00 : f32
    %208 = vector.broadcast %cst_57 : f32 to vector<8x128xf32>
    %209 = arith.mulf %208, %190 : vector<8x128xf32>
    %210 = vector.broadcast %0 : f32 to vector<8x128xf32>
    %211 = arith.addf %209, %210 : vector<8x128xf32>
    %212 = arith.addf %188, %189 : vector<8x128xf32>
    %213 = vector.broadcast %0 : f32 to vector<8x128xf32>
    %214 = arith.addf %212, %213 : vector<8x128xf32>
    %215 = tpu.reciprocal %214 {approx = true} : vector<8x128xf32> -> vector<8x128xf32>
    %216 = arith.mulf %214, %215 : vector<8x128xf32>
    %cst_58 = arith.constant 2.000000e+00 : f32
    %217 = vector.broadcast %cst_58 : f32 to vector<8x128xf32>
    %218 = arith.subf %217, %216 : vector<8x128xf32>
    %219 = arith.mulf %215, %218 : vector<8x128xf32>
    %220 = arith.mulf %211, %219 : vector<8x128xf32>
    %c0_59 = arith.constant 0 : index
    %c0_60 = arith.constant 0 : index
    %c0_61 = arith.constant 0 : index
    %221 = vector.load %arg6[%c0_59, %c0_60, %c0_61] : memref<1x8x128xf32, #tpu.memory_space<vmem>>, vector<1x8x128xf32>
    %222 = vector.shape_cast %221 : vector<1x8x128xf32> to vector<8x128xf32>
    %223 = vector.shape_cast %207 : vector<8x128xf32> to vector<1x8x128xf32>
    tpu.vector_store %arg6[%c0_59, %c0_60, %c0_61], %223 {strides = array<i32>} : memref<1x8x128xf32, #tpu.memory_space<vmem>>, vector<1x8x128xf32>,
    %c0_62 = arith.constant 0 : index
    %c0_63 = arith.constant 0 : index
    %c0_64 = arith.constant 0 : index
    %224 = vector.load %arg7[%c0_62, %c0_63, %c0_64] : memref<1x8x128xf32, #tpu.memory_space<vmem>>, vector<1x8x128xf32>
    %225 = vector.shape_cast %224 : vector<1x8x128xf32> to vector<8x128xf32>
    %226 = vector.shape_cast %220 : vector<8x128xf32> to vector<1x8x128xf32>
    tpu.vector_store %arg7[%c0_62, %c0_63, %c0_64], %226 {strides = array<i32>} : memref<1x8x128xf32, #tpu.memory_space<vmem>>, vector<1x8x128xf32>,
    return
  }
  func.func @transform_0(%arg0: i32) -> i32 {
    %c0_i32 = arith.constant 0 : i32
    %c0_i32_0 = arith.constant 0 : i32
    return %c0_i32 : i32
  }
  func.func @transform_1(%arg0: i32) -> (i32, i32) {
    %c0_i32 = arith.constant 0 : i32
    %c0_i32_0 = arith.constant 0 : i32
    %c0_i32_1 = arith.constant 0 : i32
    return %c0_i32, %c0_i32_0 : i32, i32
  }
  func.func @transform_2(%arg0: i32) -> (i32, i32, i32) {
    %c0_i32 = arith.constant 0 : i32
    %c0_i32_0 = arith.constant 0 : i32
    %c0_i32_1 = arith.constant 0 : i32
    %c0_i32_2 = arith.constant 0 : i32
    return %c0_i32, %c0_i32_0, %c0_i32_1 : i32, i32, i32
  }
  func.func @transform_3(%arg0: i32) -> (i32, i32, i32, i32) {
    %c0_i32 = arith.constant 0 : i32
    %c0_i32_0 = arith.constant 0 : i32
    %c0_i32_1 = arith.constant 0 : i32
    %c0_i32_2 = arith.constant 0 : i32
    return %arg0, %c0_i32, %c0_i32_0, %c0_i32_1 : i32, i32, i32, i32
  }
  func.func @transform_4(%arg0: i32) -> (i32, i32, i32, i32) {
    %c0_i32 = arith.constant 0 : i32
    %c0_i32_0 = arith.constant 0 : i32
    %c0_i32_1 = arith.constant 0 : i32
    %c0_i32_2 = arith.constant 0 : i32
    return %arg0, %c0_i32, %c0_i32_0, %c0_i32_1 : i32, i32, i32, i32
  }
  func.func @transform_5(%arg0: i32) -> (i32, i32, i32) {
    %c0_i32 = arith.constant 0 : i32
    %c0_i32_0 = arith.constant 0 : i32
    %c0_i32_1 = arith.constant 0 : i32
    return %arg0, %c0_i32, %c0_i32_0 : i32, i32, i32
  }
  func.func @transform_6(%arg0: i32) -> (i32, i32, i32) {
    %c0_i32 = arith.constant 0 : i32
    %c0_i32_0 = arith.constant 0 : i32
    %c0_i32_1 = arith.constant 0 : i32
    return %arg0, %c0_i32, %c0_i32_0 : i32, i32, i32
  }
}

</mosaic_0001>

<llo_original>
// kernel: tpu_custom_call.1
$region0: #{tpu_custom_call.1}
  #allocation0 [shape = 'u32[]', space=smem, size = 0x4, offset = 0x4, fixed_abs, tag = 'smem constant byte address 0x4 - core index']
  #allocation1 [shape = 'u32[144,128]{1,0:T(1,128)}', space=vmem, size = 0x12000, scoped, tag = 'internal scratch']
  %s0 = inlined_call_operand.vmem [shape: f32[2], index: 0, kind: input, shape index: {}]
  %s1 = inlined_call_operand.vmem [shape: f32[40,16], index: 1, kind: input, shape index: {}]
  %s2 = inlined_call_operand.hbm [shape: f32[5,16,128], index: 2, kind: input, shape index: {}]
  %s3 = inlined_call_operand.hbm [shape: f32[2,3,16,16], index: 3, kind: input, shape index: {}]
  %s4 = inlined_call_operand.hbm [shape: f32[2,3,16,16], index: 4, kind: input, shape index: {}]
  %s5 = inlined_call_operand.hbm [shape: f32[2,8,128], index: 5, kind: output, shape index: {0}]
  %s6 = inlined_call_operand.hbm [shape: f32[2,8,128], index: 6, kind: output, shape index: {1}]
  %7 = xla_tuple %s5, %s6
  %s8 = sld [smem:[#allocation0]]
  $region77: #{tpu_custom_call.1} parent=0
    _
  %s10 = ssub.s32 1, %s8
  %s11 = scalar_select 0, %s10, %s8
  $region1: #{tpu_custom_call.1} parent=0
    #allocation2 [shape = 'u8[512]{0}', space=smem, size = 0x200, scoped, tag = 'input window, operand 0, single buffered']
    #allocation3 [shape = 's32[2]{0}', space=sflag, size = 0x8, scoped, tag = 'scoped memory for tpu_custom_call.1']
    #allocation4 [shape = 's32[2]{0}', space=sflag, size = 0x8, scoped, tag = 'scoped memory for tpu_custom_call.1']
    #allocation5 [shape = 's32[2]{0}', space=sflag, size = 0x8, scoped, tag = 'scoped memory for tpu_custom_call.1']
    #allocation6 [shape = 'u8[40960]{0}', space=vmem, size = 0xa000, scoped, tag = 'input window, operand 2, single buffered']
    #allocation7 [shape = 'u8[49152]{0}', space=vmem, size = 0xc000, scoped, tag = 'input window, operand 3']
    #allocation8 [shape = 's32[2]{0}', space=sflag, size = 0x8, scoped, tag = 'scoped memory for tpu_custom_call.1']
    #allocation9 [shape = 'u8[49152]{0}', space=vmem, size = 0xc000, scoped, tag = 'input window, operand 4']
    #allocation10 [shape = 'u8[8192]{0}', space=vmem, size = 0x2000, scoped, tag = 'output window, operand 0']
    #allocation11 [shape = 'u8[8192]{0}', space=vmem, size = 0x2000, scoped, tag = 'output window, operand 1']
    #allocation12 [shape = 's32[2]{0}', space=sflag, size = 0x8, scoped, tag = 'scoped memory for tpu_custom_call.1']
    %12 = vsyncpa [#allocation5], 0
    %13 = vsyncpa [#allocation3], 0
    %14 = vsyncpa [#allocation8], 0
    %s15 = scalar_lea.sflag [#allocation8], 1
    %16 = vsyncpa %s15, 0
    %17 = vsyncpa [#allocation4], 0
    %s18 = scalar_lea.sflag [#allocation4], 1
    %19 = vsyncpa %s18, 0
    %20 = vsyncpa [#allocation12], 0
    %s21 = scalar_lea.sflag [#allocation12], 1
    %22 = vsyncpa %s21, 0
    loop: start=0, step=1, limit=4
    $region2: #{tpu_custom_call.1} parent=1 // loop_pre_header
      _
    $region3: #{tpu_custom_call.1} parent=1 // loop_header
      %s24 = sphi 0, %s28
      %p25 = scmp.ge.s32.totalorder %s24, 4
      %s32 = sphi 0, %s32
      %s34 = sphi 0, %s32
      %s35 = sphi 0, %s34
      %s49 = sphi 0, %s35
      %s53 = sphi 0, %s53
      %s55 = sphi 0, %s53
      %s56 = sphi 0, %s55
      %s70 = sphi 0, %s56
      %s74 = sphi 0, %s74
      %s76 = sphi 0, %s74
      %s77 = sphi 0, %s76
      %s91 = sphi 0, %s77
      %s97 = sphi 0, %s99
      %s100 = sphi 0, %s97
      %s101 = sphi 0, %s100
      %s117 = sphi 0, %s101
      %s123 = sphi 0, %s125
      %s126 = sphi 0, %s123
      %s127 = sphi 0, %s126
      %s143 = sphi 0, %s127
      %s149 = sphi 0, %s151
      %s152 = sphi 0, %s149
      %s153 = sphi 0, %s152
      %s169 = sphi 0, %s153
      %s175 = sphi 0, %s177
      %s178 = sphi 0, %s175
      %s179 = sphi 0, %s178
      %s195 = sphi 0, %s179
    $region4: #{tpu_custom_call.1} parent=1 // loop_header_branch
      %27 = sbr.rel (%p25) target = $region8
    $region5: #{tpu_custom_call.1} parent=1 // loop_body
      %s29 = ssub.s32 %s24, 1
      %s30 = ssub.s32 %s24, 2
      %s31 = sadd.s32 %s24, 1
      %s33 = sadd.s32 %s32, 1
      %p36 = scmp.eq.s32.totalorder %s24, 1
      %p37 = scmp.ne.s32.totalorder %s32, %s34
      %p38 = scmp.eq.s32.totalorder %s24, 0
      %p39 = por %p37, %p38
      %p40 = scmp.ne.s32.totalorder %s32, %s34
      %p41 = scmp.eq.s32.totalorder %s29, 1
      %p42 = por %p40, %p41
      %p43 = scmp.ne.s32.totalorder %s34, %s35
      %p44 = scmp.eq.s32.totalorder %s29, 0
      %p45 = por %p43, %p44
      %p46 = scmp.ne.s32.totalorder %s34, %s35
      %p47 = scmp.eq.s32.totalorder %s30, 1
      %p48 = por %p46, %p47
      %p50 = scmp.ne.s32.totalorder %s35, %s49
      %p51 = scmp.eq.s32.totalorder %s30, 0
      %p52 = por %p50, %p51
      %s54 = sadd.s32 %s53, 1
      %p57 = scmp.eq.s32.totalorder %s24, 1
      %p58 = scmp.ne.s32.totalorder %s53, %s55
      %p59 = scmp.eq.s32.totalorder %s24, 0
      %p60 = por %p58, %p59
      %p61 = scmp.ne.s32.totalorder %s53, %s55
      %p62 = scmp.eq.s32.totalorder %s29, 1
      %p63 = por %p61, %p62
      %p64 = scmp.ne.s32.totalorder %s55, %s56
      %p65 = scmp.eq.s32.totalorder %s29, 0
      %p66 = por %p64, %p65
      %p67 = scmp.ne.s32.totalorder %s55, %s56
      %p68 = scmp.eq.s32.totalorder %s30, 1
      %p69 = por %p67, %p68
      %p71 = scmp.ne.s32.totalorder %s56, %s70
      %p72 = scmp.eq.s32.totalorder %s30, 0
      %p73 = por %p71, %p72
      %s75 = sadd.s32 %s74, 1
      %p78 = scmp.eq.s32.totalorder %s24, 1
      %p79 = scmp.ne.s32.totalorder %s74, %s76
      %p80 = scmp.eq.s32.totalorder %s24, 0
      %p81 = por %p79, %p80
      %p82 = scmp.ne.s32.totalorder %s74, %s76
      %p83 = scmp.eq.s32.totalorder %s29, 1
      %p84 = por %p82, %p83
      %p85 = scmp.ne.s32.totalorder %s76, %s77
      %p86 = scmp.eq.s32.totalorder %s29, 0
      %p87 = por %p85, %p86
      %p88 = scmp.ne.s32.totalorder %s76, %s77
      %p89 = scmp.eq.s32.totalorder %s30, 1
      %p90 = por %p88, %p89
      %p92 = scmp.ne.s32.totalorder %s77, %s91
      %p93 = scmp.eq.s32.totalorder %s30, 0
      %p94 = por %p92, %p93
      %s95 = ssub.s32 %s24, %s31
      %p96 = scmp.eq.s32.totalorder %s95, 0
      %s98 = sadd.s32 %s97, 1
      %s99 = scalar_select %p96, %s97, %s98
      %p102 = pneg %p96
      %p103 = scmp.eq.s32.totalorder %s24, 1
      %p104 = por %p102, %p103
      %p105 = scmp.ne.s32.totalorder %s97, %s100
      %p106 = scmp.eq.s32.totalorder %s24, 0
      %p107 = por %p105, %p106
      %p108 = scmp.ne.s32.totalorder %s97, %s100
      %p109 = scmp.eq.s32.totalorder %s29, 1
      %p110 = por %p108, %p109
      %p111 = scmp.ne.s32.totalorder %s100, %s101
      %p112 = scmp.eq.s32.totalorder %s29, 0
      %p113 = por %p111, %p112
      %p114 = scmp.ne.s32.totalorder %s100, %s101
      %p115 = scmp.eq.s32.totalorder %s30, 1
      %p116 = por %p114, %p115
      %p118 = scmp.ne.s32.totalorder %s101, %s117
      %p119 = scmp.eq.s32.totalorder %s30, 0
      %p120 = por %p118, %p119
      %s121 = ssub.s32 %s24, %s31
      %p122 = scmp.eq.s32.totalorder %s121, 0
      %s124 = sadd.s32 %s123, 1
      %s125 = scalar_select %p122, %s123, %s124
      %p128 = pneg %p122
      %p129 = scmp.eq.s32.totalorder %s24, 1
      %p130 = por %p128, %p129
      %p131 = scmp.ne.s32.totalorder %s123, %s126
      %p132 = scmp.eq.s32.totalorder %s24, 0
      %p133 = por %p131, %p132
      %p134 = scmp.ne.s32.totalorder %s123, %s126
      %p135 = scmp.eq.s32.totalorder %s29, 1
      %p136 = por %p134, %p135
      %p137 = scmp.ne.s32.totalorder %s126, %s127
      %p138 = scmp.eq.s32.totalorder %s29, 0
      %p139 = por %p137, %p138
      %p140 = scmp.ne.s32.totalorder %s126, %s127
      %p141 = scmp.eq.s32.totalorder %s30, 1
      %p142 = por %p140, %p141
      %p144 = scmp.ne.s32.totalorder %s127, %s143
      %p145 = scmp.eq.s32.totalorder %s30, 0
      %p146 = por %p144, %p145
      %s147 = ssub.s32 %s24, %s31
      %p148 = scmp.eq.s32.totalorder %s147, 0
      %s150 = sadd.s32 %s149, 1
      %s151 = scalar_select %p148, %s149, %s150
      %p154 = pneg %p148
      %p155 = scmp.eq.s32.totalorder %s24, 1
      %p156 = por %p154, %p155
      %p157 = scmp.ne.s32.totalorder %s149, %s152
      %p158 = scmp.eq.s32.totalorder %s24, 0
      %p159 = por %p157, %p158
      %p160 = scmp.ne.s32.totalorder %s149, %s152
      %p161 = scmp.eq.s32.totalorder %s29, 1
      %p162 = por %p160, %p161
      %p163 = scmp.ne.s32.totalorder %s152, %s153
      %p164 = scmp.eq.s32.totalorder %s29, 0
      %p165 = por %p163, %p164
      %p166 = scmp.ne.s32.totalorder %s152, %s153
      %p167 = scmp.eq.s32.totalorder %s30, 1
      %p168 = por %p166, %p167
      %p170 = scmp.ne.s32.totalorder %s153, %s169
      %p171 = scmp.eq.s32.totalorder %s30, 0
      %p172 = por %p170, %p171
      %s173 = ssub.s32 %s24, %s31
      %p174 = scmp.eq.s32.totalorder %s173, 0
      %s176 = sadd.s32 %s175, 1
      %s177 = scalar_select %p174, %s175, %s176
      %p180 = pneg %p174
      %p181 = scmp.eq.s32.totalorder %s24, 1
      %p182 = por %p180, %p181
      %p183 = scmp.ne.s32.totalorder %s175, %s178
      %p184 = scmp.eq.s32.totalorder %s24, 0
      %p185 = por %p183, %p184
      %p186 = scmp.ne.s32.totalorder %s175, %s178
      %p187 = scmp.eq.s32.totalorder %s29, 1
      %p188 = por %p186, %p187
      %p189 = scmp.ne.s32.totalorder %s178, %s179
      %p190 = scmp.eq.s32.totalorder %s29, 0
      %p191 = por %p189, %p190
      %p192 = scmp.ne.s32.totalorder %s178, %s179
      %p193 = scmp.eq.s32.totalorder %s30, 1
      %p194 = por %p192, %p193
      %p196 = scmp.ne.s32.totalorder %s179, %s195
      %p197 = scmp.eq.s32.totalorder %s30, 0
      %p198 = por %p196, %p197
      %p199 = scmp.le.s32.totalorder 1, %s24
      %p200 = scmp.lt.s32.totalorder %s24, 3
      %p201 = pnand %p199, %p200
      %p202 = pneg %p201
      // Predicated region
      $region9: #{tpu_custom_call.1} parent=5 // pred_check
        _
      $region10: #{tpu_custom_call.1} parent=5 // pred_check_branch
        %204 = sbr.rel (%p201) target = $region12
      $region11: #{tpu_custom_call.1} parent=5 // pred_region
        %s205 = ssub.s32 %s24, 1
        // Predicated region
        $region13: #{tpu_custom_call.1} parent=11 // pred_check
          %p206 = pneg %p45
        $region14: #{tpu_custom_call.1} parent=11 // pred_check_branch
          %208 = sbr.rel (%p206) target = $region16
        $region15: #{tpu_custom_call.1} parent=11 // pred_region
          %s210 = ssub.s32 16, 16
          %211 = vsyncadd [#allocation5], %s210
          %s213 = sshll.u32 %s0, 4
          %s214 = int_to_ptr.vmem [resolvable:$true] %s213
          %216 = dma.vmem_to_smem %s214, 16, [#allocation2], [#allocation5]
        $region16: #{tpu_custom_call.1} parent=11 // pred_fallthru
          _
        // Predicated region
        $region17: #{tpu_custom_call.1} parent=11 // pred_check
          %p217 = pneg %p66
        $region18: #{tpu_custom_call.1} parent=11 // pred_check_branch
          %219 = sbr.rel (%p217) target = $region20
        $region19: #{tpu_custom_call.1} parent=11 // pred_region
          _
        $region20: #{tpu_custom_call.1} parent=11 // pred_fallthru
          _
        // Predicated region
        $region21: #{tpu_custom_call.1} parent=11 // pred_check
          %p220 = pneg %p87
        $region22: #{tpu_custom_call.1} parent=11 // pred_check_branch
          %222 = sbr.rel (%p220) target = $region24
        $region23: #{tpu_custom_call.1} parent=11 // pred_region
          %s224 = ssub.s32 1280, 1280
          %225 = vsyncadd [#allocation3], %s224
          %s226 = sshll.u32 [#allocation6], 4
          %s227 = int_to_ptr.vmem [resolvable:$true] %s226
          %232 = dma.hbm_to_vmem [thread:$0]  %s2, 1280, %s227, [#allocation3], 128, 128, 8
        $region24: #{tpu_custom_call.1} parent=11 // pred_fallthru
          _
      $region12: #{tpu_custom_call.1} parent=5 // pred_fallthru
        _
      %p233 = scmp.lt.s32.totalorder %s24, 2
      // Predicated region
      $region25: #{tpu_custom_call.1} parent=5 // pred_check
        %p234 = pneg %p233
      $region26: #{tpu_custom_call.1} parent=5 // pred_check_branch
        %236 = sbr.rel (%p234) target = $region28
      $region27: #{tpu_custom_call.1} parent=5 // pred_region
        // Predicated region
        $region29: #{tpu_custom_call.1} parent=27 // pred_check
          %p237 = pneg %p107
        $region30: #{tpu_custom_call.1} parent=27 // pred_check_branch
          %239 = sbr.rel (%p237) target = $region32
        $region31: #{tpu_custom_call.1} parent=27 // pred_region
          %s240 = sand.u32 %s24, 1
          %s241 = scalar_lea.sflag [#allocation8], %s240
          %s242 = sand.u32 %s97, 1
          %s243 = smul.addr %s242, 48
          %s244 = scalar_lea.vmem [#allocation7], %s243
          %s246 = ssub.s32 768, 768
          %247 = vsyncadd %s241, %s246
          %s248 = smul.addr %s24, 6
          %s249 = smul.addr %s248, 128
          %s250 = scalar_lea.hbm %s3, %s249
          %s251 = sshll.u32 %s244, 4
          %s252 = int_to_ptr.vmem [resolvable:$true] %s251
          %257 = dma.hbm_to_vmem [thread:$0]  %s250, 768, %s252, %s241, 128, 128, 8
        $region32: #{tpu_custom_call.1} parent=27 // pred_fallthru
          _
        // Predicated region
        $region33: #{tpu_custom_call.1} parent=27 // pred_check
          %p258 = pneg %p133
        $region34: #{tpu_custom_call.1} parent=27 // pred_check_branch
          %260 = sbr.rel (%p258) target = $region36
        $region35: #{tpu_custom_call.1} parent=27 // pred_region
          %s261 = sand.u32 %s24, 1
          %s262 = scalar_lea.sflag [#allocation8], %s261
          %s263 = sand.u32 %s123, 1
          %s264 = smul.addr %s263, 48
          %s265 = scalar_lea.vmem [#allocation9], %s264
          %s267 = ssub.s32 768, 768
          %268 = vsyncadd %s262, %s267
          %s269 = smul.addr %s24, 6
          %s270 = smul.addr %s269, 128
          %s271 = scalar_lea.hbm %s4, %s270
          %s272 = sshll.u32 %s265, 4
          %s273 = int_to_ptr.vmem [resolvable:$true] %s272
          %278 = dma.hbm_to_vmem [thread:$0]  %s271, 768, %s273, %s262, 128, 128, 8
        $region36: #{tpu_custom_call.1} parent=27 // pred_fallthru
          _
      $region28: #{tpu_custom_call.1} parent=5 // pred_fallthru
        _
      %p279 = scmp.le.s32.totalorder 1, %s24
      %p280 = scmp.lt.s32.totalorder %s24, 3
      %p281 = pnand %p279, %p280
      %p282 = pneg %p281
      // Predicated region
      $region37: #{tpu_custom_call.1} parent=5 // pred_check
        _
      $region38: #{tpu_custom_call.1} parent=5 // pred_check_branch
        %284 = sbr.rel (%p281) target = $region40
      $region39: #{tpu_custom_call.1} parent=5 // pred_region
        %s285 = ssub.s32 %s24, 1
        // Predicated region
        $region41: #{tpu_custom_call.1} parent=39 // pred_check
          %p286 = pneg %p45
        $region42: #{tpu_custom_call.1} parent=39 // pred_check_branch
          %288 = sbr.rel (%p286) target = $region44
        $region43: #{tpu_custom_call.1} parent=39 // pred_region
          %289 = dma.done [#allocation5], 16
        $region44: #{tpu_custom_call.1} parent=39 // pred_fallthru
          _
        // Predicated region
        $region45: #{tpu_custom_call.1} parent=39 // pred_check
          %p290 = pneg %p87
        $region46: #{tpu_custom_call.1} parent=39 // pred_check_branch
          %292 = sbr.rel (%p290) target = $region48
        $region47: #{tpu_custom_call.1} parent=39 // pred_region
          %293 = dma.done [#allocation3], 1280
        $region48: #{tpu_custom_call.1} parent=39 // pred_fallthru
          _
        %s294 = sand.u32 %s29, 1
        %s295 = scalar_lea.sflag [#allocation8], %s294
        %s296 = sand.u32 %s100, 1
        %s297 = smul.addr %s296, 48
        %s298 = scalar_lea.vmem [#allocation7], %s297
        // Predicated region
        $region49: #{tpu_custom_call.1} parent=39 // pred_check
          %p299 = pneg %p113
        $region50: #{tpu_custom_call.1} parent=39 // pred_check_branch
          %301 = sbr.rel (%p299) target = $region52
        $region51: #{tpu_custom_call.1} parent=39 // pred_region
          %302 = dma.done %s295, 768
        $region52: #{tpu_custom_call.1} parent=39 // pred_fallthru
          _
        %s303 = sand.u32 %s29, 1
        %s304 = scalar_lea.sflag [#allocation8], %s303
        %s305 = sand.u32 %s126, 1
        %s306 = smul.addr %s305, 48
        %s307 = scalar_lea.vmem [#allocation9], %s306
        // Predicated region
        $region53: #{tpu_custom_call.1} parent=39 // pred_check
          %p308 = pneg %p139
        $region54: #{tpu_custom_call.1} parent=39 // pred_check_branch
          %310 = sbr.rel (%p308) target = $region56
        $region55: #{tpu_custom_call.1} parent=39 // pred_region
          %311 = dma.done %s304, 768
        $region56: #{tpu_custom_call.1} parent=39 // pred_fallthru
          _
        %312 = sfence
        %p313 = pneg %p45
        %p314 = pneg %p42
        %p315 = pneg %p66
        %p316 = pneg %p63
        %p317 = pneg %p87
        %p318 = pneg %p84
        %s319 = sand.u32 %s29, 1
        %s320 = scalar_lea.sflag [#allocation8], %s319
        %s321 = sand.u32 %s100, 1
        %s322 = smul.addr %s321, 48
        %s323 = scalar_lea.vmem [#allocation7], %s322
        %p324 = pneg %p113
        %p325 = pneg %p110
        %s326 = sand.u32 %s29, 1
        %s327 = scalar_lea.sflag [#allocation8], %s326
        %s328 = sand.u32 %s126, 1
        %s329 = smul.addr %s328, 48
        %s330 = scalar_lea.vmem [#allocation9], %s329
        %p331 = pneg %p139
        %p332 = pneg %p136
        %p333 = pneg %p165
        %p334 = pneg %p162
        %s335 = sand.u32 %s152, 1
        %s336 = scalar_lea.sflag [#allocation4], %s335
        %s337 = sand.u32 %s152, 1
        %s338 = smul.addr %s337, 8
        %s339 = scalar_lea.vmem [#allocation10], %s338
        %p340 = pneg %p191
        %p341 = pneg %p188
        %s342 = sand.u32 %s178, 1
        %s343 = scalar_lea.sflag [#allocation12], %s342
        %s344 = sand.u32 %s178, 1
        %s345 = smul.addr %s344, 8
        %s346 = scalar_lea.vmem [#allocation11], %s345
        %s347 = sld [smem:[#allocation2]]
        %s348 = sld [smem:[#allocation2 + $0x1]]
        %v349 = vld [vmem:[%s298] sm:$0xff]
        %v350 = vld [vmem:[%s298 + $0x8] sm:$0xff]
        %v351 = vld [vmem:[%s307] sm:$0xff]
        %v352 = vld [vmem:[%s307 + $0x8] sm:$0xff]
        %v353 = vmul.f32 %v349, %v349
        %v354 = vmul.f32 %v350, %v350
        %v355 = vmul.f32 %v351, %v351
        %v356 = vmul.f32 %v352, %v352
        %v357 = vmul.f32 %v349, %v351
        %v358 = vmul.f32 %v350, %v352
        %s359 = scalar_lea.vmem %s298, 16 [#allocation7]
        %v360 = vld [vmem:[%s359] sm:$0xff]
        %v361 = vld [vmem:[%s359 + $0x8] sm:$0xff]
        %s362 = scalar_lea.vmem %s307, 16 [#allocation9]
        %v363 = vld [vmem:[%s362] sm:$0xff]
        %v364 = vld [vmem:[%s362 + $0x8] sm:$0xff]
        %v365 = vadd.f32 %v349, %v360
        %v366 = vadd.f32 %v350, %v361
        %v367 = vadd.f32 %v351, %v363
        %v368 = vadd.f32 %v352, %v364
        %v369 = vmul.f32 %v360, %v360
        %v370 = vmul.f32 %v361, %v361
        %v371 = vadd.f32 %v353, %v369
        %v372 = vadd.f32 %v354, %v370
        %v373 = vmul.f32 %v363, %v363
        %v374 = vmul.f32 %v364, %v364
        %v375 = vadd.f32 %v355, %v373
        %v376 = vadd.f32 %v356, %v374
        %v377 = vmul.f32 %v360, %v363
        %v378 = vmul.f32 %v361, %v364
        %v379 = vadd.f32 %v357, %v377
        %v380 = vadd.f32 %v358, %v378
        %s381 = scalar_lea.vmem %s298, 32 [#allocation7]
        %v382 = vld [vmem:[%s381] sm:$0xff]
        %v383 = vld [vmem:[%s381 + $0x8] sm:$0xff]
        %s384 = scalar_lea.vmem %s307, 32 [#allocation9]
        %v385 = vld [vmem:[%s384] sm:$0xff]
        %v386 = vld [vmem:[%s384 + $0x8] sm:$0xff]
        %v387 = vadd.f32 %v365, %v382
        %v388 = vadd.f32 %v366, %v383
        %v389 = vadd.f32 %v367, %v385
        %v390 = vadd.f32 %v368, %v386
        %v391 = vmul.f32 %v382, %v382
        %v392 = vmul.f32 %v383, %v383
        %v393 = vadd.f32 %v371, %v391
        %v394 = vadd.f32 %v372, %v392
        %v395 = vmul.f32 %v385, %v385
        %v396 = vmul.f32 %v386, %v386
        %v397 = vadd.f32 %v375, %v395
        %v398 = vadd.f32 %v376, %v396
        %v399 = vmul.f32 %v382, %v385
        %v400 = vmul.f32 %v383, %v386
        %v401 = vadd.f32 %v379, %v399
        %v402 = vadd.f32 %v380, %v400
        %v403 = vld [vmem:[%s1] sm:$0xff]
        %v404 = vld [vmem:[%s1 + $0x8] sm:$0xff]
        %v405 = vld [vmem:[%s1 + $0x10] sm:$0xff]
        %v406 = vld [vmem:[%s1 + $0x18] sm:$0xff]
        %v407 = vld [vmem:[%s1 + $0x20] sm:$0xff]
        %vm408 = vcmask 130048
        %v410 = vsel %vm408, %v403, 0
        %v413 = vsel %vm408, %v404, 0
        %v416 = vsel %vm408, %v405, 0
        %v419 = vsel %vm408, %v406, 0
        %v422 = vsel %vm408, %v407, 0
        %424 = vmatprep.subr.mxu0 0.0
        %v425 = vand.u32 %v387, 4294901760
        %426 = vmatpush1.msra.mxu0 %v425
        %427 = vmatprep.subr.mxu0 0.0
        %v428 = vand.u32 %v388, 4294901760
        %429 = vmatpush1.msra.mxu0 %v428
        %430 = vmatprep.subr.mxu0 0.0
        %431 = vmatpush1.msra.mxu0 0.0
        %432 = vmatprep.subr.mxu0 0.0
        %433 = vmatpush1.msra.mxu0 0.0
        %434 = vmatprep.subr.mxu0 0.0
        %435 = vmatpush1.msra.mxu0 0.0
        %436 = vmatprep.subr.mxu0 0.0
        %437 = vmatpush1.msra.mxu0 0.0
        %438 = vmatprep.subr.mxu0 0.0
        %439 = vmatpush1.msra.mxu0 0.0
        %440 = vmatprep.subr.mxu0 0.0
        %441 = vmatpush1.msra.mxu0 0.0
        %442 = vmatprep.subr.mxu0 0.0
        %443 = vmatpush1.msra.mxu0 0.0
        %444 = vmatprep.subr.mxu0 0.0
        %445 = vmatpush1.msra.mxu0 0.0
        %446 = vmatprep.subr.mxu0 0.0
        %447 = vmatpush1.msra.mxu0 0.0
        %448 = vmatprep.subr.mxu0 0.0
        %449 = vmatpush1.msra.mxu0 0.0
        %450 = vmatprep.subr.mxu0 0.0
        %451 = vmatpush1.msra.mxu0 0.0
        %452 = vmatprep.subr.mxu0 0.0
        %453 = vmatpush1.msra.mxu0 0.0
        %454 = vmatprep.subr.mxu0 0.0
        %455 = vmatpush1.msra.mxu0 0.0
        %456 = vmatprep.subr.mxu0 0.0
        %457 = vmatpush1.msra.mxu0 0.0
        %458 = vmatprep.subr.mxu0 0.0
        %459 = vmatpush1.msra.mxu0 0.0
        %460 = vmatprep.subr.mxu0 0.0
        %461 = vmatpush1.msra.mxu0 0.0
        %462 = vmatprep.subr.mxu0 0.0
        %463 = vmatpush1.msra.mxu0 0.0
        %464 = vmatprep.subr.mxu0 0.0
        %465 = vmatpush1.msra.mxu0 0.0
        %466 = vmatprep.subr.mxu0 0.0
        %467 = vmatpush1.msra.mxu0 0.0
        %468 = vmatprep.subr.mxu0 0.0
        %469 = vmatpush1.msra.mxu0 0.0
        %470 = vmatprep.subr.mxu0 0.0
        %471 = vmatpush1.msra.mxu0 0.0
        %472 = vmatprep.subr.mxu0 0.0
        %473 = vmatpush1.msra.mxu0 0.0
        %474 = vmatprep.subr.mxu0 0.0
        %475 = vmatpush1.msra.mxu0 0.0
        %476 = vmatprep.subr.mxu0 0.0
        %477 = vmatpush1.msra.mxu0 0.0
        %478 = vmatprep.subr.mxu0 0.0
        %479 = vmatpush1.msra.mxu0 0.0
        %480 = vmatprep.subr.mxu0 0.0
        %481 = vmatpush1.msra.mxu0 0.0
        %482 = vmatprep.subr.mxu0 0.0
        %483 = vmatpush1.msra.mxu0 0.0
        %484 = vmatprep.subr.mxu0 0.0
        %485 = vmatpush1.msra.mxu0 0.0
        %486 = vmatprep.subr.mxu0 0.0
        %487 = vmatpush1.msra.mxu0 0.0
        %488 = vmatprep.subr.mxu0 0.0
        %489 = vmatpush1.msra.mxu0 0.0
        %490 = vmatprep.mubr.f32.mxu0 0.0
        %v491 = vand.u32 %v410, 4294901760
        %v492 = vsub.f32 %v410, %v491
        %v493 = vand.u32 %v492, 4294901760
        %v494 = vsub.f32 %v492, %v493
        %v495 = vand.u32 %v494, 4294901760
        %496 = vmatmul.mubr.f32.gmra.mrb[0].mxu0 %v495
        %v497 = vpop.f32.mrb[0].mxu0
        %v498 = vadd.f32 0.0, %v497
        %v499 = vpop.f32.mrb[0].mxu0
        %500 = vmatprep.mubr.f32.mxu0 0.0
        %v501 = vand.u32 %v413, 4294901760
        %v502 = vsub.f32 %v413, %v501
        %v503 = vand.u32 %v502, 4294901760
        %v504 = vsub.f32 %v502, %v503
        %v505 = vand.u32 %v504, 4294901760
        %506 = vmatmul.mubr.f32.gmra.mrb[0].mxu0 %v505
        %v507 = vpop.f32.mrb[0].mxu0
        %v508 = vadd.f32 0.0, %v507
        %v509 = vpop.f32.mrb[0].mxu0
        %510 = vmatprep.mubr.f32.mxu0 0.0
        %v511 = vand.u32 %v416, 4294901760
        %v512 = vsub.f32 %v416, %v511
        %v513 = vand.u32 %v512, 4294901760
        %v514 = vsub.f32 %v512, %v513
        %v515 = vand.u32 %v514, 4294901760
        %516 = vmatmul.mubr.f32.gmra.mrb[0].mxu0 %v515
        %v517 = vpop.f32.mrb[0].mxu0
        %v518 = vadd.f32 0.0, %v517
        %v519 = vpop.f32.mrb[0].mxu0
        %520 = vmatprep.mubr.f32.mxu0 0.0
        %v521 = vand.u32 %v419, 4294901760
        %v522 = vsub.f32 %v419, %v521
        %v523 = vand.u32 %v522, 4294901760
        %v524 = vsub.f32 %v522, %v523
        %v525 = vand.u32 %v524, 4294901760
        %526 = vmatmul.mubr.f32.gmra.mrb[0].mxu0 %v525
        %v527 = vpop.f32.mrb[0].mxu0
        %v528 = vadd.f32 0.0, %v527
        %v529 = vpop.f32.mrb[0].mxu0
        %530 = vmatprep.mubr.f32.mxu0 0.0
        %v531 = vand.u32 %v422, 4294901760
        %v532 = vsub.f32 %v422, %v531
        %v533 = vand.u32 %v532, 4294901760
        %v534 = vsub.f32 %v532, %v533
        %v535 = vand.u32 %v534, 4294901760
        %536 = vmatmul.mubr.f32.gmra.mrb[0].mxu0 %v535
        %v537 = vpop.f32.mrb[0].mxu0
        %v538 = vadd.f32 0.0, %v537
        %v539 = vpop.f32.mrb[0].mxu0
        %540 = vdwg.mxu0
        %541 = vmatprep.subr.mxu0 0.0
        %v542 = vand.u32 %v387, 4294901760
        %v543 = vsub.f32 %v387, %v542
        %v544 = vand.u32 %v543, 4294901760
        %v545 = vsub.f32 %v543, %v544
        %v546 = vand.u32 %v545, 4294901760
        %547 = vmatpush1.msra.mxu0 %v546
        %548 = vmatprep.subr.mxu0 0.0
        %v549 = vand.u32 %v388, 4294901760
        %v550 = vsub.f32 %v388, %v549
        %v551 = vand.u32 %v550, 4294901760
        %v552 = vsub.f32 %v550, %v551
        %v553 = vand.u32 %v552, 4294901760
        %554 = vmatpush1.msra.mxu0 %v553
        %555 = vmatprep.subr.mxu0 0.0
        %556 = vmatpush1.msra.mxu0 0.0
        %557 = vmatprep.subr.mxu0 0.0
        %558 = vmatpush1.msra.mxu0 0.0
        %559 = vmatprep.subr.mxu0 0.0
        %560 = vmatpush1.msra.mxu0 0.0
        %561 = vmatprep.subr.mxu0 0.0
        %562 = vmatpush1.msra.mxu0 0.0
        %563 = vmatprep.subr.mxu0 0.0
        %564 = vmatpush1.msra.mxu0 0.0
        %565 = vmatprep.subr.mxu0 0.0
        %566 = vmatpush1.msra.mxu0 0.0
        %567 = vmatprep.subr.mxu0 0.0
        %568 = vmatpush1.msra.mxu0 0.0
        %569 = vmatprep.subr.mxu0 0.0
        %570 = vmatpush1.msra.mxu0 0.0
        %571 = vmatprep.subr.mxu0 0.0
        %572 = vmatpush1.msra.mxu0 0.0
        %573 = vmatprep.subr.mxu0 0.0
        %574 = vmatpush1.msra.mxu0 0.0
        %575 = vmatprep.subr.mxu0 0.0
        %576 = vmatpush1.msra.mxu0 0.0
        %577 = vmatprep.subr.mxu0 0.0
        %578 = vmatpush1.msra.mxu0 0.0
        %579 = vmatprep.subr.mxu0 0.0
        %580 = vmatpush1.msra.mxu0 0.0
        %581 = vmatprep.subr.mxu0 0.0
        %582 = vmatpush1.msra.mxu0 0.0
        %583 = vmatprep.subr.mxu0 0.0
        %584 = vmatpush1.msra.mxu0 0.0
        %585 = vmatprep.subr.mxu0 0.0
        %586 = vmatpush1.msra.mxu0 0.0
        %587 = vmatprep.subr.mxu0 0.0
        %588 = vmatpush1.msra.mxu0 0.0
        %589 = vmatprep.subr.mxu0 0.0
        %590 = vmatpush1.msra.mxu0 0.0
        %591 = vmatprep.subr.mxu0 0.0
        %592 = vmatpush1.msra.mxu0 0.0
        %593 = vmatprep.subr.mxu0 0.0
        %594 = vmatpush1.msra.mxu0 0.0
        %595 = vmatprep.subr.mxu0 0.0
        %596 = vmatpush1.msra.mxu0 0.0
        %597 = vmatprep.subr.mxu0 0.0
        %598 = vmatpush1.msra.mxu0 0.0
        %599 = vmatprep.subr.mxu0 0.0
        %600 = vmatpush1.msra.mxu0 0.0
        %601 = vmatprep.subr.mxu0 0.0
        %602 = vmatpush1.msra.mxu0 0.0
        %603 = vmatprep.subr.mxu0 0.0
        %604 = vmatpush1.msra.mxu0 0.0
        %605 = vmatprep.subr.mxu0 0.0
        %606 = vmatpush1.msra.mxu0 0.0
        %607 = vmatprep.subr.mxu0 0.0
        %608 = vmatpush1.msra.mxu0 0.0
        %609 = vmatprep.subr.mxu0 0.0
        %610 = vmatpush1.msra.mxu0 0.0
        %611 = vmatprep.subr.mxu0 0.0
        %612 = vmatpush1.msra.mxu0 0.0
        %613 = vmatprep.subr.mxu0 0.0
        %614 = vmatpush1.msra.mxu0 0.0
        %615 = vmatprep.mubr.f32.mxu0 0.0
        %v616 = vand.u32 %v410, 4294901760
        %617 = vmatmul.mubr.f32.gmra.mrb[0].mxu0 %v616
        %v618 = vpop.f32.mrb[0].mxu0
        %v619 = vadd.f32 %v498, %v618
        %v620 = vpop.f32.mrb[0].mxu0
        %621 = vmatprep.mubr.f32.mxu0 0.0
        %v622 = vand.u32 %v413, 4294901760
        %623 = vmatmul.mubr.f32.gmra.mrb[0].mxu0 %v622
        %v624 = vpop.f32.mrb[0].mxu0
        %v625 = vadd.f32 %v508, %v624
        %v626 = vpop.f32.mrb[0].mxu0
        %627 = vmatprep.mubr.f32.mxu0 0.0
        %v628 = vand.u32 %v416, 4294901760
        %629 = vmatmul.mubr.f32.gmra.mrb[0].mxu0 %v628
        %v630 = vpop.f32.mrb[0].mxu0
        %v631 = vadd.f32 %v518, %v630
        %v632 = vpop.f32.mrb[0].mxu0
        %633 = vmatprep.mubr.f32.mxu0 0.0
        %v634 = vand.u32 %v419, 4294901760
        %635 = vmatmul.mubr.f32.gmra.mrb[0].mxu0 %v634
        %v636 = vpop.f32.mrb[0].mxu0
        %v637 = vadd.f32 %v528, %v636
        %v638 = vpop.f32.mrb[0].mxu0
        %639 = vmatprep.mubr.f32.mxu0 0.0
        %v640 = vand.u32 %v422, 4294901760
        %641 = vmatmul.mubr.f32.gmra.mrb[0].mxu0 %v640
        %v642 = vpop.f32.mrb[0].mxu0
        %v643 = vadd.f32 %v538, %v642
        %v644 = vpop.f32.mrb[0].mxu0
        %645 = vdwg.mxu0
        %646 = vmatprep.subr.mxu0 0.0
        %v647 = vand.u32 %v387, 4294901760
        %v648 = vsub.f32 %v387, %v647
        %649 = vmatpush1.msra.mxu0 %v648
        %650 = vmatprep.subr.mxu0 0.0
        %v651 = vand.u32 %v388, 4294901760
        %v652 = vsub.f32 %v388, %v651
        %653 = vmatpush1.msra.mxu0 %v652
        %654 = vmatprep.subr.mxu0 0.0
        %655 = vmatpush1.msra.mxu0 0.0
        %656 = vmatprep.subr.mxu0 0.0
        %657 = vmatpush1.msra.mxu0 0.0
        %658 = vmatprep.subr.mxu0 0.0
        %659 = vmatpush1.msra.mxu0 0.0
        %660 = vmatprep.subr.mxu0 0.0
        %661 = vmatpush1.msra.mxu0 0.0
        %662 = vmatprep.subr.mxu0 0.0
        %663 = vmatpush1.msra.mxu0 0.0
        %664 = vmatprep.subr.mxu0 0.0
        %665 = vmatpush1.msra.mxu0 0.0
        %666 = vmatprep.subr.mxu0 0.0
        %667 = vmatpush1.msra.mxu0 0.0
        %668 = vmatprep.subr.mxu0 0.0
        %669 = vmatpush1.msra.mxu0 0.0
        %670 = vmatprep.subr.mxu0 0.0
        %671 = vmatpush1.msra.mxu0 0.0
        %672 = vmatprep.subr.mxu0 0.0
        %673 = vmatpush1.msra.mxu0 0.0
        %674 = vmatprep.subr.mxu0 0.0
        %675 = vmatpush1.msra.mxu0 0.0
        %676 = vmatprep.subr.mxu0 0.0
        %677 = vmatpush1.msra.mxu0 0.0
        %678 = vmatprep.subr.mxu0 0.0
        %679 = vmatpush1.msra.mxu0 0.0
        %680 = vmatprep.subr.mxu0 0.0
        %681 = vmatpush1.msra.mxu0 0.0
        %682 = vmatprep.subr.mxu0 0.0
        %683 = vmatpush1.msra.mxu0 0.0
        %684 = vmatprep.subr.mxu0 0.0
        %685 = vmatpush1.msra.mxu0 0.0
        %686 = vmatprep.subr.mxu0 0.0
        %687 = vmatpush1.msra.mxu0 0.0
        %688 = vmatprep.subr.mxu0 0.0
        %689 = vmatpush1.msra.mxu0 0.0
        %690 = vmatprep.subr.mxu0 0.0
        %691 = vmatpush1.msra.mxu0 0.0
        %692 = vmatprep.subr.mxu0 0.0
        %693 = vmatpush1.msra.mxu0 0.0
        %694 = vmatprep.subr.mxu0 0.0
        %695 = vmatpush1.msra.mxu0 0.0
        %696 = vmatprep.subr.mxu0 0.0
        %697 = vmatpush1.msra.mxu0 0.0
        %698 = vmatprep.subr.mxu0 0.0
        %699 = vmatpush1.msra.mxu0 0.0
        %700 = vmatprep.subr.mxu0 0.0
        %701 = vmatpush1.msra.mxu0 0.0
        %702 = vmatprep.subr.mxu0 0.0
        %703 = vmatpush1.msra.mxu0 0.0
        %704 = vmatprep.subr.mxu0 0.0
        %705 = vmatpush1.msra.mxu0 0.0
        %706 = vmatprep.subr.mxu0 0.0
        %707 = vmatpush1.msra.mxu0 0.0
        %708 = vmatprep.subr.mxu0 0.0
        %709 = vmatpush1.msra.mxu0 0.0
        %710 = vmatprep.subr.mxu0 0.0
        %711 = vmatpush1.msra.mxu0 0.0
        %712 = vmatprep.subr.mxu0 0.0
        %713 = vmatpush1.msra.mxu0 0.0
        %714 = vmatprep.mubr.f32.mxu0 0.0
        %v715 = vand.u32 %v410, 4294901760
        %v716 = vsub.f32 %v410, %v715
        %717 = vmatmul.mubr.f32.gmra.mrb[0].mxu0 %v716
        %v718 = vpop.f32.mrb[0].mxu0
        %v719 = vadd.f32 %v619, %v718
        %v720 = vpop.f32.mrb[0].mxu0
        %721 = vmatprep.mubr.f32.mxu0 0.0
        %v722 = vand.u32 %v413, 4294901760
        %v723 = vsub.f32 %v413, %v722
        %724 = vmatmul.mubr.f32.gmra.mrb[0].mxu0 %v723
        %v725 = vpop.f32.mrb[0].mxu0
        %v726 = vadd.f32 %v625, %v725
        %v727 = vpop.f32.mrb[0].mxu0
        %728 = vmatprep.mubr.f32.mxu0 0.0
        %v729 = vand.u32 %v416, 4294901760
        %v730 = vsub.f32 %v416, %v729
        %731 = vmatmul.mubr.f32.gmra.mrb[0].mxu0 %v730
        %v732 = vpop.f32.mrb[0].mxu0
        %v733 = vadd.f32 %v631, %v732
        %v734 = vpop.f32.mrb[0].mxu0
        %735 = vmatprep.mubr.f32.mxu0 0.0
        %v736 = vand.u32 %v419, 4294901760
        %v737 = vsub.f32 %v419, %v736
        %738 = vmatmul.mubr.f32.gmra.mrb[0].mxu0 %v737
        %v739 = vpop.f32.mrb[0].mxu0
        %v740 = vadd.f32 %v637, %v739
        %v741 = vpop.f32.mrb[0].mxu0
        %742 = vmatprep.mubr.f32.mxu0 0.0
        %v743 = vand.u32 %v422, 4294901760
        %v744 = vsub.f32 %v422, %v743
        %745 = vmatmul.mubr.f32.gmra.mrb[0].mxu0 %v744
        %v746 = vpop.f32.mrb[0].mxu0
        %v747 = vadd.f32 %v643, %v746
        %v748 = vpop.f32.mrb[0].mxu0
        %749 = vdwg.mxu0
        %750 = vmatprep.subr.mxu0 0.0
        %v751 = vand.u32 %v387, 4294901760
        %752 = vmatpush1.msra.mxu0 %v751
        %753 = vmatprep.subr.mxu0 0.0
        %v754 = vand.u32 %v388, 4294901760
        %755 = vmatpush1.msra.mxu0 %v754
        %756 = vmatprep.subr.mxu0 0.0
        %757 = vmatpush1.msra.mxu0 0.0
        %758 = vmatprep.subr.mxu0 0.0
        %759 = vmatpush1.msra.mxu0 0.0
        %760 = vmatprep.subr.mxu0 0.0
        %761 = vmatpush1.msra.mxu0 0.0
        %762 = vmatprep.subr.mxu0 0.0
        %763 = vmatpush1.msra.mxu0 0.0
        %764 = vmatprep.subr.mxu0 0.0
        %765 = vmatpush1.msra.mxu0 0.0
        %766 = vmatprep.subr.mxu0 0.0
        %767 = vmatpush1.msra.mxu0 0.0
        %768 = vmatprep.subr.mxu0 0.0
        %769 = vmatpush1.msra.mxu0 0.0
        %770 = vmatprep.subr.mxu0 0.0
        %771 = vmatpush1.msra.mxu0 0.0
        %772 = vmatprep.subr.mxu0 0.0
        %773 = vmatpush1.msra.mxu0 0.0
        %774 = vmatprep.subr.mxu0 0.0
        %775 = vmatpush1.msra.mxu0 0.0
        %776 = vmatprep.subr.mxu0 0.0
        %777 = vmatpush1.msra.mxu0 0.0
        %778 = vmatprep.subr.mxu0 0.0
        %779 = vmatpush1.msra.mxu0 0.0
        %780 = vmatprep.subr.mxu0 0.0
        %781 = vmatpush1.msra.mxu0 0.0
        %782 = vmatprep.subr.mxu0 0.0
        %783 = vmatpush1.msra.mxu0 0.0
        %784 = vmatprep.subr.mxu0 0.0
        %785 = vmatpush1.msra.mxu0 0.0
        %786 = vmatprep.subr.mxu0 0.0
        %787 = vmatpush1.msra.mxu0 0.0
        %788 = vmatprep.subr.mxu0 0.0
        %789 = vmatpush1.msra.mxu0 0.0
        %790 = vmatprep.subr.mxu0 0.0
        %791 = vmatpush1.msra.mxu0 0.0
        %792 = vmatprep.subr.mxu0 0.0
        %793 = vmatpush1.msra.mxu0 0.0
        %794 = vmatprep.subr.mxu0 0.0
        %795 = vmatpush1.msra.mxu0 0.0
        %796 = vmatprep.subr.mxu0 0.0
        %797 = vmatpush1.msra.mxu0 0.0
        %798 = vmatprep.subr.mxu0 0.0
        %799 = vmatpush1.msra.mxu0 0.0
        %800 = vmatprep.subr.mxu0 0.0
        %801 = vmatpush1.msra.mxu0 0.0
        %802 = vmatprep.subr.mxu0 0.0
        %803 = vmatpush1.msra.mxu0 0.0
        %804 = vmatprep.subr.mxu0 0.0
        %805 = vmatpush1.msra.mxu0 0.0
        %806 = vmatprep.subr.mxu0 0.0
        %807 = vmatpush1.msra.mxu0 0.0
        %808 = vmatprep.subr.mxu0 0.0
        %809 = vmatpush1.msra.mxu0 0.0
        %810 = vmatprep.subr.mxu0 0.0
        %811 = vmatpush1.msra.mxu0 0.0
        %812 = vmatprep.subr.mxu0 0.0
        %813 = vmatpush1.msra.mxu0 0.0
        %814 = vmatprep.subr.mxu0 0.0
        %815 = vmatpush1.msra.mxu0 0.0
        %816 = vmatprep.mubr.f32.mxu0 0.0
        %v817 = vand.u32 %v410, 4294901760
        %v818 = vsub.f32 %v410, %v817
        %v819 = vand.u32 %v818, 4294901760
        %820 = vmatmul.mubr.f32.gmra.mrb[0].mxu0 %v819
        %v821 = vpop.f32.mrb[0].mxu0
        %v822 = vadd.f32 %v719, %v821
        %v823 = vpop.f32.mrb[0].mxu0
        %824 = vmatprep.mubr.f32.mxu0 0.0
        %v825 = vand.u32 %v413, 4294901760
        %v826 = vsub.f32 %v413, %v825
        %v827 = vand.u32 %v826, 4294901760
        %828 = vmatmul.mubr.f32.gmra.mrb[0].mxu0 %v827
        %v829 = vpop.f32.mrb[0].mxu0
        %v830 = vadd.f32 %v726, %v829
        %v831 = vpop.f32.mrb[0].mxu0
        %832 = vmatprep.mubr.f32.mxu0 0.0
        %v833 = vand.u32 %v416, 4294901760
        %v834 = vsub.f32 %v416, %v833
        %v835 = vand.u32 %v834, 4294901760
        %836 = vmatmul.mubr.f32.gmra.mrb[0].mxu0 %v835
        %v837 = vpop.f32.mrb[0].mxu0
        %v838 = vadd.f32 %v733, %v837
        %v839 = vpop.f32.mrb[0].mxu0
        %840 = vmatprep.mubr.f32.mxu0 0.0
        %v841 = vand.u32 %v419, 4294901760
        %v842 = vsub.f32 %v419, %v841
        %v843 = vand.u32 %v842, 4294901760
        %844 = vmatmul.mubr.f32.gmra.mrb[0].mxu0 %v843
        %v845 = vpop.f32.mrb[0].mxu0
        %v846 = vadd.f32 %v740, %v845
        %v847 = vpop.f32.mrb[0].mxu0
        %848 = vmatprep.mubr.f32.mxu0 0.0
        %v849 = vand.u32 %v422, 4294901760
        %v850 = vsub.f32 %v422, %v849
        %v851 = vand.u32 %v850, 4294901760
        %852 = vmatmul.mubr.f32.gmra.mrb[0].mxu0 %v851
        %v853 = vpop.f32.mrb[0].mxu0
        %v854 = vadd.f32 %v747, %v853
        %v855 = vpop.f32.mrb[0].mxu0
        %856 = vdwg.mxu0
        %857 = vmatprep.subr.mxu0 0.0
        %v858 = vand.u32 %v387, 4294901760
        %v859 = vsub.f32 %v387, %v858
        %v860 = vand.u32 %v859, 4294901760
        %861 = vmatpush1.msra.mxu0 %v860
        %862 = vmatprep.subr.mxu0 0.0
        %v863 = vand.u32 %v388, 4294901760
        %v864 = vsub.f32 %v388, %v863
        %v865 = vand.u32 %v864, 4294901760
        %866 = vmatpush1.msra.mxu0 %v865
        %867 = vmatprep.subr.mxu0 0.0
        %868 = vmatpush1.msra.mxu0 0.0
        %869 = vmatprep.subr.mxu0 0.0
        %870 = vmatpush1.msra.mxu0 0.0
        %871 = vmatprep.subr.mxu0 0.0
        %872 = vmatpush1.msra.mxu0 0.0
        %873 = vmatprep.subr.mxu0 0.0
        %874 = vmatpush1.msra.mxu0 0.0
        %875 = vmatprep.subr.mxu0 0.0
        %876 = vmatpush1.msra.mxu0 0.0
        %877 = vmatprep.subr.mxu0 0.0
        %878 = vmatpush1.msra.mxu0 0.0
        %879 = vmatprep.subr.mxu0 0.0
        %880 = vmatpush1.msra.mxu0 0.0
        %881 = vmatprep.subr.mxu0 0.0
        %882 = vmatpush1.msra.mxu0 0.0
        %883 = vmatprep.subr.mxu0 0.0
        %884 = vmatpush1.msra.mxu0 0.0
        %885 = vmatprep.subr.mxu0 0.0
        %886 = vmatpush1.msra.mxu0 0.0
        %887 = vmatprep.subr.mxu0 0.0
        %888 = vmatpush1.msra.mxu0 0.0
        %889 = vmatprep.subr.mxu0 0.0
        %890 = vmatpush1.msra.mxu0 0.0
        %891 = vmatprep.subr.mxu0 0.0
        %892 = vmatpush1.msra.mxu0 0.0
        %893 = vmatprep.subr.mxu0 0.0
        %894 = vmatpush1.msra.mxu0 0.0
        %895 = vmatprep.subr.mxu0 0.0
        %896 = vmatpush1.msra.mxu0 0.0
        %897 = vmatprep.subr.mxu0 0.0
        %898 = vmatpush1.msra.mxu0 0.0
        %899 = vmatprep.subr.mxu0 0.0
        %900 = vmatpush1.msra.mxu0 0.0
        %901 = vmatprep.subr.mxu0 0.0
        %902 = vmatpush1.msra.mxu0 0.0
        %903 = vmatprep.subr.mxu0 0.0
        %904 = vmatpush1.msra.mxu0 0.0
        %905 = vmatprep.subr.mxu0 0.0
        %906 = vmatpush1.msra.mxu0 0.0
        %907 = vmatprep.subr.mxu0 0.0
        %908 = vmatpush1.msra.mxu0 0.0
        %909 = vmatprep.subr.mxu0 0.0
        %910 = vmatpush1.msra.mxu0 0.0
        %911 = vmatprep.subr.mxu0 0.0
        %912 = vmatpush1.msra.mxu0 0.0
        %913 = vmatprep.subr.mxu0 0.0
        %914 = vmatpush1.msra.mxu0 0.0
        %915 = vmatprep.subr.mxu0 0.0
        %916 = vmatpush1.msra.mxu0 0.0
        %917 = vmatprep.subr.mxu0 0.0
        %918 = vmatpush1.msra.mxu0 0.0
        %919 = vmatprep.subr.mxu0 0.0
        %920 = vmatpush1.msra.mxu0 0.0
        %921 = vmatprep.subr.mxu0 0.0
        %922 = vmatpush1.msra.mxu0 0.0
        %923 = vmatprep.subr.mxu0 0.0
        %924 = vmatpush1.msra.mxu0 0.0
        %925 = vmatprep.subr.mxu0 0.0
        %926 = vmatpush1.msra.mxu0 0.0
        %927 = vmatprep.mubr.f32.mxu0 0.0
        %v928 = vand.u32 %v410, 4294901760
        %929 = vmatmul.mubr.f32.gmra.mrb[0].mxu0 %v928
        %v930 = vpop.f32.mrb[0].mxu0
        %v931 = vadd.f32 %v822, %v930
        %v932 = vpop.f32.mrb[0].mxu0
        %933 = vmatprep.mubr.f32.mxu0 0.0
        %v934 = vand.u32 %v413, 4294901760
        %935 = vmatmul.mubr.f32.gmra.mrb[0].mxu0 %v934
        %v936 = vpop.f32.mrb[0].mxu0
        %v937 = vadd.f32 %v830, %v936
        %v938 = vpop.f32.mrb[0].mxu0
        %939 = vmatprep.mubr.f32.mxu0 0.0
        %v940 = vand.u32 %v416, 4294901760
        %941 = vmatmul.mubr.f32.gmra.mrb[0].mxu0 %v940
        %v942 = vpop.f32.mrb[0].mxu0
        %v943 = vadd.f32 %v838, %v942
        %v944 = vpop.f32.mrb[0].mxu0
        %945 = vmatprep.mubr.f32.mxu0 0.0
        %v946 = vand.u32 %v419, 4294901760
        %947 = vmatmul.mubr.f32.gmra.mrb[0].mxu0 %v946
        %v948 = vpop.f32.mrb[0].mxu0
        %v949 = vadd.f32 %v846, %v948
        %v950 = vpop.f32.mrb[0].mxu0
        %951 = vmatprep.mubr.f32.mxu0 0.0
        %v952 = vand.u32 %v422, 4294901760
        %953 = vmatmul.mubr.f32.gmra.mrb[0].mxu0 %v952
        %v954 = vpop.f32.mrb[0].mxu0
        %v955 = vadd.f32 %v854, %v954
        %v956 = vpop.f32.mrb[0].mxu0
        %957 = vdwg.mxu0
        %958 = vmatprep.subr.mxu0 0.0
        %v959 = vand.u32 %v387, 4294901760
        %960 = vmatpush1.msra.mxu0 %v959
        %961 = vmatprep.subr.mxu0 0.0
        %v962 = vand.u32 %v388, 4294901760
        %963 = vmatpush1.msra.mxu0 %v962
        %964 = vmatprep.subr.mxu0 0.0
        %965 = vmatpush1.msra.mxu0 0.0
        %966 = vmatprep.subr.mxu0 0.0
        %967 = vmatpush1.msra.mxu0 0.0
        %968 = vmatprep.subr.mxu0 0.0
        %969 = vmatpush1.msra.mxu0 0.0
        %970 = vmatprep.subr.mxu0 0.0
        %971 = vmatpush1.msra.mxu0 0.0
        %972 = vmatprep.subr.mxu0 0.0
        %973 = vmatpush1.msra.mxu0 0.0
        %974 = vmatprep.subr.mxu0 0.0
        %975 = vmatpush1.msra.mxu0 0.0
        %976 = vmatprep.subr.mxu0 0.0
        %977 = vmatpush1.msra.mxu0 0.0
        %978 = vmatprep.subr.mxu0 0.0
        %979 = vmatpush1.msra.mxu0 0.0
        %980 = vmatprep.subr.mxu0 0.0
        %981 = vmatpush1.msra.mxu0 0.0
        %982 = vmatprep.subr.mxu0 0.0
        %983 = vmatpush1.msra.mxu0 0.0
        %984 = vmatprep.subr.mxu0 0.0
        %985 = vmatpush1.msra.mxu0 0.0
        %986 = vmatprep.subr.mxu0 0.0
        %987 = vmatpush1.msra.mxu0 0.0
        %988 = vmatprep.subr.mxu0 0.0
        %989 = vmatpush1.msra.mxu0 0.0
        %990 = vmatprep.subr.mxu0 0.0
        %991 = vmatpush1.msra.mxu0 0.0
        %992 = vmatprep.subr.mxu0 0.0
        %993 = vmatpush1.msra.mxu0 0.0
        %994 = vmatprep.subr.mxu0 0.0
        %995 = vmatpush1.msra.mxu0 0.0
        %996 = vmatprep.subr.mxu0 0.0
        %997 = vmatpush1.msra.mxu0 0.0
        %998 = vmatprep.subr.mxu0 0.0
        %999 = vmatpush1.msra.mxu0 0.0
        %1000 = vmatprep.subr.mxu0 0.0
        %1001 = vmatpush1.msra.mxu0 0.0
        %1002 = vmatprep.subr.mxu0 0.0
        %1003 = vmatpush1.msra.mxu0 0.0
        %1004 = vmatprep.subr.mxu0 0.0
        %1005 = vmatpush1.msra.mxu0 0.0
        %1006 = vmatprep.subr.mxu0 0.0
        %1007 = vmatpush1.msra.mxu0 0.0
        %1008 = vmatprep.subr.mxu0 0.0
        %1009 = vmatpush1.msra.mxu0 0.0
        %1010 = vmatprep.subr.mxu0 0.0
        %1011 = vmatpush1.msra.mxu0 0.0
        %1012 = vmatprep.subr.mxu0 0.0
        %1013 = vmatpush1.msra.mxu0 0.0
        %1014 = vmatprep.subr.mxu0 0.0
        %1015 = vmatpush1.msra.mxu0 0.0
        %1016 = vmatprep.subr.mxu0 0.0
        %1017 = vmatpush1.msra.mxu0 0.0
        %1018 = vmatprep.subr.mxu0 0.0
        %1019 = vmatpush1.msra.mxu0 0.0
        %1020 = vmatprep.subr.mxu0 0.0
        %1021 = vmatpush1.msra.mxu0 0.0
        %1022 = vmatprep.subr.mxu0 0.0
        %1023 = vmatpush1.msra.mxu0 0.0
        %1024 = vmatprep.mubr.f32.mxu0 0.0
        %v1025 = vand.u32 %v410, 4294901760
        %1026 = vmatmul.mubr.f32.gmra.mrb[0].mxu0 %v1025
        %v1027 = vpop.f32.mrb[0].mxu0
        %v1028 = vadd.f32 %v931, %v1027
        %v1029 = vpop.f32.mrb[0].mxu0
        %1030 = vmatprep.mubr.f32.mxu0 0.0
        %v1031 = vand.u32 %v413, 4294901760
        %1032 = vmatmul.mubr.f32.gmra.mrb[0].mxu0 %v1031
        %v1033 = vpop.f32.mrb[0].mxu0
        %v1034 = vadd.f32 %v937, %v1033
        %v1035 = vpop.f32.mrb[0].mxu0
        %1036 = vmatprep.mubr.f32.mxu0 0.0
        %v1037 = vand.u32 %v416, 4294901760
        %1038 = vmatmul.mubr.f32.gmra.mrb[0].mxu0 %v1037
        %v1039 = vpop.f32.mrb[0].mxu0
        %v1040 = vadd.f32 %v943, %v1039
        %v1041 = vpop.f32.mrb[0].mxu0
        %1042 = vmatprep.mubr.f32.mxu0 0.0
        %v1043 = vand.u32 %v419, 4294901760
        %1044 = vmatmul.mubr.f32.gmra.mrb[0].mxu0 %v1043
        %v1045 = vpop.f32.mrb[0].mxu0
        %v1046 = vadd.f32 %v949, %v1045
        %v1047 = vpop.f32.mrb[0].mxu0
        %1048 = vmatprep.mubr.f32.mxu0 0.0
        %v1049 = vand.u32 %v422, 4294901760
        %1050 = vmatmul.mubr.f32.gmra.mrb[0].mxu0 %v1049
        %v1051 = vpop.f32.mrb[0].mxu0
        %v1052 = vadd.f32 %v955, %v1051
        %v1053 = vpop.f32.mrb[0].mxu0
        %1054 = vdwg.mxu0
        %1055 = vmatprep.subr.mxu0 0.0
        %v1056 = vand.u32 %v389, 4294901760
        %1057 = vmatpush1.msra.mxu0 %v1056
        %1058 = vmatprep.subr.mxu0 0.0
        %v1059 = vand.u32 %v390, 4294901760
        %1060 = vmatpush1.msra.mxu0 %v1059
        %1061 = vmatprep.subr.mxu0 0.0
        %1062 = vmatpush1.msra.mxu0 0.0
        %1063 = vmatprep.subr.mxu0 0.0
        %1064 = vmatpush1.msra.mxu0 0.0
        %1065 = vmatprep.subr.mxu0 0.0
        %1066 = vmatpush1.msra.mxu0 0.0
        %1067 = vmatprep.subr.mxu0 0.0
        %1068 = vmatpush1.msra.mxu0 0.0
        %1069 = vmatprep.subr.mxu0 0.0
        %1070 = vmatpush1.msra.mxu0 0.0
        %1071 = vmatprep.subr.mxu0 0.0
        %1072 = vmatpush1.msra.mxu0 0.0
        %1073 = vmatprep.subr.mxu0 0.0
        %1074 = vmatpush1.msra.mxu0 0.0
        %1075 = vmatprep.subr.mxu0 0.0
        %1076 = vmatpush1.msra.mxu0 0.0
        %1077 = vmatprep.subr.mxu0 0.0
        %1078 = vmatpush1.msra.mxu0 0.0
        %1079 = vmatprep.subr.mxu0 0.0
        %1080 = vmatpush1.msra.mxu0 0.0
        %1081 = vmatprep.subr.mxu0 0.0
        %1082 = vmatpush1.msra.mxu0 0.0
        %1083 = vmatprep.subr.mxu0 0.0
        %1084 = vmatpush1.msra.mxu0 0.0
        %1085 = vmatprep.subr.mxu0 0.0
        %1086 = vmatpush1.msra.mxu0 0.0
        %1087 = vmatprep.subr.mxu0 0.0
        %1088 = vmatpush1.msra.mxu0 0.0
        %1089 = vmatprep.subr.mxu0 0.0
        %1090 = vmatpush1.msra.mxu0 0.0
        %1091 = vmatprep.subr.mxu0 0.0
        %1092 = vmatpush1.msra.mxu0 0.0
        %1093 = vmatprep.subr.mxu0 0.0
        %1094 = vmatpush1.msra.mxu0 0.0
        %1095 = vmatprep.subr.mxu0 0.0
        %1096 = vmatpush1.msra.mxu0 0.0
        %1097 = vmatprep.subr.mxu0 0.0
        %1098 = vmatpush1.msra.mxu0 0.0
        %1099 = vmatprep.subr.mxu0 0.0
        %1100 = vmatpush1.msra.mxu0 0.0
        %1101 = vmatprep.subr.mxu0 0.0
        %1102 = vmatpush1.msra.mxu0 0.0
        %1103 = vmatprep.subr.mxu0 0.0
        %1104 = vmatpush1.msra.mxu0 0.0
        %1105 = vmatprep.subr.mxu0 0.0
        %1106 = vmatpush1.msra.mxu0 0.0
        %1107 = vmatprep.subr.mxu0 0.0
        %1108 = vmatpush1.msra.mxu0 0.0
        %1109 = vmatprep.subr.mxu0 0.0
        %1110 = vmatpush1.msra.mxu0 0.0
        %1111 = vmatprep.subr.mxu0 0.0
        %1112 = vmatpush1.msra.mxu0 0.0
        %1113 = vmatprep.subr.mxu0 0.0
        %1114 = vmatpush1.msra.mxu0 0.0
        %1115 = vmatprep.subr.mxu0 0.0
        %1116 = vmatpush1.msra.mxu0 0.0
        %1117 = vmatprep.subr.mxu0 0.0
        %1118 = vmatpush1.msra.mxu0 0.0
        %1119 = vmatprep.subr.mxu0 0.0
        %1120 = vmatpush1.msra.mxu0 0.0
        %1121 = vmatprep.mubr.f32.mxu0 0.0
        %v1122 = vand.u32 %v410, 4294901760
        %v1123 = vsub.f32 %v410, %v1122
        %v1124 = vand.u32 %v1123, 4294901760
        %v1125 = vsub.f32 %v1123, %v1124
        %v1126 = vand.u32 %v1125, 4294901760
        %1127 = vmatmul.mubr.f32.gmra.mrb[0].mxu0 %v1126
        %v1128 = vpop.f32.mrb[0].mxu0
        %v1129 = vadd.f32 0.0, %v1128
        %v1130 = vpop.f32.mrb[0].mxu0
        %1131 = vmatprep.mubr.f32.mxu0 0.0
        %v1132 = vand.u32 %v413, 4294901760
        %v1133 = vsub.f32 %v413, %v1132
        %v1134 = vand.u32 %v1133, 4294901760
        %v1135 = vsub.f32 %v1133, %v1134
        %v1136 = vand.u32 %v1135, 4294901760
        %1137 = vmatmul.mubr.f32.gmra.mrb[0].mxu0 %v1136
        %v1138 = vpop.f32.mrb[0].mxu0
        %v1139 = vadd.f32 0.0, %v1138
        %v1140 = vpop.f32.mrb[0].mxu0
        %1141 = vmatprep.mubr.f32.mxu0 0.0
        %v1142 = vand.u32 %v416, 4294901760
        %v1143 = vsub.f32 %v416, %v1142
        %v1144 = vand.u32 %v1143, 4294901760
        %v1145 = vsub.f32 %v1143, %v1144
        %v1146 = vand.u32 %v1145, 4294901760
        %1147 = vmatmul.mubr.f32.gmra.mrb[0].mxu0 %v1146
        %v1148 = vpop.f32.mrb[0].mxu0
        %v1149 = vadd.f32 0.0, %v1148
        %v1150 = vpop.f32.mrb[0].mxu0
        %1151 = vmatprep.mubr.f32.mxu0 0.0
        %v1152 = vand.u32 %v419, 4294901760
        %v1153 = vsub.f32 %v419, %v1152
        %v1154 = vand.u32 %v1153, 4294901760
        %v1155 = vsub.f32 %v1153, %v1154
        %v1156 = vand.u32 %v1155, 4294901760
        %1157 = vmatmul.mubr.f32.gmra.mrb[0].mxu0 %v1156
        %v1158 = vpop.f32.mrb[0].mxu0
        %v1159 = vadd.f32 0.0, %v1158
        %v1160 = vpop.f32.mrb[0].mxu0
        %1161 = vmatprep.mubr.f32.mxu0 0.0
        %v1162 = vand.u32 %v422, 4294901760
        %v1163 = vsub.f32 %v422, %v1162
        %v1164 = vand.u32 %v1163, 4294901760
        %v1165 = vsub.f32 %v1163, %v1164
        %v1166 = vand.u32 %v1165, 4294901760
        %1167 = vmatmul.mubr.f32.gmra.mrb[0].mxu0 %v1166
        %v1168 = vpop.f32.mrb[0].mxu0
        %v1169 = vadd.f32 0.0, %v1168
        %v1170 = vpop.f32.mrb[0].mxu0
        %1171 = vdwg.mxu0
        %1172 = vmatprep.subr.mxu0 0.0
        %v1173 = vand.u32 %v389, 4294901760
        %v1174 = vsub.f32 %v389, %v1173
        %v1175 = vand.u32 %v1174, 4294901760
        %v1176 = vsub.f32 %v1174, %v1175
        %v1177 = vand.u32 %v1176, 4294901760
        %1178 = vmatpush1.msra.mxu0 %v1177
        %1179 = vmatprep.subr.mxu0 0.0
        %v1180 = vand.u32 %v390, 4294901760
        %v1181 = vsub.f32 %v390, %v1180
        %v1182 = vand.u32 %v1181, 4294901760
        %v1183 = vsub.f32 %v1181, %v1182
        %v1184 = vand.u32 %v1183, 4294901760
        %1185 = vmatpush1.msra.mxu0 %v1184
        %1186 = vmatprep.subr.mxu0 0.0
        %1187 = vmatpush1.msra.mxu0 0.0
        %1188 = vmatprep.subr.mxu0 0.0
        %1189 = vmatpush1.msra.mxu0 0.0
        %1190 = vmatprep.subr.mxu0 0.0
        %1191 = vmatpush1.msra.mxu0 0.0
        %1192 = vmatprep.subr.mxu0 0.0
        %1193 = vmatpush1.msra.mxu0 0.0
        %1194 = vmatprep.subr.mxu0 0.0
        %1195 = vmatpush1.msra.mxu0 0.0
        %1196 = vmatprep.subr.mxu0 0.0
        %1197 = vmatpush1.msra.mxu0 0.0
        %1198 = vmatprep.subr.mxu0 0.0
        %1199 = vmatpush1.msra.mxu0 0.0
        %1200 = vmatprep.subr.mxu0 0.0
        %1201 = vmatpush1.msra.mxu0 0.0
        %1202 = vmatprep.subr.mxu0 0.0
        %1203 = vmatpush1.msra.mxu0 0.0
        %1204 = vmatprep.subr.mxu0 0.0
        %1205 = vmatpush1.msra.mxu0 0.0
        %1206 = vmatprep.subr.mxu0 0.0
        %1207 = vmatpush1.msra.mxu0 0.0
        %1208 = vmatprep.subr.mxu0 0.0
        %1209 = vmatpush1.msra.mxu0 0.0
        %1210 = vmatprep.subr.mxu0 0.0
        %1211 = vmatpush1.msra.mxu0 0.0
        %1212 = vmatprep.subr.mxu0 0.0
        %1213 = vmatpush1.msra.mxu0 0.0
        %1214 = vmatprep.subr.mxu0 0.0
        %1215 = vmatpush1.msra.mxu0 0.0
        %1216 = vmatprep.subr.mxu0 0.0
        %1217 = vmatpush1.msra.mxu0 0.0
        %1218 = vmatprep.subr.mxu0 0.0
        %1219 = vmatpush1.msra.mxu0 0.0
        %1220 = vmatprep.subr.mxu0 0.0
        %1221 = vmatpush1.msra.mxu0 0.0
        %1222 = vmatprep.subr.mxu0 0.0
        %1223 = vmatpush1.msra.mxu0 0.0
        %1224 = vmatprep.subr.mxu0 0.0
        %1225 = vmatpush1.msra.mxu0 0.0
        %1226 = vmatprep.subr.mxu0 0.0
        %1227 = vmatpush1.msra.mxu0 0.0
        %1228 = vmatprep.subr.mxu0 0.0
        %1229 = vmatpush1.msra.mxu0 0.0
        %1230 = vmatprep.subr.mxu0 0.0
        %1231 = vmatpush1.msra.mxu0 0.0
        %1232 = vmatprep.subr.mxu0 0.0
        %1233 = vmatpush1.msra.mxu0 0.0
        %1234 = vmatprep.subr.mxu0 0.0
        %1235 = vmatpush1.msra.mxu0 0.0
        %1236 = vmatprep.subr.mxu0 0.0
        %1237 = vmatpush1.msra.mxu0 0.0
        %1238 = vmatprep.subr.mxu0 0.0
        %1239 = vmatpush1.msra.mxu0 0.0
        %1240 = vmatprep.subr.mxu0 0.0
        %1241 = vmatpush1.msra.mxu0 0.0
        %1242 = vmatprep.subr.mxu0 0.0
        %1243 = vmatpush1.msra.mxu0 0.0
        %1244 = vmatprep.subr.mxu0 0.0
        %1245 = vmatpush1.msra.mxu0 0.0
        %1246 = vmatprep.mubr.f32.mxu0 0.0
        %v1247 = vand.u32 %v410, 4294901760
        %1248 = vmatmul.mubr.f32.gmra.mrb[0].mxu0 %v1247
        %v1249 = vpop.f32.mrb[0].mxu0
        %v1250 = vadd.f32 %v1129, %v1249
        %v1251 = vpop.f32.mrb[0].mxu0
        %1252 = vmatprep.mubr.f32.mxu0 0.0
        %v1253 = vand.u32 %v413, 4294901760
        %1254 = vmatmul.mubr.f32.gmra.mrb[0].mxu0 %v1253
        %v1255 = vpop.f32.mrb[0].mxu0
        %v1256 = vadd.f32 %v1139, %v1255
        %v1257 = vpop.f32.mrb[0].mxu0
        %1258 = vmatprep.mubr.f32.mxu0 0.0
        %v1259 = vand.u32 %v416, 4294901760
        %1260 = vmatmul.mubr.f32.gmra.mrb[0].mxu0 %v1259
        %v1261 = vpop.f32.mrb[0].mxu0
        %v1262 = vadd.f32 %v1149, %v1261
        %v1263 = vpop.f32.mrb[0].mxu0
        %1264 = vmatprep.mubr.f32.mxu0 0.0
        %v1265 = vand.u32 %v419, 4294901760
        %1266 = vmatmul.mubr.f32.gmra.mrb[0].mxu0 %v1265
        %v1267 = vpop.f32.mrb[0].mxu0
        %v1268 = vadd.f32 %v1159, %v1267
        %v1269 = vpop.f32.mrb[0].mxu0
        %1270 = vmatprep.mubr.f32.mxu0 0.0
        %v1271 = vand.u32 %v422, 4294901760
        %1272 = vmatmul.mubr.f32.gmra.mrb[0].mxu0 %v1271
        %v1273 = vpop.f32.mrb[0].mxu0
        %v1274 = vadd.f32 %v1169, %v1273
        %v1275 = vpop.f32.mrb[0].mxu0
        %1276 = vdwg.mxu0
        %1277 = vmatprep.subr.mxu0 0.0
        %v1278 = vand.u32 %v389, 4294901760
        %v1279 = vsub.f32 %v389, %v1278
        %1280 = vmatpush1.msra.mxu0 %v1279
        %1281 = vmatprep.subr.mxu0 0.0
        %v1282 = vand.u32 %v390, 4294901760
        %v1283 = vsub.f32 %v390, %v1282
        %1284 = vmatpush1.msra.mxu0 %v1283
        %1285 = vmatprep.subr.mxu0 0.0
        %1286 = vmatpush1.msra.mxu0 0.0
        %1287 = vmatprep.subr.mxu0 0.0
        %1288 = vmatpush1.msra.mxu0 0.0
        %1289 = vmatprep.subr.mxu0 0.0
        %1290 = vmatpush1.msra.mxu0 0.0
        %1291 = vmatprep.subr.mxu0 0.0
        %1292 = vmatpush1.msra.mxu0 0.0
        %1293 = vmatprep.subr.mxu0 0.0
        %1294 = vmatpush1.msra.mxu0 0.0
        %1295 = vmatprep.subr.mxu0 0.0
        %1296 = vmatpush1.msra.mxu0 0.0
        %1297 = vmatprep.subr.mxu0 0.0
        %1298 = vmatpush1.msra.mxu0 0.0
        %1299 = vmatprep.subr.mxu0 0.0
        %1300 = vmatpush1.msra.mxu0 0.0
        %1301 = vmatprep.subr.mxu0 0.0
        %1302 = vmatpush1.msra.mxu0 0.0
        %1303 = vmatprep.subr.mxu0 0.0
        %1304 = vmatpush1.msra.mxu0 0.0
        %1305 = vmatprep.subr.mxu0 0.0
        %1306 = vmatpush1.msra.mxu0 0.0
        %1307 = vmatprep.subr.mxu0 0.0
        %1308 = vmatpush1.msra.mxu0 0.0
        %1309 = vmatprep.subr.mxu0 0.0
        %1310 = vmatpush1.msra.mxu0 0.0
        %1311 = vmatprep.subr.mxu0 0.0
        %1312 = vmatpush1.msra.mxu0 0.0
        %1313 = vmatprep.subr.mxu0 0.0
        %1314 = vmatpush1.msra.mxu0 0.0
        %1315 = vmatprep.subr.mxu0 0.0
        %1316 = vmatpush1.msra.mxu0 0.0
        %1317 = vmatprep.subr.mxu0 0.0
        %1318 = vmatpush1.msra.mxu0 0.0
        %1319 = vmatprep.subr.mxu0 0.0
        %1320 = vmatpush1.msra.mxu0 0.0
        %1321 = vmatprep.subr.mxu0 0.0
        %1322 = vmatpush1.msra.mxu0 0.0
        %1323 = vmatprep.subr.mxu0 0.0
        %1324 = vmatpush1.msra.mxu0 0.0
        %1325 = vmatprep.subr.mxu0 0.0
        %1326 = vmatpush1.msra.mxu0 0.0
        %1327 = vmatprep.subr.mxu0 0.0
        %1328 = vmatpush1.msra.mxu0 0.0
        %1329 = vmatprep.subr.mxu0 0.0
        %1330 = vmatpush1.msra.mxu0 0.0
        %1331 = vmatprep.subr.mxu0 0.0
        %1332 = vmatpush1.msra.mxu0 0.0
        %1333 = vmatprep.subr.mxu0 0.0
        %1334 = vmatpush1.msra.mxu0 0.0
        %1335 = vmatprep.subr.mxu0 0.0
        %1336 = vmatpush1.msra.mxu0 0.0
        %1337 = vmatprep.subr.mxu0 0.0
        %1338 = vmatpush1.msra.mxu0 0.0
        %1339 = vmatprep.subr.mxu0 0.0
        %1340 = vmatpush1.msra.mxu0 0.0
        %1341 = vmatprep.subr.mxu0 0.0
        %1342 = vmatpush1.msra.mxu0 0.0
        %1343 = vmatprep.subr.mxu0 0.0
        %1344 = vmatpush1.msra.mxu0 0.0
        %1345 = vmatprep.mubr.f32.mxu0 0.0
        %v1346 = vand.u32 %v410, 4294901760
        %v1347 = vsub.f32 %v410, %v1346
        %1348 = vmatmul.mubr.f32.gmra.mrb[0].mxu0 %v1347
        %v1349 = vpop.f32.mrb[0].mxu0
        %v1350 = vadd.f32 %v1250, %v1349
        %v1351 = vpop.f32.mrb[0].mxu0
        %1352 = vmatprep.mubr.f32.mxu0 0.0
        %v1353 = vand.u32 %v413, 4294901760
        %v1354 = vsub.f32 %v413, %v1353
        %1355 = vmatmul.mubr.f32.gmra.mrb[0].mxu0 %v1354
        %v1356 = vpop.f32.mrb[0].mxu0
        %v1357 = vadd.f32 %v1256, %v1356
        %v1358 = vpop.f32.mrb[0].mxu0
        %1359 = vmatprep.mubr.f32.mxu0 0.0
        %v1360 = vand.u32 %v416, 4294901760
        %v1361 = vsub.f32 %v416, %v1360
        %1362 = vmatmul.mubr.f32.gmra.mrb[0].mxu0 %v1361
        %v1363 = vpop.f32.mrb[0].mxu0
        %v1364 = vadd.f32 %v1262, %v1363
        %v1365 = vpop.f32.mrb[0].mxu0
        %1366 = vmatprep.mubr.f32.mxu0 0.0
        %v1367 = vand.u32 %v419, 4294901760
        %v1368 = vsub.f32 %v419, %v1367
        %1369 = vmatmul.mubr.f32.gmra.mrb[0].mxu0 %v1368
        %v1370 = vpop.f32.mrb[0].mxu0
        %v1371 = vadd.f32 %v1268, %v1370
        %v1372 = vpop.f32.mrb[0].mxu0
        %1373 = vmatprep.mubr.f32.mxu0 0.0
        %v1374 = vand.u32 %v422, 4294901760
        %v1375 = vsub.f32 %v422, %v1374
        %1376 = vmatmul.mubr.f32.gmra.mrb[0].mxu0 %v1375
        %v1377 = vpop.f32.mrb[0].mxu0
        %v1378 = vadd.f32 %v1274, %v1377
        %v1379 = vpop.f32.mrb[0].mxu0
        %1380 = vdwg.mxu0
        %1381 = vmatprep.subr.mxu0 0.0
        %v1382 = vand.u32 %v389, 4294901760
        %1383 = vmatpush1.msra.mxu0 %v1382
        %1384 = vmatprep.subr.mxu0 0.0
        %v1385 = vand.u32 %v390, 4294901760
        %1386 = vmatpush1.msra.mxu0 %v1385
        %1387 = vmatprep.subr.mxu0 0.0
        %1388 = vmatpush1.msra.mxu0 0.0
        %1389 = vmatprep.subr.mxu0 0.0
        %1390 = vmatpush1.msra.mxu0 0.0
        %1391 = vmatprep.subr.mxu0 0.0
        %1392 = vmatpush1.msra.mxu0 0.0
        %1393 = vmatprep.subr.mxu0 0.0
        %1394 = vmatpush1.msra.mxu0 0.0
        %1395 = vmatprep.subr.mxu0 0.0
        %1396 = vmatpush1.msra.mxu0 0.0
        %1397 = vmatprep.subr.mxu0 0.0
        %1398 = vmatpush1.msra.mxu0 0.0
        %1399 = vmatprep.subr.mxu0 0.0
        %1400 = vmatpush1.msra.mxu0 0.0
        %1401 = vmatprep.subr.mxu0 0.0
        %1402 = vmatpush1.msra.mxu0 0.0
        %1403 = vmatprep.subr.mxu0 0.0
        %1404 = vmatpush1.msra.mxu0 0.0
        %1405 = vmatprep.subr.mxu0 0.0
        %1406 = vmatpush1.msra.mxu0 0.0
        %1407 = vmatprep.subr.mxu0 0.0
        %1408 = vmatpush1.msra.mxu0 0.0
        %1409 = vmatprep.subr.mxu0 0.0
        %1410 = vmatpush1.msra.mxu0 0.0
        %1411 = vmatprep.subr.mxu0 0.0
        %1412 = vmatpush1.msra.mxu0 0.0
        %1413 = vmatprep.subr.mxu0 0.0
        %1414 = vmatpush1.msra.mxu0 0.0
        %1415 = vmatprep.subr.mxu0 0.0
        %1416 = vmatpush1.msra.mxu0 0.0
        %1417 = vmatprep.subr.mxu0 0.0
        %1418 = vmatpush1.msra.mxu0 0.0
        %1419 = vmatprep.subr.mxu0 0.0
        %1420 = vmatpush1.msra.mxu0 0.0
        %1421 = vmatprep.subr.mxu0 0.0
        %1422 = vmatpush1.msra.mxu0 0.0
        %1423 = vmatprep.subr.mxu0 0.0
        %1424 = vmatpush1.msra.mxu0 0.0
        %1425 = vmatprep.subr.mxu0 0.0
        %1426 = vmatpush1.msra.mxu0 0.0
        %1427 = vmatprep.subr.mxu0 0.0
        %1428 = vmatpush1.msra.mxu0 0.0
        %1429 = vmatprep.subr.mxu0 0.0
        %1430 = vmatpush1.msra.mxu0 0.0
        %1431 = vmatprep.subr.mxu0 0.0
        %1432 = vmatpush1.msra.mxu0 0.0
        %1433 = vmatprep.subr.mxu0 0.0
        %1434 = vmatpush1.msra.mxu0 0.0
        %1435 = vmatprep.subr.mxu0 0.0
        %1436 = vmatpush1.msra.mxu0 0.0
        %1437 = vmatprep.subr.mxu0 0.0
        %1438 = vmatpush1.msra.mxu0 0.0
        %1439 = vmatprep.subr.mxu0 0.0
        %1440 = vmatpush1.msra.mxu0 0.0
        %1441 = vmatprep.subr.mxu0 0.0
        %1442 = vmatpush1.msra.mxu0 0.0
        %1443 = vmatprep.subr.mxu0 0.0
        %1444 = vmatpush1.msra.mxu0 0.0
        %1445 = vmatprep.subr.mxu0 0.0
        %1446 = vmatpush1.msra.mxu0 0.0
        %1447 = vmatprep.mubr.f32.mxu0 0.0
        %v1448 = vand.u32 %v410, 4294901760
        %v1449 = vsub.f32 %v410, %v1448
        %v1450 = vand.u32 %v1449, 4294901760
        %1451 = vmatmul.mubr.f32.gmra.mrb[0].mxu0 %v1450
        %v1452 = vpop.f32.mrb[0].mxu0
        %v1453 = vadd.f32 %v1350, %v1452
        %v1454 = vpop.f32.mrb[0].mxu0
        %1455 = vmatprep.mubr.f32.mxu0 0.0
        %v1456 = vand.u32 %v413, 4294901760
        %v1457 = vsub.f32 %v413, %v1456
        %v1458 = vand.u32 %v1457, 4294901760
        %1459 = vmatmul.mubr.f32.gmra.mrb[0].mxu0 %v1458
        %v1460 = vpop.f32.mrb[0].mxu0
        %v1461 = vadd.f32 %v1357, %v1460
        %v1462 = vpop.f32.mrb[0].mxu0
        %1463 = vmatprep.mubr.f32.mxu0 0.0
        %v1464 = vand.u32 %v416, 4294901760
        %v1465 = vsub.f32 %v416, %v1464
        %v1466 = vand.u32 %v1465, 4294901760
        %1467 = vmatmul.mubr.f32.gmra.mrb[0].mxu0 %v1466
        %v1468 = vpop.f32.mrb[0].mxu0
        %v1469 = vadd.f32 %v1364, %v1468
        %v1470 = vpop.f32.mrb[0].mxu0
        %1471 = vmatprep.mubr.f32.mxu0 0.0
        %v1472 = vand.u32 %v419, 4294901760
        %v1473 = vsub.f32 %v419, %v1472
        %v1474 = vand.u32 %v1473, 4294901760
        %1475 = vmatmul.mubr.f32.gmra.mrb[0].mxu0 %v1474
        %v1476 = vpop.f32.mrb[0].mxu0
        %v1477 = vadd.f32 %v1371, %v1476
        %v1478 = vpop.f32.mrb[0].mxu0
        %1479 = vmatprep.mubr.f32.mxu0 0.0
        %v1480 = vand.u32 %v422, 4294901760
        %v1481 = vsub.f32 %v422, %v1480
        %v1482 = vand.u32 %v1481, 4294901760
        %1483 = vmatmul.mubr.f32.gmra.mrb[0].mxu0 %v1482
        %v1484 = vpop.f32.mrb[0].mxu0
        %v1485 = vadd.f32 %v1378, %v1484
        %v1486 = vpop.f32.mrb[0].mxu0
        %1487 = vdwg.mxu0
        %1488 = vmatprep.subr.mxu0 0.0
        %v1489 = vand.u32 %v389, 4294901760
        %v1490 = vsub.f32 %v389, %v1489
        %v1491 = vand.u32 %v1490, 4294901760
        %1492 = vmatpush1.msra.mxu0 %v1491
        %1493 = vmatprep.subr.mxu0 0.0
        %v1494 = vand.u32 %v390, 4294901760
        %v1495 = vsub.f32 %v390, %v1494
        %v1496 = vand.u32 %v1495, 4294901760
        %1497 = vmatpush1.msra.mxu0 %v1496
        %1498 = vmatprep.subr.mxu0 0.0
        %1499 = vmatpush1.msra.mxu0 0.0
        %1500 = vmatprep.subr.mxu0 0.0
        %1501 = vmatpush1.msra.mxu0 0.0
        %1502 = vmatprep.subr.mxu0 0.0
        %1503 = vmatpush1.msra.mxu0 0.0
        %1504 = vmatprep.subr.mxu0 0.0
        %1505 = vmatpush1.msra.mxu0 0.0
        %1506 = vmatprep.subr.mxu0 0.0
        %1507 = vmatpush1.msra.mxu0 0.0
        %1508 = vmatprep.subr.mxu0 0.0
        %1509 = vmatpush1.msra.mxu0 0.0
        %1510 = vmatprep.subr.mxu0 0.0
        %1511 = vmatpush1.msra.mxu0 0.0
        %1512 = vmatprep.subr.mxu0 0.0
        %1513 = vmatpush1.msra.mxu0 0.0
        %1514 = vmatprep.subr.mxu0 0.0
        %1515 = vmatpush1.msra.mxu0 0.0
        %1516 = vmatprep.subr.mxu0 0.0
        %1517 = vmatpush1.msra.mxu0 0.0
        %1518 = vmatprep.subr.mxu0 0.0
        %1519 = vmatpush1.msra.mxu0 0.0
        %1520 = vmatprep.subr.mxu0 0.0
        %1521 = vmatpush1.msra.mxu0 0.0
        %1522 = vmatprep.subr.mxu0 0.0
        %1523 = vmatpush1.msra.mxu0 0.0
        %1524 = vmatprep.subr.mxu0 0.0
        %1525 = vmatpush1.msra.mxu0 0.0
        %1526 = vmatprep.subr.mxu0 0.0
        %1527 = vmatpush1.msra.mxu0 0.0
        %1528 = vmatprep.subr.mxu0 0.0
        %1529 = vmatpush1.msra.mxu0 0.0
        %1530 = vmatprep.subr.mxu0 0.0
        %1531 = vmatpush1.msra.mxu0 0.0
        %1532 = vmatprep.subr.mxu0 0.0
        %1533 = vmatpush1.msra.mxu0 0.0
        %1534 = vmatprep.subr.mxu0 0.0
        %1535 = vmatpush1.msra.mxu0 0.0
        %1536 = vmatprep.subr.mxu0 0.0
        %1537 = vmatpush1.msra.mxu0 0.0
        %1538 = vmatprep.subr.mxu0 0.0
        %1539 = vmatpush1.msra.mxu0 0.0
        %1540 = vmatprep.subr.mxu0 0.0
        %1541 = vmatpush1.msra.mxu0 0.0
        %1542 = vmatprep.subr.mxu0 0.0
        %1543 = vmatpush1.msra.mxu0 0.0
        %1544 = vmatprep.subr.mxu0 0.0
        %1545 = vmatpush1.msra.mxu0 0.0
        %1546 = vmatprep.subr.mxu0 0.0
        %1547 = vmatpush1.msra.mxu0 0.0
        %1548 = vmatprep.subr.mxu0 0.0
        %1549 = vmatpush1.msra.mxu0 0.0
        %1550 = vmatprep.subr.mxu0 0.0
        %1551 = vmatpush1.msra.mxu0 0.0
        %1552 = vmatprep.subr.mxu0 0.0
        %1553 = vmatpush1.msra.mxu0 0.0
        %1554 = vmatprep.subr.mxu0 0.0
        %1555 = vmatpush1.msra.mxu0 0.0
        %1556 = vmatprep.subr.mxu0 0.0
        %1557 = vmatpush1.msra.mxu0 0.0
        %1558 = vmatprep.mubr.f32.mxu0 0.0
        %v1559 = vand.u32 %v410, 4294901760
        %1560 = vmatmul.mubr.f32.gmra.mrb[0].mxu0 %v1559
        %v1561 = vpop.f32.mrb[0].mxu0
        %v1562 = vadd.f32 %v1453, %v1561
        %v1563 = vpop.f32.mrb[0].mxu0
        %1564 = vmatprep.mubr.f32.mxu0 0.0
        %v1565 = vand.u32 %v413, 4294901760
        %1566 = vmatmul.mubr.f32.gmra.mrb[0].mxu0 %v1565
        %v1567 = vpop.f32.mrb[0].mxu0
        %v1568 = vadd.f32 %v1461, %v1567
        %v1569 = vpop.f32.mrb[0].mxu0
        %1570 = vmatprep.mubr.f32.mxu0 0.0
        %v1571 = vand.u32 %v416, 4294901760
        %1572 = vmatmul.mubr.f32.gmra.mrb[0].mxu0 %v1571
        %v1573 = vpop.f32.mrb[0].mxu0
        %v1574 = vadd.f32 %v1469, %v1573
        %v1575 = vpop.f32.mrb[0].mxu0
        %1576 = vmatprep.mubr.f32.mxu0 0.0
        %v1577 = vand.u32 %v419, 4294901760
        %1578 = vmatmul.mubr.f32.gmra.mrb[0].mxu0 %v1577
        %v1579 = vpop.f32.mrb[0].mxu0
        %v1580 = vadd.f32 %v1477, %v1579
        %v1581 = vpop.f32.mrb[0].mxu0
        %1582 = vmatprep.mubr.f32.mxu0 0.0
        %v1583 = vand.u32 %v422, 4294901760
        %1584 = vmatmul.mubr.f32.gmra.mrb[0].mxu0 %v1583
        %v1585 = vpop.f32.mrb[0].mxu0
        %v1586 = vadd.f32 %v1485, %v1585
        %v1587 = vpop.f32.mrb[0].mxu0
        %1588 = vdwg.mxu0
        %1589 = vmatprep.subr.mxu0 0.0
        %v1590 = vand.u32 %v389, 4294901760
        %1591 = vmatpush1.msra.mxu0 %v1590
        %1592 = vmatprep.subr.mxu0 0.0
        %v1593 = vand.u32 %v390, 4294901760
        %1594 = vmatpush1.msra.mxu0 %v1593
        %1595 = vmatprep.subr.mxu0 0.0
        %1596 = vmatpush1.msra.mxu0 0.0
        %1597 = vmatprep.subr.mxu0 0.0
        %1598 = vmatpush1.msra.mxu0 0.0
        %1599 = vmatprep.subr.mxu0 0.0
        %1600 = vmatpush1.msra.mxu0 0.0
        %1601 = vmatprep.subr.mxu0 0.0
        %1602 = vmatpush1.msra.mxu0 0.0
        %1603 = vmatprep.subr.mxu0 0.0
        %1604 = vmatpush1.msra.mxu0 0.0
        %1605 = vmatprep.subr.mxu0 0.0
        %1606 = vmatpush1.msra.mxu0 0.0
        %1607 = vmatprep.subr.mxu0 0.0
        %1608 = vmatpush1.msra.mxu0 0.0
        %1609 = vmatprep.subr.mxu0 0.0
        %1610 = vmatpush1.msra.mxu0 0.0
        %1611 = vmatprep.subr.mxu0 0.0
        %1612 = vmatpush1.msra.mxu0 0.0
        %1613 = vmatprep.subr.mxu0 0.0
        %1614 = vmatpush1.msra.mxu0 0.0
        %1615 = vmatprep.subr.mxu0 0.0
        %1616 = vmatpush1.msra.mxu0 0.0
        %1617 = vmatprep.subr.mxu0 0.0
        %1618 = vmatpush1.msra.mxu0 0.0
        %1619 = vmatprep.subr.mxu0 0.0
        %1620 = vmatpush1.msra.mxu0 0.0
        %1621 = vmatprep.subr.mxu0 0.0
        %1622 = vmatpush1.msra.mxu0 0.0
        %1623 = vmatprep.subr.mxu0 0.0
        %1624 = vmatpush1.msra.mxu0 0.0
        %1625 = vmatprep.subr.mxu0 0.0
        %1626 = vmatpush1.msra.mxu0 0.0
        %1627 = vmatprep.subr.mxu0 0.0
        %1628 = vmatpush1.msra.mxu0 0.0
        %1629 = vmatprep.subr.mxu0 0.0
        %1630 = vmatpush1.msra.mxu0 0.0
        %1631 = vmatprep.subr.mxu0 0.0
        %1632 = vmatpush1.msra.mxu0 0.0
        %1633 = vmatprep.subr.mxu0 0.0
        %1634 = vmatpush1.msra.mxu0 0.0
        %1635 = vmatprep.subr.mxu0 0.0
        %1636 = vmatpush1.msra.mxu0 0.0
        %1637 = vmatprep.subr.mxu0 0.0
        %1638 = vmatpush1.msra.mxu0 0.0
        %1639 = vmatprep.subr.mxu0 0.0
        %1640 = vmatpush1.msra.mxu0 0.0
        %1641 = vmatprep.subr.mxu0 0.0
        %1642 = vmatpush1.msra.mxu0 0.0
        %1643 = vmatprep.subr.mxu0 0.0
        %1644 = vmatpush1.msra.mxu0 0.0
        %1645 = vmatprep.subr.mxu0 0.0
        %1646 = vmatpush1.msra.mxu0 0.0
        %1647 = vmatprep.subr.mxu0 0.0
        %1648 = vmatpush1.msra.mxu0 0.0
        %1649 = vmatprep.subr.mxu0 0.0
        %1650 = vmatpush1.msra.mxu0 0.0
        %1651 = vmatprep.subr.mxu0 0.0
        %1652 = vmatpush1.msra.mxu0 0.0
        %1653 = vmatprep.subr.mxu0 0.0
        %1654 = vmatpush1.msra.mxu0 0.0
        %1655 = vmatprep.mubr.f32.mxu0 0.0
        %v1656 = vand.u32 %v410, 4294901760
        %1657 = vmatmul.mubr.f32.gmra.mrb[0].mxu0 %v1656
        %v1658 = vpop.f32.mrb[0].mxu0
        %v1659 = vadd.f32 %v1562, %v1658
        %v1660 = vpop.f32.mrb[0].mxu0
        %1661 = vmatprep.mubr.f32.mxu0 0.0
        %v1662 = vand.u32 %v413, 4294901760
        %1663 = vmatmul.mubr.f32.gmra.mrb[0].mxu0 %v1662
        %v1664 = vpop.f32.mrb[0].mxu0
        %v1665 = vadd.f32 %v1568, %v1664
        %v1666 = vpop.f32.mrb[0].mxu0
        %1667 = vmatprep.mubr.f32.mxu0 0.0
        %v1668 = vand.u32 %v416, 4294901760
        %1669 = vmatmul.mubr.f32.gmra.mrb[0].mxu0 %v1668
        %v1670 = vpop.f32.mrb[0].mxu0
        %v1671 = vadd.f32 %v1574, %v1670
        %v1672 = vpop.f32.mrb[0].mxu0
        %1673 = vmatprep.mubr.f32.mxu0 0.0
        %v1674 = vand.u32 %v419, 4294901760
        %1675 = vmatmul.mubr.f32.gmra.mrb[0].mxu0 %v1674
        %v1676 = vpop.f32.mrb[0].mxu0
        %v1677 = vadd.f32 %v1580, %v1676
        %v1678 = vpop.f32.mrb[0].mxu0
        %1679 = vmatprep.mubr.f32.mxu0 0.0
        %v1680 = vand.u32 %v422, 4294901760
        %1681 = vmatmul.mubr.f32.gmra.mrb[0].mxu0 %v1680
        %v1682 = vpop.f32.mrb[0].mxu0
        %v1683 = vadd.f32 %v1586, %v1682
        %v1684 = vpop.f32.mrb[0].mxu0
        %1685 = vdwg.mxu0
        %1686 = vmatprep.subr.mxu0 0.0
        %v1687 = vand.u32 %v393, 4294901760
        %1688 = vmatpush1.msra.mxu0 %v1687
        %1689 = vmatprep.subr.mxu0 0.0
        %v1690 = vand.u32 %v394, 4294901760
        %1691 = vmatpush1.msra.mxu0 %v1690
        %1692 = vmatprep.subr.mxu0 0.0
        %1693 = vmatpush1.msra.mxu0 0.0
        %1694 = vmatprep.subr.mxu0 0.0
        %1695 = vmatpush1.msra.mxu0 0.0
        %1696 = vmatprep.subr.mxu0 0.0
        %1697 = vmatpush1.msra.mxu0 0.0
        %1698 = vmatprep.subr.mxu0 0.0
        %1699 = vmatpush1.msra.mxu0 0.0
        %1700 = vmatprep.subr.mxu0 0.0
        %1701 = vmatpush1.msra.mxu0 0.0
        %1702 = vmatprep.subr.mxu0 0.0
        %1703 = vmatpush1.msra.mxu0 0.0
        %1704 = vmatprep.subr.mxu0 0.0
        %1705 = vmatpush1.msra.mxu0 0.0
        %1706 = vmatprep.subr.mxu0 0.0
        %1707 = vmatpush1.msra.mxu0 0.0
        %1708 = vmatprep.subr.mxu0 0.0
        %1709 = vmatpush1.msra.mxu0 0.0
        %1710 = vmatprep.subr.mxu0 0.0
        %1711 = vmatpush1.msra.mxu0 0.0
        %1712 = vmatprep.subr.mxu0 0.0
        %1713 = vmatpush1.msra.mxu0 0.0
        %1714 = vmatprep.subr.mxu0 0.0
        %1715 = vmatpush1.msra.mxu0 0.0
        %1716 = vmatprep.subr.mxu0 0.0
        %1717 = vmatpush1.msra.mxu0 0.0
        %1718 = vmatprep.subr.mxu0 0.0
        %1719 = vmatpush1.msra.mxu0 0.0
        %1720 = vmatprep.subr.mxu0 0.0
        %1721 = vmatpush1.msra.mxu0 0.0
        %1722 = vmatprep.subr.mxu0 0.0
        %1723 = vmatpush1.msra.mxu0 0.0
        %1724 = vmatprep.subr.mxu0 0.0
        %1725 = vmatpush1.msra.mxu0 0.0
        %1726 = vmatprep.subr.mxu0 0.0
        %1727 = vmatpush1.msra.mxu0 0.0
        %1728 = vmatprep.subr.mxu0 0.0
        %1729 = vmatpush1.msra.mxu0 0.0
        %1730 = vmatprep.subr.mxu0 0.0
        %1731 = vmatpush1.msra.mxu0 0.0
        %1732 = vmatprep.subr.mxu0 0.0
        %1733 = vmatpush1.msra.mxu0 0.0
        %1734 = vmatprep.subr.mxu0 0.0
        %1735 = vmatpush1.msra.mxu0 0.0
        %1736 = vmatprep.subr.mxu0 0.0
        %1737 = vmatpush1.msra.mxu0 0.0
        %1738 = vmatprep.subr.mxu0 0.0
        %1739 = vmatpush1.msra.mxu0 0.0
        %1740 = vmatprep.subr.mxu0 0.0
        %1741 = vmatpush1.msra.mxu0 0.0
        %1742 = vmatprep.subr.mxu0 0.0
        %1743 = vmatpush1.msra.mxu0 0.0
        %1744 = vmatprep.subr.mxu0 0.0
        %1745 = vmatpush1.msra.mxu0 0.0
        %1746 = vmatprep.subr.mxu0 0.0
        %1747 = vmatpush1.msra.mxu0 0.0
        %1748 = vmatprep.subr.mxu0 0.0
        %1749 = vmatpush1.msra.mxu0 0.0
        %1750 = vmatprep.subr.mxu0 0.0
        %1751 = vmatpush1.msra.mxu0 0.0
        %1752 = vmatprep.mubr.f32.mxu0 0.0
        %v1753 = vand.u32 %v410, 4294901760
        %v1754 = vsub.f32 %v410, %v1753
        %v1755 = vand.u32 %v1754, 4294901760
        %v1756 = vsub.f32 %v1754, %v1755
        %v1757 = vand.u32 %v1756, 4294901760
        %1758 = vmatmul.mubr.f32.gmra.mrb[0].mxu0 %v1757
        %v1759 = vpop.f32.mrb[0].mxu0
        %v1760 = vadd.f32 0.0, %v1759
        %v1761 = vpop.f32.mrb[0].mxu0
        %1762 = vmatprep.mubr.f32.mxu0 0.0
        %v1763 = vand.u32 %v413, 4294901760
        %v1764 = vsub.f32 %v413, %v1763
        %v1765 = vand.u32 %v1764, 4294901760
        %v1766 = vsub.f32 %v1764, %v1765
        %v1767 = vand.u32 %v1766, 4294901760
        %1768 = vmatmul.mubr.f32.gmra.mrb[0].mxu0 %v1767
        %v1769 = vpop.f32.mrb[0].mxu0
        %v1770 = vadd.f32 0.0, %v1769
        %v1771 = vpop.f32.mrb[0].mxu0
        %1772 = vmatprep.mubr.f32.mxu0 0.0
        %v1773 = vand.u32 %v416, 4294901760
        %v1774 = vsub.f32 %v416, %v1773
        %v1775 = vand.u32 %v1774, 4294901760
        %v1776 = vsub.f32 %v1774, %v1775
        %v1777 = vand.u32 %v1776, 4294901760
        %1778 = vmatmul.mubr.f32.gmra.mrb[0].mxu0 %v1777
        %v1779 = vpop.f32.mrb[0].mxu0
        %v1780 = vadd.f32 0.0, %v1779
        %v1781 = vpop.f32.mrb[0].mxu0
        %1782 = vmatprep.mubr.f32.mxu0 0.0
        %v1783 = vand.u32 %v419, 4294901760
        %v1784 = vsub.f32 %v419, %v1783
        %v1785 = vand.u32 %v1784, 4294901760
        %v1786 = vsub.f32 %v1784, %v1785
        %v1787 = vand.u32 %v1786, 4294901760
        %1788 = vmatmul.mubr.f32.gmra.mrb[0].mxu0 %v1787
        %v1789 = vpop.f32.mrb[0].mxu0
        %v1790 = vadd.f32 0.0, %v1789
        %v1791 = vpop.f32.mrb[0].mxu0
        %1792 = vmatprep.mubr.f32.mxu0 0.0
        %v1793 = vand.u32 %v422, 4294901760
        %v1794 = vsub.f32 %v422, %v1793
        %v1795 = vand.u32 %v1794, 4294901760
        %v1796 = vsub.f32 %v1794, %v1795
        %v1797 = vand.u32 %v1796, 4294901760
        %1798 = vmatmul.mubr.f32.gmra.mrb[0].mxu0 %v1797
        %v1799 = vpop.f32.mrb[0].mxu0
        %v1800 = vadd.f32 0.0, %v1799
        %v1801 = vpop.f32.mrb[0].mxu0
        %1802 = vdwg.mxu0
        %1803 = vmatprep.subr.mxu0 0.0
        %v1804 = vand.u32 %v393, 4294901760
        %v1805 = vsub.f32 %v393, %v1804
        %v1806 = vand.u32 %v1805, 4294901760
        %v1807 = vsub.f32 %v1805, %v1806
        %v1808 = vand.u32 %v1807, 4294901760
        %1809 = vmatpush1.msra.mxu0 %v1808
        %1810 = vmatprep.subr.mxu0 0.0
        %v1811 = vand.u32 %v394, 4294901760
        %v1812 = vsub.f32 %v394, %v1811
        %v1813 = vand.u32 %v1812, 4294901760
        %v1814 = vsub.f32 %v1812, %v1813
        %v1815 = vand.u32 %v1814, 4294901760
        %1816 = vmatpush1.msra.mxu0 %v1815
        %1817 = vmatprep.subr.mxu0 0.0
        %1818 = vmatpush1.msra.mxu0 0.0
        %1819 = vmatprep.subr.mxu0 0.0
        %1820 = vmatpush1.msra.mxu0 0.0
        %1821 = vmatprep.subr.mxu0 0.0
        %1822 = vmatpush1.msra.mxu0 0.0
        %1823 = vmatprep.subr.mxu0 0.0
        %1824 = vmatpush1.msra.mxu0 0.0
        %1825 = vmatprep.subr.mxu0 0.0
        %1826 = vmatpush1.msra.mxu0 0.0
        %1827 = vmatprep.subr.mxu0 0.0
        %1828 = vmatpush1.msra.mxu0 0.0
        %1829 = vmatprep.subr.mxu0 0.0
        %1830 = vmatpush1.msra.mxu0 0.0
        %1831 = vmatprep.subr.mxu0 0.0
        %1832 = vmatpush1.msra.mxu0 0.0
        %1833 = vmatprep.subr.mxu0 0.0
        %1834 = vmatpush1.msra.mxu0 0.0
        %1835 = vmatprep.subr.mxu0 0.0
        %1836 = vmatpush1.msra.mxu0 0.0
        %1837 = vmatprep.subr.mxu0 0.0
        %1838 = vmatpush1.msra.mxu0 0.0
        %1839 = vmatprep.subr.mxu0 0.0
        %1840 = vmatpush1.msra.mxu0 0.0
        %1841 = vmatprep.subr.mxu0 0.0
        %1842 = vmatpush1.msra.mxu0 0.0
        %1843 = vmatprep.subr.mxu0 0.0
        %1844 = vmatpush1.msra.mxu0 0.0
        %1845 = vmatprep.subr.mxu0 0.0
        %1846 = vmatpush1.msra.mxu0 0.0
        %1847 = vmatprep.subr.mxu0 0.0
        %1848 = vmatpush1.msra.mxu0 0.0
        %1849 = vmatprep.subr.mxu0 0.0
        %1850 = vmatpush1.msra.mxu0 0.0
        %1851 = vmatprep.subr.mxu0 0.0
        %1852 = vmatpush1.msra.mxu0 0.0
        %1853 = vmatprep.subr.mxu0 0.0
        %1854 = vmatpush1.msra.mxu0 0.0
        %1855 = vmatprep.subr.mxu0 0.0
        %1856 = vmatpush1.msra.mxu0 0.0
        %1857 = vmatprep.subr.mxu0 0.0
        %1858 = vmatpush1.msra.mxu0 0.0
        %1859 = vmatprep.subr.mxu0 0.0
        %1860 = vmatpush1.msra.mxu0 0.0
        %1861 = vmatprep.subr.mxu0 0.0
        %1862 = vmatpush1.msra.mxu0 0.0
        %1863 = vmatprep.subr.mxu0 0.0
        %1864 = vmatpush1.msra.mxu0 0.0
        %1865 = vmatprep.subr.mxu0 0.0
        %1866 = vmatpush1.msra.mxu0 0.0
        %1867 = vmatprep.subr.mxu0 0.0
        %1868 = vmatpush1.msra.mxu0 0.0
        %1869 = vmatprep.subr.mxu0 0.0
        %1870 = vmatpush1.msra.mxu0 0.0
        %1871 = vmatprep.subr.mxu0 0.0
        %1872 = vmatpush1.msra.mxu0 0.0
        %1873 = vmatprep.subr.mxu0 0.0
        %1874 = vmatpush1.msra.mxu0 0.0
        %1875 = vmatprep.subr.mxu0 0.0
        %1876 = vmatpush1.msra.mxu0 0.0
        %1877 = vmatprep.mubr.f32.mxu0 0.0
        %v1878 = vand.u32 %v410, 4294901760
        %1879 = vmatmul.mubr.f32.gmra.mrb[0].mxu0 %v1878
        %v1880 = vpop.f32.mrb[0].mxu0
        %v1881 = vadd.f32 %v1760, %v1880
        %v1882 = vpop.f32.mrb[0].mxu0
        %1883 = vmatprep.mubr.f32.mxu0 0.0
        %v1884 = vand.u32 %v413, 4294901760
        %1885 = vmatmul.mubr.f32.gmra.mrb[0].mxu0 %v1884
        %v1886 = vpop.f32.mrb[0].mxu0
        %v1887 = vadd.f32 %v1770, %v1886
        %v1888 = vpop.f32.mrb[0].mxu0
        %1889 = vmatprep.mubr.f32.mxu0 0.0
        %v1890 = vand.u32 %v416, 4294901760
        %1891 = vmatmul.mubr.f32.gmra.mrb[0].mxu0 %v1890
        %v1892 = vpop.f32.mrb[0].mxu0
        %v1893 = vadd.f32 %v1780, %v1892
        %v1894 = vpop.f32.mrb[0].mxu0
        %1895 = vmatprep.mubr.f32.mxu0 0.0
        %v1896 = vand.u32 %v419, 4294901760
        %1897 = vmatmul.mubr.f32.gmra.mrb[0].mxu0 %v1896
        %v1898 = vpop.f32.mrb[0].mxu0
        %v1899 = vadd.f32 %v1790, %v1898
        %v1900 = vpop.f32.mrb[0].mxu0
        %1901 = vmatprep.mubr.f32.mxu0 0.0
        %v1902 = vand.u32 %v422, 4294901760
        %1903 = vmatmul.mubr.f32.gmra.mrb[0].mxu0 %v1902
        %v1904 = vpop.f32.mrb[0].mxu0
        %v1905 = vadd.f32 %v1800, %v1904
        %v1906 = vpop.f32.mrb[0].mxu0
        %1907 = vdwg.mxu0
        %1908 = vmatprep.subr.mxu0 0.0
        %v1909 = vand.u32 %v393, 4294901760
        %v1910 = vsub.f32 %v393, %v1909
        %1911 = vmatpush1.msra.mxu0 %v1910
        %1912 = vmatprep.subr.mxu0 0.0
        %v1913 = vand.u32 %v394, 4294901760
        %v1914 = vsub.f32 %v394, %v1913
        %1915 = vmatpush1.msra.mxu0 %v1914
        %1916 = vmatprep.subr.mxu0 0.0
        %1917 = vmatpush1.msra.mxu0 0.0
        %1918 = vmatprep.subr.mxu0 0.0
        %1919 = vmatpush1.msra.mxu0 0.0
        %1920 = vmatprep.subr.mxu0 0.0
        %1921 = vmatpush1.msra.mxu0 0.0
        %1922 = vmatprep.subr.mxu0 0.0
        %1923 = vmatpush1.msra.mxu0 0.0
        %1924 = vmatprep.subr.mxu0 0.0
        %1925 = vmatpush1.msra.mxu0 0.0
        %1926 = vmatprep.subr.mxu0 0.0
        %1927 = vmatpush1.msra.mxu0 0.0
        %1928 = vmatprep.subr.mxu0 0.0
        %1929 = vmatpush1.msra.mxu0 0.0
        %1930 = vmatprep.subr.mxu0 0.0
        %1931 = vmatpush1.msra.mxu0 0.0
        %1932 = vmatprep.subr.mxu0 0.0
        %1933 = vmatpush1.msra.mxu0 0.0
        %1934 = vmatprep.subr.mxu0 0.0
        %1935 = vmatpush1.msra.mxu0 0.0
        %1936 = vmatprep.subr.mxu0 0.0
        %1937 = vmatpush1.msra.mxu0 0.0
        %1938 = vmatprep.subr.mxu0 0.0
        %1939 = vmatpush1.msra.mxu0 0.0
        %1940 = vmatprep.subr.mxu0 0.0
        %1941 = vmatpush1.msra.mxu0 0.0
        %1942 = vmatprep.subr.mxu0 0.0
        %1943 = vmatpush1.msra.mxu0 0.0
        %1944 = vmatprep.subr.mxu0 0.0
        %1945 = vmatpush1.msra.mxu0 0.0
        %1946 = vmatprep.subr.mxu0 0.0
        %1947 = vmatpush1.msra.mxu0 0.0
        %1948 = vmatprep.subr.mxu0 0.0
        %1949 = vmatpush1.msra.mxu0 0.0
        %1950 = vmatprep.subr.mxu0 0.0
        %1951 = vmatpush1.msra.mxu0 0.0
        %1952 = vmatprep.subr.mxu0 0.0
        %1953 = vmatpush1.msra.mxu0 0.0
        %1954 = vmatprep.subr.mxu0 0.0
        %1955 = vmatpush1.msra.mxu0 0.0
        %1956 = vmatprep.subr.mxu0 0.0
        %1957 = vmatpush1.msra.mxu0 0.0
        %1958 = vmatprep.subr.mxu0 0.0
        %1959 = vmatpush1.msra.mxu0 0.0
        %1960 = vmatprep.subr.mxu0 0.0
        %1961 = vmatpush1.msra.mxu0 0.0
        %1962 = vmatprep.subr.mxu0 0.0
        %1963 = vmatpush1.msra.mxu0 0.0
        %1964 = vmatprep.subr.mxu0 0.0
        %1965 = vmatpush1.msra.mxu0 0.0
        %1966 = vmatprep.subr.mxu0 0.0
        %1967 = vmatpush1.msra.mxu0 0.0
        %1968 = vmatprep.subr.mxu0 0.0
        %1969 = vmatpush1.msra.mxu0 0.0
        %1970 = vmatprep.subr.mxu0 0.0
        %1971 = vmatpush1.msra.mxu0 0.0
        %1972 = vmatprep.subr.mxu0 0.0
        %1973 = vmatpush1.msra.mxu0 0.0
        %1974 = vmatprep.subr.mxu0 0.0
        %1975 = vmatpush1.msra.mxu0 0.0
        %1976 = vmatprep.mubr.f32.mxu0 0.0
        %v1977 = vand.u32 %v410, 4294901760
        %v1978 = vsub.f32 %v410, %v1977
        %1979 = vmatmul.mubr.f32.gmra.mrb[0].mxu0 %v1978
        %v1980 = vpop.f32.mrb[0].mxu0
        %v1981 = vadd.f32 %v1881, %v1980
        %v1982 = vpop.f32.mrb[0].mxu0
        %1983 = vmatprep.mubr.f32.mxu0 0.0
        %v1984 = vand.u32 %v413, 4294901760
        %v1985 = vsub.f32 %v413, %v1984
        %1986 = vmatmul.mubr.f32.gmra.mrb[0].mxu0 %v1985
        %v1987 = vpop.f32.mrb[0].mxu0
        %v1988 = vadd.f32 %v1887, %v1987
        %v1989 = vpop.f32.mrb[0].mxu0
        %1990 = vmatprep.mubr.f32.mxu0 0.0
        %v1991 = vand.u32 %v416, 4294901760
        %v1992 = vsub.f32 %v416, %v1991
        %1993 = vmatmul.mubr.f32.gmra.mrb[0].mxu0 %v1992
        %v1994 = vpop.f32.mrb[0].mxu0
        %v1995 = vadd.f32 %v1893, %v1994
        %v1996 = vpop.f32.mrb[0].mxu0
        %1997 = vmatprep.mubr.f32.mxu0 0.0
        %v1998 = vand.u32 %v419, 4294901760
        %v1999 = vsub.f32 %v419, %v1998
        %2000 = vmatmul.mubr.f32.gmra.mrb[0].mxu0 %v1999
        %v2001 = vpop.f32.mrb[0].mxu0
        %v2002 = vadd.f32 %v1899, %v2001
        %v2003 = vpop.f32.mrb[0].mxu0
        %2004 = vmatprep.mubr.f32.mxu0 0.0
        %v2005 = vand.u32 %v422, 4294901760
        %v2006 = vsub.f32 %v422, %v2005
        %2007 = vmatmul.mubr.f32.gmra.mrb[0].mxu0 %v2006
        %v2008 = vpop.f32.mrb[0].mxu0
        %v2009 = vadd.f32 %v1905, %v2008
        %v2010 = vpop.f32.mrb[0].mxu0
        %2011 = vdwg.mxu0
        %2012 = vmatprep.subr.mxu0 0.0
        %v2013 = vand.u32 %v393, 4294901760
        %2014 = vmatpush1.msra.mxu0 %v2013
        %2015 = vmatprep.subr.mxu0 0.0
        %v2016 = vand.u32 %v394, 4294901760
        %2017 = vmatpush1.msra.mxu0 %v2016
        %2018 = vmatprep.subr.mxu0 0.0
        %2019 = vmatpush1.msra.mxu0 0.0
        %2020 = vmatprep.subr.mxu0 0.0
        %2021 = vmatpush1.msra.mxu0 0.0
        %2022 = vmatprep.subr.mxu0 0.0
        %2023 = vmatpush1.msra.mxu0 0.0
        %2024 = vmatprep.subr.mxu0 0.0
        %2025 = vmatpush1.msra.mxu0 0.0
        %2026 = vmatprep.subr.mxu0 0.0
        %2027 = vmatpush1.msra.mxu0 0.0
        %2028 = vmatprep.subr.mxu0 0.0
        %2029 = vmatpush1.msra.mxu0 0.0
        %2030 = vmatprep.subr.mxu0 0.0
        %2031 = vmatpush1.msra.mxu0 0.0
        %2032 = vmatprep.subr.mxu0 0.0
        %2033 = vmatpush1.msra.mxu0 0.0
        %2034 = vmatprep.subr.mxu0 0.0
        %2035 = vmatpush1.msra.mxu0 0.0
        %2036 = vmatprep.subr.mxu0 0.0
        %2037 = vmatpush1.msra.mxu0 0.0
        %2038 = vmatprep.subr.mxu0 0.0
        %2039 = vmatpush1.msra.mxu0 0.0
        %2040 = vmatprep.subr.mxu0 0.0
        %2041 = vmatpush1.msra.mxu0 0.0
        %2042 = vmatprep.subr.mxu0 0.0
        %2043 = vmatpush1.msra.mxu0 0.0
        %2044 = vmatprep.subr.mxu0 0.0
        %2045 = vmatpush1.msra.mxu0 0.0
        %2046 = vmatprep.subr.mxu0 0.0
        %2047 = vmatpush1.msra.mxu0 0.0
        %2048 = vmatprep.subr.mxu0 0.0
        %2049 = vmatpush1.msra.mxu0 0.0
        %2050 = vmatprep.subr.mxu0 0.0
        %2051 = vmatpush1.msra.mxu0 0.0
        %2052 = vmatprep.subr.mxu0 0.0
        %2053 = vmatpush1.msra.mxu0 0.0
        %2054 = vmatprep.subr.mxu0 0.0
        %2055 = vmatpush1.msra.mxu0 0.0
        %2056 = vmatprep.subr.mxu0 0.0
        %2057 = vmatpush1.msra.mxu0 0.0
        %2058 = vmatprep.subr.mxu0 0.0
        %2059 = vmatpush1.msra.mxu0 0.0
        %2060 = vmatprep.subr.mxu0 0.0
        %2061 = vmatpush1.msra.mxu0 0.0
        %2062 = vmatprep.subr.mxu0 0.0
        %2063 = vmatpush1.msra.mxu0 0.0
        %2064 = vmatprep.subr.mxu0 0.0
        %2065 = vmatpush1.msra.mxu0 0.0
        %2066 = vmatprep.subr.mxu0 0.0
        %2067 = vmatpush1.msra.mxu0 0.0
        %2068 = vmatprep.subr.mxu0 0.0
        %2069 = vmatpush1.msra.mxu0 0.0
        %2070 = vmatprep.subr.mxu0 0.0
        %2071 = vmatpush1.msra.mxu0 0.0
        %2072 = vmatprep.subr.mxu0 0.0
        %2073 = vmatpush1.msra.mxu0 0.0
        %2074 = vmatprep.subr.mxu0 0.0
        %2075 = vmatpush1.msra.mxu0 0.0
        %2076 = vmatprep.subr.mxu0 0.0
        %2077 = vmatpush1.msra.mxu0 0.0
        %2078 = vmatprep.mubr.f32.mxu0 0.0
        %v2079 = vand.u32 %v410, 4294901760
        %v2080 = vsub.f32 %v410, %v2079
        %v2081 = vand.u32 %v2080, 4294901760
        %2082 = vmatmul.mubr.f32.gmra.mrb[0].mxu0 %v2081
        %v2083 = vpop.f32.mrb[0].mxu0
        %v2084 = vadd.f32 %v1981, %v2083
        %v2085 = vpop.f32.mrb[0].mxu0
        %2086 = vmatprep.mubr.f32.mxu0 0.0
        %v2087 = vand.u32 %v413, 4294901760
        %v2088 = vsub.f32 %v413, %v2087
        %v2089 = vand.u32 %v2088, 4294901760
        %2090 = vmatmul.mubr.f32.gmra.mrb[0].mxu0 %v2089
        %v2091 = vpop.f32.mrb[0].mxu0
        %v2092 = vadd.f32 %v1988, %v2091
        %v2093 = vpop.f32.mrb[0].mxu0
        %2094 = vmatprep.mubr.f32.mxu0 0.0
        %v2095 = vand.u32 %v416, 4294901760
        %v2096 = vsub.f32 %v416, %v2095
        %v2097 = vand.u32 %v2096, 4294901760
        %2098 = vmatmul.mubr.f32.gmra.mrb[0].mxu0 %v2097
        %v2099 = vpop.f32.mrb[0].mxu0
        %v2100 = vadd.f32 %v1995, %v2099
        %v2101 = vpop.f32.mrb[0].mxu0
        %2102 = vmatprep.mubr.f32.mxu0 0.0
        %v2103 = vand.u32 %v419, 4294901760
        %v2104 = vsub.f32 %v419, %v2103
        %v2105 = vand.u32 %v2104, 4294901760
        %2106 = vmatmul.mubr.f32.gmra.mrb[0].mxu0 %v2105
        %v2107 = vpop.f32.mrb[0].mxu0
        %v2108 = vadd.f32 %v2002, %v2107
        %v2109 = vpop.f32.mrb[0].mxu0
        %2110 = vmatprep.mubr.f32.mxu0 0.0
        %v2111 = vand.u32 %v422, 4294901760
        %v2112 = vsub.f32 %v422, %v2111
        %v2113 = vand.u32 %v2112, 4294901760
        %2114 = vmatmul.mubr.f32.gmra.mrb[0].mxu0 %v2113
        %v2115 = vpop.f32.mrb[0].mxu0
        %v2116 = vadd.f32 %v2009, %v2115
        %v2117 = vpop.f32.mrb[0].mxu0
        %2118 = vdwg.mxu0
        %2119 = vmatprep.subr.mxu0 0.0
        %v2120 = vand.u32 %v393, 4294901760
        %v2121 = vsub.f32 %v393, %v2120
        %v2122 = vand.u32 %v2121, 4294901760
        %2123 = vmatpush1.msra.mxu0 %v2122
        %2124 = vmatprep.subr.mxu0 0.0
        %v2125 = vand.u32 %v394, 4294901760
        %v2126 = vsub.f32 %v394, %v2125
        %v2127 = vand.u32 %v2126, 4294901760
        %2128 = vmatpush1.msra.mxu0 %v2127
        %2129 = vmatprep.subr.mxu0 0.0
        %2130 = vmatpush1.msra.mxu0 0.0
        %2131 = vmatprep.subr.mxu0 0.0
        %2132 = vmatpush1.msra.mxu0 0.0
        %2133 = vmatprep.subr.mxu0 0.0
        %2134 = vmatpush1.msra.mxu0 0.0
        %2135 = vmatprep.subr.mxu0 0.0
        %2136 = vmatpush1.msra.mxu0 0.0
        %2137 = vmatprep.subr.mxu0 0.0
        %2138 = vmatpush1.msra.mxu0 0.0
        %2139 = vmatprep.subr.mxu0 0.0
        %2140 = vmatpush1.msra.mxu0 0.0
        %2141 = vmatprep.subr.mxu0 0.0
        %2142 = vmatpush1.msra.mxu0 0.0
        %2143 = vmatprep.subr.mxu0 0.0
        %2144 = vmatpush1.msra.mxu0 0.0
        %2145 = vmatprep.subr.mxu0 0.0
        %2146 = vmatpush1.msra.mxu0 0.0
        %2147 = vmatprep.subr.mxu0 0.0
        %2148 = vmatpush1.msra.mxu0 0.0
        %2149 = vmatprep.subr.mxu0 0.0
        %2150 = vmatpush1.msra.mxu0 0.0
        %2151 = vmatprep.subr.mxu0 0.0
        %2152 = vmatpush1.msra.mxu0 0.0
        %2153 = vmatprep.subr.mxu0 0.0
        %2154 = vmatpush1.msra.mxu0 0.0
        %2155 = vmatprep.subr.mxu0 0.0
        %2156 = vmatpush1.msra.mxu0 0.0
        %2157 = vmatprep.subr.mxu0 0.0
        %2158 = vmatpush1.msra.mxu0 0.0
        %2159 = vmatprep.subr.mxu0 0.0
        %2160 = vmatpush1.msra.mxu0 0.0
        %2161 = vmatprep.subr.mxu0 0.0
        %2162 = vmatpush1.msra.mxu0 0.0
        %2163 = vmatprep.subr.mxu0 0.0
        %2164 = vmatpush1.msra.mxu0 0.0
        %2165 = vmatprep.subr.mxu0 0.0
        %2166 = vmatpush1.msra.mxu0 0.0
        %2167 = vmatprep.subr.mxu0 0.0
        %2168 = vmatpush1.msra.mxu0 0.0
        %2169 = vmatprep.subr.mxu0 0.0
        %2170 = vmatpush1.msra.mxu0 0.0
        %2171 = vmatprep.subr.mxu0 0.0
        %2172 = vmatpush1.msra.mxu0 0.0
        %2173 = vmatprep.subr.mxu0 0.0
        %2174 = vmatpush1.msra.mxu0 0.0
        %2175 = vmatprep.subr.mxu0 0.0
        %2176 = vmatpush1.msra.mxu0 0.0
        %2177 = vmatprep.subr.mxu0 0.0
        %2178 = vmatpush1.msra.mxu0 0.0
        %2179 = vmatprep.subr.mxu0 0.0
        %2180 = vmatpush1.msra.mxu0 0.0
        %2181 = vmatprep.subr.mxu0 0.0
        %2182 = vmatpush1.msra.mxu0 0.0
        %2183 = vmatprep.subr.mxu0 0.0
        %2184 = vmatpush1.msra.mxu0 0.0
        %2185 = vmatprep.subr.mxu0 0.0
        %2186 = vmatpush1.msra.mxu0 0.0
        %2187 = vmatprep.subr.mxu0 0.0
        %2188 = vmatpush1.msra.mxu0 0.0
        %2189 = vmatprep.mubr.f32.mxu0 0.0
        %v2190 = vand.u32 %v410, 4294901760
        %2191 = vmatmul.mubr.f32.gmra.mrb[0].mxu0 %v2190
        %v2192 = vpop.f32.mrb[0].mxu0
        %v2193 = vadd.f32 %v2084, %v2192
        %v2194 = vpop.f32.mrb[0].mxu0
        %2195 = vmatprep.mubr.f32.mxu0 0.0
        %v2196 = vand.u32 %v413, 4294901760
        %2197 = vmatmul.mubr.f32.gmra.mrb[0].mxu0 %v2196
        %v2198 = vpop.f32.mrb[0].mxu0
        %v2199 = vadd.f32 %v2092, %v2198
        %v2200 = vpop.f32.mrb[0].mxu0
        %2201 = vmatprep.mubr.f32.mxu0 0.0
        %v2202 = vand.u32 %v416, 4294901760
        %2203 = vmatmul.mubr.f32.gmra.mrb[0].mxu0 %v2202
        %v2204 = vpop.f32.mrb[0].mxu0
        %v2205 = vadd.f32 %v2100, %v2204
        %v2206 = vpop.f32.mrb[0].mxu0
        %2207 = vmatprep.mubr.f32.mxu0 0.0
        %v2208 = vand.u32 %v419, 4294901760
        %2209 = vmatmul.mubr.f32.gmra.mrb[0].mxu0 %v2208
        %v2210 = vpop.f32.mrb[0].mxu0
        %v2211 = vadd.f32 %v2108, %v2210
        %v2212 = vpop.f32.mrb[0].mxu0
        %2213 = vmatprep.mubr.f32.mxu0 0.0
        %v2214 = vand.u32 %v422, 4294901760
        %2215 = vmatmul.mubr.f32.gmra.mrb[0].mxu0 %v2214
        %v2216 = vpop.f32.mrb[0].mxu0
        %v2217 = vadd.f32 %v2116, %v2216
        %v2218 = vpop.f32.mrb[0].mxu0
        %2219 = vdwg.mxu0
        %2220 = vmatprep.subr.mxu0 0.0
        %v2221 = vand.u32 %v393, 4294901760
        %2222 = vmatpush1.msra.mxu0 %v2221
        %2223 = vmatprep.subr.mxu0 0.0
        %v2224 = vand.u32 %v394, 4294901760
        %2225 = vmatpush1.msra.mxu0 %v2224
        %2226 = vmatprep.subr.mxu0 0.0
        %2227 = vmatpush1.msra.mxu0 0.0
        %2228 = vmatprep.subr.mxu0 0.0
        %2229 = vmatpush1.msra.mxu0 0.0
        %2230 = vmatprep.subr.mxu0 0.0
        %2231 = vmatpush1.msra.mxu0 0.0
        %2232 = vmatprep.subr.mxu0 0.0
        %2233 = vmatpush1.msra.mxu0 0.0
        %2234 = vmatprep.subr.mxu0 0.0
        %2235 = vmatpush1.msra.mxu0 0.0
        %2236 = vmatprep.subr.mxu0 0.0
        %2237 = vmatpush1.msra.mxu0 0.0
        %2238 = vmatprep.subr.mxu0 0.0
        %2239 = vmatpush1.msra.mxu0 0.0
        %2240 = vmatprep.subr.mxu0 0.0
        %2241 = vmatpush1.msra.mxu0 0.0
        %2242 = vmatprep.subr.mxu0 0.0
        %2243 = vmatpush1.msra.mxu0 0.0
        %2244 = vmatprep.subr.mxu0 0.0
        %2245 = vmatpush1.msra.mxu0 0.0
        %2246 = vmatprep.subr.mxu0 0.0
        %2247 = vmatpush1.msra.mxu0 0.0
        %2248 = vmatprep.subr.mxu0 0.0
        %2249 = vmatpush1.msra.mxu0 0.0
        %2250 = vmatprep.subr.mxu0 0.0
        %2251 = vmatpush1.msra.mxu0 0.0
        %2252 = vmatprep.subr.mxu0 0.0
        %2253 = vmatpush1.msra.mxu0 0.0
        %2254 = vmatprep.subr.mxu0 0.0
        %2255 = vmatpush1.msra.mxu0 0.0
        %2256 = vmatprep.subr.mxu0 0.0
        %2257 = vmatpush1.msra.mxu0 0.0
        %2258 = vmatprep.subr.mxu0 0.0
        %2259 = vmatpush1.msra.mxu0 0.0
        %2260 = vmatprep.subr.mxu0 0.0
        %2261 = vmatpush1.msra.mxu0 0.0
        %2262 = vmatprep.subr.mxu0 0.0
        %2263 = vmatpush1.msra.mxu0 0.0
        %2264 = vmatprep.subr.mxu0 0.0
        %2265 = vmatpush1.msra.mxu0 0.0
        %2266 = vmatprep.subr.mxu0 0.0
        %2267 = vmatpush1.msra.mxu0 0.0
        %2268 = vmatprep.subr.mxu0 0.0
        %2269 = vmatpush1.msra.mxu0 0.0
        %2270 = vmatprep.subr.mxu0 0.0
        %2271 = vmatpush1.msra.mxu0 0.0
        %2272 = vmatprep.subr.mxu0 0.0
        %2273 = vmatpush1.msra.mxu0 0.0
        %2274 = vmatprep.subr.mxu0 0.0
        %2275 = vmatpush1.msra.mxu0 0.0
        %2276 = vmatprep.subr.mxu0 0.0
        %2277 = vmatpush1.msra.mxu0 0.0
        %2278 = vmatprep.subr.mxu0 0.0
        %2279 = vmatpush1.msra.mxu0 0.0
        %2280 = vmatprep.subr.mxu0 0.0
        %2281 = vmatpush1.msra.mxu0 0.0
        %2282 = vmatprep.subr.mxu0 0.0
        %2283 = vmatpush1.msra.mxu0 0.0
        %2284 = vmatprep.subr.mxu0 0.0
        %2285 = vmatpush1.msra.mxu0 0.0
        %2286 = vmatprep.mubr.f32.mxu0 0.0
        %v2287 = vand.u32 %v410, 4294901760
        %2288 = vmatmul.mubr.f32.gmra.mrb[0].mxu0 %v2287
        %v2289 = vpop.f32.mrb[0].mxu0
        %v2290 = vadd.f32 %v2193, %v2289
        %v2291 = vpop.f32.mrb[0].mxu0
        %2292 = vmatprep.mubr.f32.mxu0 0.0
        %v2293 = vand.u32 %v413, 4294901760
        %2294 = vmatmul.mubr.f32.gmra.mrb[0].mxu0 %v2293
        %v2295 = vpop.f32.mrb[0].mxu0
        %v2296 = vadd.f32 %v2199, %v2295
        %v2297 = vpop.f32.mrb[0].mxu0
        %2298 = vmatprep.mubr.f32.mxu0 0.0
        %v2299 = vand.u32 %v416, 4294901760
        %2300 = vmatmul.mubr.f32.gmra.mrb[0].mxu0 %v2299
        %v2301 = vpop.f32.mrb[0].mxu0
        %v2302 = vadd.f32 %v2205, %v2301
        %v2303 = vpop.f32.mrb[0].mxu0
        %2304 = vmatprep.mubr.f32.mxu0 0.0
        %v2305 = vand.u32 %v419, 4294901760
        %2306 = vmatmul.mubr.f32.gmra.mrb[0].mxu0 %v2305
        %v2307 = vpop.f32.mrb[0].mxu0
        %v2308 = vadd.f32 %v2211, %v2307
        %v2309 = vpop.f32.mrb[0].mxu0
        %2310 = vmatprep.mubr.f32.mxu0 0.0
        %v2311 = vand.u32 %v422, 4294901760
        %2312 = vmatmul.mubr.f32.gmra.mrb[0].mxu0 %v2311
        %v2313 = vpop.f32.mrb[0].mxu0
        %v2314 = vadd.f32 %v2217, %v2313
        %v2315 = vpop.f32.mrb[0].mxu0
        %2316 = vdwg.mxu0
        %2317 = vmatprep.subr.mxu0 0.0
        %v2318 = vand.u32 %v397, 4294901760
        %2319 = vmatpush1.msra.mxu0 %v2318
        %2320 = vmatprep.subr.mxu0 0.0
        %v2321 = vand.u32 %v398, 4294901760
        %2322 = vmatpush1.msra.mxu0 %v2321
        %2323 = vmatprep.subr.mxu0 0.0
        %2324 = vmatpush1.msra.mxu0 0.0
        %2325 = vmatprep.subr.mxu0 0.0
        %2326 = vmatpush1.msra.mxu0 0.0
        %2327 = vmatprep.subr.mxu0 0.0
        %2328 = vmatpush1.msra.mxu0 0.0
        %2329 = vmatprep.subr.mxu0 0.0
        %2330 = vmatpush1.msra.mxu0 0.0
        %2331 = vmatprep.subr.mxu0 0.0
        %2332 = vmatpush1.msra.mxu0 0.0
        %2333 = vmatprep.subr.mxu0 0.0
        %2334 = vmatpush1.msra.mxu0 0.0
        %2335 = vmatprep.subr.mxu0 0.0
        %2336 = vmatpush1.msra.mxu0 0.0
        %2337 = vmatprep.subr.mxu0 0.0
        %2338 = vmatpush1.msra.mxu0 0.0
        %2339 = vmatprep.subr.mxu0 0.0
        %2340 = vmatpush1.msra.mxu0 0.0
        %2341 = vmatprep.subr.mxu0 0.0
        %2342 = vmatpush1.msra.mxu0 0.0
        %2343 = vmatprep.subr.mxu0 0.0
        %2344 = vmatpush1.msra.mxu0 0.0
        %2345 = vmatprep.subr.mxu0 0.0
        %2346 = vmatpush1.msra.mxu0 0.0
        %2347 = vmatprep.subr.mxu0 0.0
        %2348 = vmatpush1.msra.mxu0 0.0
        %2349 = vmatprep.subr.mxu0 0.0
        %2350 = vmatpush1.msra.mxu0 0.0
        %2351 = vmatprep.subr.mxu0 0.0
        %2352 = vmatpush1.msra.mxu0 0.0
        %2353 = vmatprep.subr.mxu0 0.0
        %2354 = vmatpush1.msra.mxu0 0.0
        %2355 = vmatprep.subr.mxu0 0.0
        %2356 = vmatpush1.msra.mxu0 0.0
        %2357 = vmatprep.subr.mxu0 0.0
        %2358 = vmatpush1.msra.mxu0 0.0
        %2359 = vmatprep.subr.mxu0 0.0
        %2360 = vmatpush1.msra.mxu0 0.0
        %2361 = vmatprep.subr.mxu0 0.0
        %2362 = vmatpush1.msra.mxu0 0.0
        %2363 = vmatprep.subr.mxu0 0.0
        %2364 = vmatpush1.msra.mxu0 0.0
        %2365 = vmatprep.subr.mxu0 0.0
        %2366 = vmatpush1.msra.mxu0 0.0
        %2367 = vmatprep.subr.mxu0 0.0
        %2368 = vmatpush1.msra.mxu0 0.0
        %2369 = vmatprep.subr.mxu0 0.0
        %2370 = vmatpush1.msra.mxu0 0.0
        %2371 = vmatprep.subr.mxu0 0.0
        %2372 = vmatpush1.msra.mxu0 0.0
        %2373 = vmatprep.subr.mxu0 0.0
        %2374 = vmatpush1.msra.mxu0 0.0
        %2375 = vmatprep.subr.mxu0 0.0
        %2376 = vmatpush1.msra.mxu0 0.0
        %2377 = vmatprep.subr.mxu0 0.0
        %2378 = vmatpush1.msra.mxu0 0.0
        %2379 = vmatprep.subr.mxu0 0.0
        %2380 = vmatpush1.msra.mxu0 0.0
        %2381 = vmatprep.subr.mxu0 0.0
        %2382 = vmatpush1.msra.mxu0 0.0
        %2383 = vmatprep.mubr.f32.mxu0 0.0
        %v2384 = vand.u32 %v410, 4294901760
        %v2385 = vsub.f32 %v410, %v2384
        %v2386 = vand.u32 %v2385, 4294901760
        %v2387 = vsub.f32 %v2385, %v2386
        %v2388 = vand.u32 %v2387, 4294901760
        %2389 = vmatmul.mubr.f32.gmra.mrb[0].mxu0 %v2388
        %v2390 = vpop.f32.mrb[0].mxu0
        %v2391 = vadd.f32 0.0, %v2390
        %v2392 = vpop.f32.mrb[0].mxu0
        %2393 = vmatprep.mubr.f32.mxu0 0.0
        %v2394 = vand.u32 %v413, 4294901760
        %v2395 = vsub.f32 %v413, %v2394
        %v2396 = vand.u32 %v2395, 4294901760
        %v2397 = vsub.f32 %v2395, %v2396
        %v2398 = vand.u32 %v2397, 4294901760
        %2399 = vmatmul.mubr.f32.gmra.mrb[0].mxu0 %v2398
        %v2400 = vpop.f32.mrb[0].mxu0
        %v2401 = vadd.f32 0.0, %v2400
        %v2402 = vpop.f32.mrb[0].mxu0
        %2403 = vmatprep.mubr.f32.mxu0 0.0
        %v2404 = vand.u32 %v416, 4294901760
        %v2405 = vsub.f32 %v416, %v2404
        %v2406 = vand.u32 %v2405, 4294901760
        %v2407 = vsub.f32 %v2405, %v2406
        %v2408 = vand.u32 %v2407, 4294901760
        %2409 = vmatmul.mubr.f32.gmra.mrb[0].mxu0 %v2408
        %v2410 = vpop.f32.mrb[0].mxu0
        %v2411 = vadd.f32 0.0, %v2410
        %v2412 = vpop.f32.mrb[0].mxu0
        %2413 = vmatprep.mubr.f32.mxu0 0.0
        %v2414 = vand.u32 %v419, 4294901760
        %v2415 = vsub.f32 %v419, %v2414
        %v2416 = vand.u32 %v2415, 4294901760
        %v2417 = vsub.f32 %v2415, %v2416
        %v2418 = vand.u32 %v2417, 4294901760
        %2419 = vmatmul.mubr.f32.gmra.mrb[0].mxu0 %v2418
        %v2420 = vpop.f32.mrb[0].mxu0
        %v2421 = vadd.f32 0.0, %v2420
        %v2422 = vpop.f32.mrb[0].mxu0
        %2423 = vmatprep.mubr.f32.mxu0 0.0
        %v2424 = vand.u32 %v422, 4294901760
        %v2425 = vsub.f32 %v422, %v2424
        %v2426 = vand.u32 %v2425, 4294901760
        %v2427 = vsub.f32 %v2425, %v2426
        %v2428 = vand.u32 %v2427, 4294901760
        %2429 = vmatmul.mubr.f32.gmra.mrb[0].mxu0 %v2428
        %v2430 = vpop.f32.mrb[0].mxu0
        %v2431 = vadd.f32 0.0, %v2430
        %v2432 = vpop.f32.mrb[0].mxu0
        %2433 = vdwg.mxu0
        %2434 = vmatprep.subr.mxu0 0.0
        %v2435 = vand.u32 %v397, 4294901760
        %v2436 = vsub.f32 %v397, %v2435
        %v2437 = vand.u32 %v2436, 4294901760
        %v2438 = vsub.f32 %v2436, %v2437
        %v2439 = vand.u32 %v2438, 4294901760
        %2440 = vmatpush1.msra.mxu0 %v2439
        %2441 = vmatprep.subr.mxu0 0.0
        %v2442 = vand.u32 %v398, 4294901760
        %v2443 = vsub.f32 %v398, %v2442
        %v2444 = vand.u32 %v2443, 4294901760
        %v2445 = vsub.f32 %v2443, %v2444
        %v2446 = vand.u32 %v2445, 4294901760
        %2447 = vmatpush1.msra.mxu0 %v2446
        %2448 = vmatprep.subr.mxu0 0.0
        %2449 = vmatpush1.msra.mxu0 0.0
        %2450 = vmatprep.subr.mxu0 0.0
        %2451 = vmatpush1.msra.mxu0 0.0
        %2452 = vmatprep.subr.mxu0 0.0
        %2453 = vmatpush1.msra.mxu0 0.0
        %2454 = vmatprep.subr.mxu0 0.0
        %2455 = vmatpush1.msra.mxu0 0.0
        %2456 = vmatprep.subr.mxu0 0.0
        %2457 = vmatpush1.msra.mxu0 0.0
        %2458 = vmatprep.subr.mxu0 0.0
        %2459 = vmatpush1.msra.mxu0 0.0
        %2460 = vmatprep.subr.mxu0 0.0
        %2461 = vmatpush1.msra.mxu0 0.0
        %2462 = vmatprep.subr.mxu0 0.0
        %2463 = vmatpush1.msra.mxu0 0.0
        %2464 = vmatprep.subr.mxu0 0.0
        %2465 = vmatpush1.msra.mxu0 0.0
        %2466 = vmatprep.subr.mxu0 0.0
        %2467 = vmatpush1.msra.mxu0 0.0
        %2468 = vmatprep.subr.mxu0 0.0
        %2469 = vmatpush1.msra.mxu0 0.0
        %2470 = vmatprep.subr.mxu0 0.0
        %2471 = vmatpush1.msra.mxu0 0.0
        %2472 = vmatprep.subr.mxu0 0.0
        %2473 = vmatpush1.msra.mxu0 0.0
        %2474 = vmatprep.subr.mxu0 0.0
        %2475 = vmatpush1.msra.mxu0 0.0
        %2476 = vmatprep.subr.mxu0 0.0
        %2477 = vmatpush1.msra.mxu0 0.0
        %2478 = vmatprep.subr.mxu0 0.0
        %2479 = vmatpush1.msra.mxu0 0.0
        %2480 = vmatprep.subr.mxu0 0.0
        %2481 = vmatpush1.msra.mxu0 0.0
        %2482 = vmatprep.subr.mxu0 0.0
        %2483 = vmatpush1.msra.mxu0 0.0
        %2484 = vmatprep.subr.mxu0 0.0
        %2485 = vmatpush1.msra.mxu0 0.0
        %2486 = vmatprep.subr.mxu0 0.0
        %2487 = vmatpush1.msra.mxu0 0.0
        %2488 = vmatprep.subr.mxu0 0.0
        %2489 = vmatpush1.msra.mxu0 0.0
        %2490 = vmatprep.subr.mxu0 0.0
        %2491 = vmatpush1.msra.mxu0 0.0
        %2492 = vmatprep.subr.mxu0 0.0
        %2493 = vmatpush1.msra.mxu0 0.0
        %2494 = vmatprep.subr.mxu0 0.0
        %2495 = vmatpush1.msra.mxu0 0.0
        %2496 = vmatprep.subr.mxu0 0.0
        %2497 = vmatpush1.msra.mxu0 0.0
        %2498 = vmatprep.subr.mxu0 0.0
        %2499 = vmatpush1.msra.mxu0 0.0
        %2500 = vmatprep.subr.mxu0 0.0
        %2501 = vmatpush1.msra.mxu0 0.0
        %2502 = vmatprep.subr.mxu0 0.0
        %2503 = vmatpush1.msra.mxu0 0.0
        %2504 = vmatprep.subr.mxu0 0.0
        %2505 = vmatpush1.msra.mxu0 0.0
        %2506 = vmatprep.subr.mxu0 0.0
        %2507 = vmatpush1.msra.mxu0 0.0
        %2508 = vmatprep.mubr.f32.mxu0 0.0
        %v2509 = vand.u32 %v410, 4294901760
        %2510 = vmatmul.mubr.f32.gmra.mrb[0].mxu0 %v2509
        %v2511 = vpop.f32.mrb[0].mxu0
        %v2512 = vadd.f32 %v2391, %v2511
        %v2513 = vpop.f32.mrb[0].mxu0
        %2514 = vmatprep.mubr.f32.mxu0 0.0
        %v2515 = vand.u32 %v413, 4294901760
        %2516 = vmatmul.mubr.f32.gmra.mrb[0].mxu0 %v2515
        %v2517 = vpop.f32.mrb[0].mxu0
        %v2518 = vadd.f32 %v2401, %v2517
        %v2519 = vpop.f32.mrb[0].mxu0
        %2520 = vmatprep.mubr.f32.mxu0 0.0
        %v2521 = vand.u32 %v416, 4294901760
        %2522 = vmatmul.mubr.f32.gmra.mrb[0].mxu0 %v2521
        %v2523 = vpop.f32.mrb[0].mxu0
        %v2524 = vadd.f32 %v2411, %v2523
        %v2525 = vpop.f32.mrb[0].mxu0
        %2526 = vmatprep.mubr.f32.mxu0 0.0
        %v2527 = vand.u32 %v419, 4294901760
        %2528 = vmatmul.mubr.f32.gmra.mrb[0].mxu0 %v2527
        %v2529 = vpop.f32.mrb[0].mxu0
        %v2530 = vadd.f32 %v2421, %v2529
        %v2531 = vpop.f32.mrb[0].mxu0
        %2532 = vmatprep.mubr.f32.mxu0 0.0
        %v2533 = vand.u32 %v422, 4294901760
        %2534 = vmatmul.mubr.f32.gmra.mrb[0].mxu0 %v2533
        %v2535 = vpop.f32.mrb[0].mxu0
        %v2536 = vadd.f32 %v2431, %v2535
        %v2537 = vpop.f32.mrb[0].mxu0
        %2538 = vdwg.mxu0
        %2539 = vmatprep.subr.mxu0 0.0
        %v2540 = vand.u32 %v397, 4294901760
        %v2541 = vsub.f32 %v397, %v2540
        %2542 = vmatpush1.msra.mxu0 %v2541
        %2543 = vmatprep.subr.mxu0 0.0
        %v2544 = vand.u32 %v398, 4294901760
        %v2545 = vsub.f32 %v398, %v2544
        %2546 = vmatpush1.msra.mxu0 %v2545
        %2547 = vmatprep.subr.mxu0 0.0
        %2548 = vmatpush1.msra.mxu0 0.0
        %2549 = vmatprep.subr.mxu0 0.0
        %2550 = vmatpush1.msra.mxu0 0.0
        %2551 = vmatprep.subr.mxu0 0.0
        %2552 = vmatpush1.msra.mxu0 0.0
        %2553 = vmatprep.subr.mxu0 0.0
        %2554 = vmatpush1.msra.mxu0 0.0
        %2555 = vmatprep.subr.mxu0 0.0
        %2556 = vmatpush1.msra.mxu0 0.0
        %2557 = vmatprep.subr.mxu0 0.0
        %2558 = vmatpush1.msra.mxu0 0.0
        %2559 = vmatprep.subr.mxu0 0.0
        %2560 = vmatpush1.msra.mxu0 0.0
        %2561 = vmatprep.subr.mxu0 0.0
        %2562 = vmatpush1.msra.mxu0 0.0
        %2563 = vmatprep.subr.mxu0 0.0
        %2564 = vmatpush1.msra.mxu0 0.0
        %2565 = vmatprep.subr.mxu0 0.0
        %2566 = vmatpush1.msra.mxu0 0.0
        %2567 = vmatprep.subr.mxu0 0.0
        %2568 = vmatpush1.msra.mxu0 0.0
        %2569 = vmatprep.subr.mxu0 0.0
        %2570 = vmatpush1.msra.mxu0 0.0
        %2571 = vmatprep.subr.mxu0 0.0
        %2572 = vmatpush1.msra.mxu0 0.0
        %2573 = vmatprep.subr.mxu0 0.0
        %2574 = vmatpush1.msra.mxu0 0.0
        %2575 = vmatprep.subr.mxu0 0.0
        %2576 = vmatpush1.msra.mxu0 0.0
        %2577 = vmatprep.subr.mxu0 0.0
        %2578 = vmatpush1.msra.mxu0 0.0
        %2579 = vmatprep.subr.mxu0 0.0
        %2580 = vmatpush1.msra.mxu0 0.0
        %2581 = vmatprep.subr.mxu0 0.0
        %2582 = vmatpush1.msra.mxu0 0.0
        %2583 = vmatprep.subr.mxu0 0.0
        %2584 = vmatpush1.msra.mxu0 0.0
        %2585 = vmatprep.subr.mxu0 0.0
        %2586 = vmatpush1.msra.mxu0 0.0
        %2587 = vmatprep.subr.mxu0 0.0
        %2588 = vmatpush1.msra.mxu0 0.0
        %2589 = vmatprep.subr.mxu0 0.0
        %2590 = vmatpush1.msra.mxu0 0.0
        %2591 = vmatprep.subr.mxu0 0.0
        %2592 = vmatpush1.msra.mxu0 0.0
        %2593 = vmatprep.subr.mxu0 0.0
        %2594 = vmatpush1.msra.mxu0 0.0
        %2595 = vmatprep.subr.mxu0 0.0
        %2596 = vmatpush1.msra.mxu0 0.0
        %2597 = vmatprep.subr.mxu0 0.0
        %2598 = vmatpush1.msra.mxu0 0.0
        %2599 = vmatprep.subr.mxu0 0.0
        %2600 = vmatpush1.msra.mxu0 0.0
        %2601 = vmatprep.subr.mxu0 0.0
        %2602 = vmatpush1.msra.mxu0 0.0
        %2603 = vmatprep.subr.mxu0 0.0
        %2604 = vmatpush1.msra.mxu0 0.0
        %2605 = vmatprep.subr.mxu0 0.0
        %2606 = vmatpush1.msra.mxu0 0.0
        %2607 = vmatprep.mubr.f32.mxu0 0.0
        %v2608 = vand.u32 %v410, 4294901760
        %v2609 = vsub.f32 %v410, %v2608
        %2610 = vmatmul.mubr.f32.gmra.mrb[0].mxu0 %v2609
        %v2611 = vpop.f32.mrb[0].mxu0
        %v2612 = vadd.f32 %v2512, %v2611
        %v2613 = vpop.f32.mrb[0].mxu0
        %2614 = vmatprep.mubr.f32.mxu0 0.0
        %v2615 = vand.u32 %v413, 4294901760
        %v2616 = vsub.f32 %v413, %v2615
        %2617 = vmatmul.mubr.f32.gmra.mrb[0].mxu0 %v2616
        %v2618 = vpop.f32.mrb[0].mxu0
        %v2619 = vadd.f32 %v2518, %v2618
        %v2620 = vpop.f32.mrb[0].mxu0
        %2621 = vmatprep.mubr.f32.mxu0 0.0
        %v2622 = vand.u32 %v416, 4294901760
        %v2623 = vsub.f32 %v416, %v2622
        %2624 = vmatmul.mubr.f32.gmra.mrb[0].mxu0 %v2623
        %v2625 = vpop.f32.mrb[0].mxu0
        %v2626 = vadd.f32 %v2524, %v2625
        %v2627 = vpop.f32.mrb[0].mxu0
        %2628 = vmatprep.mubr.f32.mxu0 0.0
        %v2629 = vand.u32 %v419, 4294901760
        %v2630 = vsub.f32 %v419, %v2629
        %2631 = vmatmul.mubr.f32.gmra.mrb[0].mxu0 %v2630
        %v2632 = vpop.f32.mrb[0].mxu0
        %v2633 = vadd.f32 %v2530, %v2632
        %v2634 = vpop.f32.mrb[0].mxu0
        %2635 = vmatprep.mubr.f32.mxu0 0.0
        %v2636 = vand.u32 %v422, 4294901760
        %v2637 = vsub.f32 %v422, %v2636
        %2638 = vmatmul.mubr.f32.gmra.mrb[0].mxu0 %v2637
        %v2639 = vpop.f32.mrb[0].mxu0
        %v2640 = vadd.f32 %v2536, %v2639
        %v2641 = vpop.f32.mrb[0].mxu0
        %2642 = vdwg.mxu0
        %2643 = vmatprep.subr.mxu0 0.0
        %v2644 = vand.u32 %v397, 4294901760
        %2645 = vmatpush1.msra.mxu0 %v2644
        %2646 = vmatprep.subr.mxu0 0.0
        %v2647 = vand.u32 %v398, 4294901760
        %2648 = vmatpush1.msra.mxu0 %v2647
        %2649 = vmatprep.subr.mxu0 0.0
        %2650 = vmatpush1.msra.mxu0 0.0
        %2651 = vmatprep.subr.mxu0 0.0
        %2652 = vmatpush1.msra.mxu0 0.0
        %2653 = vmatprep.subr.mxu0 0.0
        %2654 = vmatpush1.msra.mxu0 0.0
        %2655 = vmatprep.subr.mxu0 0.0
        %2656 = vmatpush1.msra.mxu0 0.0
        %2657 = vmatprep.subr.mxu0 0.0
        %2658 = vmatpush1.msra.mxu0 0.0
        %2659 = vmatprep.subr.mxu0 0.0
        %2660 = vmatpush1.msra.mxu0 0.0
        %2661 = vmatprep.subr.mxu0 0.0
        %2662 = vmatpush1.msra.mxu0 0.0
        %2663 = vmatprep.subr.mxu0 0.0
        %2664 = vmatpush1.msra.mxu0 0.0
        %2665 = vmatprep.subr.mxu0 0.0
        %2666 = vmatpush1.msra.mxu0 0.0
        %2667 = vmatprep.subr.mxu0 0.0
        %2668 = vmatpush1.msra.mxu0 0.0
        %2669 = vmatprep.subr.mxu0 0.0
        %2670 = vmatpush1.msra.mxu0 0.0
        %2671 = vmatprep.subr.mxu0 0.0
        %2672 = vmatpush1.msra.mxu0 0.0
        %2673 = vmatprep.subr.mxu0 0.0
        %2674 = vmatpush1.msra.mxu0 0.0
        %2675 = vmatprep.subr.mxu0 0.0
        %2676 = vmatpush1.msra.mxu0 0.0
        %2677 = vmatprep.subr.mxu0 0.0
        %2678 = vmatpush1.msra.mxu0 0.0
        %2679 = vmatprep.subr.mxu0 0.0
        %2680 = vmatpush1.msra.mxu0 0.0
        %2681 = vmatprep.subr.mxu0 0.0
        %2682 = vmatpush1.msra.mxu0 0.0
        %2683 = vmatprep.subr.mxu0 0.0
        %2684 = vmatpush1.msra.mxu0 0.0
        %2685 = vmatprep.subr.mxu0 0.0
        %2686 = vmatpush1.msra.mxu0 0.0
        %2687 = vmatprep.subr.mxu0 0.0
        %2688 = vmatpush1.msra.mxu0 0.0
        %2689 = vmatprep.subr.mxu0 0.0
        %2690 = vmatpush1.msra.mxu0 0.0
        %2691 = vmatprep.subr.mxu0 0.0
        %2692 = vmatpush1.msra.mxu0 0.0
        %2693 = vmatprep.subr.mxu0 0.0
        %2694 = vmatpush1.msra.mxu0 0.0
        %2695 = vmatprep.subr.mxu0 0.0
        %2696 = vmatpush1.msra.mxu0 0.0
        %2697 = vmatprep.subr.mxu0 0.0
        %2698 = vmatpush1.msra.mxu0 0.0
        %2699 = vmatprep.subr.mxu0 0.0
        %2700 = vmatpush1.msra.mxu0 0.0
        %2701 = vmatprep.subr.mxu0 0.0
        %2702 = vmatpush1.msra.mxu0 0.0
        %2703 = vmatprep.subr.mxu0 0.0
        %2704 = vmatpush1.msra.mxu0 0.0
        %2705 = vmatprep.subr.mxu0 0.0
        %2706 = vmatpush1.msra.mxu0 0.0
        %2707 = vmatprep.subr.mxu0 0.0
        %2708 = vmatpush1.msra.mxu0 0.0
        %2709 = vmatprep.mubr.f32.mxu0 0.0
        %v2710 = vand.u32 %v410, 4294901760
        %v2711 = vsub.f32 %v410, %v2710
        %v2712 = vand.u32 %v2711, 4294901760
        %2713 = vmatmul.mubr.f32.gmra.mrb[0].mxu0 %v2712
        %v2714 = vpop.f32.mrb[0].mxu0
        %v2715 = vadd.f32 %v2612, %v2714
        %v2716 = vpop.f32.mrb[0].mxu0
        %2717 = vmatprep.mubr.f32.mxu0 0.0
        %v2718 = vand.u32 %v413, 4294901760
        %v2719 = vsub.f32 %v413, %v2718
        %v2720 = vand.u32 %v2719, 4294901760
        %2721 = vmatmul.mubr.f32.gmra.mrb[0].mxu0 %v2720
        %v2722 = vpop.f32.mrb[0].mxu0
        %v2723 = vadd.f32 %v2619, %v2722
        %v2724 = vpop.f32.mrb[0].mxu0
        %2725 = vmatprep.mubr.f32.mxu0 0.0
        %v2726 = vand.u32 %v416, 4294901760
        %v2727 = vsub.f32 %v416, %v2726
        %v2728 = vand.u32 %v2727, 4294901760
        %2729 = vmatmul.mubr.f32.gmra.mrb[0].mxu0 %v2728
        %v2730 = vpop.f32.mrb[0].mxu0
        %v2731 = vadd.f32 %v2626, %v2730
        %v2732 = vpop.f32.mrb[0].mxu0
        %2733 = vmatprep.mubr.f32.mxu0 0.0
        %v2734 = vand.u32 %v419, 4294901760
        %v2735 = vsub.f32 %v419, %v2734
        %v2736 = vand.u32 %v2735, 4294901760
        %2737 = vmatmul.mubr.f32.gmra.mrb[0].mxu0 %v2736
        %v2738 = vpop.f32.mrb[0].mxu0
        %v2739 = vadd.f32 %v2633, %v2738
        %v2740 = vpop.f32.mrb[0].mxu0
        %2741 = vmatprep.mubr.f32.mxu0 0.0
        %v2742 = vand.u32 %v422, 4294901760
        %v2743 = vsub.f32 %v422, %v2742
        %v2744 = vand.u32 %v2743, 4294901760
        %2745 = vmatmul.mubr.f32.gmra.mrb[0].mxu0 %v2744
        %v2746 = vpop.f32.mrb[0].mxu0
        %v2747 = vadd.f32 %v2640, %v2746
        %v2748 = vpop.f32.mrb[0].mxu0
        %2749 = vdwg.mxu0
        %2750 = vmatprep.subr.mxu0 0.0
        %v2751 = vand.u32 %v397, 4294901760
        %v2752 = vsub.f32 %v397, %v2751
        %v2753 = vand.u32 %v2752, 4294901760
        %2754 = vmatpush1.msra.mxu0 %v2753
        %2755 = vmatprep.subr.mxu0 0.0
        %v2756 = vand.u32 %v398, 4294901760
        %v2757 = vsub.f32 %v398, %v2756
        %v2758 = vand.u32 %v2757, 4294901760
        %2759 = vmatpush1.msra.mxu0 %v2758
        %2760 = vmatprep.subr.mxu0 0.0
        %2761 = vmatpush1.msra.mxu0 0.0
        %2762 = vmatprep.subr.mxu0 0.0
        %2763 = vmatpush1.msra.mxu0 0.0
        %2764 = vmatprep.subr.mxu0 0.0
        %2765 = vmatpush1.msra.mxu0 0.0
        %2766 = vmatprep.subr.mxu0 0.0
        %2767 = vmatpush1.msra.mxu0 0.0
        %2768 = vmatprep.subr.mxu0 0.0
        %2769 = vmatpush1.msra.mxu0 0.0
        %2770 = vmatprep.subr.mxu0 0.0
        %2771 = vmatpush1.msra.mxu0 0.0
        %2772 = vmatprep.subr.mxu0 0.0
        %2773 = vmatpush1.msra.mxu0 0.0
        %2774 = vmatprep.subr.mxu0 0.0
        %2775 = vmatpush1.msra.mxu0 0.0
        %2776 = vmatprep.subr.mxu0 0.0
        %2777 = vmatpush1.msra.mxu0 0.0
        %2778 = vmatprep.subr.mxu0 0.0
        %2779 = vmatpush1.msra.mxu0 0.0
        %2780 = vmatprep.subr.mxu0 0.0
        %2781 = vmatpush1.msra.mxu0 0.0
        %2782 = vmatprep.subr.mxu0 0.0
        %2783 = vmatpush1.msra.mxu0 0.0
        %2784 = vmatprep.subr.mxu0 0.0
        %2785 = vmatpush1.msra.mxu0 0.0
        %2786 = vmatprep.subr.mxu0 0.0
        %2787 = vmatpush1.msra.mxu0 0.0
        %2788 = vmatprep.subr.mxu0 0.0
        %2789 = vmatpush1.msra.mxu0 0.0
        %2790 = vmatprep.subr.mxu0 0.0
        %2791 = vmatpush1.msra.mxu0 0.0
        %2792 = vmatprep.subr.mxu0 0.0
        %2793 = vmatpush1.msra.mxu0 0.0
        %2794 = vmatprep.subr.mxu0 0.0
        %2795 = vmatpush1.msra.mxu0 0.0
        %2796 = vmatprep.subr.mxu0 0.0
        %2797 = vmatpush1.msra.mxu0 0.0
        %2798 = vmatprep.subr.mxu0 0.0
        %2799 = vmatpush1.msra.mxu0 0.0
        %2800 = vmatprep.subr.mxu0 0.0
        %2801 = vmatpush1.msra.mxu0 0.0
        %2802 = vmatprep.subr.mxu0 0.0
        %2803 = vmatpush1.msra.mxu0 0.0
        %2804 = vmatprep.subr.mxu0 0.0
        %2805 = vmatpush1.msra.mxu0 0.0
        %2806 = vmatprep.subr.mxu0 0.0
        %2807 = vmatpush1.msra.mxu0 0.0
        %2808 = vmatprep.subr.mxu0 0.0
        %2809 = vmatpush1.msra.mxu0 0.0
        %2810 = vmatprep.subr.mxu0 0.0
        %2811 = vmatpush1.msra.mxu0 0.0
        %2812 = vmatprep.subr.mxu0 0.0
        %2813 = vmatpush1.msra.mxu0 0.0
        %2814 = vmatprep.subr.mxu0 0.0
        %2815 = vmatpush1.msra.mxu0 0.0
        %2816 = vmatprep.subr.mxu0 0.0
        %2817 = vmatpush1.msra.mxu0 0.0
        %2818 = vmatprep.subr.mxu0 0.0
        %2819 = vmatpush1.msra.mxu0 0.0
        %2820 = vmatprep.mubr.f32.mxu0 0.0
        %v2821 = vand.u32 %v410, 4294901760
        %2822 = vmatmul.mubr.f32.gmra.mrb[0].mxu0 %v2821
        %v2823 = vpop.f32.mrb[0].mxu0
        %v2824 = vadd.f32 %v2715, %v2823
        %v2825 = vpop.f32.mrb[0].mxu0
        %2826 = vmatprep.mubr.f32.mxu0 0.0
        %v2827 = vand.u32 %v413, 4294901760
        %2828 = vmatmul.mubr.f32.gmra.mrb[0].mxu0 %v2827
        %v2829 = vpop.f32.mrb[0].mxu0
        %v2830 = vadd.f32 %v2723, %v2829
        %v2831 = vpop.f32.mrb[0].mxu0
        %2832 = vmatprep.mubr.f32.mxu0 0.0
        %v2833 = vand.u32 %v416, 4294901760
        %2834 = vmatmul.mubr.f32.gmra.mrb[0].mxu0 %v2833
        %v2835 = vpop.f32.mrb[0].mxu0
        %v2836 = vadd.f32 %v2731, %v2835
        %v2837 = vpop.f32.mrb[0].mxu0
        %2838 = vmatprep.mubr.f32.mxu0 0.0
        %v2839 = vand.u32 %v419, 4294901760
        %2840 = vmatmul.mubr.f32.gmra.mrb[0].mxu0 %v2839
        %v2841 = vpop.f32.mrb[0].mxu0
        %v2842 = vadd.f32 %v2739, %v2841
        %v2843 = vpop.f32.mrb[0].mxu0
        %2844 = vmatprep.mubr.f32.mxu0 0.0
        %v2845 = vand.u32 %v422, 4294901760
        %2846 = vmatmul.mubr.f32.gmra.mrb[0].mxu0 %v2845
        %v2847 = vpop.f32.mrb[0].mxu0
        %v2848 = vadd.f32 %v2747, %v2847
        %v2849 = vpop.f32.mrb[0].mxu0
        %2850 = vdwg.mxu0
        %2851 = vmatprep.subr.mxu0 0.0
        %v2852 = vand.u32 %v397, 4294901760
        %2853 = vmatpush1.msra.mxu0 %v2852
        %2854 = vmatprep.subr.mxu0 0.0
        %v2855 = vand.u32 %v398, 4294901760
        %2856 = vmatpush1.msra.mxu0 %v2855
        %2857 = vmatprep.subr.mxu0 0.0
        %2858 = vmatpush1.msra.mxu0 0.0
        %2859 = vmatprep.subr.mxu0 0.0
        %2860 = vmatpush1.msra.mxu0 0.0
        %2861 = vmatprep.subr.mxu0 0.0
        %2862 = vmatpush1.msra.mxu0 0.0
        %2863 = vmatprep.subr.mxu0 0.0
        %2864 = vmatpush1.msra.mxu0 0.0
        %2865 = vmatprep.subr.mxu0 0.0
        %2866 = vmatpush1.msra.mxu0 0.0
        %2867 = vmatprep.subr.mxu0 0.0
        %2868 = vmatpush1.msra.mxu0 0.0
        %2869 = vmatprep.subr.mxu0 0.0
        %2870 = vmatpush1.msra.mxu0 0.0
        %2871 = vmatprep.subr.mxu0 0.0
        %2872 = vmatpush1.msra.mxu0 0.0
        %2873 = vmatprep.subr.mxu0 0.0
        %2874 = vmatpush1.msra.mxu0 0.0
        %2875 = vmatprep.subr.mxu0 0.0
        %2876 = vmatpush1.msra.mxu0 0.0
        %2877 = vmatprep.subr.mxu0 0.0
        %2878 = vmatpush1.msra.mxu0 0.0
        %2879 = vmatprep.subr.mxu0 0.0
        %2880 = vmatpush1.msra.mxu0 0.0
        %2881 = vmatprep.subr.mxu0 0.0
        %2882 = vmatpush1.msra.mxu0 0.0
        %2883 = vmatprep.subr.mxu0 0.0
        %2884 = vmatpush1.msra.mxu0 0.0
        %2885 = vmatprep.subr.mxu0 0.0
        %2886 = vmatpush1.msra.mxu0 0.0
        %2887 = vmatprep.subr.mxu0 0.0
        %2888 = vmatpush1.msra.mxu0 0.0
        %2889 = vmatprep.subr.mxu0 0.0
        %2890 = vmatpush1.msra.mxu0 0.0
        %2891 = vmatprep.subr.mxu0 0.0
        %2892 = vmatpush1.msra.mxu0 0.0
        %2893 = vmatprep.subr.mxu0 0.0
        %2894 = vmatpush1.msra.mxu0 0.0
        %2895 = vmatprep.subr.mxu0 0.0
        %2896 = vmatpush1.msra.mxu0 0.0
        %2897 = vmatprep.subr.mxu0 0.0
        %2898 = vmatpush1.msra.mxu0 0.0
        %2899 = vmatprep.subr.mxu0 0.0
        %2900 = vmatpush1.msra.mxu0 0.0
        %2901 = vmatprep.subr.mxu0 0.0
        %2902 = vmatpush1.msra.mxu0 0.0
        %2903 = vmatprep.subr.mxu0 0.0
        %2904 = vmatpush1.msra.mxu0 0.0
        %2905 = vmatprep.subr.mxu0 0.0
        %2906 = vmatpush1.msra.mxu0 0.0
        %2907 = vmatprep.subr.mxu0 0.0
        %2908 = vmatpush1.msra.mxu0 0.0
        %2909 = vmatprep.subr.mxu0 0.0
        %2910 = vmatpush1.msra.mxu0 0.0
        %2911 = vmatprep.subr.mxu0 0.0
        %2912 = vmatpush1.msra.mxu0 0.0
        %2913 = vmatprep.subr.mxu0 0.0
        %2914 = vmatpush1.msra.mxu0 0.0
        %2915 = vmatprep.subr.mxu0 0.0
        %2916 = vmatpush1.msra.mxu0 0.0
        %2917 = vmatprep.mubr.f32.mxu0 0.0
        %v2918 = vand.u32 %v410, 4294901760
        %2919 = vmatmul.mubr.f32.gmra.mrb[0].mxu0 %v2918
        %v2920 = vpop.f32.mrb[0].mxu0
        %v2921 = vadd.f32 %v2824, %v2920
        %v2922 = vpop.f32.mrb[0].mxu0
        %2923 = vmatprep.mubr.f32.mxu0 0.0
        %v2924 = vand.u32 %v413, 4294901760
        %2925 = vmatmul.mubr.f32.gmra.mrb[0].mxu0 %v2924
        %v2926 = vpop.f32.mrb[0].mxu0
        %v2927 = vadd.f32 %v2830, %v2926
        %v2928 = vpop.f32.mrb[0].mxu0
        %2929 = vmatprep.mubr.f32.mxu0 0.0
        %v2930 = vand.u32 %v416, 4294901760
        %2931 = vmatmul.mubr.f32.gmra.mrb[0].mxu0 %v2930
        %v2932 = vpop.f32.mrb[0].mxu0
        %v2933 = vadd.f32 %v2836, %v2932
        %v2934 = vpop.f32.mrb[0].mxu0
        %2935 = vmatprep.mubr.f32.mxu0 0.0
        %v2936 = vand.u32 %v419, 4294901760
        %2937 = vmatmul.mubr.f32.gmra.mrb[0].mxu0 %v2936
        %v2938 = vpop.f32.mrb[0].mxu0
        %v2939 = vadd.f32 %v2842, %v2938
        %v2940 = vpop.f32.mrb[0].mxu0
        %2941 = vmatprep.mubr.f32.mxu0 0.0
        %v2942 = vand.u32 %v422, 4294901760
        %2943 = vmatmul.mubr.f32.gmra.mrb[0].mxu0 %v2942
        %v2944 = vpop.f32.mrb[0].mxu0
        %v2945 = vadd.f32 %v2848, %v2944
        %v2946 = vpop.f32.mrb[0].mxu0
        %2947 = vdwg.mxu0
        %2948 = vmatprep.subr.mxu0 0.0
        %v2949 = vand.u32 %v401, 4294901760
        %2950 = vmatpush1.msra.mxu0 %v2949
        %2951 = vmatprep.subr.mxu0 0.0
        %v2952 = vand.u32 %v402, 4294901760
        %2953 = vmatpush1.msra.mxu0 %v2952
        %2954 = vmatprep.subr.mxu0 0.0
        %2955 = vmatpush1.msra.mxu0 0.0
        %2956 = vmatprep.subr.mxu0 0.0
        %2957 = vmatpush1.msra.mxu0 0.0
        %2958 = vmatprep.subr.mxu0 0.0
        %2959 = vmatpush1.msra.mxu0 0.0
        %2960 = vmatprep.subr.mxu0 0.0
        %2961 = vmatpush1.msra.mxu0 0.0
        %2962 = vmatprep.subr.mxu0 0.0
        %2963 = vmatpush1.msra.mxu0 0.0
        %2964 = vmatprep.subr.mxu0 0.0
        %2965 = vmatpush1.msra.mxu0 0.0
        %2966 = vmatprep.subr.mxu0 0.0
        %2967 = vmatpush1.msra.mxu0 0.0
        %2968 = vmatprep.subr.mxu0 0.0
        %2969 = vmatpush1.msra.mxu0 0.0
        %2970 = vmatprep.subr.mxu0 0.0
        %2971 = vmatpush1.msra.mxu0 0.0
        %2972 = vmatprep.subr.mxu0 0.0
        %2973 = vmatpush1.msra.mxu0 0.0
        %2974 = vmatprep.subr.mxu0 0.0
        %2975 = vmatpush1.msra.mxu0 0.0
        %2976 = vmatprep.subr.mxu0 0.0
        %2977 = vmatpush1.msra.mxu0 0.0
        %2978 = vmatprep.subr.mxu0 0.0
        %2979 = vmatpush1.msra.mxu0 0.0
        %2980 = vmatprep.subr.mxu0 0.0
        %2981 = vmatpush1.msra.mxu0 0.0
        %2982 = vmatprep.subr.mxu0 0.0
        %2983 = vmatpush1.msra.mxu0 0.0
        %2984 = vmatprep.subr.mxu0 0.0
        %2985 = vmatpush1.msra.mxu0 0.0
        %2986 = vmatprep.subr.mxu0 0.0
        %2987 = vmatpush1.msra.mxu0 0.0
        %2988 = vmatprep.subr.mxu0 0.0
        %2989 = vmatpush1.msra.mxu0 0.0
        %2990 = vmatprep.subr.mxu0 0.0
        %2991 = vmatpush1.msra.mxu0 0.0
        %2992 = vmatprep.subr.mxu0 0.0
        %2993 = vmatpush1.msra.mxu0 0.0
        %2994 = vmatprep.subr.mxu0 0.0
        %2995 = vmatpush1.msra.mxu0 0.0
        %2996 = vmatprep.subr.mxu0 0.0
        %2997 = vmatpush1.msra.mxu0 0.0
        %2998 = vmatprep.subr.mxu0 0.0
        %2999 = vmatpush1.msra.mxu0 0.0
        %3000 = vmatprep.subr.mxu0 0.0
        %3001 = vmatpush1.msra.mxu0 0.0
        %3002 = vmatprep.subr.mxu0 0.0
        %3003 = vmatpush1.msra.mxu0 0.0
        %3004 = vmatprep.subr.mxu0 0.0
        %3005 = vmatpush1.msra.mxu0 0.0
        %3006 = vmatprep.subr.mxu0 0.0
        %3007 = vmatpush1.msra.mxu0 0.0
        %3008 = vmatprep.subr.mxu0 0.0
        %3009 = vmatpush1.msra.mxu0 0.0
        %3010 = vmatprep.subr.mxu0 0.0
        %3011 = vmatpush1.msra.mxu0 0.0
        %3012 = vmatprep.subr.mxu0 0.0
        %3013 = vmatpush1.msra.mxu0 0.0
        %3014 = vmatprep.mubr.f32.mxu0 0.0
        %v3015 = vand.u32 %v410, 4294901760
        %v3016 = vsub.f32 %v410, %v3015
        %v3017 = vand.u32 %v3016, 4294901760
        %v3018 = vsub.f32 %v3016, %v3017
        %v3019 = vand.u32 %v3018, 4294901760
        %3020 = vmatmul.mubr.f32.gmra.mrb[0].mxu0 %v3019
        %v3021 = vpop.f32.mrb[0].mxu0
        %v3022 = vadd.f32 0.0, %v3021
        %v3023 = vpop.f32.mrb[0].mxu0
        %3024 = vmatprep.mubr.f32.mxu0 0.0
        %v3025 = vand.u32 %v413, 4294901760
        %v3026 = vsub.f32 %v413, %v3025
        %v3027 = vand.u32 %v3026, 4294901760
        %v3028 = vsub.f32 %v3026, %v3027
        %v3029 = vand.u32 %v3028, 4294901760
        %3030 = vmatmul.mubr.f32.gmra.mrb[0].mxu0 %v3029
        %v3031 = vpop.f32.mrb[0].mxu0
        %v3032 = vadd.f32 0.0, %v3031
        %v3033 = vpop.f32.mrb[0].mxu0
        %3034 = vmatprep.mubr.f32.mxu0 0.0
        %v3035 = vand.u32 %v416, 4294901760
        %v3036 = vsub.f32 %v416, %v3035
        %v3037 = vand.u32 %v3036, 4294901760
        %v3038 = vsub.f32 %v3036, %v3037
        %v3039 = vand.u32 %v3038, 4294901760
        %3040 = vmatmul.mubr.f32.gmra.mrb[0].mxu0 %v3039
        %v3041 = vpop.f32.mrb[0].mxu0
        %v3042 = vadd.f32 0.0, %v3041
        %v3043 = vpop.f32.mrb[0].mxu0
        %3044 = vmatprep.mubr.f32.mxu0 0.0
        %v3045 = vand.u32 %v419, 4294901760
        %v3046 = vsub.f32 %v419, %v3045
        %v3047 = vand.u32 %v3046, 4294901760
        %v3048 = vsub.f32 %v3046, %v3047
        %v3049 = vand.u32 %v3048, 4294901760
        %3050 = vmatmul.mubr.f32.gmra.mrb[0].mxu0 %v3049
        %v3051 = vpop.f32.mrb[0].mxu0
        %v3052 = vadd.f32 0.0, %v3051
        %v3053 = vpop.f32.mrb[0].mxu0
        %3054 = vmatprep.mubr.f32.mxu0 0.0
        %v3055 = vand.u32 %v422, 4294901760
        %v3056 = vsub.f32 %v422, %v3055
        %v3057 = vand.u32 %v3056, 4294901760
        %v3058 = vsub.f32 %v3056, %v3057
        %v3059 = vand.u32 %v3058, 4294901760
        %3060 = vmatmul.mubr.f32.gmra.mrb[0].mxu0 %v3059
        %v3061 = vpop.f32.mrb[0].mxu0
        %v3062 = vadd.f32 0.0, %v3061
        %v3063 = vpop.f32.mrb[0].mxu0
        %3064 = vdwg.mxu0
        %3065 = vmatprep.subr.mxu0 0.0
        %v3066 = vand.u32 %v401, 4294901760
        %v3067 = vsub.f32 %v401, %v3066
        %v3068 = vand.u32 %v3067, 4294901760
        %v3069 = vsub.f32 %v3067, %v3068
        %v3070 = vand.u32 %v3069, 4294901760
        %3071 = vmatpush1.msra.mxu0 %v3070
        %3072 = vmatprep.subr.mxu0 0.0
        %v3073 = vand.u32 %v402, 4294901760
        %v3074 = vsub.f32 %v402, %v3073
        %v3075 = vand.u32 %v3074, 4294901760
        %v3076 = vsub.f32 %v3074, %v3075
        %v3077 = vand.u32 %v3076, 4294901760
        %3078 = vmatpush1.msra.mxu0 %v3077
        %3079 = vmatprep.subr.mxu0 0.0
        %3080 = vmatpush1.msra.mxu0 0.0
        %3081 = vmatprep.subr.mxu0 0.0
        %3082 = vmatpush1.msra.mxu0 0.0
        %3083 = vmatprep.subr.mxu0 0.0
        %3084 = vmatpush1.msra.mxu0 0.0
        %3085 = vmatprep.subr.mxu0 0.0
        %3086 = vmatpush1.msra.mxu0 0.0
        %3087 = vmatprep.subr.mxu0 0.0
        %3088 = vmatpush1.msra.mxu0 0.0
        %3089 = vmatprep.subr.mxu0 0.0
        %3090 = vmatpush1.msra.mxu0 0.0
        %3091 = vmatprep.subr.mxu0 0.0
        %3092 = vmatpush1.msra.mxu0 0.0
        %3093 = vmatprep.subr.mxu0 0.0
        %3094 = vmatpush1.msra.mxu0 0.0
        %3095 = vmatprep.subr.mxu0 0.0
        %3096 = vmatpush1.msra.mxu0 0.0
        %3097 = vmatprep.subr.mxu0 0.0
        %3098 = vmatpush1.msra.mxu0 0.0
        %3099 = vmatprep.subr.mxu0 0.0
        %3100 = vmatpush1.msra.mxu0 0.0
        %3101 = vmatprep.subr.mxu0 0.0
        %3102 = vmatpush1.msra.mxu0 0.0
        %3103 = vmatprep.subr.mxu0 0.0
        %3104 = vmatpush1.msra.mxu0 0.0
        %3105 = vmatprep.subr.mxu0 0.0
        %3106 = vmatpush1.msra.mxu0 0.0
        %3107 = vmatprep.subr.mxu0 0.0
        %3108 = vmatpush1.msra.mxu0 0.0
        %3109 = vmatprep.subr.mxu0 0.0
        %3110 = vmatpush1.msra.mxu0 0.0
        %3111 = vmatprep.subr.mxu0 0.0
        %3112 = vmatpush1.msra.mxu0 0.0
        %3113 = vmatprep.subr.mxu0 0.0
        %3114 = vmatpush1.msra.mxu0 0.0
        %3115 = vmatprep.subr.mxu0 0.0
        %3116 = vmatpush1.msra.mxu0 0.0
        %3117 = vmatprep.subr.mxu0 0.0
        %3118 = vmatpush1.msra.mxu0 0.0
        %3119 = vmatprep.subr.mxu0 0.0
        %3120 = vmatpush1.msra.mxu0 0.0
        %3121 = vmatprep.subr.mxu0 0.0
        %3122 = vmatpush1.msra.mxu0 0.0
        %3123 = vmatprep.subr.mxu0 0.0
        %3124 = vmatpush1.msra.mxu0 0.0
        %3125 = vmatprep.subr.mxu0 0.0
        %3126 = vmatpush1.msra.mxu0 0.0
        %3127 = vmatprep.subr.mxu0 0.0
        %3128 = vmatpush1.msra.mxu0 0.0
        %3129 = vmatprep.subr.mxu0 0.0
        %3130 = vmatpush1.msra.mxu0 0.0
        %3131 = vmatprep.subr.mxu0 0.0
        %3132 = vmatpush1.msra.mxu0 0.0
        %3133 = vmatprep.subr.mxu0 0.0
        %3134 = vmatpush1.msra.mxu0 0.0
        %3135 = vmatprep.subr.mxu0 0.0
        %3136 = vmatpush1.msra.mxu0 0.0
        %3137 = vmatprep.subr.mxu0 0.0
        %3138 = vmatpush1.msra.mxu0 0.0
        %3139 = vmatprep.mubr.f32.mxu0 0.0
        %v3140 = vand.u32 %v410, 4294901760
        %3141 = vmatmul.mubr.f32.gmra.mrb[0].mxu0 %v3140
        %v3142 = vpop.f32.mrb[0].mxu0
        %v3143 = vadd.f32 %v3022, %v3142
        %v3144 = vpop.f32.mrb[0].mxu0
        %3145 = vmatprep.mubr.f32.mxu0 0.0
        %v3146 = vand.u32 %v413, 4294901760
        %3147 = vmatmul.mubr.f32.gmra.mrb[0].mxu0 %v3146
        %v3148 = vpop.f32.mrb[0].mxu0
        %v3149 = vadd.f32 %v3032, %v3148
        %v3150 = vpop.f32.mrb[0].mxu0
        %3151 = vmatprep.mubr.f32.mxu0 0.0
        %v3152 = vand.u32 %v416, 4294901760
        %3153 = vmatmul.mubr.f32.gmra.mrb[0].mxu0 %v3152
        %v3154 = vpop.f32.mrb[0].mxu0
        %v3155 = vadd.f32 %v3042, %v3154
        %v3156 = vpop.f32.mrb[0].mxu0
        %3157 = vmatprep.mubr.f32.mxu0 0.0
        %v3158 = vand.u32 %v419, 4294901760
        %3159 = vmatmul.mubr.f32.gmra.mrb[0].mxu0 %v3158
        %v3160 = vpop.f32.mrb[0].mxu0
        %v3161 = vadd.f32 %v3052, %v3160
        %v3162 = vpop.f32.mrb[0].mxu0
        %3163 = vmatprep.mubr.f32.mxu0 0.0
        %v3164 = vand.u32 %v422, 4294901760
        %3165 = vmatmul.mubr.f32.gmra.mrb[0].mxu0 %v3164
        %v3166 = vpop.f32.mrb[0].mxu0
        %v3167 = vadd.f32 %v3062, %v3166
        %v3168 = vpop.f32.mrb[0].mxu0
        %3169 = vdwg.mxu0
        %3170 = vmatprep.subr.mxu0 0.0
        %v3171 = vand.u32 %v401, 4294901760
        %v3172 = vsub.f32 %v401, %v3171
        %3173 = vmatpush1.msra.mxu0 %v3172
        %3174 = vmatprep.subr.mxu0 0.0
        %v3175 = vand.u32 %v402, 4294901760
        %v3176 = vsub.f32 %v402, %v3175
        %3177 = vmatpush1.msra.mxu0 %v3176
        %3178 = vmatprep.subr.mxu0 0.0
        %3179 = vmatpush1.msra.mxu0 0.0
        %3180 = vmatprep.subr.mxu0 0.0
        %3181 = vmatpush1.msra.mxu0 0.0
        %3182 = vmatprep.subr.mxu0 0.0
        %3183 = vmatpush1.msra.mxu0 0.0
        %3184 = vmatprep.subr.mxu0 0.0
        %3185 = vmatpush1.msra.mxu0 0.0
        %3186 = vmatprep.subr.mxu0 0.0
        %3187 = vmatpush1.msra.mxu0 0.0
        %3188 = vmatprep.subr.mxu0 0.0
        %3189 = vmatpush1.msra.mxu0 0.0
        %3190 = vmatprep.subr.mxu0 0.0
        %3191 = vmatpush1.msra.mxu0 0.0
        %3192 = vmatprep.subr.mxu0 0.0
        %3193 = vmatpush1.msra.mxu0 0.0
        %3194 = vmatprep.subr.mxu0 0.0
        %3195 = vmatpush1.msra.mxu0 0.0
        %3196 = vmatprep.subr.mxu0 0.0
        %3197 = vmatpush1.msra.mxu0 0.0
        %3198 = vmatprep.subr.mxu0 0.0
        %3199 = vmatpush1.msra.mxu0 0.0
        %3200 = vmatprep.subr.mxu0 0.0
        %3201 = vmatpush1.msra.mxu0 0.0
        %3202 = vmatprep.subr.mxu0 0.0
        %3203 = vmatpush1.msra.mxu0 0.0
        %3204 = vmatprep.subr.mxu0 0.0
        %3205 = vmatpush1.msra.mxu0 0.0
        %3206 = vmatprep.subr.mxu0 0.0
        %3207 = vmatpush1.msra.mxu0 0.0
        %3208 = vmatprep.subr.mxu0 0.0
        %3209 = vmatpush1.msra.mxu0 0.0
        %3210 = vmatprep.subr.mxu0 0.0
        %3211 = vmatpush1.msra.mxu0 0.0
        %3212 = vmatprep.subr.mxu0 0.0
        %3213 = vmatpush1.msra.mxu0 0.0
        %3214 = vmatprep.subr.mxu0 0.0
        %3215 = vmatpush1.msra.mxu0 0.0
        %3216 = vmatprep.subr.mxu0 0.0
        %3217 = vmatpush1.msra.mxu0 0.0
        %3218 = vmatprep.subr.mxu0 0.0
        %3219 = vmatpush1.msra.mxu0 0.0
        %3220 = vmatprep.subr.mxu0 0.0
        %3221 = vmatpush1.msra.mxu0 0.0
        %3222 = vmatprep.subr.mxu0 0.0
        %3223 = vmatpush1.msra.mxu0 0.0
        %3224 = vmatprep.subr.mxu0 0.0
        %3225 = vmatpush1.msra.mxu0 0.0
        %3226 = vmatprep.subr.mxu0 0.0
        %3227 = vmatpush1.msra.mxu0 0.0
        %3228 = vmatprep.subr.mxu0 0.0
        %3229 = vmatpush1.msra.mxu0 0.0
        %3230 = vmatprep.subr.mxu0 0.0
        %3231 = vmatpush1.msra.mxu0 0.0
        %3232 = vmatprep.subr.mxu0 0.0
        %3233 = vmatpush1.msra.mxu0 0.0
        %3234 = vmatprep.subr.mxu0 0.0
        %3235 = vmatpush1.msra.mxu0 0.0
        %3236 = vmatprep.subr.mxu0 0.0
        %3237 = vmatpush1.msra.mxu0 0.0
        %3238 = vmatprep.mubr.f32.mxu0 0.0
        %v3239 = vand.u32 %v410, 4294901760
        %v3240 = vsub.f32 %v410, %v3239
        %3241 = vmatmul.mubr.f32.gmra.mrb[0].mxu0 %v3240
        %v3242 = vpop.f32.mrb[0].mxu0
        %v3243 = vadd.f32 %v3143, %v3242
        %v3244 = vpop.f32.mrb[0].mxu0
        %3245 = vmatprep.mubr.f32.mxu0 0.0
        %v3246 = vand.u32 %v413, 4294901760
        %v3247 = vsub.f32 %v413, %v3246
        %3248 = vmatmul.mubr.f32.gmra.mrb[0].mxu0 %v3247
        %v3249 = vpop.f32.mrb[0].mxu0
        %v3250 = vadd.f32 %v3149, %v3249
        %v3251 = vpop.f32.mrb[0].mxu0
        %3252 = vmatprep.mubr.f32.mxu0 0.0
        %v3253 = vand.u32 %v416, 4294901760
        %v3254 = vsub.f32 %v416, %v3253
        %3255 = vmatmul.mubr.f32.gmra.mrb[0].mxu0 %v3254
        %v3256 = vpop.f32.mrb[0].mxu0
        %v3257 = vadd.f32 %v3155, %v3256
        %v3258 = vpop.f32.mrb[0].mxu0
        %3259 = vmatprep.mubr.f32.mxu0 0.0
        %v3260 = vand.u32 %v419, 4294901760
        %v3261 = vsub.f32 %v419, %v3260
        %3262 = vmatmul.mubr.f32.gmra.mrb[0].mxu0 %v3261
        %v3263 = vpop.f32.mrb[0].mxu0
        %v3264 = vadd.f32 %v3161, %v3263
        %v3265 = vpop.f32.mrb[0].mxu0
        %3266 = vmatprep.mubr.f32.mxu0 0.0
        %v3267 = vand.u32 %v422, 4294901760
        %v3268 = vsub.f32 %v422, %v3267
        %3269 = vmatmul.mubr.f32.gmra.mrb[0].mxu0 %v3268
        %v3270 = vpop.f32.mrb[0].mxu0
        %v3271 = vadd.f32 %v3167, %v3270
        %v3272 = vpop.f32.mrb[0].mxu0
        %3273 = vdwg.mxu0
        %3274 = vmatprep.subr.mxu0 0.0
        %v3275 = vand.u32 %v401, 4294901760
        %3276 = vmatpush1.msra.mxu0 %v3275
        %3277 = vmatprep.subr.mxu0 0.0
        %v3278 = vand.u32 %v402, 4294901760
        %3279 = vmatpush1.msra.mxu0 %v3278
        %3280 = vmatprep.subr.mxu0 0.0
        %3281 = vmatpush1.msra.mxu0 0.0
        %3282 = vmatprep.subr.mxu0 0.0
        %3283 = vmatpush1.msra.mxu0 0.0
        %3284 = vmatprep.subr.mxu0 0.0
        %3285 = vmatpush1.msra.mxu0 0.0
        %3286 = vmatprep.subr.mxu0 0.0
        %3287 = vmatpush1.msra.mxu0 0.0
        %3288 = vmatprep.subr.mxu0 0.0
        %3289 = vmatpush1.msra.mxu0 0.0
        %3290 = vmatprep.subr.mxu0 0.0
        %3291 = vmatpush1.msra.mxu0 0.0
        %3292 = vmatprep.subr.mxu0 0.0
        %3293 = vmatpush1.msra.mxu0 0.0
        %3294 = vmatprep.subr.mxu0 0.0
        %3295 = vmatpush1.msra.mxu0 0.0
        %3296 = vmatprep.subr.mxu0 0.0
        %3297 = vmatpush1.msra.mxu0 0.0
        %3298 = vmatprep.subr.mxu0 0.0
        %3299 = vmatpush1.msra.mxu0 0.0
        %3300 = vmatprep.subr.mxu0 0.0
        %3301 = vmatpush1.msra.mxu0 0.0
        %3302 = vmatprep.subr.mxu0 0.0
        %3303 = vmatpush1.msra.mxu0 0.0
        %3304 = vmatprep.subr.mxu0 0.0
        %3305 = vmatpush1.msra.mxu0 0.0
        %3306 = vmatprep.subr.mxu0 0.0
        %3307 = vmatpush1.msra.mxu0 0.0
        %3308 = vmatprep.subr.mxu0 0.0
        %3309 = vmatpush1.msra.mxu0 0.0
        %3310 = vmatprep.subr.mxu0 0.0
        %3311 = vmatpush1.msra.mxu0 0.0
        %3312 = vmatprep.subr.mxu0 0.0
        %3313 = vmatpush1.msra.mxu0 0.0
        %3314 = vmatprep.subr.mxu0 0.0
        %3315 = vmatpush1.msra.mxu0 0.0
        %3316 = vmatprep.subr.mxu0 0.0
        %3317 = vmatpush1.msra.mxu0 0.0
        %3318 = vmatprep.subr.mxu0 0.0
        %3319 = vmatpush1.msra.mxu0 0.0
        %3320 = vmatprep.subr.mxu0 0.0
        %3321 = vmatpush1.msra.mxu0 0.0
        %3322 = vmatprep.subr.mxu0 0.0
        %3323 = vmatpush1.msra.mxu0 0.0
        %3324 = vmatprep.subr.mxu0 0.0
        %3325 = vmatpush1.msra.mxu0 0.0
        %3326 = vmatprep.subr.mxu0 0.0
        %3327 = vmatpush1.msra.mxu0 0.0
        %3328 = vmatprep.subr.mxu0 0.0
        %3329 = vmatpush1.msra.mxu0 0.0
        %3330 = vmatprep.subr.mxu0 0.0
        %3331 = vmatpush1.msra.mxu0 0.0
        %3332 = vmatprep.subr.mxu0 0.0
        %3333 = vmatpush1.msra.mxu0 0.0
        %3334 = vmatprep.subr.mxu0 0.0
        %3335 = vmatpush1.msra.mxu0 0.0
        %3336 = vmatprep.subr.mxu0 0.0
        %3337 = vmatpush1.msra.mxu0 0.0
        %3338 = vmatprep.subr.mxu0 0.0
        %3339 = vmatpush1.msra.mxu0 0.0
        %3340 = vmatprep.mubr.f32.mxu0 0.0
        %v3341 = vand.u32 %v410, 4294901760
        %v3342 = vsub.f32 %v410, %v3341
        %v3343 = vand.u32 %v3342, 4294901760
        %3344 = vmatmul.mubr.f32.gmra.mrb[0].mxu0 %v3343
        %v3345 = vpop.f32.mrb[0].mxu0
        %v3346 = vadd.f32 %v3243, %v3345
        %v3347 = vpop.f32.mrb[0].mxu0
        %3348 = vmatprep.mubr.f32.mxu0 0.0
        %v3349 = vand.u32 %v413, 4294901760
        %v3350 = vsub.f32 %v413, %v3349
        %v3351 = vand.u32 %v3350, 4294901760
        %3352 = vmatmul.mubr.f32.gmra.mrb[0].mxu0 %v3351
        %v3353 = vpop.f32.mrb[0].mxu0
        %v3354 = vadd.f32 %v3250, %v3353
        %v3355 = vpop.f32.mrb[0].mxu0
        %3356 = vmatprep.mubr.f32.mxu0 0.0
        %v3357 = vand.u32 %v416, 4294901760
        %v3358 = vsub.f32 %v416, %v3357
        %v3359 = vand.u32 %v3358, 4294901760
        %3360 = vmatmul.mubr.f32.gmra.mrb[0].mxu0 %v3359
        %v3361 = vpop.f32.mrb[0].mxu0
        %v3362 = vadd.f32 %v3257, %v3361
        %v3363 = vpop.f32.mrb[0].mxu0
        %3364 = vmatprep.mubr.f32.mxu0 0.0
        %v3365 = vand.u32 %v419, 4294901760
        %v3366 = vsub.f32 %v419, %v3365
        %v3367 = vand.u32 %v3366, 4294901760
        %3368 = vmatmul.mubr.f32.gmra.mrb[0].mxu0 %v3367
        %v3369 = vpop.f32.mrb[0].mxu0
        %v3370 = vadd.f32 %v3264, %v3369
        %v3371 = vpop.f32.mrb[0].mxu0
        %3372 = vmatprep.mubr.f32.mxu0 0.0
        %v3373 = vand.u32 %v422, 4294901760
        %v3374 = vsub.f32 %v422, %v3373
        %v3375 = vand.u32 %v3374, 4294901760
        %3376 = vmatmul.mubr.f32.gmra.mrb[0].mxu0 %v3375
        %v3377 = vpop.f32.mrb[0].mxu0
        %v3378 = vadd.f32 %v3271, %v3377
        %v3379 = vpop.f32.mrb[0].mxu0
        %3380 = vdwg.mxu0
        %3381 = vmatprep.subr.mxu0 0.0
        %v3382 = vand.u32 %v401, 4294901760
        %v3383 = vsub.f32 %v401, %v3382
        %v3384 = vand.u32 %v3383, 4294901760
        %3385 = vmatpush1.msra.mxu0 %v3384
        %3386 = vmatprep.subr.mxu0 0.0
        %v3387 = vand.u32 %v402, 4294901760
        %v3388 = vsub.f32 %v402, %v3387
        %v3389 = vand.u32 %v3388, 4294901760
        %3390 = vmatpush1.msra.mxu0 %v3389
        %3391 = vmatprep.subr.mxu0 0.0
        %3392 = vmatpush1.msra.mxu0 0.0
        %3393 = vmatprep.subr.mxu0 0.0
        %3394 = vmatpush1.msra.mxu0 0.0
        %3395 = vmatprep.subr.mxu0 0.0
        %3396 = vmatpush1.msra.mxu0 0.0
        %3397 = vmatprep.subr.mxu0 0.0
        %3398 = vmatpush1.msra.mxu0 0.0
        %3399 = vmatprep.subr.mxu0 0.0
        %3400 = vmatpush1.msra.mxu0 0.0
        %3401 = vmatprep.subr.mxu0 0.0
        %3402 = vmatpush1.msra.mxu0 0.0
        %3403 = vmatprep.subr.mxu0 0.0
        %3404 = vmatpush1.msra.mxu0 0.0
        %3405 = vmatprep.subr.mxu0 0.0
        %3406 = vmatpush1.msra.mxu0 0.0
        %3407 = vmatprep.subr.mxu0 0.0
        %3408 = vmatpush1.msra.mxu0 0.0
        %3409 = vmatprep.subr.mxu0 0.0
        %3410 = vmatpush1.msra.mxu0 0.0
        %3411 = vmatprep.subr.mxu0 0.0
        %3412 = vmatpush1.msra.mxu0 0.0
        %3413 = vmatprep.subr.mxu0 0.0
        %3414 = vmatpush1.msra.mxu0 0.0
        %3415 = vmatprep.subr.mxu0 0.0
        %3416 = vmatpush1.msra.mxu0 0.0
        %3417 = vmatprep.subr.mxu0 0.0
        %3418 = vmatpush1.msra.mxu0 0.0
        %3419 = vmatprep.subr.mxu0 0.0
        %3420 = vmatpush1.msra.mxu0 0.0
        %3421 = vmatprep.subr.mxu0 0.0
        %3422 = vmatpush1.msra.mxu0 0.0
        %3423 = vmatprep.subr.mxu0 0.0
        %3424 = vmatpush1.msra.mxu0 0.0
        %3425 = vmatprep.subr.mxu0 0.0
        %3426 = vmatpush1.msra.mxu0 0.0
        %3427 = vmatprep.subr.mxu0 0.0
        %3428 = vmatpush1.msra.mxu0 0.0
        %3429 = vmatprep.subr.mxu0 0.0
        %3430 = vmatpush1.msra.mxu0 0.0
        %3431 = vmatprep.subr.mxu0 0.0
        %3432 = vmatpush1.msra.mxu0 0.0
        %3433 = vmatprep.subr.mxu0 0.0
        %3434 = vmatpush1.msra.mxu0 0.0
        %3435 = vmatprep.subr.mxu0 0.0
        %3436 = vmatpush1.msra.mxu0 0.0
        %3437 = vmatprep.subr.mxu0 0.0
        %3438 = vmatpush1.msra.mxu0 0.0
        %3439 = vmatprep.subr.mxu0 0.0
        %3440 = vmatpush1.msra.mxu0 0.0
        %3441 = vmatprep.subr.mxu0 0.0
        %3442 = vmatpush1.msra.mxu0 0.0
        %3443 = vmatprep.subr.mxu0 0.0
        %3444 = vmatpush1.msra.mxu0 0.0
        %3445 = vmatprep.subr.mxu0 0.0
        %3446 = vmatpush1.msra.mxu0 0.0
        %3447 = vmatprep.subr.mxu0 0.0
        %3448 = vmatpush1.msra.mxu0 0.0
        %3449 = vmatprep.subr.mxu0 0.0
        %3450 = vmatpush1.msra.mxu0 0.0
        %3451 = vmatprep.mubr.f32.mxu0 0.0
        %v3452 = vand.u32 %v410, 4294901760
        %3453 = vmatmul.mubr.f32.gmra.mrb[0].mxu0 %v3452
        %v3454 = vpop.f32.mrb[0].mxu0
        %v3455 = vadd.f32 %v3346, %v3454
        %v3456 = vpop.f32.mrb[0].mxu0
        %3457 = vmatprep.mubr.f32.mxu0 0.0
        %v3458 = vand.u32 %v413, 4294901760
        %3459 = vmatmul.mubr.f32.gmra.mrb[0].mxu0 %v3458
        %v3460 = vpop.f32.mrb[0].mxu0
        %v3461 = vadd.f32 %v3354, %v3460
        %v3462 = vpop.f32.mrb[0].mxu0
        %3463 = vmatprep.mubr.f32.mxu0 0.0
        %v3464 = vand.u32 %v416, 4294901760
        %3465 = vmatmul.mubr.f32.gmra.mrb[0].mxu0 %v3464
        %v3466 = vpop.f32.mrb[0].mxu0
        %v3467 = vadd.f32 %v3362, %v3466
        %v3468 = vpop.f32.mrb[0].mxu0
        %3469 = vmatprep.mubr.f32.mxu0 0.0
        %v3470 = vand.u32 %v419, 4294901760
        %3471 = vmatmul.mubr.f32.gmra.mrb[0].mxu0 %v3470
        %v3472 = vpop.f32.mrb[0].mxu0
        %v3473 = vadd.f32 %v3370, %v3472
        %v3474 = vpop.f32.mrb[0].mxu0
        %3475 = vmatprep.mubr.f32.mxu0 0.0
        %v3476 = vand.u32 %v422, 4294901760
        %3477 = vmatmul.mubr.f32.gmra.mrb[0].mxu0 %v3476
        %v3478 = vpop.f32.mrb[0].mxu0
        %v3479 = vadd.f32 %v3378, %v3478
        %v3480 = vpop.f32.mrb[0].mxu0
        %3481 = vdwg.mxu0
        %3482 = vmatprep.subr.mxu0 0.0
        %v3483 = vand.u32 %v401, 4294901760
        %3484 = vmatpush1.msra.mxu0 %v3483
        %3485 = vmatprep.subr.mxu0 0.0
        %v3486 = vand.u32 %v402, 4294901760
        %3487 = vmatpush1.msra.mxu0 %v3486
        %3488 = vmatprep.subr.mxu0 0.0
        %3489 = vmatpush1.msra.mxu0 0.0
        %3490 = vmatprep.subr.mxu0 0.0
        %3491 = vmatpush1.msra.mxu0 0.0
        %3492 = vmatprep.subr.mxu0 0.0
        %3493 = vmatpush1.msra.mxu0 0.0
        %3494 = vmatprep.subr.mxu0 0.0
        %3495 = vmatpush1.msra.mxu0 0.0
        %3496 = vmatprep.subr.mxu0 0.0
        %3497 = vmatpush1.msra.mxu0 0.0
        %3498 = vmatprep.subr.mxu0 0.0
        %3499 = vmatpush1.msra.mxu0 0.0
        %3500 = vmatprep.subr.mxu0 0.0
        %3501 = vmatpush1.msra.mxu0 0.0
        %3502 = vmatprep.subr.mxu0 0.0
        %3503 = vmatpush1.msra.mxu0 0.0
        %3504 = vmatprep.subr.mxu0 0.0
        %3505 = vmatpush1.msra.mxu0 0.0
        %3506 = vmatprep.subr.mxu0 0.0
        %3507 = vmatpush1.msra.mxu0 0.0
        %3508 = vmatprep.subr.mxu0 0.0
        %3509 = vmatpush1.msra.mxu0 0.0
        %3510 = vmatprep.subr.mxu0 0.0
        %3511 = vmatpush1.msra.mxu0 0.0
        %3512 = vmatprep.subr.mxu0 0.0
        %3513 = vmatpush1.msra.mxu0 0.0
        %3514 = vmatprep.subr.mxu0 0.0
        %3515 = vmatpush1.msra.mxu0 0.0
        %3516 = vmatprep.subr.mxu0 0.0
        %3517 = vmatpush1.msra.mxu0 0.0
        %3518 = vmatprep.subr.mxu0 0.0
        %3519 = vmatpush1.msra.mxu0 0.0
        %3520 = vmatprep.subr.mxu0 0.0
        %3521 = vmatpush1.msra.mxu0 0.0
        %3522 = vmatprep.subr.mxu0 0.0
        %3523 = vmatpush1.msra.mxu0 0.0
        %3524 = vmatprep.subr.mxu0 0.0
        %3525 = vmatpush1.msra.mxu0 0.0
        %3526 = vmatprep.subr.mxu0 0.0
        %3527 = vmatpush1.msra.mxu0 0.0
        %3528 = vmatprep.subr.mxu0 0.0
        %3529 = vmatpush1.msra.mxu0 0.0
        %3530 = vmatprep.subr.mxu0 0.0
        %3531 = vmatpush1.msra.mxu0 0.0
        %3532 = vmatprep.subr.mxu0 0.0
        %3533 = vmatpush1.msra.mxu0 0.0
        %3534 = vmatprep.subr.mxu0 0.0
        %3535 = vmatpush1.msra.mxu0 0.0
        %3536 = vmatprep.subr.mxu0 0.0
        %3537 = vmatpush1.msra.mxu0 0.0
        %3538 = vmatprep.subr.mxu0 0.0
        %3539 = vmatpush1.msra.mxu0 0.0
        %3540 = vmatprep.subr.mxu0 0.0
        %3541 = vmatpush1.msra.mxu0 0.0
        %3542 = vmatprep.subr.mxu0 0.0
        %3543 = vmatpush1.msra.mxu0 0.0
        %3544 = vmatprep.subr.mxu0 0.0
        %3545 = vmatpush1.msra.mxu0 0.0
        %3546 = vmatprep.subr.mxu0 0.0
        %3547 = vmatpush1.msra.mxu0 0.0
        %3548 = vmatprep.mubr.f32.mxu0 0.0
        %v3549 = vand.u32 %v410, 4294901760
        %3550 = vmatmul.mubr.f32.gmra.mrb[0].mxu0 %v3549
        %v3551 = vpop.f32.mrb[0].mxu0
        %v3552 = vadd.f32 %v3455, %v3551
        %v3553 = vpop.f32.mrb[0].mxu0
        %3554 = vmatprep.mubr.f32.mxu0 0.0
        %v3555 = vand.u32 %v413, 4294901760
        %3556 = vmatmul.mubr.f32.gmra.mrb[0].mxu0 %v3555
        %v3557 = vpop.f32.mrb[0].mxu0
        %v3558 = vadd.f32 %v3461, %v3557
        %v3559 = vpop.f32.mrb[0].mxu0
        %3560 = vmatprep.mubr.f32.mxu0 0.0
        %v3561 = vand.u32 %v416, 4294901760
        %3562 = vmatmul.mubr.f32.gmra.mrb[0].mxu0 %v3561
        %v3563 = vpop.f32.mrb[0].mxu0
        %v3564 = vadd.f32 %v3467, %v3563
        %v3565 = vpop.f32.mrb[0].mxu0
        %3566 = vmatprep.mubr.f32.mxu0 0.0
        %v3567 = vand.u32 %v419, 4294901760
        %3568 = vmatmul.mubr.f32.gmra.mrb[0].mxu0 %v3567
        %v3569 = vpop.f32.mrb[0].mxu0
        %v3570 = vadd.f32 %v3473, %v3569
        %v3571 = vpop.f32.mrb[0].mxu0
        %3572 = vmatprep.mubr.f32.mxu0 0.0
        %v3573 = vand.u32 %v422, 4294901760
        %3574 = vmatmul.mubr.f32.gmra.mrb[0].mxu0 %v3573
        %v3575 = vpop.f32.mrb[0].mxu0
        %v3576 = vadd.f32 %v3479, %v3575
        %v3577 = vpop.f32.mrb[0].mxu0
        %3578 = vdwg.mxu0
        %v3579 = vld [vmem:[#allocation6] sm:$0xff]
        %v3580 = vld [vmem:[#allocation6 + $0x8] sm:$0xff]
        %v3582 = vsel %vm408, %v1028, 0
        %v3585 = vsel %vm408, %v1659, 0
        %v3588 = vsel %vm408, %v2290, 0
        %v3591 = vsel %vm408, %v2921, 0
        %v3594 = vsel %vm408, %v3552, 0
        %3596 = vmatprep.subr.mxu0 0.0
        %v3597 = vand.u32 %v3579, 4294901760
        %3598 = vmatpush1.msra.mxu0 %v3597
        %3599 = vmatprep.subr.mxu0 0.0
        %v3600 = vand.u32 %v3580, 4294901760
        %3601 = vmatpush1.msra.mxu0 %v3600
        %3602 = vmatprep.subr.mxu0 0.0
        %3603 = vmatpush1.msra.mxu0 0.0
        %3604 = vmatprep.subr.mxu0 0.0
        %3605 = vmatpush1.msra.mxu0 0.0
        %3606 = vmatprep.subr.mxu0 0.0
        %3607 = vmatpush1.msra.mxu0 0.0
        %3608 = vmatprep.subr.mxu0 0.0
        %3609 = vmatpush1.msra.mxu0 0.0
        %3610 = vmatprep.subr.mxu0 0.0
        %3611 = vmatpush1.msra.mxu0 0.0
        %3612 = vmatprep.subr.mxu0 0.0
        %3613 = vmatpush1.msra.mxu0 0.0
        %3614 = vmatprep.subr.mxu0 0.0
        %3615 = vmatpush1.msra.mxu0 0.0
        %3616 = vmatprep.subr.mxu0 0.0
        %3617 = vmatpush1.msra.mxu0 0.0
        %3618 = vmatprep.subr.mxu0 0.0
        %3619 = vmatpush1.msra.mxu0 0.0
        %3620 = vmatprep.subr.mxu0 0.0
        %3621 = vmatpush1.msra.mxu0 0.0
        %3622 = vmatprep.subr.mxu0 0.0
        %3623 = vmatpush1.msra.mxu0 0.0
        %3624 = vmatprep.subr.mxu0 0.0
        %3625 = vmatpush1.msra.mxu0 0.0
        %3626 = vmatprep.subr.mxu0 0.0
        %3627 = vmatpush1.msra.mxu0 0.0
        %3628 = vmatprep.subr.mxu0 0.0
        %3629 = vmatpush1.msra.mxu0 0.0
        %3630 = vmatprep.subr.mxu0 0.0
        %3631 = vmatpush1.msra.mxu0 0.0
        %3632 = vmatprep.subr.mxu0 0.0
        %3633 = vmatpush1.msra.mxu0 0.0
        %3634 = vmatprep.subr.mxu0 0.0
        %3635 = vmatpush1.msra.mxu0 0.0
        %3636 = vmatprep.subr.mxu0 0.0
        %3637 = vmatpush1.msra.mxu0 0.0
        %3638 = vmatprep.subr.mxu0 0.0
        %3639 = vmatpush1.msra.mxu0 0.0
        %3640 = vmatprep.subr.mxu0 0.0
        %3641 = vmatpush1.msra.mxu0 0.0
        %3642 = vmatprep.subr.mxu0 0.0
        %3643 = vmatpush1.msra.mxu0 0.0
        %3644 = vmatprep.subr.mxu0 0.0
        %3645 = vmatpush1.msra.mxu0 0.0
        %3646 = vmatprep.subr.mxu0 0.0
        %3647 = vmatpush1.msra.mxu0 0.0
        %3648 = vmatprep.subr.mxu0 0.0
        %3649 = vmatpush1.msra.mxu0 0.0
        %3650 = vmatprep.subr.mxu0 0.0
        %3651 = vmatpush1.msra.mxu0 0.0
        %3652 = vmatprep.subr.mxu0 0.0
        %3653 = vmatpush1.msra.mxu0 0.0
        %3654 = vmatprep.subr.mxu0 0.0
        %3655 = vmatpush1.msra.mxu0 0.0
        %3656 = vmatprep.subr.mxu0 0.0
        %3657 = vmatpush1.msra.mxu0 0.0
        %3658 = vmatprep.subr.mxu0 0.0
        %3659 = vmatpush1.msra.mxu0 0.0
        %3660 = vmatprep.subr.mxu0 0.0
        %3661 = vmatpush1.msra.mxu0 0.0
        %3662 = vmatprep.mubr.f32.mxu0 0.0
        %v3663 = vand.u32 %v3582, 4294901760
        %v3664 = vsub.f32 %v3582, %v3663
        %v3665 = vand.u32 %v3664, 4294901760
        %v3666 = vsub.f32 %v3664, %v3665
        %v3667 = vand.u32 %v3666, 4294901760
        %3668 = vmatmul.mubr.f32.gmra.mrb[0].mxu0 %v3667
        %v3669 = vpop.f32.mrb[0].mxu0
        %v3670 = vadd.f32 0.0, %v3669
        %v3671 = vpop.f32.mrb[0].mxu0
        %3672 = vmatprep.mubr.f32.mxu0 0.0
        %v3673 = vand.u32 %v3585, 4294901760
        %v3674 = vsub.f32 %v3585, %v3673
        %v3675 = vand.u32 %v3674, 4294901760
        %v3676 = vsub.f32 %v3674, %v3675
        %v3677 = vand.u32 %v3676, 4294901760
        %3678 = vmatmul.mubr.f32.gmra.mrb[0].mxu0 %v3677
        %v3679 = vpop.f32.mrb[0].mxu0
        %v3680 = vadd.f32 0.0, %v3679
        %v3681 = vpop.f32.mrb[0].mxu0
        %3682 = vmatprep.mubr.f32.mxu0 0.0
        %v3683 = vand.u32 %v3588, 4294901760
        %v3684 = vsub.f32 %v3588, %v3683
        %v3685 = vand.u32 %v3684, 4294901760
        %v3686 = vsub.f32 %v3684, %v3685
        %v3687 = vand.u32 %v3686, 4294901760
        %3688 = vmatmul.mubr.f32.gmra.mrb[0].mxu0 %v3687
        %v3689 = vpop.f32.mrb[0].mxu0
        %v3690 = vadd.f32 0.0, %v3689
        %v3691 = vpop.f32.mrb[0].mxu0
        %3692 = vmatprep.mubr.f32.mxu0 0.0
        %v3693 = vand.u32 %v3591, 4294901760
        %v3694 = vsub.f32 %v3591, %v3693
        %v3695 = vand.u32 %v3694, 4294901760
        %v3696 = vsub.f32 %v3694, %v3695
        %v3697 = vand.u32 %v3696, 4294901760
        %3698 = vmatmul.mubr.f32.gmra.mrb[0].mxu0 %v3697
        %v3699 = vpop.f32.mrb[0].mxu0
        %v3700 = vadd.f32 0.0, %v3699
        %v3701 = vpop.f32.mrb[0].mxu0
        %3702 = vmatprep.mubr.f32.mxu0 0.0
        %v3703 = vand.u32 %v3594, 4294901760
        %v3704 = vsub.f32 %v3594, %v3703
        %v3705 = vand.u32 %v3704, 4294901760
        %v3706 = vsub.f32 %v3704, %v3705
        %v3707 = vand.u32 %v3706, 4294901760
        %3708 = vmatmul.mubr.f32.gmra.mrb[0].mxu0 %v3707
        %v3709 = vpop.f32.mrb[0].mxu0
        %v3710 = vadd.f32 0.0, %v3709
        %v3711 = vpop.f32.mrb[0].mxu0
        %3712 = vdwg.mxu0
        %3713 = vmatprep.subr.mxu0 0.0
        %v3714 = vand.u32 %v3579, 4294901760
        %v3715 = vsub.f32 %v3579, %v3714
        %v3716 = vand.u32 %v3715, 4294901760
        %v3717 = vsub.f32 %v3715, %v3716
        %v3718 = vand.u32 %v3717, 4294901760
        %3719 = vmatpush1.msra.mxu0 %v3718
        %3720 = vmatprep.subr.mxu0 0.0
        %v3721 = vand.u32 %v3580, 4294901760
        %v3722 = vsub.f32 %v3580, %v3721
        %v3723 = vand.u32 %v3722, 4294901760
        %v3724 = vsub.f32 %v3722, %v3723
        %v3725 = vand.u32 %v3724, 4294901760
        %3726 = vmatpush1.msra.mxu0 %v3725
        %3727 = vmatprep.subr.mxu0 0.0
        %3728 = vmatpush1.msra.mxu0 0.0
        %3729 = vmatprep.subr.mxu0 0.0
        %3730 = vmatpush1.msra.mxu0 0.0
        %3731 = vmatprep.subr.mxu0 0.0
        %3732 = vmatpush1.msra.mxu0 0.0
        %3733 = vmatprep.subr.mxu0 0.0
        %3734 = vmatpush1.msra.mxu0 0.0
        %3735 = vmatprep.subr.mxu0 0.0
        %3736 = vmatpush1.msra.mxu0 0.0
        %3737 = vmatprep.subr.mxu0 0.0
        %3738 = vmatpush1.msra.mxu0 0.0
        %3739 = vmatprep.subr.mxu0 0.0
        %3740 = vmatpush1.msra.mxu0 0.0
        %3741 = vmatprep.subr.mxu0 0.0
        %3742 = vmatpush1.msra.mxu0 0.0
        %3743 = vmatprep.subr.mxu0 0.0
        %3744 = vmatpush1.msra.mxu0 0.0
        %3745 = vmatprep.subr.mxu0 0.0
        %3746 = vmatpush1.msra.mxu0 0.0
        %3747 = vmatprep.subr.mxu0 0.0
        %3748 = vmatpush1.msra.mxu0 0.0
        %3749 = vmatprep.subr.mxu0 0.0
        %3750 = vmatpush1.msra.mxu0 0.0
        %3751 = vmatprep.subr.mxu0 0.0
        %3752 = vmatpush1.msra.mxu0 0.0
        %3753 = vmatprep.subr.mxu0 0.0
        %3754 = vmatpush1.msra.mxu0 0.0
        %3755 = vmatprep.subr.mxu0 0.0
        %3756 = vmatpush1.msra.mxu0 0.0
        %3757 = vmatprep.subr.mxu0 0.0
        %3758 = vmatpush1.msra.mxu0 0.0
        %3759 = vmatprep.subr.mxu0 0.0
        %3760 = vmatpush1.msra.mxu0 0.0
        %3761 = vmatprep.subr.mxu0 0.0
        %3762 = vmatpush1.msra.mxu0 0.0
        %3763 = vmatprep.subr.mxu0 0.0
        %3764 = vmatpush1.msra.mxu0 0.0
        %3765 = vmatprep.subr.mxu0 0.0
        %3766 = vmatpush1.msra.mxu0 0.0
        %3767 = vmatprep.subr.mxu0 0.0
        %3768 = vmatpush1.msra.mxu0 0.0
        %3769 = vmatprep.subr.mxu0 0.0
        %3770 = vmatpush1.msra.mxu0 0.0
        %3771 = vmatprep.subr.mxu0 0.0
        %3772 = vmatpush1.msra.mxu0 0.0
        %3773 = vmatprep.subr.mxu0 0.0
        %3774 = vmatpush1.msra.mxu0 0.0
        %3775 = vmatprep.subr.mxu0 0.0
        %3776 = vmatpush1.msra.mxu0 0.0
        %3777 = vmatprep.subr.mxu0 0.0
        %3778 = vmatpush1.msra.mxu0 0.0
        %3779 = vmatprep.subr.mxu0 0.0
        %3780 = vmatpush1.msra.mxu0 0.0
        %3781 = vmatprep.subr.mxu0 0.0
        %3782 = vmatpush1.msra.mxu0 0.0
        %3783 = vmatprep.subr.mxu0 0.0
        %3784 = vmatpush1.msra.mxu0 0.0
        %3785 = vmatprep.subr.mxu0 0.0
        %3786 = vmatpush1.msra.mxu0 0.0
        %3787 = vmatprep.mubr.f32.mxu0 0.0
        %v3788 = vand.u32 %v3582, 4294901760
        %3789 = vmatmul.mubr.f32.gmra.mrb[0].mxu0 %v3788
        %v3790 = vpop.f32.mrb[0].mxu0
        %v3791 = vadd.f32 %v3670, %v3790
        %v3792 = vpop.f32.mrb[0].mxu0
        %3793 = vmatprep.mubr.f32.mxu0 0.0
        %v3794 = vand.u32 %v3585, 4294901760
        %3795 = vmatmul.mubr.f32.gmra.mrb[0].mxu0 %v3794
        %v3796 = vpop.f32.mrb[0].mxu0
        %v3797 = vadd.f32 %v3680, %v3796
        %v3798 = vpop.f32.mrb[0].mxu0
        %3799 = vmatprep.mubr.f32.mxu0 0.0
        %v3800 = vand.u32 %v3588, 4294901760
        %3801 = vmatmul.mubr.f32.gmra.mrb[0].mxu0 %v3800
        %v3802 = vpop.f32.mrb[0].mxu0
        %v3803 = vadd.f32 %v3690, %v3802
        %v3804 = vpop.f32.mrb[0].mxu0
        %3805 = vmatprep.mubr.f32.mxu0 0.0
        %v3806 = vand.u32 %v3591, 4294901760
        %3807 = vmatmul.mubr.f32.gmra.mrb[0].mxu0 %v3806
        %v3808 = vpop.f32.mrb[0].mxu0
        %v3809 = vadd.f32 %v3700, %v3808
        %v3810 = vpop.f32.mrb[0].mxu0
        %3811 = vmatprep.mubr.f32.mxu0 0.0
        %v3812 = vand.u32 %v3594, 4294901760
        %3813 = vmatmul.mubr.f32.gmra.mrb[0].mxu0 %v3812
        %v3814 = vpop.f32.mrb[0].mxu0
        %v3815 = vadd.f32 %v3710, %v3814
        %v3816 = vpop.f32.mrb[0].mxu0
        %3817 = vdwg.mxu0
        %3818 = vmatprep.subr.mxu0 0.0
        %v3819 = vand.u32 %v3579, 4294901760
        %v3820 = vsub.f32 %v3579, %v3819
        %3821 = vmatpush1.msra.mxu0 %v3820
        %3822 = vmatprep.subr.mxu0 0.0
        %v3823 = vand.u32 %v3580, 4294901760
        %v3824 = vsub.f32 %v3580, %v3823
        %3825 = vmatpush1.msra.mxu0 %v3824
        %3826 = vmatprep.subr.mxu0 0.0
        %3827 = vmatpush1.msra.mxu0 0.0
        %3828 = vmatprep.subr.mxu0 0.0
        %3829 = vmatpush1.msra.mxu0 0.0
        %3830 = vmatprep.subr.mxu0 0.0
        %3831 = vmatpush1.msra.mxu0 0.0
        %3832 = vmatprep.subr.mxu0 0.0
        %3833 = vmatpush1.msra.mxu0 0.0
        %3834 = vmatprep.subr.mxu0 0.0
        %3835 = vmatpush1.msra.mxu0 0.0
        %3836 = vmatprep.subr.mxu0 0.0
        %3837 = vmatpush1.msra.mxu0 0.0
        %3838 = vmatprep.subr.mxu0 0.0
        %3839 = vmatpush1.msra.mxu0 0.0
        %3840 = vmatprep.subr.mxu0 0.0
        %3841 = vmatpush1.msra.mxu0 0.0
        %3842 = vmatprep.subr.mxu0 0.0
        %3843 = vmatpush1.msra.mxu0 0.0
        %3844 = vmatprep.subr.mxu0 0.0
        %3845 = vmatpush1.msra.mxu0 0.0
        %3846 = vmatprep.subr.mxu0 0.0
        %3847 = vmatpush1.msra.mxu0 0.0
        %3848 = vmatprep.subr.mxu0 0.0
        %3849 = vmatpush1.msra.mxu0 0.0
        %3850 = vmatprep.subr.mxu0 0.0
        %3851 = vmatpush1.msra.mxu0 0.0
        %3852 = vmatprep.subr.mxu0 0.0
        %3853 = vmatpush1.msra.mxu0 0.0
        %3854 = vmatprep.subr.mxu0 0.0
        %3855 = vmatpush1.msra.mxu0 0.0
        %3856 = vmatprep.subr.mxu0 0.0
        %3857 = vmatpush1.msra.mxu0 0.0
        %3858 = vmatprep.subr.mxu0 0.0
        %3859 = vmatpush1.msra.mxu0 0.0
        %3860 = vmatprep.subr.mxu0 0.0
        %3861 = vmatpush1.msra.mxu0 0.0
        %3862 = vmatprep.subr.mxu0 0.0
        %3863 = vmatpush1.msra.mxu0 0.0
        %3864 = vmatprep.subr.mxu0 0.0
        %3865 = vmatpush1.msra.mxu0 0.0
        %3866 = vmatprep.subr.mxu0 0.0
        %3867 = vmatpush1.msra.mxu0 0.0
        %3868 = vmatprep.subr.mxu0 0.0
        %3869 = vmatpush1.msra.mxu0 0.0
        %3870 = vmatprep.subr.mxu0 0.0
        %3871 = vmatpush1.msra.mxu0 0.0
        %3872 = vmatprep.subr.mxu0 0.0
        %3873 = vmatpush1.msra.mxu0 0.0
        %3874 = vmatprep.subr.mxu0 0.0
        %3875 = vmatpush1.msra.mxu0 0.0
        %3876 = vmatprep.subr.mxu0 0.0
        %3877 = vmatpush1.msra.mxu0 0.0
        %3878 = vmatprep.subr.mxu0 0.0
        %3879 = vmatpush1.msra.mxu0 0.0
        %3880 = vmatprep.subr.mxu0 0.0
        %3881 = vmatpush1.msra.mxu0 0.0
        %3882 = vmatprep.subr.mxu0 0.0
        %3883 = vmatpush1.msra.mxu0 0.0
        %3884 = vmatprep.subr.mxu0 0.0
        %3885 = vmatpush1.msra.mxu0 0.0
        %3886 = vmatprep.mubr.f32.mxu0 0.0
        %v3887 = vand.u32 %v3582, 4294901760
        %v3888 = vsub.f32 %v3582, %v3887
        %3889 = vmatmul.mubr.f32.gmra.mrb[0].mxu0 %v3888
        %v3890 = vpop.f32.mrb[0].mxu0
        %v3891 = vadd.f32 %v3791, %v3890
        %v3892 = vpop.f32.mrb[0].mxu0
        %3893 = vmatprep.mubr.f32.mxu0 0.0
        %v3894 = vand.u32 %v3585, 4294901760
        %v3895 = vsub.f32 %v3585, %v3894
        %3896 = vmatmul.mubr.f32.gmra.mrb[0].mxu0 %v3895
        %v3897 = vpop.f32.mrb[0].mxu0
        %v3898 = vadd.f32 %v3797, %v3897
        %v3899 = vpop.f32.mrb[0].mxu0
        %3900 = vmatprep.mubr.f32.mxu0 0.0
        %v3901 = vand.u32 %v3588, 4294901760
        %v3902 = vsub.f32 %v3588, %v3901
        %3903 = vmatmul.mubr.f32.gmra.mrb[0].mxu0 %v3902
        %v3904 = vpop.f32.mrb[0].mxu0
        %v3905 = vadd.f32 %v3803, %v3904
        %v3906 = vpop.f32.mrb[0].mxu0
        %3907 = vmatprep.mubr.f32.mxu0 0.0
        %v3908 = vand.u32 %v3591, 4294901760
        %v3909 = vsub.f32 %v3591, %v3908
        %3910 = vmatmul.mubr.f32.gmra.mrb[0].mxu0 %v3909
        %v3911 = vpop.f32.mrb[0].mxu0
        %v3912 = vadd.f32 %v3809, %v3911
        %v3913 = vpop.f32.mrb[0].mxu0
        %3914 = vmatprep.mubr.f32.mxu0 0.0
        %v3915 = vand.u32 %v3594, 4294901760
        %v3916 = vsub.f32 %v3594, %v3915
        %3917 = vmatmul.mubr.f32.gmra.mrb[0].mxu0 %v3916
        %v3918 = vpop.f32.mrb[0].mxu0
        %v3919 = vadd.f32 %v3815, %v3918
        %v3920 = vpop.f32.mrb[0].mxu0
        %3921 = vdwg.mxu0
        %3922 = vmatprep.subr.mxu0 0.0
        %v3923 = vand.u32 %v3579, 4294901760
        %3924 = vmatpush1.msra.mxu0 %v3923
        %3925 = vmatprep.subr.mxu0 0.0
        %v3926 = vand.u32 %v3580, 4294901760
        %3927 = vmatpush1.msra.mxu0 %v3926
        %3928 = vmatprep.subr.mxu0 0.0
        %3929 = vmatpush1.msra.mxu0 0.0
        %3930 = vmatprep.subr.mxu0 0.0
        %3931 = vmatpush1.msra.mxu0 0.0
        %3932 = vmatprep.subr.mxu0 0.0
        %3933 = vmatpush1.msra.mxu0 0.0
        %3934 = vmatprep.subr.mxu0 0.0
        %3935 = vmatpush1.msra.mxu0 0.0
        %3936 = vmatprep.subr.mxu0 0.0
        %3937 = vmatpush1.msra.mxu0 0.0
        %3938 = vmatprep.subr.mxu0 0.0
        %3939 = vmatpush1.msra.mxu0 0.0
        %3940 = vmatprep.subr.mxu0 0.0
        %3941 = vmatpush1.msra.mxu0 0.0
        %3942 = vmatprep.subr.mxu0 0.0
        %3943 = vmatpush1.msra.mxu0 0.0
        %3944 = vmatprep.subr.mxu0 0.0
        %3945 = vmatpush1.msra.mxu0 0.0
        %3946 = vmatprep.subr.mxu0 0.0
        %3947 = vmatpush1.msra.mxu0 0.0
        %3948 = vmatprep.subr.mxu0 0.0
        %3949 = vmatpush1.msra.mxu0 0.0
        %3950 = vmatprep.subr.mxu0 0.0
        %3951 = vmatpush1.msra.mxu0 0.0
        %3952 = vmatprep.subr.mxu0 0.0
        %3953 = vmatpush1.msra.mxu0 0.0
        %3954 = vmatprep.subr.mxu0 0.0
        %3955 = vmatpush1.msra.mxu0 0.0
        %3956 = vmatprep.subr.mxu0 0.0
        %3957 = vmatpush1.msra.mxu0 0.0
        %3958 = vmatprep.subr.mxu0 0.0
        %3959 = vmatpush1.msra.mxu0 0.0
        %3960 = vmatprep.subr.mxu0 0.0
        %3961 = vmatpush1.msra.mxu0 0.0
        %3962 = vmatprep.subr.mxu0 0.0
        %3963 = vmatpush1.msra.mxu0 0.0
        %3964 = vmatprep.subr.mxu0 0.0
        %3965 = vmatpush1.msra.mxu0 0.0
        %3966 = vmatprep.subr.mxu0 0.0
        %3967 = vmatpush1.msra.mxu0 0.0
        %3968 = vmatprep.subr.mxu0 0.0
        %3969 = vmatpush1.msra.mxu0 0.0
        %3970 = vmatprep.subr.mxu0 0.0
        %3971 = vmatpush1.msra.mxu0 0.0
        %3972 = vmatprep.subr.mxu0 0.0
        %3973 = vmatpush1.msra.mxu0 0.0
        %3974 = vmatprep.subr.mxu0 0.0
        %3975 = vmatpush1.msra.mxu0 0.0
        %3976 = vmatprep.subr.mxu0 0.0
        %3977 = vmatpush1.msra.mxu0 0.0
        %3978 = vmatprep.subr.mxu0 0.0
        %3979 = vmatpush1.msra.mxu0 0.0
        %3980 = vmatprep.subr.mxu0 0.0
        %3981 = vmatpush1.msra.mxu0 0.0
        %3982 = vmatprep.subr.mxu0 0.0
        %3983 = vmatpush1.msra.mxu0 0.0
        %3984 = vmatprep.subr.mxu0 0.0
        %3985 = vmatpush1.msra.mxu0 0.0
        %3986 = vmatprep.subr.mxu0 0.0
        %3987 = vmatpush1.msra.mxu0 0.0
        %3988 = vmatprep.mubr.f32.mxu0 0.0
        %v3989 = vand.u32 %v3582, 4294901760
        %v3990 = vsub.f32 %v3582, %v3989
        %v3991 = vand.u32 %v3990, 4294901760
        %3992 = vmatmul.mubr.f32.gmra.mrb[0].mxu0 %v3991
        %v3993 = vpop.f32.mrb[0].mxu0
        %v3994 = vadd.f32 %v3891, %v3993
        %v3995 = vpop.f32.mrb[0].mxu0
        %3996 = vmatprep.mubr.f32.mxu0 0.0
        %v3997 = vand.u32 %v3585, 4294901760
        %v3998 = vsub.f32 %v3585, %v3997
        %v3999 = vand.u32 %v3998, 4294901760
        %4000 = vmatmul.mubr.f32.gmra.mrb[0].mxu0 %v3999
        %v4001 = vpop.f32.mrb[0].mxu0
        %v4002 = vadd.f32 %v3898, %v4001
        %v4003 = vpop.f32.mrb[0].mxu0
        %4004 = vmatprep.mubr.f32.mxu0 0.0
        %v4005 = vand.u32 %v3588, 4294901760
        %v4006 = vsub.f32 %v3588, %v4005
        %v4007 = vand.u32 %v4006, 4294901760
        %4008 = vmatmul.mubr.f32.gmra.mrb[0].mxu0 %v4007
        %v4009 = vpop.f32.mrb[0].mxu0
        %v4010 = vadd.f32 %v3905, %v4009
        %v4011 = vpop.f32.mrb[0].mxu0
        %4012 = vmatprep.mubr.f32.mxu0 0.0
        %v4013 = vand.u32 %v3591, 4294901760
        %v4014 = vsub.f32 %v3591, %v4013
        %v4015 = vand.u32 %v4014, 4294901760
        %4016 = vmatmul.mubr.f32.gmra.mrb[0].mxu0 %v4015
        %v4017 = vpop.f32.mrb[0].mxu0
        %v4018 = vadd.f32 %v3912, %v4017
        %v4019 = vpop.f32.mrb[0].mxu0
        %4020 = vmatprep.mubr.f32.mxu0 0.0
        %v4021 = vand.u32 %v3594, 4294901760
        %v4022 = vsub.f32 %v3594, %v4021
        %v4023 = vand.u32 %v4022, 4294901760
        %4024 = vmatmul.mubr.f32.gmra.mrb[0].mxu0 %v4023
        %v4025 = vpop.f32.mrb[0].mxu0
        %v4026 = vadd.f32 %v3919, %v4025
        %v4027 = vpop.f32.mrb[0].mxu0
        %4028 = vdwg.mxu0
        %4029 = vmatprep.subr.mxu0 0.0
        %v4030 = vand.u32 %v3579, 4294901760
        %v4031 = vsub.f32 %v3579, %v4030
        %v4032 = vand.u32 %v4031, 4294901760
        %4033 = vmatpush1.msra.mxu0 %v4032
        %4034 = vmatprep.subr.mxu0 0.0
        %v4035 = vand.u32 %v3580, 4294901760
        %v4036 = vsub.f32 %v3580, %v4035
        %v4037 = vand.u32 %v4036, 4294901760
        %4038 = vmatpush1.msra.mxu0 %v4037
        %4039 = vmatprep.subr.mxu0 0.0
        %4040 = vmatpush1.msra.mxu0 0.0
        %4041 = vmatprep.subr.mxu0 0.0
        %4042 = vmatpush1.msra.mxu0 0.0
        %4043 = vmatprep.subr.mxu0 0.0
        %4044 = vmatpush1.msra.mxu0 0.0
        %4045 = vmatprep.subr.mxu0 0.0
        %4046 = vmatpush1.msra.mxu0 0.0
        %4047 = vmatprep.subr.mxu0 0.0
        %4048 = vmatpush1.msra.mxu0 0.0
        %4049 = vmatprep.subr.mxu0 0.0
        %4050 = vmatpush1.msra.mxu0 0.0
        %4051 = vmatprep.subr.mxu0 0.0
        %4052 = vmatpush1.msra.mxu0 0.0
        %4053 = vmatprep.subr.mxu0 0.0
        %4054 = vmatpush1.msra.mxu0 0.0
        %4055 = vmatprep.subr.mxu0 0.0
        %4056 = vmatpush1.msra.mxu0 0.0
        %4057 = vmatprep.subr.mxu0 0.0
        %4058 = vmatpush1.msra.mxu0 0.0
        %4059 = vmatprep.subr.mxu0 0.0
        %4060 = vmatpush1.msra.mxu0 0.0
        %4061 = vmatprep.subr.mxu0 0.0
        %4062 = vmatpush1.msra.mxu0 0.0
        %4063 = vmatprep.subr.mxu0 0.0
        %4064 = vmatpush1.msra.mxu0 0.0
        %4065 = vmatprep.subr.mxu0 0.0
        %4066 = vmatpush1.msra.mxu0 0.0
        %4067 = vmatprep.subr.mxu0 0.0
        %4068 = vmatpush1.msra.mxu0 0.0
        %4069 = vmatprep.subr.mxu0 0.0
        %4070 = vmatpush1.msra.mxu0 0.0
        %4071 = vmatprep.subr.mxu0 0.0
        %4072 = vmatpush1.msra.mxu0 0.0
        %4073 = vmatprep.subr.mxu0 0.0
        %4074 = vmatpush1.msra.mxu0 0.0
        %4075 = vmatprep.subr.mxu0 0.0
        %4076 = vmatpush1.msra.mxu0 0.0
        %4077 = vmatprep.subr.mxu0 0.0
        %4078 = vmatpush1.msra.mxu0 0.0
        %4079 = vmatprep.subr.mxu0 0.0
        %4080 = vmatpush1.msra.mxu0 0.0
        %4081 = vmatprep.subr.mxu0 0.0
        %4082 = vmatpush1.msra.mxu0 0.0
        %4083 = vmatprep.subr.mxu0 0.0
        %4084 = vmatpush1.msra.mxu0 0.0
        %4085 = vmatprep.subr.mxu0 0.0
        %4086 = vmatpush1.msra.mxu0 0.0
        %4087 = vmatprep.subr.mxu0 0.0
        %4088 = vmatpush1.msra.mxu0 0.0
        %4089 = vmatprep.subr.mxu0 0.0
        %4090 = vmatpush1.msra.mxu0 0.0
        %4091 = vmatprep.subr.mxu0 0.0
        %4092 = vmatpush1.msra.mxu0 0.0
        %4093 = vmatprep.subr.mxu0 0.0
        %4094 = vmatpush1.msra.mxu0 0.0
        %4095 = vmatprep.subr.mxu0 0.0
        %4096 = vmatpush1.msra.mxu0 0.0
        %4097 = vmatprep.subr.mxu0 0.0
        %4098 = vmatpush1.msra.mxu0 0.0
        %4099 = vmatprep.mubr.f32.mxu0 0.0
        %v4100 = vand.u32 %v3582, 4294901760
        %4101 = vmatmul.mubr.f32.gmra.mrb[0].mxu0 %v4100
        %v4102 = vpop.f32.mrb[0].mxu0
        %v4103 = vadd.f32 %v3994, %v4102
        %v4104 = vpop.f32.mrb[0].mxu0
        %4105 = vmatprep.mubr.f32.mxu0 0.0
        %v4106 = vand.u32 %v3585, 4294901760
        %4107 = vmatmul.mubr.f32.gmra.mrb[0].mxu0 %v4106
        %v4108 = vpop.f32.mrb[0].mxu0
        %v4109 = vadd.f32 %v4002, %v4108
        %v4110 = vpop.f32.mrb[0].mxu0
        %4111 = vmatprep.mubr.f32.mxu0 0.0
        %v4112 = vand.u32 %v3588, 4294901760
        %4113 = vmatmul.mubr.f32.gmra.mrb[0].mxu0 %v4112
        %v4114 = vpop.f32.mrb[0].mxu0
        %v4115 = vadd.f32 %v4010, %v4114
        %v4116 = vpop.f32.mrb[0].mxu0
        %4117 = vmatprep.mubr.f32.mxu0 0.0
        %v4118 = vand.u32 %v3591, 4294901760
        %4119 = vmatmul.mubr.f32.gmra.mrb[0].mxu0 %v4118
        %v4120 = vpop.f32.mrb[0].mxu0
        %v4121 = vadd.f32 %v4018, %v4120
        %v4122 = vpop.f32.mrb[0].mxu0
        %4123 = vmatprep.mubr.f32.mxu0 0.0
        %v4124 = vand.u32 %v3594, 4294901760
        %4125 = vmatmul.mubr.f32.gmra.mrb[0].mxu0 %v4124
        %v4126 = vpop.f32.mrb[0].mxu0
        %v4127 = vadd.f32 %v4026, %v4126
        %v4128 = vpop.f32.mrb[0].mxu0
        %4129 = vdwg.mxu0
        %4130 = vmatprep.subr.mxu0 0.0
        %v4131 = vand.u32 %v3579, 4294901760
        %4132 = vmatpush1.msra.mxu0 %v4131
        %4133 = vmatprep.subr.mxu0 0.0
        %v4134 = vand.u32 %v3580, 4294901760
        %4135 = vmatpush1.msra.mxu0 %v4134
        %4136 = vmatprep.subr.mxu0 0.0
        %4137 = vmatpush1.msra.mxu0 0.0
        %4138 = vmatprep.subr.mxu0 0.0
        %4139 = vmatpush1.msra.mxu0 0.0
        %4140 = vmatprep.subr.mxu0 0.0
        %4141 = vmatpush1.msra.mxu0 0.0
        %4142 = vmatprep.subr.mxu0 0.0
        %4143 = vmatpush1.msra.mxu0 0.0
        %4144 = vmatprep.subr.mxu0 0.0
        %4145 = vmatpush1.msra.mxu0 0.0
        %4146 = vmatprep.subr.mxu0 0.0
        %4147 = vmatpush1.msra.mxu0 0.0
        %4148 = vmatprep.subr.mxu0 0.0
        %4149 = vmatpush1.msra.mxu0 0.0
        %4150 = vmatprep.subr.mxu0 0.0
        %4151 = vmatpush1.msra.mxu0 0.0
        %4152 = vmatprep.subr.mxu0 0.0
        %4153 = vmatpush1.msra.mxu0 0.0
        %4154 = vmatprep.subr.mxu0 0.0
        %4155 = vmatpush1.msra.mxu0 0.0
        %4156 = vmatprep.subr.mxu0 0.0
        %4157 = vmatpush1.msra.mxu0 0.0
        %4158 = vmatprep.subr.mxu0 0.0
        %4159 = vmatpush1.msra.mxu0 0.0
        %4160 = vmatprep.subr.mxu0 0.0
        %4161 = vmatpush1.msra.mxu0 0.0
        %4162 = vmatprep.subr.mxu0 0.0
        %4163 = vmatpush1.msra.mxu0 0.0
        %4164 = vmatprep.subr.mxu0 0.0
        %4165 = vmatpush1.msra.mxu0 0.0
        %4166 = vmatprep.subr.mxu0 0.0
        %4167 = vmatpush1.msra.mxu0 0.0
        %4168 = vmatprep.subr.mxu0 0.0
        %4169 = vmatpush1.msra.mxu0 0.0
        %4170 = vmatprep.subr.mxu0 0.0
        %4171 = vmatpush1.msra.mxu0 0.0
        %4172 = vmatprep.subr.mxu0 0.0
        %4173 = vmatpush1.msra.mxu0 0.0
        %4174 = vmatprep.subr.mxu0 0.0
        %4175 = vmatpush1.msra.mxu0 0.0
        %4176 = vmatprep.subr.mxu0 0.0
        %4177 = vmatpush1.msra.mxu0 0.0
        %4178 = vmatprep.subr.mxu0 0.0
        %4179 = vmatpush1.msra.mxu0 0.0
        %4180 = vmatprep.subr.mxu0 0.0
        %4181 = vmatpush1.msra.mxu0 0.0
        %4182 = vmatprep.subr.mxu0 0.0
        %4183 = vmatpush1.msra.mxu0 0.0
        %4184 = vmatprep.subr.mxu0 0.0
        %4185 = vmatpush1.msra.mxu0 0.0
        %4186 = vmatprep.subr.mxu0 0.0
        %4187 = vmatpush1.msra.mxu0 0.0
        %4188 = vmatprep.subr.mxu0 0.0
        %4189 = vmatpush1.msra.mxu0 0.0
        %4190 = vmatprep.subr.mxu0 0.0
        %4191 = vmatpush1.msra.mxu0 0.0
        %4192 = vmatprep.subr.mxu0 0.0
        %4193 = vmatpush1.msra.mxu0 0.0
        %4194 = vmatprep.subr.mxu0 0.0
        %4195 = vmatpush1.msra.mxu0 0.0
        %4196 = vmatprep.mubr.f32.mxu0 0.0
        %v4197 = vand.u32 %v3582, 4294901760
        %4198 = vmatmul.mubr.f32.gmra.mrb[0].mxu0 %v4197
        %v4199 = vpop.f32.mrb[0].mxu0
        %v4200 = vadd.f32 %v4103, %v4199
        %v4201 = vpop.f32.mrb[0].mxu0
        %4202 = vmatprep.mubr.f32.mxu0 0.0
        %v4203 = vand.u32 %v3585, 4294901760
        %4204 = vmatmul.mubr.f32.gmra.mrb[0].mxu0 %v4203
        %v4205 = vpop.f32.mrb[0].mxu0
        %v4206 = vadd.f32 %v4109, %v4205
        %v4207 = vpop.f32.mrb[0].mxu0
        %4208 = vmatprep.mubr.f32.mxu0 0.0
        %v4209 = vand.u32 %v3588, 4294901760
        %4210 = vmatmul.mubr.f32.gmra.mrb[0].mxu0 %v4209
        %v4211 = vpop.f32.mrb[0].mxu0
        %v4212 = vadd.f32 %v4115, %v4211
        %v4213 = vpop.f32.mrb[0].mxu0
        %4214 = vmatprep.mubr.f32.mxu0 0.0
        %v4215 = vand.u32 %v3591, 4294901760
        %4216 = vmatmul.mubr.f32.gmra.mrb[0].mxu0 %v4215
        %v4217 = vpop.f32.mrb[0].mxu0
        %v4218 = vadd.f32 %v4121, %v4217
        %v4219 = vpop.f32.mrb[0].mxu0
        %4220 = vmatprep.mubr.f32.mxu0 0.0
        %v4221 = vand.u32 %v3594, 4294901760
        %4222 = vmatmul.mubr.f32.gmra.mrb[0].mxu0 %v4221
        %v4223 = vpop.f32.mrb[0].mxu0
        %v4224 = vadd.f32 %v4127, %v4223
        %v4225 = vpop.f32.mrb[0].mxu0
        %4226 = vdwg.mxu0
        %v4227 = vmul.f32 %v4200, %v4200
        %v4228 = vmul.f32 %v4206, %v4206
        %v4229 = vmul.f32 %v4200, %v4206
        %v4230 = vsub.f32 %v4212, %v4227
        %v4231 = vsub.f32 %v4218, %v4228
        %v4232 = vsub.f32 %v4224, %v4229
        %v4233 = vmul.f32 %v4232, 2.0
        %v4234 = vstv %s348
        %v4235 = vadd.f32 %v4233, %v4234
        %v4236 = vadd.f32 %v4230, %v4231
        %v4237 = vadd.f32 %v4236, %v4234
        %v4238 = vrcp.pop %v4237
        %v4239 = vmul.f32 %v4237, %v4238
        %v4240 = vsub.f32 2.0, %v4239
        %v4241 = vmul.f32 %v4238, %v4240
        %v4242 = vmul.f32 %v4235, %v4241
        %s4243 = scalar_lea.vmem [#allocation6], 16
        %v4244 = vld [vmem:[%s4243] sm:$0xff]
        %v4245 = vld [vmem:[%s4243 + $0x8] sm:$0xff]
        %v4247 = vsel %vm408, %v1034, 0
        %v4250 = vsel %vm408, %v1665, 0
        %v4253 = vsel %vm408, %v2296, 0
        %v4256 = vsel %vm408, %v2927, 0
        %v4259 = vsel %vm408, %v3558, 0
        %4261 = vmatprep.subr.mxu0 0.0
        %v4262 = vand.u32 %v4244, 4294901760
        %4263 = vmatpush1.msra.mxu0 %v4262
        %4264 = vmatprep.subr.mxu0 0.0
        %v4265 = vand.u32 %v4245, 4294901760
        %4266 = vmatpush1.msra.mxu0 %v4265
        %4267 = vmatprep.subr.mxu0 0.0
        %4268 = vmatpush1.msra.mxu0 0.0
        %4269 = vmatprep.subr.mxu0 0.0
        %4270 = vmatpush1.msra.mxu0 0.0
        %4271 = vmatprep.subr.mxu0 0.0
        %4272 = vmatpush1.msra.mxu0 0.0
        %4273 = vmatprep.subr.mxu0 0.0
        %4274 = vmatpush1.msra.mxu0 0.0
        %4275 = vmatprep.subr.mxu0 0.0
        %4276 = vmatpush1.msra.mxu0 0.0
        %4277 = vmatprep.subr.mxu0 0.0
        %4278 = vmatpush1.msra.mxu0 0.0
        %4279 = vmatprep.subr.mxu0 0.0
        %4280 = vmatpush1.msra.mxu0 0.0
        %4281 = vmatprep.subr.mxu0 0.0
        %4282 = vmatpush1.msra.mxu0 0.0
        %4283 = vmatprep.subr.mxu0 0.0
        %4284 = vmatpush1.msra.mxu0 0.0
        %4285 = vmatprep.subr.mxu0 0.0
        %4286 = vmatpush1.msra.mxu0 0.0
        %4287 = vmatprep.subr.mxu0 0.0
        %4288 = vmatpush1.msra.mxu0 0.0
        %4289 = vmatprep.subr.mxu0 0.0
        %4290 = vmatpush1.msra.mxu0 0.0
        %4291 = vmatprep.subr.mxu0 0.0
        %4292 = vmatpush1.msra.mxu0 0.0
        %4293 = vmatprep.subr.mxu0 0.0
        %4294 = vmatpush1.msra.mxu0 0.0
        %4295 = vmatprep.subr.mxu0 0.0
        %4296 = vmatpush1.msra.mxu0 0.0
        %4297 = vmatprep.subr.mxu0 0.0
        %4298 = vmatpush1.msra.mxu0 0.0
        %4299 = vmatprep.subr.mxu0 0.0
        %4300 = vmatpush1.msra.mxu0 0.0
        %4301 = vmatprep.subr.mxu0 0.0
        %4302 = vmatpush1.msra.mxu0 0.0
        %4303 = vmatprep.subr.mxu0 0.0
        %4304 = vmatpush1.msra.mxu0 0.0
        %4305 = vmatprep.subr.mxu0 0.0
        %4306 = vmatpush1.msra.mxu0 0.0
        %4307 = vmatprep.subr.mxu0 0.0
        %4308 = vmatpush1.msra.mxu0 0.0
        %4309 = vmatprep.subr.mxu0 0.0
        %4310 = vmatpush1.msra.mxu0 0.0
        %4311 = vmatprep.subr.mxu0 0.0
        %4312 = vmatpush1.msra.mxu0 0.0
        %4313 = vmatprep.subr.mxu0 0.0
        %4314 = vmatpush1.msra.mxu0 0.0
        %4315 = vmatprep.subr.mxu0 0.0
        %4316 = vmatpush1.msra.mxu0 0.0
        %4317 = vmatprep.subr.mxu0 0.0
        %4318 = vmatpush1.msra.mxu0 0.0
        %4319 = vmatprep.subr.mxu0 0.0
        %4320 = vmatpush1.msra.mxu0 0.0
        %4321 = vmatprep.subr.mxu0 0.0
        %4322 = vmatpush1.msra.mxu0 0.0
        %4323 = vmatprep.subr.mxu0 0.0
        %4324 = vmatpush1.msra.mxu0 0.0
        %4325 = vmatprep.subr.mxu0 0.0
        %4326 = vmatpush1.msra.mxu0 0.0
        %4327 = vmatprep.mubr.f32.mxu0 0.0
        %v4328 = vand.u32 %v4247, 4294901760
        %v4329 = vsub.f32 %v4247, %v4328
        %v4330 = vand.u32 %v4329, 4294901760
        %v4331 = vsub.f32 %v4329, %v4330
        %v4332 = vand.u32 %v4331, 4294901760
        %4333 = vmatmul.mubr.f32.gmra.mrb[0].mxu0 %v4332
        %v4334 = vpop.f32.mrb[0].mxu0
        %v4335 = vadd.f32 0.0, %v4334
        %v4336 = vpop.f32.mrb[0].mxu0
        %4337 = vmatprep.mubr.f32.mxu0 0.0
        %v4338 = vand.u32 %v4250, 4294901760
        %v4339 = vsub.f32 %v4250, %v4338
        %v4340 = vand.u32 %v4339, 4294901760
        %v4341 = vsub.f32 %v4339, %v4340
        %v4342 = vand.u32 %v4341, 4294901760
        %4343 = vmatmul.mubr.f32.gmra.mrb[0].mxu0 %v4342
        %v4344 = vpop.f32.mrb[0].mxu0
        %v4345 = vadd.f32 0.0, %v4344
        %v4346 = vpop.f32.mrb[0].mxu0
        %4347 = vmatprep.mubr.f32.mxu0 0.0
        %v4348 = vand.u32 %v4253, 4294901760
        %v4349 = vsub.f32 %v4253, %v4348
        %v4350 = vand.u32 %v4349, 4294901760
        %v4351 = vsub.f32 %v4349, %v4350
        %v4352 = vand.u32 %v4351, 4294901760
        %4353 = vmatmul.mubr.f32.gmra.mrb[0].mxu0 %v4352
        %v4354 = vpop.f32.mrb[0].mxu0
        %v4355 = vadd.f32 0.0, %v4354
        %v4356 = vpop.f32.mrb[0].mxu0
        %4357 = vmatprep.mubr.f32.mxu0 0.0
        %v4358 = vand.u32 %v4256, 4294901760
        %v4359 = vsub.f32 %v4256, %v4358
        %v4360 = vand.u32 %v4359, 4294901760
        %v4361 = vsub.f32 %v4359, %v4360
        %v4362 = vand.u32 %v4361, 4294901760
        %4363 = vmatmul.mubr.f32.gmra.mrb[0].mxu0 %v4362
        %v4364 = vpop.f32.mrb[0].mxu0
        %v4365 = vadd.f32 0.0, %v4364
        %v4366 = vpop.f32.mrb[0].mxu0
        %4367 = vmatprep.mubr.f32.mxu0 0.0
        %v4368 = vand.u32 %v4259, 4294901760
        %v4369 = vsub.f32 %v4259, %v4368
        %v4370 = vand.u32 %v4369, 4294901760
        %v4371 = vsub.f32 %v4369, %v4370
        %v4372 = vand.u32 %v4371, 4294901760
        %4373 = vmatmul.mubr.f32.gmra.mrb[0].mxu0 %v4372
        %v4374 = vpop.f32.mrb[0].mxu0
        %v4375 = vadd.f32 0.0, %v4374
        %v4376 = vpop.f32.mrb[0].mxu0
        %4377 = vdwg.mxu0
        %4378 = vmatprep.subr.mxu0 0.0
        %v4379 = vand.u32 %v4244, 4294901760
        %v4380 = vsub.f32 %v4244, %v4379
        %v4381 = vand.u32 %v4380, 4294901760
        %v4382 = vsub.f32 %v4380, %v4381
        %v4383 = vand.u32 %v4382, 4294901760
        %4384 = vmatpush1.msra.mxu0 %v4383
        %4385 = vmatprep.subr.mxu0 0.0
        %v4386 = vand.u32 %v4245, 4294901760
        %v4387 = vsub.f32 %v4245, %v4386
        %v4388 = vand.u32 %v4387, 4294901760
        %v4389 = vsub.f32 %v4387, %v4388
        %v4390 = vand.u32 %v4389, 4294901760
        %4391 = vmatpush1.msra.mxu0 %v4390
        %4392 = vmatprep.subr.mxu0 0.0
        %4393 = vmatpush1.msra.mxu0 0.0
        %4394 = vmatprep.subr.mxu0 0.0
        %4395 = vmatpush1.msra.mxu0 0.0
        %4396 = vmatprep.subr.mxu0 0.0
        %4397 = vmatpush1.msra.mxu0 0.0
        %4398 = vmatprep.subr.mxu0 0.0
        %4399 = vmatpush1.msra.mxu0 0.0
        %4400 = vmatprep.subr.mxu0 0.0
        %4401 = vmatpush1.msra.mxu0 0.0
        %4402 = vmatprep.subr.mxu0 0.0
        %4403 = vmatpush1.msra.mxu0 0.0
        %4404 = vmatprep.subr.mxu0 0.0
        %4405 = vmatpush1.msra.mxu0 0.0
        %4406 = vmatprep.subr.mxu0 0.0
        %4407 = vmatpush1.msra.mxu0 0.0
        %4408 = vmatprep.subr.mxu0 0.0
        %4409 = vmatpush1.msra.mxu0 0.0
        %4410 = vmatprep.subr.mxu0 0.0
        %4411 = vmatpush1.msra.mxu0 0.0
        %4412 = vmatprep.subr.mxu0 0.0
        %4413 = vmatpush1.msra.mxu0 0.0
        %4414 = vmatprep.subr.mxu0 0.0
        %4415 = vmatpush1.msra.mxu0 0.0
        %4416 = vmatprep.subr.mxu0 0.0
        %4417 = vmatpush1.msra.mxu0 0.0
        %4418 = vmatprep.subr.mxu0 0.0
        %4419 = vmatpush1.msra.mxu0 0.0
        %4420 = vmatprep.subr.mxu0 0.0
        %4421 = vmatpush1.msra.mxu0 0.0
        %4422 = vmatprep.subr.mxu0 0.0
        %4423 = vmatpush1.msra.mxu0 0.0
        %4424 = vmatprep.subr.mxu0 0.0
        %4425 = vmatpush1.msra.mxu0 0.0
        %4426 = vmatprep.subr.mxu0 0.0
        %4427 = vmatpush1.msra.mxu0 0.0
        %4428 = vmatprep.subr.mxu0 0.0
        %4429 = vmatpush1.msra.mxu0 0.0
        %4430 = vmatprep.subr.mxu0 0.0
        %4431 = vmatpush1.msra.mxu0 0.0
        %4432 = vmatprep.subr.mxu0 0.0
        %4433 = vmatpush1.msra.mxu0 0.0
        %4434 = vmatprep.subr.mxu0 0.0
        %4435 = vmatpush1.msra.mxu0 0.0
        %4436 = vmatprep.subr.mxu0 0.0
        %4437 = vmatpush1.msra.mxu0 0.0
        %4438 = vmatprep.subr.mxu0 0.0
        %4439 = vmatpush1.msra.mxu0 0.0
        %4440 = vmatprep.subr.mxu0 0.0
        %4441 = vmatpush1.msra.mxu0 0.0
        %4442 = vmatprep.subr.mxu0 0.0
        %4443 = vmatpush1.msra.mxu0 0.0
        %4444 = vmatprep.subr.mxu0 0.0
        %4445 = vmatpush1.msra.mxu0 0.0
        %4446 = vmatprep.subr.mxu0 0.0
        %4447 = vmatpush1.msra.mxu0 0.0
        %4448 = vmatprep.subr.mxu0 0.0
        %4449 = vmatpush1.msra.mxu0 0.0
        %4450 = vmatprep.subr.mxu0 0.0
        %4451 = vmatpush1.msra.mxu0 0.0
        %4452 = vmatprep.mubr.f32.mxu0 0.0
        %v4453 = vand.u32 %v4247, 4294901760
        %4454 = vmatmul.mubr.f32.gmra.mrb[0].mxu0 %v4453
        %v4455 = vpop.f32.mrb[0].mxu0
        %v4456 = vadd.f32 %v4335, %v4455
        %v4457 = vpop.f32.mrb[0].mxu0
        %4458 = vmatprep.mubr.f32.mxu0 0.0
        %v4459 = vand.u32 %v4250, 4294901760
        %4460 = vmatmul.mubr.f32.gmra.mrb[0].mxu0 %v4459
        %v4461 = vpop.f32.mrb[0].mxu0
        %v4462 = vadd.f32 %v4345, %v4461
        %v4463 = vpop.f32.mrb[0].mxu0
        %4464 = vmatprep.mubr.f32.mxu0 0.0
        %v4465 = vand.u32 %v4253, 4294901760
        %4466 = vmatmul.mubr.f32.gmra.mrb[0].mxu0 %v4465
        %v4467 = vpop.f32.mrb[0].mxu0
        %v4468 = vadd.f32 %v4355, %v4467
        %v4469 = vpop.f32.mrb[0].mxu0
        %4470 = vmatprep.mubr.f32.mxu0 0.0
        %v4471 = vand.u32 %v4256, 4294901760
        %4472 = vmatmul.mubr.f32.gmra.mrb[0].mxu0 %v4471
        %v4473 = vpop.f32.mrb[0].mxu0
        %v4474 = vadd.f32 %v4365, %v4473
        %v4475 = vpop.f32.mrb[0].mxu0
        %4476 = vmatprep.mubr.f32.mxu0 0.0
        %v4477 = vand.u32 %v4259, 4294901760
        %4478 = vmatmul.mubr.f32.gmra.mrb[0].mxu0 %v4477
        %v4479 = vpop.f32.mrb[0].mxu0
        %v4480 = vadd.f32 %v4375, %v4479
        %v4481 = vpop.f32.mrb[0].mxu0
        %4482 = vdwg.mxu0
        %4483 = vmatprep.subr.mxu0 0.0
        %v4484 = vand.u32 %v4244, 4294901760
        %v4485 = vsub.f32 %v4244, %v4484
        %4486 = vmatpush1.msra.mxu0 %v4485
        %4487 = vmatprep.subr.mxu0 0.0
        %v4488 = vand.u32 %v4245, 4294901760
        %v4489 = vsub.f32 %v4245, %v4488
        %4490 = vmatpush1.msra.mxu0 %v4489
        %4491 = vmatprep.subr.mxu0 0.0
        %4492 = vmatpush1.msra.mxu0 0.0
        %4493 = vmatprep.subr.mxu0 0.0
        %4494 = vmatpush1.msra.mxu0 0.0
        %4495 = vmatprep.subr.mxu0 0.0
        %4496 = vmatpush1.msra.mxu0 0.0
        %4497 = vmatprep.subr.mxu0 0.0
        %4498 = vmatpush1.msra.mxu0 0.0
        %4499 = vmatprep.subr.mxu0 0.0
        %4500 = vmatpush1.msra.mxu0 0.0
        %4501 = vmatprep.subr.mxu0 0.0
        %4502 = vmatpush1.msra.mxu0 0.0
        %4503 = vmatprep.subr.mxu0 0.0
        %4504 = vmatpush1.msra.mxu0 0.0
        %4505 = vmatprep.subr.mxu0 0.0
        %4506 = vmatpush1.msra.mxu0 0.0
        %4507 = vmatprep.subr.mxu0 0.0
        %4508 = vmatpush1.msra.mxu0 0.0
        %4509 = vmatprep.subr.mxu0 0.0
        %4510 = vmatpush1.msra.mxu0 0.0
        %4511 = vmatprep.subr.mxu0 0.0
        %4512 = vmatpush1.msra.mxu0 0.0
        %4513 = vmatprep.subr.mxu0 0.0
        %4514 = vmatpush1.msra.mxu0 0.0
        %4515 = vmatprep.subr.mxu0 0.0
        %4516 = vmatpush1.msra.mxu0 0.0
        %4517 = vmatprep.subr.mxu0 0.0
        %4518 = vmatpush1.msra.mxu0 0.0
        %4519 = vmatprep.subr.mxu0 0.0
        %4520 = vmatpush1.msra.mxu0 0.0
        %4521 = vmatprep.subr.mxu0 0.0
        %4522 = vmatpush1.msra.mxu0 0.0
        %4523 = vmatprep.subr.mxu0 0.0
        %4524 = vmatpush1.msra.mxu0 0.0
        %4525 = vmatprep.subr.mxu0 0.0
        %4526 = vmatpush1.msra.mxu0 0.0
        %4527 = vmatprep.subr.mxu0 0.0
        %4528 = vmatpush1.msra.mxu0 0.0
        %4529 = vmatprep.subr.mxu0 0.0
        %4530 = vmatpush1.msra.mxu0 0.0
        %4531 = vmatprep.subr.mxu0 0.0
        %4532 = vmatpush1.msra.mxu0 0.0
        %4533 = vmatprep.subr.mxu0 0.0
        %4534 = vmatpush1.msra.mxu0 0.0
        %4535 = vmatprep.subr.mxu0 0.0
        %4536 = vmatpush1.msra.mxu0 0.0
        %4537 = vmatprep.subr.mxu0 0.0
        %4538 = vmatpush1.msra.mxu0 0.0
        %4539 = vmatprep.subr.mxu0 0.0
        %4540 = vmatpush1.msra.mxu0 0.0
        %4541 = vmatprep.subr.mxu0 0.0
        %4542 = vmatpush1.msra.mxu0 0.0
        %4543 = vmatprep.subr.mxu0 0.0
        %4544 = vmatpush1.msra.mxu0 0.0
        %4545 = vmatprep.subr.mxu0 0.0
        %4546 = vmatpush1.msra.mxu0 0.0
        %4547 = vmatprep.subr.mxu0 0.0
        %4548 = vmatpush1.msra.mxu0 0.0
        %4549 = vmatprep.subr.mxu0 0.0
        %4550 = vmatpush1.msra.mxu0 0.0
        %4551 = vmatprep.mubr.f32.mxu0 0.0
        %v4552 = vand.u32 %v4247, 4294901760
        %v4553 = vsub.f32 %v4247, %v4552
        %4554 = vmatmul.mubr.f32.gmra.mrb[0].mxu0 %v4553
        %v4555 = vpop.f32.mrb[0].mxu0
        %v4556 = vadd.f32 %v4456, %v4555
        %v4557 = vpop.f32.mrb[0].mxu0
        %4558 = vmatprep.mubr.f32.mxu0 0.0
        %v4559 = vand.u32 %v4250, 4294901760
        %v4560 = vsub.f32 %v4250, %v4559
        %4561 = vmatmul.mubr.f32.gmra.mrb[0].mxu0 %v4560
        %v4562 = vpop.f32.mrb[0].mxu0
        %v4563 = vadd.f32 %v4462, %v4562
        %v4564 = vpop.f32.mrb[0].mxu0
        %4565 = vmatprep.mubr.f32.mxu0 0.0
        %v4566 = vand.u32 %v4253, 4294901760
        %v4567 = vsub.f32 %v4253, %v4566
        %4568 = vmatmul.mubr.f32.gmra.mrb[0].mxu0 %v4567
        %v4569 = vpop.f32.mrb[0].mxu0
        %v4570 = vadd.f32 %v4468, %v4569
        %v4571 = vpop.f32.mrb[0].mxu0
        %4572 = vmatprep.mubr.f32.mxu0 0.0
        %v4573 = vand.u32 %v4256, 4294901760
        %v4574 = vsub.f32 %v4256, %v4573
        %4575 = vmatmul.mubr.f32.gmra.mrb[0].mxu0 %v4574
        %v4576 = vpop.f32.mrb[0].mxu0
        %v4577 = vadd.f32 %v4474, %v4576
        %v4578 = vpop.f32.mrb[0].mxu0
        %4579 = vmatprep.mubr.f32.mxu0 0.0
        %v4580 = vand.u32 %v4259, 4294901760
        %v4581 = vsub.f32 %v4259, %v4580
        %4582 = vmatmul.mubr.f32.gmra.mrb[0].mxu0 %v4581
        %v4583 = vpop.f32.mrb[0].mxu0
        %v4584 = vadd.f32 %v4480, %v4583
        %v4585 = vpop.f32.mrb[0].mxu0
        %4586 = vdwg.mxu0
        %4587 = vmatprep.subr.mxu0 0.0
        %v4588 = vand.u32 %v4244, 4294901760
        %4589 = vmatpush1.msra.mxu0 %v4588
        %4590 = vmatprep.subr.mxu0 0.0
        %v4591 = vand.u32 %v4245, 4294901760
        %4592 = vmatpush1.msra.mxu0 %v4591
        %4593 = vmatprep.subr.mxu0 0.0
        %4594 = vmatpush1.msra.mxu0 0.0
        %4595 = vmatprep.subr.mxu0 0.0
        %4596 = vmatpush1.msra.mxu0 0.0
        %4597 = vmatprep.subr.mxu0 0.0
        %4598 = vmatpush1.msra.mxu0 0.0
        %4599 = vmatprep.subr.mxu0 0.0
        %4600 = vmatpush1.msra.mxu0 0.0
        %4601 = vmatprep.subr.mxu0 0.0
        %4602 = vmatpush1.msra.mxu0 0.0
        %4603 = vmatprep.subr.mxu0 0.0
        %4604 = vmatpush1.msra.mxu0 0.0
        %4605 = vmatprep.subr.mxu0 0.0
        %4606 = vmatpush1.msra.mxu0 0.0
        %4607 = vmatprep.subr.mxu0 0.0
        %4608 = vmatpush1.msra.mxu0 0.0
        %4609 = vmatprep.subr.mxu0 0.0
        %4610 = vmatpush1.msra.mxu0 0.0
        %4611 = vmatprep.subr.mxu0 0.0
        %4612 = vmatpush1.msra.mxu0 0.0
        %4613 = vmatprep.subr.mxu0 0.0
        %4614 = vmatpush1.msra.mxu0 0.0
        %4615 = vmatprep.subr.mxu0 0.0
        %4616 = vmatpush1.msra.mxu0 0.0
        %4617 = vmatprep.subr.mxu0 0.0
        %4618 = vmatpush1.msra.mxu0 0.0
        %4619 = vmatprep.subr.mxu0 0.0
        %4620 = vmatpush1.msra.mxu0 0.0
        %4621 = vmatprep.subr.mxu0 0.0
        %4622 = vmatpush1.msra.mxu0 0.0
        %4623 = vmatprep.subr.mxu0 0.0
        %4624 = vmatpush1.msra.mxu0 0.0
        %4625 = vmatprep.subr.mxu0 0.0
        %4626 = vmatpush1.msra.mxu0 0.0
        %4627 = vmatprep.subr.mxu0 0.0
        %4628 = vmatpush1.msra.mxu0 0.0
        %4629 = vmatprep.subr.mxu0 0.0
        %4630 = vmatpush1.msra.mxu0 0.0
        %4631 = vmatprep.subr.mxu0 0.0
        %4632 = vmatpush1.msra.mxu0 0.0
        %4633 = vmatprep.subr.mxu0 0.0
        %4634 = vmatpush1.msra.mxu0 0.0
        %4635 = vmatprep.subr.mxu0 0.0
        %4636 = vmatpush1.msra.mxu0 0.0
        %4637 = vmatprep.subr.mxu0 0.0
        %4638 = vmatpush1.msra.mxu0 0.0
        %4639 = vmatprep.subr.mxu0 0.0
        %4640 = vmatpush1.msra.mxu0 0.0
        %4641 = vmatprep.subr.mxu0 0.0
        %4642 = vmatpush1.msra.mxu0 0.0
        %4643 = vmatprep.subr.mxu0 0.0
        %4644 = vmatpush1.msra.mxu0 0.0
        %4645 = vmatprep.subr.mxu0 0.0
        %4646 = vmatpush1.msra.mxu0 0.0
        %4647 = vmatprep.subr.mxu0 0.0
        %4648 = vmatpush1.msra.mxu0 0.0
        %4649 = vmatprep.subr.mxu0 0.0
        %4650 = vmatpush1.msra.mxu0 0.0
        %4651 = vmatprep.subr.mxu0 0.0
        %4652 = vmatpush1.msra.mxu0 0.0
        %4653 = vmatprep.mubr.f32.mxu0 0.0
        %v4654 = vand.u32 %v4247, 4294901760
        %v4655 = vsub.f32 %v4247, %v4654
        %v4656 = vand.u32 %v4655, 4294901760
        %4657 = vmatmul.mubr.f32.gmra.mrb[0].mxu0 %v4656
        %v4658 = vpop.f32.mrb[0].mxu0
        %v4659 = vadd.f32 %v4556, %v4658
        %v4660 = vpop.f32.mrb[0].mxu0
        %4661 = vmatprep.mubr.f32.mxu0 0.0
        %v4662 = vand.u32 %v4250, 4294901760
        %v4663 = vsub.f32 %v4250, %v4662
        %v4664 = vand.u32 %v4663, 4294901760
        %4665 = vmatmul.mubr.f32.gmra.mrb[0].mxu0 %v4664
        %v4666 = vpop.f32.mrb[0].mxu0
        %v4667 = vadd.f32 %v4563, %v4666
        %v4668 = vpop.f32.mrb[0].mxu0
        %4669 = vmatprep.mubr.f32.mxu0 0.0
        %v4670 = vand.u32 %v4253, 4294901760
        %v4671 = vsub.f32 %v4253, %v4670
        %v4672 = vand.u32 %v4671, 4294901760
        %4673 = vmatmul.mubr.f32.gmra.mrb[0].mxu0 %v4672
        %v4674 = vpop.f32.mrb[0].mxu0
        %v4675 = vadd.f32 %v4570, %v4674
        %v4676 = vpop.f32.mrb[0].mxu0
        %4677 = vmatprep.mubr.f32.mxu0 0.0
        %v4678 = vand.u32 %v4256, 4294901760
        %v4679 = vsub.f32 %v4256, %v4678
        %v4680 = vand.u32 %v4679, 4294901760
        %4681 = vmatmul.mubr.f32.gmra.mrb[0].mxu0 %v4680
        %v4682 = vpop.f32.mrb[0].mxu0
        %v4683 = vadd.f32 %v4577, %v4682
        %v4684 = vpop.f32.mrb[0].mxu0
        %4685 = vmatprep.mubr.f32.mxu0 0.0
        %v4686 = vand.u32 %v4259, 4294901760
        %v4687 = vsub.f32 %v4259, %v4686
        %v4688 = vand.u32 %v4687, 4294901760
        %4689 = vmatmul.mubr.f32.gmra.mrb[0].mxu0 %v4688
        %v4690 = vpop.f32.mrb[0].mxu0
        %v4691 = vadd.f32 %v4584, %v4690
        %v4692 = vpop.f32.mrb[0].mxu0
        %4693 = vdwg.mxu0
        %4694 = vmatprep.subr.mxu0 0.0
        %v4695 = vand.u32 %v4244, 4294901760
        %v4696 = vsub.f32 %v4244, %v4695
        %v4697 = vand.u32 %v4696, 4294901760
        %4698 = vmatpush1.msra.mxu0 %v4697
        %4699 = vmatprep.subr.mxu0 0.0
        %v4700 = vand.u32 %v4245, 4294901760
        %v4701 = vsub.f32 %v4245, %v4700
        %v4702 = vand.u32 %v4701, 4294901760
        %4703 = vmatpush1.msra.mxu0 %v4702
        %4704 = vmatprep.subr.mxu0 0.0
        %4705 = vmatpush1.msra.mxu0 0.0
        %4706 = vmatprep.subr.mxu0 0.0
        %4707 = vmatpush1.msra.mxu0 0.0
        %4708 = vmatprep.subr.mxu0 0.0
        %4709 = vmatpush1.msra.mxu0 0.0
        %4710 = vmatprep.subr.mxu0 0.0
        %4711 = vmatpush1.msra.mxu0 0.0
        %4712 = vmatprep.subr.mxu0 0.0
        %4713 = vmatpush1.msra.mxu0 0.0
        %4714 = vmatprep.subr.mxu0 0.0
        %4715 = vmatpush1.msra.mxu0 0.0
        %4716 = vmatprep.subr.mxu0 0.0
        %4717 = vmatpush1.msra.mxu0 0.0
        %4718 = vmatprep.subr.mxu0 0.0
        %4719 = vmatpush1.msra.mxu0 0.0
        %4720 = vmatprep.subr.mxu0 0.0
        %4721 = vmatpush1.msra.mxu0 0.0
        %4722 = vmatprep.subr.mxu0 0.0
        %4723 = vmatpush1.msra.mxu0 0.0
        %4724 = vmatprep.subr.mxu0 0.0
        %4725 = vmatpush1.msra.mxu0 0.0
        %4726 = vmatprep.subr.mxu0 0.0
        %4727 = vmatpush1.msra.mxu0 0.0
        %4728 = vmatprep.subr.mxu0 0.0
        %4729 = vmatpush1.msra.mxu0 0.0
        %4730 = vmatprep.subr.mxu0 0.0
        %4731 = vmatpush1.msra.mxu0 0.0
        %4732 = vmatprep.subr.mxu0 0.0
        %4733 = vmatpush1.msra.mxu0 0.0
        %4734 = vmatprep.subr.mxu0 0.0
        %4735 = vmatpush1.msra.mxu0 0.0
        %4736 = vmatprep.subr.mxu0 0.0
        %4737 = vmatpush1.msra.mxu0 0.0
        %4738 = vmatprep.subr.mxu0 0.0
        %4739 = vmatpush1.msra.mxu0 0.0
        %4740 = vmatprep.subr.mxu0 0.0
        %4741 = vmatpush1.msra.mxu0 0.0
        %4742 = vmatprep.subr.mxu0 0.0
        %4743 = vmatpush1.msra.mxu0 0.0
        %4744 = vmatprep.subr.mxu0 0.0
        %4745 = vmatpush1.msra.mxu0 0.0
        %4746 = vmatprep.subr.mxu0 0.0
        %4747 = vmatpush1.msra.mxu0 0.0
        %4748 = vmatprep.subr.mxu0 0.0
        %4749 = vmatpush1.msra.mxu0 0.0
        %4750 = vmatprep.subr.mxu0 0.0
        %4751 = vmatpush1.msra.mxu0 0.0
        %4752 = vmatprep.subr.mxu0 0.0
        %4753 = vmatpush1.msra.mxu0 0.0
        %4754 = vmatprep.subr.mxu0 0.0
        %4755 = vmatpush1.msra.mxu0 0.0
        %4756 = vmatprep.subr.mxu0 0.0
        %4757 = vmatpush1.msra.mxu0 0.0
        %4758 = vmatprep.subr.mxu0 0.0
        %4759 = vmatpush1.msra.mxu0 0.0
        %4760 = vmatprep.subr.mxu0 0.0
        %4761 = vmatpush1.msra.mxu0 0.0
        %4762 = vmatprep.subr.mxu0 0.0
        %4763 = vmatpush1.msra.mxu0 0.0
        %4764 = vmatprep.mubr.f32.mxu0 0.0
        %v4765 = vand.u32 %v4247, 4294901760
        %4766 = vmatmul.mubr.f32.gmra.mrb[0].mxu0 %v4765
        %v4767 = vpop.f32.mrb[0].mxu0
        %v4768 = vadd.f32 %v4659, %v4767
        %v4769 = vpop.f32.mrb[0].mxu0
        %4770 = vmatprep.mubr.f32.mxu0 0.0
        %v4771 = vand.u32 %v4250, 4294901760
        %4772 = vmatmul.mubr.f32.gmra.mrb[0].mxu0 %v4771
        %v4773 = vpop.f32.mrb[0].mxu0
        %v4774 = vadd.f32 %v4667, %v4773
        %v4775 = vpop.f32.mrb[0].mxu0
        %4776 = vmatprep.mubr.f32.mxu0 0.0
        %v4777 = vand.u32 %v4253, 4294901760
        %4778 = vmatmul.mubr.f32.gmra.mrb[0].mxu0 %v4777
        %v4779 = vpop.f32.mrb[0].mxu0
        %v4780 = vadd.f32 %v4675, %v4779
        %v4781 = vpop.f32.mrb[0].mxu0
        %4782 = vmatprep.mubr.f32.mxu0 0.0
        %v4783 = vand.u32 %v4256, 4294901760
        %4784 = vmatmul.mubr.f32.gmra.mrb[0].mxu0 %v4783
        %v4785 = vpop.f32.mrb[0].mxu0
        %v4786 = vadd.f32 %v4683, %v4785
        %v4787 = vpop.f32.mrb[0].mxu0
        %4788 = vmatprep.mubr.f32.mxu0 0.0
        %v4789 = vand.u32 %v4259, 4294901760
        %4790 = vmatmul.mubr.f32.gmra.mrb[0].mxu0 %v4789
        %v4791 = vpop.f32.mrb[0].mxu0
        %v4792 = vadd.f32 %v4691, %v4791
        %v4793 = vpop.f32.mrb[0].mxu0
        %4794 = vdwg.mxu0
        %4795 = vmatprep.subr.mxu0 0.0
        %v4796 = vand.u32 %v4244, 4294901760
        %4797 = vmatpush1.msra.mxu0 %v4796
        %4798 = vmatprep.subr.mxu0 0.0
        %v4799 = vand.u32 %v4245, 4294901760
        %4800 = vmatpush1.msra.mxu0 %v4799
        %4801 = vmatprep.subr.mxu0 0.0
        %4802 = vmatpush1.msra.mxu0 0.0
        %4803 = vmatprep.subr.mxu0 0.0
        %4804 = vmatpush1.msra.mxu0 0.0
        %4805 = vmatprep.subr.mxu0 0.0
        %4806 = vmatpush1.msra.mxu0 0.0
        %4807 = vmatprep.subr.mxu0 0.0
        %4808 = vmatpush1.msra.mxu0 0.0
        %4809 = vmatprep.subr.mxu0 0.0
        %4810 = vmatpush1.msra.mxu0 0.0
        %4811 = vmatprep.subr.mxu0 0.0
        %4812 = vmatpush1.msra.mxu0 0.0
        %4813 = vmatprep.subr.mxu0 0.0
        %4814 = vmatpush1.msra.mxu0 0.0
        %4815 = vmatprep.subr.mxu0 0.0
        %4816 = vmatpush1.msra.mxu0 0.0
        %4817 = vmatprep.subr.mxu0 0.0
        %4818 = vmatpush1.msra.mxu0 0.0
        %4819 = vmatprep.subr.mxu0 0.0
        %4820 = vmatpush1.msra.mxu0 0.0
        %4821 = vmatprep.subr.mxu0 0.0
        %4822 = vmatpush1.msra.mxu0 0.0
        %4823 = vmatprep.subr.mxu0 0.0
        %4824 = vmatpush1.msra.mxu0 0.0
        %4825 = vmatprep.subr.mxu0 0.0
        %4826 = vmatpush1.msra.mxu0 0.0
        %4827 = vmatprep.subr.mxu0 0.0
        %4828 = vmatpush1.msra.mxu0 0.0
        %4829 = vmatprep.subr.mxu0 0.0
        %4830 = vmatpush1.msra.mxu0 0.0
        %4831 = vmatprep.subr.mxu0 0.0
        %4832 = vmatpush1.msra.mxu0 0.0
        %4833 = vmatprep.subr.mxu0 0.0
        %4834 = vmatpush1.msra.mxu0 0.0
        %4835 = vmatprep.subr.mxu0 0.0
        %4836 = vmatpush1.msra.mxu0 0.0
        %4837 = vmatprep.subr.mxu0 0.0
        %4838 = vmatpush1.msra.mxu0 0.0
        %4839 = vmatprep.subr.mxu0 0.0
        %4840 = vmatpush1.msra.mxu0 0.0
        %4841 = vmatprep.subr.mxu0 0.0
        %4842 = vmatpush1.msra.mxu0 0.0
        %4843 = vmatprep.subr.mxu0 0.0
        %4844 = vmatpush1.msra.mxu0 0.0
        %4845 = vmatprep.subr.mxu0 0.0
        %4846 = vmatpush1.msra.mxu0 0.0
        %4847 = vmatprep.subr.mxu0 0.0
        %4848 = vmatpush1.msra.mxu0 0.0
        %4849 = vmatprep.subr.mxu0 0.0
        %4850 = vmatpush1.msra.mxu0 0.0
        %4851 = vmatprep.subr.mxu0 0.0
        %4852 = vmatpush1.msra.mxu0 0.0
        %4853 = vmatprep.subr.mxu0 0.0
        %4854 = vmatpush1.msra.mxu0 0.0
        %4855 = vmatprep.subr.mxu0 0.0
        %4856 = vmatpush1.msra.mxu0 0.0
        %4857 = vmatprep.subr.mxu0 0.0
        %4858 = vmatpush1.msra.mxu0 0.0
        %4859 = vmatprep.subr.mxu0 0.0
        %4860 = vmatpush1.msra.mxu0 0.0
        %4861 = vmatprep.mubr.f32.mxu0 0.0
        %v4862 = vand.u32 %v4247, 4294901760
        %4863 = vmatmul.mubr.f32.gmra.mrb[0].mxu0 %v4862
        %v4864 = vpop.f32.mrb[0].mxu0
        %v4865 = vadd.f32 %v4768, %v4864
        %v4866 = vpop.f32.mrb[0].mxu0
        %4867 = vmatprep.mubr.f32.mxu0 0.0
        %v4868 = vand.u32 %v4250, 4294901760
        %4869 = vmatmul.mubr.f32.gmra.mrb[0].mxu0 %v4868
        %v4870 = vpop.f32.mrb[0].mxu0
        %v4871 = vadd.f32 %v4774, %v4870
        %v4872 = vpop.f32.mrb[0].mxu0
        %4873 = vmatprep.mubr.f32.mxu0 0.0
        %v4874 = vand.u32 %v4253, 4294901760
        %4875 = vmatmul.mubr.f32.gmra.mrb[0].mxu0 %v4874
        %v4876 = vpop.f32.mrb[0].mxu0
        %v4877 = vadd.f32 %v4780, %v4876
        %v4878 = vpop.f32.mrb[0].mxu0
        %4879 = vmatprep.mubr.f32.mxu0 0.0
        %v4880 = vand.u32 %v4256, 4294901760
        %4881 = vmatmul.mubr.f32.gmra.mrb[0].mxu0 %v4880
        %v4882 = vpop.f32.mrb[0].mxu0
        %v4883 = vadd.f32 %v4786, %v4882
        %v4884 = vpop.f32.mrb[0].mxu0
        %4885 = vmatprep.mubr.f32.mxu0 0.0
        %v4886 = vand.u32 %v4259, 4294901760
        %4887 = vmatmul.mubr.f32.gmra.mrb[0].mxu0 %v4886
        %v4888 = vpop.f32.mrb[0].mxu0
        %v4889 = vadd.f32 %v4792, %v4888
        %v4890 = vpop.f32.mrb[0].mxu0
        %4891 = vdwg.mxu0
        %v4892 = vmul.f32 %v4865, %v4865
        %v4893 = vmul.f32 %v4871, %v4871
        %v4894 = vmul.f32 %v4865, %v4871
        %v4895 = vsub.f32 %v4877, %v4892
        %v4896 = vsub.f32 %v4883, %v4893
        %v4897 = vsub.f32 %v4889, %v4894
        %v4898 = vmul.f32 %v4897, 2.0
        %v4899 = vadd.f32 %v4898, %v4234
        %v4900 = vadd.f32 %v4895, %v4896
        %v4901 = vadd.f32 %v4900, %v4234
        %v4902 = vrcp.pop %v4901
        %v4903 = vmul.f32 %v4901, %v4902
        %v4904 = vsub.f32 2.0, %v4903
        %v4905 = vmul.f32 %v4902, %v4904
        %v4906 = vmul.f32 %v4899, %v4905
        %v4907 = vmul.f32 %v4242, %v4906
        %s4908 = scalar_lea.vmem [#allocation6], 32
        %v4909 = vld [vmem:[%s4908] sm:$0xff]
        %v4910 = vld [vmem:[%s4908 + $0x8] sm:$0xff]
        %v4912 = vsel %vm408, %v1040, 0
        %v4915 = vsel %vm408, %v1671, 0
        %v4918 = vsel %vm408, %v2302, 0
        %v4921 = vsel %vm408, %v2933, 0
        %v4924 = vsel %vm408, %v3564, 0
        %4926 = vmatprep.subr.mxu0 0.0
        %v4927 = vand.u32 %v4909, 4294901760
        %4928 = vmatpush1.msra.mxu0 %v4927
        %4929 = vmatprep.subr.mxu0 0.0
        %v4930 = vand.u32 %v4910, 4294901760
        %4931 = vmatpush1.msra.mxu0 %v4930
        %4932 = vmatprep.subr.mxu0 0.0
        %4933 = vmatpush1.msra.mxu0 0.0
        %4934 = vmatprep.subr.mxu0 0.0
        %4935 = vmatpush1.msra.mxu0 0.0
        %4936 = vmatprep.subr.mxu0 0.0
        %4937 = vmatpush1.msra.mxu0 0.0
        %4938 = vmatprep.subr.mxu0 0.0
        %4939 = vmatpush1.msra.mxu0 0.0
        %4940 = vmatprep.subr.mxu0 0.0
        %4941 = vmatpush1.msra.mxu0 0.0
        %4942 = vmatprep.subr.mxu0 0.0
        %4943 = vmatpush1.msra.mxu0 0.0
        %4944 = vmatprep.subr.mxu0 0.0
        %4945 = vmatpush1.msra.mxu0 0.0
        %4946 = vmatprep.subr.mxu0 0.0
        %4947 = vmatpush1.msra.mxu0 0.0
        %4948 = vmatprep.subr.mxu0 0.0
        %4949 = vmatpush1.msra.mxu0 0.0
        %4950 = vmatprep.subr.mxu0 0.0
        %4951 = vmatpush1.msra.mxu0 0.0
        %4952 = vmatprep.subr.mxu0 0.0
        %4953 = vmatpush1.msra.mxu0 0.0
        %4954 = vmatprep.subr.mxu0 0.0
        %4955 = vmatpush1.msra.mxu0 0.0
        %4956 = vmatprep.subr.mxu0 0.0
        %4957 = vmatpush1.msra.mxu0 0.0
        %4958 = vmatprep.subr.mxu0 0.0
        %4959 = vmatpush1.msra.mxu0 0.0
        %4960 = vmatprep.subr.mxu0 0.0
        %4961 = vmatpush1.msra.mxu0 0.0
        %4962 = vmatprep.subr.mxu0 0.0
        %4963 = vmatpush1.msra.mxu0 0.0
        %4964 = vmatprep.subr.mxu0 0.0
        %4965 = vmatpush1.msra.mxu0 0.0
        %4966 = vmatprep.subr.mxu0 0.0
        %4967 = vmatpush1.msra.mxu0 0.0
        %4968 = vmatprep.subr.mxu0 0.0
        %4969 = vmatpush1.msra.mxu0 0.0
        %4970 = vmatprep.subr.mxu0 0.0
        %4971 = vmatpush1.msra.mxu0 0.0
        %4972 = vmatprep.subr.mxu0 0.0
        %4973 = vmatpush1.msra.mxu0 0.0
        %4974 = vmatprep.subr.mxu0 0.0
        %4975 = vmatpush1.msra.mxu0 0.0
        %4976 = vmatprep.subr.mxu0 0.0
        %4977 = vmatpush1.msra.mxu0 0.0
        %4978 = vmatprep.subr.mxu0 0.0
        %4979 = vmatpush1.msra.mxu0 0.0
        %4980 = vmatprep.subr.mxu0 0.0
        %4981 = vmatpush1.msra.mxu0 0.0
        %4982 = vmatprep.subr.mxu0 0.0
        %4983 = vmatpush1.msra.mxu0 0.0
        %4984 = vmatprep.subr.mxu0 0.0
        %4985 = vmatpush1.msra.mxu0 0.0
        %4986 = vmatprep.subr.mxu0 0.0
        %4987 = vmatpush1.msra.mxu0 0.0
        %4988 = vmatprep.subr.mxu0 0.0
        %4989 = vmatpush1.msra.mxu0 0.0
        %4990 = vmatprep.subr.mxu0 0.0
        %4991 = vmatpush1.msra.mxu0 0.0
        %4992 = vmatprep.mubr.f32.mxu0 0.0
        %v4993 = vand.u32 %v4912, 4294901760
        %v4994 = vsub.f32 %v4912, %v4993
        %v4995 = vand.u32 %v4994, 4294901760
        %v4996 = vsub.f32 %v4994, %v4995
        %v4997 = vand.u32 %v4996, 4294901760
        %4998 = vmatmul.mubr.f32.gmra.mrb[0].mxu0 %v4997
        %v4999 = vpop.f32.mrb[0].mxu0
        %v5000 = vadd.f32 0.0, %v4999
        %v5001 = vpop.f32.mrb[0].mxu0
        %5002 = vmatprep.mubr.f32.mxu0 0.0
        %v5003 = vand.u32 %v4915, 4294901760
        %v5004 = vsub.f32 %v4915, %v5003
        %v5005 = vand.u32 %v5004, 4294901760
        %v5006 = vsub.f32 %v5004, %v5005
        %v5007 = vand.u32 %v5006, 4294901760
        %5008 = vmatmul.mubr.f32.gmra.mrb[0].mxu0 %v5007
        %v5009 = vpop.f32.mrb[0].mxu0
        %v5010 = vadd.f32 0.0, %v5009
        %v5011 = vpop.f32.mrb[0].mxu0
        %5012 = vmatprep.mubr.f32.mxu0 0.0
        %v5013 = vand.u32 %v4918, 4294901760
        %v5014 = vsub.f32 %v4918, %v5013
        %v5015 = vand.u32 %v5014, 4294901760
        %v5016 = vsub.f32 %v5014, %v5015
        %v5017 = vand.u32 %v5016, 4294901760
        %5018 = vmatmul.mubr.f32.gmra.mrb[0].mxu0 %v5017
        %v5019 = vpop.f32.mrb[0].mxu0
        %v5020 = vadd.f32 0.0, %v5019
        %v5021 = vpop.f32.mrb[0].mxu0
        %5022 = vmatprep.mubr.f32.mxu0 0.0
        %v5023 = vand.u32 %v4921, 4294901760
        %v5024 = vsub.f32 %v4921, %v5023
        %v5025 = vand.u32 %v5024, 4294901760
        %v5026 = vsub.f32 %v5024, %v5025
        %v5027 = vand.u32 %v5026, 4294901760
        %5028 = vmatmul.mubr.f32.gmra.mrb[0].mxu0 %v5027
        %v5029 = vpop.f32.mrb[0].mxu0
        %v5030 = vadd.f32 0.0, %v5029
        %v5031 = vpop.f32.mrb[0].mxu0
        %5032 = vmatprep.mubr.f32.mxu0 0.0
        %v5033 = vand.u32 %v4924, 4294901760
        %v5034 = vsub.f32 %v4924, %v5033
        %v5035 = vand.u32 %v5034, 4294901760
        %v5036 = vsub.f32 %v5034, %v5035
        %v5037 = vand.u32 %v5036, 4294901760
        %5038 = vmatmul.mubr.f32.gmra.mrb[0].mxu0 %v5037
        %v5039 = vpop.f32.mrb[0].mxu0
        %v5040 = vadd.f32 0.0, %v5039
        %v5041 = vpop.f32.mrb[0].mxu0
        %5042 = vdwg.mxu0
        %5043 = vmatprep.subr.mxu0 0.0
        %v5044 = vand.u32 %v4909, 4294901760
        %v5045 = vsub.f32 %v4909, %v5044
        %v5046 = vand.u32 %v5045, 4294901760
        %v5047 = vsub.f32 %v5045, %v5046
        %v5048 = vand.u32 %v5047, 4294901760
        %5049 = vmatpush1.msra.mxu0 %v5048
        %5050 = vmatprep.subr.mxu0 0.0
        %v5051 = vand.u32 %v4910, 4294901760
        %v5052 = vsub.f32 %v4910, %v5051
        %v5053 = vand.u32 %v5052, 4294901760
        %v5054 = vsub.f32 %v5052, %v5053
        %v5055 = vand.u32 %v5054, 4294901760
        %5056 = vmatpush1.msra.mxu0 %v5055
        %5057 = vmatprep.subr.mxu0 0.0
        %5058 = vmatpush1.msra.mxu0 0.0
        %5059 = vmatprep.subr.mxu0 0.0
        %5060 = vmatpush1.msra.mxu0 0.0
        %5061 = vmatprep.subr.mxu0 0.0
        %5062 = vmatpush1.msra.mxu0 0.0
        %5063 = vmatprep.subr.mxu0 0.0
        %5064 = vmatpush1.msra.mxu0 0.0
        %5065 = vmatprep.subr.mxu0 0.0
        %5066 = vmatpush1.msra.mxu0 0.0
        %5067 = vmatprep.subr.mxu0 0.0
        %5068 = vmatpush1.msra.mxu0 0.0
        %5069 = vmatprep.subr.mxu0 0.0
        %5070 = vmatpush1.msra.mxu0 0.0
        %5071 = vmatprep.subr.mxu0 0.0
        %5072 = vmatpush1.msra.mxu0 0.0
        %5073 = vmatprep.subr.mxu0 0.0
        %5074 = vmatpush1.msra.mxu0 0.0
        %5075 = vmatprep.subr.mxu0 0.0
        %5076 = vmatpush1.msra.mxu0 0.0
        %5077 = vmatprep.subr.mxu0 0.0
        %5078 = vmatpush1.msra.mxu0 0.0
        %5079 = vmatprep.subr.mxu0 0.0
        %5080 = vmatpush1.msra.mxu0 0.0
        %5081 = vmatprep.subr.mxu0 0.0
        %5082 = vmatpush1.msra.mxu0 0.0
        %5083 = vmatprep.subr.mxu0 0.0
        %5084 = vmatpush1.msra.mxu0 0.0
        %5085 = vmatprep.subr.mxu0 0.0
        %5086 = vmatpush1.msra.mxu0 0.0
        %5087 = vmatprep.subr.mxu0 0.0
        %5088 = vmatpush1.msra.mxu0 0.0
        %5089 = vmatprep.subr.mxu0 0.0
        %5090 = vmatpush1.msra.mxu0 0.0
        %5091 = vmatprep.subr.mxu0 0.0
        %5092 = vmatpush1.msra.mxu0 0.0
        %5093 = vmatprep.subr.mxu0 0.0
        %5094 = vmatpush1.msra.mxu0 0.0
        %5095 = vmatprep.subr.mxu0 0.0
        %5096 = vmatpush1.msra.mxu0 0.0
        %5097 = vmatprep.subr.mxu0 0.0
        %5098 = vmatpush1.msra.mxu0 0.0
        %5099 = vmatprep.subr.mxu0 0.0
        %5100 = vmatpush1.msra.mxu0 0.0
        %5101 = vmatprep.subr.mxu0 0.0
        %5102 = vmatpush1.msra.mxu0 0.0
        %5103 = vmatprep.subr.mxu0 0.0
        %5104 = vmatpush1.msra.mxu0 0.0
        %5105 = vmatprep.subr.mxu0 0.0
        %5106 = vmatpush1.msra.mxu0 0.0
        %5107 = vmatprep.subr.mxu0 0.0
        %5108 = vmatpush1.msra.mxu0 0.0
        %5109 = vmatprep.subr.mxu0 0.0
        %5110 = vmatpush1.msra.mxu0 0.0
        %5111 = vmatprep.subr.mxu0 0.0
        %5112 = vmatpush1.msra.mxu0 0.0
        %5113 = vmatprep.subr.mxu0 0.0
        %5114 = vmatpush1.msra.mxu0 0.0
        %5115 = vmatprep.subr.mxu0 0.0
        %5116 = vmatpush1.msra.mxu0 0.0
        %5117 = vmatprep.mubr.f32.mxu0 0.0
        %v5118 = vand.u32 %v4912, 4294901760
        %5119 = vmatmul.mubr.f32.gmra.mrb[0].mxu0 %v5118
        %v5120 = vpop.f32.mrb[0].mxu0
        %v5121 = vadd.f32 %v5000, %v5120
        %v5122 = vpop.f32.mrb[0].mxu0
        %5123 = vmatprep.mubr.f32.mxu0 0.0
        %v5124 = vand.u32 %v4915, 4294901760
        %5125 = vmatmul.mubr.f32.gmra.mrb[0].mxu0 %v5124
        %v5126 = vpop.f32.mrb[0].mxu0
        %v5127 = vadd.f32 %v5010, %v5126
        %v5128 = vpop.f32.mrb[0].mxu0
        %5129 = vmatprep.mubr.f32.mxu0 0.0
        %v5130 = vand.u32 %v4918, 4294901760
        %5131 = vmatmul.mubr.f32.gmra.mrb[0].mxu0 %v5130
        %v5132 = vpop.f32.mrb[0].mxu0
        %v5133 = vadd.f32 %v5020, %v5132
        %v5134 = vpop.f32.mrb[0].mxu0
        %5135 = vmatprep.mubr.f32.mxu0 0.0
        %v5136 = vand.u32 %v4921, 4294901760
        %5137 = vmatmul.mubr.f32.gmra.mrb[0].mxu0 %v5136
        %v5138 = vpop.f32.mrb[0].mxu0
        %v5139 = vadd.f32 %v5030, %v5138
        %v5140 = vpop.f32.mrb[0].mxu0
        %5141 = vmatprep.mubr.f32.mxu0 0.0
        %v5142 = vand.u32 %v4924, 4294901760
        %5143 = vmatmul.mubr.f32.gmra.mrb[0].mxu0 %v5142
        %v5144 = vpop.f32.mrb[0].mxu0
        %v5145 = vadd.f32 %v5040, %v5144
        %v5146 = vpop.f32.mrb[0].mxu0
        %5147 = vdwg.mxu0
        %5148 = vmatprep.subr.mxu0 0.0
        %v5149 = vand.u32 %v4909, 4294901760
        %v5150 = vsub.f32 %v4909, %v5149
        %5151 = vmatpush1.msra.mxu0 %v5150
        %5152 = vmatprep.subr.mxu0 0.0
        %v5153 = vand.u32 %v4910, 4294901760
        %v5154 = vsub.f32 %v4910, %v5153
        %5155 = vmatpush1.msra.mxu0 %v5154
        %5156 = vmatprep.subr.mxu0 0.0
        %5157 = vmatpush1.msra.mxu0 0.0
        %5158 = vmatprep.subr.mxu0 0.0
        %5159 = vmatpush1.msra.mxu0 0.0
        %5160 = vmatprep.subr.mxu0 0.0
        %5161 = vmatpush1.msra.mxu0 0.0
        %5162 = vmatprep.subr.mxu0 0.0
        %5163 = vmatpush1.msra.mxu0 0.0
        %5164 = vmatprep.subr.mxu0 0.0
        %5165 = vmatpush1.msra.mxu0 0.0
        %5166 = vmatprep.subr.mxu0 0.0
        %5167 = vmatpush1.msra.mxu0 0.0
        %5168 = vmatprep.subr.mxu0 0.0
        %5169 = vmatpush1.msra.mxu0 0.0
        %5170 = vmatprep.subr.mxu0 0.0
        %5171 = vmatpush1.msra.mxu0 0.0
        %5172 = vmatprep.subr.mxu0 0.0
        %5173 = vmatpush1.msra.mxu0 0.0
        %5174 = vmatprep.subr.mxu0 0.0
        %5175 = vmatpush1.msra.mxu0 0.0
        %5176 = vmatprep.subr.mxu0 0.0
        %5177 = vmatpush1.msra.mxu0 0.0
        %5178 = vmatprep.subr.mxu0 0.0
        %5179 = vmatpush1.msra.mxu0 0.0
        %5180 = vmatprep.subr.mxu0 0.0
        %5181 = vmatpush1.msra.mxu0 0.0
        %5182 = vmatprep.subr.mxu0 0.0
        %5183 = vmatpush1.msra.mxu0 0.0
        %5184 = vmatprep.subr.mxu0 0.0
        %5185 = vmatpush1.msra.mxu0 0.0
        %5186 = vmatprep.subr.mxu0 0.0
        %5187 = vmatpush1.msra.mxu0 0.0
        %5188 = vmatprep.subr.mxu0 0.0
        %5189 = vmatpush1.msra.mxu0 0.0
        %5190 = vmatprep.subr.mxu0 0.0
        %5191 = vmatpush1.msra.mxu0 0.0
        %5192 = vmatprep.subr.mxu0 0.0
        %5193 = vmatpush1.msra.mxu0 0.0
        %5194 = vmatprep.subr.mxu0 0.0
        %5195 = vmatpush1.msra.mxu0 0.0
        %5196 = vmatprep.subr.mxu0 0.0
        %5197 = vmatpush1.msra.mxu0 0.0
        %5198 = vmatprep.subr.mxu0 0.0
        %5199 = vmatpush1.msra.mxu0 0.0
        %5200 = vmatprep.subr.mxu0 0.0
        %5201 = vmatpush1.msra.mxu0 0.0
        %5202 = vmatprep.subr.mxu0 0.0
        %5203 = vmatpush1.msra.mxu0 0.0
        %5204 = vmatprep.subr.mxu0 0.0
        %5205 = vmatpush1.msra.mxu0 0.0
        %5206 = vmatprep.subr.mxu0 0.0
        %5207 = vmatpush1.msra.mxu0 0.0
        %5208 = vmatprep.subr.mxu0 0.0
        %5209 = vmatpush1.msra.mxu0 0.0
        %5210 = vmatprep.subr.mxu0 0.0
        %5211 = vmatpush1.msra.mxu0 0.0
        %5212 = vmatprep.subr.mxu0 0.0
        %5213 = vmatpush1.msra.mxu0 0.0
        %5214 = vmatprep.subr.mxu0 0.0
        %5215 = vmatpush1.msra.mxu0 0.0
        %5216 = vmatprep.mubr.f32.mxu0 0.0
        %v5217 = vand.u32 %v4912, 4294901760
        %v5218 = vsub.f32 %v4912, %v5217
        %5219 = vmatmul.mubr.f32.gmra.mrb[0].mxu0 %v5218
        %v5220 = vpop.f32.mrb[0].mxu0
        %v5221 = vadd.f32 %v5121, %v5220
        %v5222 = vpop.f32.mrb[0].mxu0
        %5223 = vmatprep.mubr.f32.mxu0 0.0
        %v5224 = vand.u32 %v4915, 4294901760
        %v5225 = vsub.f32 %v4915, %v5224
        %5226 = vmatmul.mubr.f32.gmra.mrb[0].mxu0 %v5225
        %v5227 = vpop.f32.mrb[0].mxu0
        %v5228 = vadd.f32 %v5127, %v5227
        %v5229 = vpop.f32.mrb[0].mxu0
        %5230 = vmatprep.mubr.f32.mxu0 0.0
        %v5231 = vand.u32 %v4918, 4294901760
        %v5232 = vsub.f32 %v4918, %v5231
        %5233 = vmatmul.mubr.f32.gmra.mrb[0].mxu0 %v5232
        %v5234 = vpop.f32.mrb[0].mxu0
        %v5235 = vadd.f32 %v5133, %v5234
        %v5236 = vpop.f32.mrb[0].mxu0
        %5237 = vmatprep.mubr.f32.mxu0 0.0
        %v5238 = vand.u32 %v4921, 4294901760
        %v5239 = vsub.f32 %v4921, %v5238
        %5240 = vmatmul.mubr.f32.gmra.mrb[0].mxu0 %v5239
        %v5241 = vpop.f32.mrb[0].mxu0
        %v5242 = vadd.f32 %v5139, %v5241
        %v5243 = vpop.f32.mrb[0].mxu0
        %5244 = vmatprep.mubr.f32.mxu0 0.0
        %v5245 = vand.u32 %v4924, 4294901760
        %v5246 = vsub.f32 %v4924, %v5245
        %5247 = vmatmul.mubr.f32.gmra.mrb[0].mxu0 %v5246
        %v5248 = vpop.f32.mrb[0].mxu0
        %v5249 = vadd.f32 %v5145, %v5248
        %v5250 = vpop.f32.mrb[0].mxu0
        %5251 = vdwg.mxu0
        %5252 = vmatprep.subr.mxu0 0.0
        %v5253 = vand.u32 %v4909, 4294901760
        %5254 = vmatpush1.msra.mxu0 %v5253
        %5255 = vmatprep.subr.mxu0 0.0
        %v5256 = vand.u32 %v4910, 4294901760
        %5257 = vmatpush1.msra.mxu0 %v5256
        %5258 = vmatprep.subr.mxu0 0.0
        %5259 = vmatpush1.msra.mxu0 0.0
        %5260 = vmatprep.subr.mxu0 0.0
        %5261 = vmatpush1.msra.mxu0 0.0
        %5262 = vmatprep.subr.mxu0 0.0
        %5263 = vmatpush1.msra.mxu0 0.0
        %5264 = vmatprep.subr.mxu0 0.0
        %5265 = vmatpush1.msra.mxu0 0.0
        %5266 = vmatprep.subr.mxu0 0.0
        %5267 = vmatpush1.msra.mxu0 0.0
        %5268 = vmatprep.subr.mxu0 0.0
        %5269 = vmatpush1.msra.mxu0 0.0
        %5270 = vmatprep.subr.mxu0 0.0
        %5271 = vmatpush1.msra.mxu0 0.0
        %5272 = vmatprep.subr.mxu0 0.0
        %5273 = vmatpush1.msra.mxu0 0.0
        %5274 = vmatprep.subr.mxu0 0.0
        %5275 = vmatpush1.msra.mxu0 0.0
        %5276 = vmatprep.subr.mxu0 0.0
        %5277 = vmatpush1.msra.mxu0 0.0
        %5278 = vmatprep.subr.mxu0 0.0
        %5279 = vmatpush1.msra.mxu0 0.0
        %5280 = vmatprep.subr.mxu0 0.0
        %5281 = vmatpush1.msra.mxu0 0.0
        %5282 = vmatprep.subr.mxu0 0.0
        %5283 = vmatpush1.msra.mxu0 0.0
        %5284 = vmatprep.subr.mxu0 0.0
        %5285 = vmatpush1.msra.mxu0 0.0
        %5286 = vmatprep.subr.mxu0 0.0
        %5287 = vmatpush1.msra.mxu0 0.0
        %5288 = vmatprep.subr.mxu0 0.0
        %5289 = vmatpush1.msra.mxu0 0.0
        %5290 = vmatprep.subr.mxu0 0.0
        %5291 = vmatpush1.msra.mxu0 0.0
        %5292 = vmatprep.subr.mxu0 0.0
        %5293 = vmatpush1.msra.mxu0 0.0
        %5294 = vmatprep.subr.mxu0 0.0
        %5295 = vmatpush1.msra.mxu0 0.0
        %5296 = vmatprep.subr.mxu0 0.0
        %5297 = vmatpush1.msra.mxu0 0.0
        %5298 = vmatprep.subr.mxu0 0.0
        %5299 = vmatpush1.msra.mxu0 0.0
        %5300 = vmatprep.subr.mxu0 0.0
        %5301 = vmatpush1.msra.mxu0 0.0
        %5302 = vmatprep.subr.mxu0 0.0
        %5303 = vmatpush1.msra.mxu0 0.0
        %5304 = vmatprep.subr.mxu0 0.0
        %5305 = vmatpush1.msra.mxu0 0.0
        %5306 = vmatprep.subr.mxu0 0.0
        %5307 = vmatpush1.msra.mxu0 0.0
        %5308 = vmatprep.subr.mxu0 0.0
        %5309 = vmatpush1.msra.mxu0 0.0
        %5310 = vmatprep.subr.mxu0 0.0
        %5311 = vmatpush1.msra.mxu0 0.0
        %5312 = vmatprep.subr.mxu0 0.0
        %5313 = vmatpush1.msra.mxu0 0.0
        %5314 = vmatprep.subr.mxu0 0.0
        %5315 = vmatpush1.msra.mxu0 0.0
        %5316 = vmatprep.subr.mxu0 0.0
        %5317 = vmatpush1.msra.mxu0 0.0
        %5318 = vmatprep.mubr.f32.mxu0 0.0
        %v5319 = vand.u32 %v4912, 4294901760
        %v5320 = vsub.f32 %v4912, %v5319
        %v5321 = vand.u32 %v5320, 4294901760
        %5322 = vmatmul.mubr.f32.gmra.mrb[0].mxu0 %v5321
        %v5323 = vpop.f32.mrb[0].mxu0
        %v5324 = vadd.f32 %v5221, %v5323
        %v5325 = vpop.f32.mrb[0].mxu0
        %5326 = vmatprep.mubr.f32.mxu0 0.0
        %v5327 = vand.u32 %v4915, 4294901760
        %v5328 = vsub.f32 %v4915, %v5327
        %v5329 = vand.u32 %v5328, 4294901760
        %5330 = vmatmul.mubr.f32.gmra.mrb[0].mxu0 %v5329
        %v5331 = vpop.f32.mrb[0].mxu0
        %v5332 = vadd.f32 %v5228, %v5331
        %v5333 = vpop.f32.mrb[0].mxu0
        %5334 = vmatprep.mubr.f32.mxu0 0.0
        %v5335 = vand.u32 %v4918, 4294901760
        %v5336 = vsub.f32 %v4918, %v5335
        %v5337 = vand.u32 %v5336, 4294901760
        %5338 = vmatmul.mubr.f32.gmra.mrb[0].mxu0 %v5337
        %v5339 = vpop.f32.mrb[0].mxu0
        %v5340 = vadd.f32 %v5235, %v5339
        %v5341 = vpop.f32.mrb[0].mxu0
        %5342 = vmatprep.mubr.f32.mxu0 0.0
        %v5343 = vand.u32 %v4921, 4294901760
        %v5344 = vsub.f32 %v4921, %v5343
        %v5345 = vand.u32 %v5344, 4294901760
        %5346 = vmatmul.mubr.f32.gmra.mrb[0].mxu0 %v5345
        %v5347 = vpop.f32.mrb[0].mxu0
        %v5348 = vadd.f32 %v5242, %v5347
        %v5349 = vpop.f32.mrb[0].mxu0
        %5350 = vmatprep.mubr.f32.mxu0 0.0
        %v5351 = vand.u32 %v4924, 4294901760
        %v5352 = vsub.f32 %v4924, %v5351
        %v5353 = vand.u32 %v5352, 4294901760
        %5354 = vmatmul.mubr.f32.gmra.mrb[0].mxu0 %v5353
        %v5355 = vpop.f32.mrb[0].mxu0
        %v5356 = vadd.f32 %v5249, %v5355
        %v5357 = vpop.f32.mrb[0].mxu0
        %5358 = vdwg.mxu0
        %5359 = vmatprep.subr.mxu0 0.0
        %v5360 = vand.u32 %v4909, 4294901760
        %v5361 = vsub.f32 %v4909, %v5360
        %v5362 = vand.u32 %v5361, 4294901760
        %5363 = vmatpush1.msra.mxu0 %v5362
        %5364 = vmatprep.subr.mxu0 0.0
        %v5365 = vand.u32 %v4910, 4294901760
        %v5366 = vsub.f32 %v4910, %v5365
        %v5367 = vand.u32 %v5366, 4294901760
        %5368 = vmatpush1.msra.mxu0 %v5367
        %5369 = vmatprep.subr.mxu0 0.0
        %5370 = vmatpush1.msra.mxu0 0.0
        %5371 = vmatprep.subr.mxu0 0.0
        %5372 = vmatpush1.msra.mxu0 0.0
        %5373 = vmatprep.subr.mxu0 0.0
        %5374 = vmatpush1.msra.mxu0 0.0
        %5375 = vmatprep.subr.mxu0 0.0
        %5376 = vmatpush1.msra.mxu0 0.0
        %5377 = vmatprep.subr.mxu0 0.0
        %5378 = vmatpush1.msra.mxu0 0.0
        %5379 = vmatprep.subr.mxu0 0.0
        %5380 = vmatpush1.msra.mxu0 0.0
        %5381 = vmatprep.subr.mxu0 0.0
        %5382 = vmatpush1.msra.mxu0 0.0
        %5383 = vmatprep.subr.mxu0 0.0
        %5384 = vmatpush1.msra.mxu0 0.0
        %5385 = vmatprep.subr.mxu0 0.0
        %5386 = vmatpush1.msra.mxu0 0.0
        %5387 = vmatprep.subr.mxu0 0.0
        %5388 = vmatpush1.msra.mxu0 0.0
        %5389 = vmatprep.subr.mxu0 0.0
        %5390 = vmatpush1.msra.mxu0 0.0
        %5391 = vmatprep.subr.mxu0 0.0
        %5392 = vmatpush1.msra.mxu0 0.0
        %5393 = vmatprep.subr.mxu0 0.0
        %5394 = vmatpush1.msra.mxu0 0.0
        %5395 = vmatprep.subr.mxu0 0.0
        %5396 = vmatpush1.msra.mxu0 0.0
        %5397 = vmatprep.subr.mxu0 0.0
        %5398 = vmatpush1.msra.mxu0 0.0
        %5399 = vmatprep.subr.mxu0 0.0
        %5400 = vmatpush1.msra.mxu0 0.0
        %5401 = vmatprep.subr.mxu0 0.0
        %5402 = vmatpush1.msra.mxu0 0.0
        %5403 = vmatprep.subr.mxu0 0.0
        %5404 = vmatpush1.msra.mxu0 0.0
        %5405 = vmatprep.subr.mxu0 0.0
        %5406 = vmatpush1.msra.mxu0 0.0
        %5407 = vmatprep.subr.mxu0 0.0
        %5408 = vmatpush1.msra.mxu0 0.0
        %5409 = vmatprep.subr.mxu0 0.0
        %5410 = vmatpush1.msra.mxu0 0.0
        %5411 = vmatprep.subr.mxu0 0.0
        %5412 = vmatpush1.msra.mxu0 0.0
        %5413 = vmatprep.subr.mxu0 0.0
        %5414 = vmatpush1.msra.mxu0 0.0
        %5415 = vmatprep.subr.mxu0 0.0
        %5416 = vmatpush1.msra.mxu0 0.0
        %5417 = vmatprep.subr.mxu0 0.0
        %5418 = vmatpush1.msra.mxu0 0.0
        %5419 = vmatprep.subr.mxu0 0.0
        %5420 = vmatpush1.msra.mxu0 0.0
        %5421 = vmatprep.subr.mxu0 0.0
        %5422 = vmatpush1.msra.mxu0 0.0
        %5423 = vmatprep.subr.mxu0 0.0
        %5424 = vmatpush1.msra.mxu0 0.0
        %5425 = vmatprep.subr.mxu0 0.0
        %5426 = vmatpush1.msra.mxu0 0.0
        %5427 = vmatprep.subr.mxu0 0.0
        %5428 = vmatpush1.msra.mxu0 0.0
        %5429 = vmatprep.mubr.f32.mxu0 0.0
        %v5430 = vand.u32 %v4912, 4294901760
        %5431 = vmatmul.mubr.f32.gmra.mrb[0].mxu0 %v5430
        %v5432 = vpop.f32.mrb[0].mxu0
        %v5433 = vadd.f32 %v5324, %v5432
        %v5434 = vpop.f32.mrb[0].mxu0
        %5435 = vmatprep.mubr.f32.mxu0 0.0
        %v5436 = vand.u32 %v4915, 4294901760
        %5437 = vmatmul.mubr.f32.gmra.mrb[0].mxu0 %v5436
        %v5438 = vpop.f32.mrb[0].mxu0
        %v5439 = vadd.f32 %v5332, %v5438
        %v5440 = vpop.f32.mrb[0].mxu0
        %5441 = vmatprep.mubr.f32.mxu0 0.0
        %v5442 = vand.u32 %v4918, 4294901760
        %5443 = vmatmul.mubr.f32.gmra.mrb[0].mxu0 %v5442
        %v5444 = vpop.f32.mrb[0].mxu0
        %v5445 = vadd.f32 %v5340, %v5444
        %v5446 = vpop.f32.mrb[0].mxu0
        %5447 = vmatprep.mubr.f32.mxu0 0.0
        %v5448 = vand.u32 %v4921, 4294901760
        %5449 = vmatmul.mubr.f32.gmra.mrb[0].mxu0 %v5448
        %v5450 = vpop.f32.mrb[0].mxu0
        %v5451 = vadd.f32 %v5348, %v5450
        %v5452 = vpop.f32.mrb[0].mxu0
        %5453 = vmatprep.mubr.f32.mxu0 0.0
        %v5454 = vand.u32 %v4924, 4294901760
        %5455 = vmatmul.mubr.f32.gmra.mrb[0].mxu0 %v5454
        %v5456 = vpop.f32.mrb[0].mxu0
        %v5457 = vadd.f32 %v5356, %v5456
        %v5458 = vpop.f32.mrb[0].mxu0
        %5459 = vdwg.mxu0
        %5460 = vmatprep.subr.mxu0 0.0
        %v5461 = vand.u32 %v4909, 4294901760
        %5462 = vmatpush1.msra.mxu0 %v5461
        %5463 = vmatprep.subr.mxu0 0.0
        %v5464 = vand.u32 %v4910, 4294901760
        %5465 = vmatpush1.msra.mxu0 %v5464
        %5466 = vmatprep.subr.mxu0 0.0
        %5467 = vmatpush1.msra.mxu0 0.0
        %5468 = vmatprep.subr.mxu0 0.0
        %5469 = vmatpush1.msra.mxu0 0.0
        %5470 = vmatprep.subr.mxu0 0.0
        %5471 = vmatpush1.msra.mxu0 0.0
        %5472 = vmatprep.subr.mxu0 0.0
        %5473 = vmatpush1.msra.mxu0 0.0
        %5474 = vmatprep.subr.mxu0 0.0
        %5475 = vmatpush1.msra.mxu0 0.0
        %5476 = vmatprep.subr.mxu0 0.0
        %5477 = vmatpush1.msra.mxu0 0.0
        %5478 = vmatprep.subr.mxu0 0.0
        %5479 = vmatpush1.msra.mxu0 0.0
        %5480 = vmatprep.subr.mxu0 0.0
        %5481 = vmatpush1.msra.mxu0 0.0
        %5482 = vmatprep.subr.mxu0 0.0
        %5483 = vmatpush1.msra.mxu0 0.0
        %5484 = vmatprep.subr.mxu0 0.0
        %5485 = vmatpush1.msra.mxu0 0.0
        %5486 = vmatprep.subr.mxu0 0.0
        %5487 = vmatpush1.msra.mxu0 0.0
        %5488 = vmatprep.subr.mxu0 0.0
        %5489 = vmatpush1.msra.mxu0 0.0
        %5490 = vmatprep.subr.mxu0 0.0
        %5491 = vmatpush1.msra.mxu0 0.0
        %5492 = vmatprep.subr.mxu0 0.0
        %5493 = vmatpush1.msra.mxu0 0.0
        %5494 = vmatprep.subr.mxu0 0.0
        %5495 = vmatpush1.msra.mxu0 0.0
        %5496 = vmatprep.subr.mxu0 0.0
        %5497 = vmatpush1.msra.mxu0 0.0
        %5498 = vmatprep.subr.mxu0 0.0
        %5499 = vmatpush1.msra.mxu0 0.0
        %5500 = vmatprep.subr.mxu0 0.0
        %5501 = vmatpush1.msra.mxu0 0.0
        %5502 = vmatprep.subr.mxu0 0.0
        %5503 = vmatpush1.msra.mxu0 0.0
        %5504 = vmatprep.subr.mxu0 0.0
        %5505 = vmatpush1.msra.mxu0 0.0
        %5506 = vmatprep.subr.mxu0 0.0
        %5507 = vmatpush1.msra.mxu0 0.0
        %5508 = vmatprep.subr.mxu0 0.0
        %5509 = vmatpush1.msra.mxu0 0.0
        %5510 = vmatprep.subr.mxu0 0.0
        %5511 = vmatpush1.msra.mxu0 0.0
        %5512 = vmatprep.subr.mxu0 0.0
        %5513 = vmatpush1.msra.mxu0 0.0
        %5514 = vmatprep.subr.mxu0 0.0
        %5515 = vmatpush1.msra.mxu0 0.0
        %5516 = vmatprep.subr.mxu0 0.0
        %5517 = vmatpush1.msra.mxu0 0.0
        %5518 = vmatprep.subr.mxu0 0.0
        %5519 = vmatpush1.msra.mxu0 0.0
        %5520 = vmatprep.subr.mxu0 0.0
        %5521 = vmatpush1.msra.mxu0 0.0
        %5522 = vmatprep.subr.mxu0 0.0
        %5523 = vmatpush1.msra.mxu0 0.0
        %5524 = vmatprep.subr.mxu0 0.0
        %5525 = vmatpush1.msra.mxu0 0.0
        %5526 = vmatprep.mubr.f32.mxu0 0.0
        %v5527 = vand.u32 %v4912, 4294901760
        %5528 = vmatmul.mubr.f32.gmra.mrb[0].mxu0 %v5527
        %v5529 = vpop.f32.mrb[0].mxu0
        %v5530 = vadd.f32 %v5433, %v5529
        %v5531 = vpop.f32.mrb[0].mxu0
        %5532 = vmatprep.mubr.f32.mxu0 0.0
        %v5533 = vand.u32 %v4915, 4294901760
        %5534 = vmatmul.mubr.f32.gmra.mrb[0].mxu0 %v5533
        %v5535 = vpop.f32.mrb[0].mxu0
        %v5536 = vadd.f32 %v5439, %v5535
        %v5537 = vpop.f32.mrb[0].mxu0
        %5538 = vmatprep.mubr.f32.mxu0 0.0
        %v5539 = vand.u32 %v4918, 4294901760
        %5540 = vmatmul.mubr.f32.gmra.mrb[0].mxu0 %v5539
        %v5541 = vpop.f32.mrb[0].mxu0
        %v5542 = vadd.f32 %v5445, %v5541
        %v5543 = vpop.f32.mrb[0].mxu0
        %5544 = vmatprep.mubr.f32.mxu0 0.0
        %v5545 = vand.u32 %v4921, 4294901760
        %5546 = vmatmul.mubr.f32.gmra.mrb[0].mxu0 %v5545
        %v5547 = vpop.f32.mrb[0].mxu0
        %v5548 = vadd.f32 %v5451, %v5547
        %v5549 = vpop.f32.mrb[0].mxu0
        %5550 = vmatprep.mubr.f32.mxu0 0.0
        %v5551 = vand.u32 %v4924, 4294901760
        %5552 = vmatmul.mubr.f32.gmra.mrb[0].mxu0 %v5551
        %v5553 = vpop.f32.mrb[0].mxu0
        %v5554 = vadd.f32 %v5457, %v5553
        %v5555 = vpop.f32.mrb[0].mxu0
        %5556 = vdwg.mxu0
        %v5557 = vmul.f32 %v5530, %v5530
        %v5558 = vmul.f32 %v5536, %v5536
        %v5559 = vmul.f32 %v5530, %v5536
        %v5560 = vsub.f32 %v5542, %v5557
        %v5561 = vsub.f32 %v5548, %v5558
        %v5562 = vsub.f32 %v5554, %v5559
        %v5563 = vmul.f32 %v5562, 2.0
        %v5564 = vadd.f32 %v5563, %v4234
        %v5565 = vadd.f32 %v5560, %v5561
        %v5566 = vadd.f32 %v5565, %v4234
        %v5567 = vrcp.pop %v5566
        %v5568 = vmul.f32 %v5566, %v5567
        %v5569 = vsub.f32 2.0, %v5568
        %v5570 = vmul.f32 %v5567, %v5569
        %v5571 = vmul.f32 %v5564, %v5570
        %v5572 = vmul.f32 %v4907, %v5571
        %s5573 = scalar_lea.vmem [#allocation6], 48
        %v5574 = vld [vmem:[%s5573] sm:$0xff]
        %v5575 = vld [vmem:[%s5573 + $0x8] sm:$0xff]
        %v5577 = vsel %vm408, %v1046, 0
        %v5580 = vsel %vm408, %v1677, 0
        %v5583 = vsel %vm408, %v2308, 0
        %v5586 = vsel %vm408, %v2939, 0
        %v5589 = vsel %vm408, %v3570, 0
        %5591 = vmatprep.subr.mxu0 0.0
        %v5592 = vand.u32 %v5574, 4294901760
        %5593 = vmatpush1.msra.mxu0 %v5592
        %5594 = vmatprep.subr.mxu0 0.0
        %v5595 = vand.u32 %v5575, 4294901760
        %5596 = vmatpush1.msra.mxu0 %v5595
        %5597 = vmatprep.subr.mxu0 0.0
        %5598 = vmatpush1.msra.mxu0 0.0
        %5599 = vmatprep.subr.mxu0 0.0
        %5600 = vmatpush1.msra.mxu0 0.0
        %5601 = vmatprep.subr.mxu0 0.0
        %5602 = vmatpush1.msra.mxu0 0.0
        %5603 = vmatprep.subr.mxu0 0.0
        %5604 = vmatpush1.msra.mxu0 0.0
        %5605 = vmatprep.subr.mxu0 0.0
        %5606 = vmatpush1.msra.mxu0 0.0
        %5607 = vmatprep.subr.mxu0 0.0
        %5608 = vmatpush1.msra.mxu0 0.0
        %5609 = vmatprep.subr.mxu0 0.0
        %5610 = vmatpush1.msra.mxu0 0.0
        %5611 = vmatprep.subr.mxu0 0.0
        %5612 = vmatpush1.msra.mxu0 0.0
        %5613 = vmatprep.subr.mxu0 0.0
        %5614 = vmatpush1.msra.mxu0 0.0
        %5615 = vmatprep.subr.mxu0 0.0
        %5616 = vmatpush1.msra.mxu0 0.0
        %5617 = vmatprep.subr.mxu0 0.0
        %5618 = vmatpush1.msra.mxu0 0.0
        %5619 = vmatprep.subr.mxu0 0.0
        %5620 = vmatpush1.msra.mxu0 0.0
        %5621 = vmatprep.subr.mxu0 0.0
        %5622 = vmatpush1.msra.mxu0 0.0
        %5623 = vmatprep.subr.mxu0 0.0
        %5624 = vmatpush1.msra.mxu0 0.0
        %5625 = vmatprep.subr.mxu0 0.0
        %5626 = vmatpush1.msra.mxu0 0.0
        %5627 = vmatprep.subr.mxu0 0.0
        %5628 = vmatpush1.msra.mxu0 0.0
        %5629 = vmatprep.subr.mxu0 0.0
        %5630 = vmatpush1.msra.mxu0 0.0
        %5631 = vmatprep.subr.mxu0 0.0
        %5632 = vmatpush1.msra.mxu0 0.0
        %5633 = vmatprep.subr.mxu0 0.0
        %5634 = vmatpush1.msra.mxu0 0.0
        %5635 = vmatprep.subr.mxu0 0.0
        %5636 = vmatpush1.msra.mxu0 0.0
        %5637 = vmatprep.subr.mxu0 0.0
        %5638 = vmatpush1.msra.mxu0 0.0
        %5639 = vmatprep.subr.mxu0 0.0
        %5640 = vmatpush1.msra.mxu0 0.0
        %5641 = vmatprep.subr.mxu0 0.0
        %5642 = vmatpush1.msra.mxu0 0.0
        %5643 = vmatprep.subr.mxu0 0.0
        %5644 = vmatpush1.msra.mxu0 0.0
        %5645 = vmatprep.subr.mxu0 0.0
        %5646 = vmatpush1.msra.mxu0 0.0
        %5647 = vmatprep.subr.mxu0 0.0
        %5648 = vmatpush1.msra.mxu0 0.0
        %5649 = vmatprep.subr.mxu0 0.0
        %5650 = vmatpush1.msra.mxu0 0.0
        %5651 = vmatprep.subr.mxu0 0.0
        %5652 = vmatpush1.msra.mxu0 0.0
        %5653 = vmatprep.subr.mxu0 0.0
        %5654 = vmatpush1.msra.mxu0 0.0
        %5655 = vmatprep.subr.mxu0 0.0
        %5656 = vmatpush1.msra.mxu0 0.0
        %5657 = vmatprep.mubr.f32.mxu0 0.0
        %v5658 = vand.u32 %v5577, 4294901760
        %v5659 = vsub.f32 %v5577, %v5658
        %v5660 = vand.u32 %v5659, 4294901760
        %v5661 = vsub.f32 %v5659, %v5660
        %v5662 = vand.u32 %v5661, 4294901760
        %5663 = vmatmul.mubr.f32.gmra.mrb[0].mxu0 %v5662
        %v5664 = vpop.f32.mrb[0].mxu0
        %v5665 = vadd.f32 0.0, %v5664
        %v5666 = vpop.f32.mrb[0].mxu0
        %5667 = vmatprep.mubr.f32.mxu0 0.0
        %v5668 = vand.u32 %v5580, 4294901760
        %v5669 = vsub.f32 %v5580, %v5668
        %v5670 = vand.u32 %v5669, 4294901760
        %v5671 = vsub.f32 %v5669, %v5670
        %v5672 = vand.u32 %v5671, 4294901760
        %5673 = vmatmul.mubr.f32.gmra.mrb[0].mxu0 %v5672
        %v5674 = vpop.f32.mrb[0].mxu0
        %v5675 = vadd.f32 0.0, %v5674
        %v5676 = vpop.f32.mrb[0].mxu0
        %5677 = vmatprep.mubr.f32.mxu0 0.0
        %v5678 = vand.u32 %v5583, 4294901760
        %v5679 = vsub.f32 %v5583, %v5678
        %v5680 = vand.u32 %v5679, 4294901760
        %v5681 = vsub.f32 %v5679, %v5680
        %v5682 = vand.u32 %v5681, 4294901760
        %5683 = vmatmul.mubr.f32.gmra.mrb[0].mxu0 %v5682
        %v5684 = vpop.f32.mrb[0].mxu0
        %v5685 = vadd.f32 0.0, %v5684
        %v5686 = vpop.f32.mrb[0].mxu0
        %5687 = vmatprep.mubr.f32.mxu0 0.0
        %v5688 = vand.u32 %v5586, 4294901760
        %v5689 = vsub.f32 %v5586, %v5688
        %v5690 = vand.u32 %v5689, 4294901760
        %v5691 = vsub.f32 %v5689, %v5690
        %v5692 = vand.u32 %v5691, 4294901760
        %5693 = vmatmul.mubr.f32.gmra.mrb[0].mxu0 %v5692
        %v5694 = vpop.f32.mrb[0].mxu0
        %v5695 = vadd.f32 0.0, %v5694
        %v5696 = vpop.f32.mrb[0].mxu0
        %5697 = vmatprep.mubr.f32.mxu0 0.0
        %v5698 = vand.u32 %v5589, 4294901760
        %v5699 = vsub.f32 %v5589, %v5698
        %v5700 = vand.u32 %v5699, 4294901760
        %v5701 = vsub.f32 %v5699, %v5700
        %v5702 = vand.u32 %v5701, 4294901760
        %5703 = vmatmul.mubr.f32.gmra.mrb[0].mxu0 %v5702
        %v5704 = vpop.f32.mrb[0].mxu0
        %v5705 = vadd.f32 0.0, %v5704
        %v5706 = vpop.f32.mrb[0].mxu0
        %5707 = vdwg.mxu0
        %5708 = vmatprep.subr.mxu0 0.0
        %v5709 = vand.u32 %v5574, 4294901760
        %v5710 = vsub.f32 %v5574, %v5709
        %v5711 = vand.u32 %v5710, 4294901760
        %v5712 = vsub.f32 %v5710, %v5711
        %v5713 = vand.u32 %v5712, 4294901760
        %5714 = vmatpush1.msra.mxu0 %v5713
        %5715 = vmatprep.subr.mxu0 0.0
        %v5716 = vand.u32 %v5575, 4294901760
        %v5717 = vsub.f32 %v5575, %v5716
        %v5718 = vand.u32 %v5717, 4294901760
        %v5719 = vsub.f32 %v5717, %v5718
        %v5720 = vand.u32 %v5719, 4294901760
        %5721 = vmatpush1.msra.mxu0 %v5720
        %5722 = vmatprep.subr.mxu0 0.0
        %5723 = vmatpush1.msra.mxu0 0.0
        %5724 = vmatprep.subr.mxu0 0.0
        %5725 = vmatpush1.msra.mxu0 0.0
        %5726 = vmatprep.subr.mxu0 0.0
        %5727 = vmatpush1.msra.mxu0 0.0
        %5728 = vmatprep.subr.mxu0 0.0
        %5729 = vmatpush1.msra.mxu0 0.0
        %5730 = vmatprep.subr.mxu0 0.0
        %5731 = vmatpush1.msra.mxu0 0.0
        %5732 = vmatprep.subr.mxu0 0.0
        %5733 = vmatpush1.msra.mxu0 0.0
        %5734 = vmatprep.subr.mxu0 0.0
        %5735 = vmatpush1.msra.mxu0 0.0
        %5736 = vmatprep.subr.mxu0 0.0
        %5737 = vmatpush1.msra.mxu0 0.0
        %5738 = vmatprep.subr.mxu0 0.0
        %5739 = vmatpush1.msra.mxu0 0.0
        %5740 = vmatprep.subr.mxu0 0.0
        %5741 = vmatpush1.msra.mxu0 0.0
        %5742 = vmatprep.subr.mxu0 0.0
        %5743 = vmatpush1.msra.mxu0 0.0
        %5744 = vmatprep.subr.mxu0 0.0
        %5745 = vmatpush1.msra.mxu0 0.0
        %5746 = vmatprep.subr.mxu0 0.0
        %5747 = vmatpush1.msra.mxu0 0.0
        %5748 = vmatprep.subr.mxu0 0.0
        %5749 = vmatpush1.msra.mxu0 0.0
        %5750 = vmatprep.subr.mxu0 0.0
        %5751 = vmatpush1.msra.mxu0 0.0
        %5752 = vmatprep.subr.mxu0 0.0
        %5753 = vmatpush1.msra.mxu0 0.0
        %5754 = vmatprep.subr.mxu0 0.0
        %5755 = vmatpush1.msra.mxu0 0.0
        %5756 = vmatprep.subr.mxu0 0.0
        %5757 = vmatpush1.msra.mxu0 0.0
        %5758 = vmatprep.subr.mxu0 0.0
        %5759 = vmatpush1.msra.mxu0 0.0
        %5760 = vmatprep.subr.mxu0 0.0
        %5761 = vmatpush1.msra.mxu0 0.0
        %5762 = vmatprep.subr.mxu0 0.0
        %5763 = vmatpush1.msra.mxu0 0.0
        %5764 = vmatprep.subr.mxu0 0.0
        %5765 = vmatpush1.msra.mxu0 0.0
        %5766 = vmatprep.subr.mxu0 0.0
        %5767 = vmatpush1.msra.mxu0 0.0
        %5768 = vmatprep.subr.mxu0 0.0
        %5769 = vmatpush1.msra.mxu0 0.0
        %5770 = vmatprep.subr.mxu0 0.0
        %5771 = vmatpush1.msra.mxu0 0.0
        %5772 = vmatprep.subr.mxu0 0.0
        %5773 = vmatpush1.msra.mxu0 0.0
        %5774 = vmatprep.subr.mxu0 0.0
        %5775 = vmatpush1.msra.mxu0 0.0
        %5776 = vmatprep.subr.mxu0 0.0
        %5777 = vmatpush1.msra.mxu0 0.0
        %5778 = vmatprep.subr.mxu0 0.0
        %5779 = vmatpush1.msra.mxu0 0.0
        %5780 = vmatprep.subr.mxu0 0.0
        %5781 = vmatpush1.msra.mxu0 0.0
        %5782 = vmatprep.mubr.f32.mxu0 0.0
        %v5783 = vand.u32 %v5577, 4294901760
        %5784 = vmatmul.mubr.f32.gmra.mrb[0].mxu0 %v5783
        %v5785 = vpop.f32.mrb[0].mxu0
        %v5786 = vadd.f32 %v5665, %v5785
        %v5787 = vpop.f32.mrb[0].mxu0
        %5788 = vmatprep.mubr.f32.mxu0 0.0
        %v5789 = vand.u32 %v5580, 4294901760
        %5790 = vmatmul.mubr.f32.gmra.mrb[0].mxu0 %v5789
        %v5791 = vpop.f32.mrb[0].mxu0
        %v5792 = vadd.f32 %v5675, %v5791
        %v5793 = vpop.f32.mrb[0].mxu0
        %5794 = vmatprep.mubr.f32.mxu0 0.0
        %v5795 = vand.u32 %v5583, 4294901760
        %5796 = vmatmul.mubr.f32.gmra.mrb[0].mxu0 %v5795
        %v5797 = vpop.f32.mrb[0].mxu0
        %v5798 = vadd.f32 %v5685, %v5797
        %v5799 = vpop.f32.mrb[0].mxu0
        %5800 = vmatprep.mubr.f32.mxu0 0.0
        %v5801 = vand.u32 %v5586, 4294901760
        %5802 = vmatmul.mubr.f32.gmra.mrb[0].mxu0 %v5801
        %v5803 = vpop.f32.mrb[0].mxu0
        %v5804 = vadd.f32 %v5695, %v5803
        %v5805 = vpop.f32.mrb[0].mxu0
        %5806 = vmatprep.mubr.f32.mxu0 0.0
        %v5807 = vand.u32 %v5589, 4294901760
        %5808 = vmatmul.mubr.f32.gmra.mrb[0].mxu0 %v5807
        %v5809 = vpop.f32.mrb[0].mxu0
        %v5810 = vadd.f32 %v5705, %v5809
        %v5811 = vpop.f32.mrb[0].mxu0
        %5812 = vdwg.mxu0
        %5813 = vmatprep.subr.mxu0 0.0
        %v5814 = vand.u32 %v5574, 4294901760
        %v5815 = vsub.f32 %v5574, %v5814
        %5816 = vmatpush1.msra.mxu0 %v5815
        %5817 = vmatprep.subr.mxu0 0.0
        %v5818 = vand.u32 %v5575, 4294901760
        %v5819 = vsub.f32 %v5575, %v5818
        %5820 = vmatpush1.msra.mxu0 %v5819
        %5821 = vmatprep.subr.mxu0 0.0
        %5822 = vmatpush1.msra.mxu0 0.0
        %5823 = vmatprep.subr.mxu0 0.0
        %5824 = vmatpush1.msra.mxu0 0.0
        %5825 = vmatprep.subr.mxu0 0.0
        %5826 = vmatpush1.msra.mxu0 0.0
        %5827 = vmatprep.subr.mxu0 0.0
        %5828 = vmatpush1.msra.mxu0 0.0
        %5829 = vmatprep.subr.mxu0 0.0
        %5830 = vmatpush1.msra.mxu0 0.0
        %5831 = vmatprep.subr.mxu0 0.0
        %5832 = vmatpush1.msra.mxu0 0.0
        %5833 = vmatprep.subr.mxu0 0.0
        %5834 = vmatpush1.msra.mxu0 0.0
        %5835 = vmatprep.subr.mxu0 0.0
        %5836 = vmatpush1.msra.mxu0 0.0
        %5837 = vmatprep.subr.mxu0 0.0
        %5838 = vmatpush1.msra.mxu0 0.0
        %5839 = vmatprep.subr.mxu0 0.0
        %5840 = vmatpush1.msra.mxu0 0.0
        %5841 = vmatprep.subr.mxu0 0.0
        %5842 = vmatpush1.msra.mxu0 0.0
        %5843 = vmatprep.subr.mxu0 0.0
        %5844 = vmatpush1.msra.mxu0 0.0
        %5845 = vmatprep.subr.mxu0 0.0
        %5846 = vmatpush1.msra.mxu0 0.0
        %5847 = vmatprep.subr.mxu0 0.0
        %5848 = vmatpush1.msra.mxu0 0.0
        %5849 = vmatprep.subr.mxu0 0.0
        %5850 = vmatpush1.msra.mxu0 0.0
        %5851 = vmatprep.subr.mxu0 0.0
        %5852 = vmatpush1.msra.mxu0 0.0
        %5853 = vmatprep.subr.mxu0 0.0
        %5854 = vmatpush1.msra.mxu0 0.0
        %5855 = vmatprep.subr.mxu0 0.0
        %5856 = vmatpush1.msra.mxu0 0.0
        %5857 = vmatprep.subr.mxu0 0.0
        %5858 = vmatpush1.msra.mxu0 0.0
        %5859 = vmatprep.subr.mxu0 0.0
        %5860 = vmatpush1.msra.mxu0 0.0
        %5861 = vmatprep.subr.mxu0 0.0
        %5862 = vmatpush1.msra.mxu0 0.0
        %5863 = vmatprep.subr.mxu0 0.0
        %5864 = vmatpush1.msra.mxu0 0.0
        %5865 = vmatprep.subr.mxu0 0.0
        %5866 = vmatpush1.msra.mxu0 0.0
        %5867 = vmatprep.subr.mxu0 0.0
        %5868 = vmatpush1.msra.mxu0 0.0
        %5869 = vmatprep.subr.mxu0 0.0
        %5870 = vmatpush1.msra.mxu0 0.0
        %5871 = vmatprep.subr.mxu0 0.0
        %5872 = vmatpush1.msra.mxu0 0.0
        %5873 = vmatprep.subr.mxu0 0.0
        %5874 = vmatpush1.msra.mxu0 0.0
        %5875 = vmatprep.subr.mxu0 0.0
        %5876 = vmatpush1.msra.mxu0 0.0
        %5877 = vmatprep.subr.mxu0 0.0
        %5878 = vmatpush1.msra.mxu0 0.0
        %5879 = vmatprep.subr.mxu0 0.0
        %5880 = vmatpush1.msra.mxu0 0.0
        %5881 = vmatprep.mubr.f32.mxu0 0.0
        %v5882 = vand.u32 %v5577, 4294901760
        %v5883 = vsub.f32 %v5577, %v5882
        %5884 = vmatmul.mubr.f32.gmra.mrb[0].mxu0 %v5883
        %v5885 = vpop.f32.mrb[0].mxu0
        %v5886 = vadd.f32 %v5786, %v5885
        %v5887 = vpop.f32.mrb[0].mxu0
        %5888 = vmatprep.mubr.f32.mxu0 0.0
        %v5889 = vand.u32 %v5580, 4294901760
        %v5890 = vsub.f32 %v5580, %v5889
        %5891 = vmatmul.mubr.f32.gmra.mrb[0].mxu0 %v5890
        %v5892 = vpop.f32.mrb[0].mxu0
        %v5893 = vadd.f32 %v5792, %v5892
        %v5894 = vpop.f32.mrb[0].mxu0
        %5895 = vmatprep.mubr.f32.mxu0 0.0
        %v5896 = vand.u32 %v5583, 4294901760
        %v5897 = vsub.f32 %v5583, %v5896
        %5898 = vmatmul.mubr.f32.gmra.mrb[0].mxu0 %v5897
        %v5899 = vpop.f32.mrb[0].mxu0
        %v5900 = vadd.f32 %v5798, %v5899
        %v5901 = vpop.f32.mrb[0].mxu0
        %5902 = vmatprep.mubr.f32.mxu0 0.0
        %v5903 = vand.u32 %v5586, 4294901760
        %v5904 = vsub.f32 %v5586, %v5903
        %5905 = vmatmul.mubr.f32.gmra.mrb[0].mxu0 %v5904
        %v5906 = vpop.f32.mrb[0].mxu0
        %v5907 = vadd.f32 %v5804, %v5906
        %v5908 = vpop.f32.mrb[0].mxu0
        %5909 = vmatprep.mubr.f32.mxu0 0.0
        %v5910 = vand.u32 %v5589, 4294901760
        %v5911 = vsub.f32 %v5589, %v5910
        %5912 = vmatmul.mubr.f32.gmra.mrb[0].mxu0 %v5911
        %v5913 = vpop.f32.mrb[0].mxu0
        %v5914 = vadd.f32 %v5810, %v5913
        %v5915 = vpop.f32.mrb[0].mxu0
        %5916 = vdwg.mxu0
        %5917 = vmatprep.subr.mxu0 0.0
        %v5918 = vand.u32 %v5574, 4294901760
        %5919 = vmatpush1.msra.mxu0 %v5918
        %5920 = vmatprep.subr.mxu0 0.0
        %v5921 = vand.u32 %v5575, 4294901760
        %5922 = vmatpush1.msra.mxu0 %v5921
        %5923 = vmatprep.subr.mxu0 0.0
        %5924 = vmatpush1.msra.mxu0 0.0
        %5925 = vmatprep.subr.mxu0 0.0
        %5926 = vmatpush1.msra.mxu0 0.0
        %5927 = vmatprep.subr.mxu0 0.0
        %5928 = vmatpush1.msra.mxu0 0.0
        %5929 = vmatprep.subr.mxu0 0.0
        %5930 = vmatpush1.msra.mxu0 0.0
        %5931 = vmatprep.subr.mxu0 0.0
        %5932 = vmatpush1.msra.mxu0 0.0
        %5933 = vmatprep.subr.mxu0 0.0
        %5934 = vmatpush1.msra.mxu0 0.0
        %5935 = vmatprep.subr.mxu0 0.0
        %5936 = vmatpush1.msra.mxu0 0.0
        %5937 = vmatprep.subr.mxu0 0.0
        %5938 = vmatpush1.msra.mxu0 0.0
        %5939 = vmatprep.subr.mxu0 0.0
        %5940 = vmatpush1.msra.mxu0 0.0
        %5941 = vmatprep.subr.mxu0 0.0
        %5942 = vmatpush1.msra.mxu0 0.0
        %5943 = vmatprep.subr.mxu0 0.0
        %5944 = vmatpush1.msra.mxu0 0.0
        %5945 = vmatprep.subr.mxu0 0.0
        %5946 = vmatpush1.msra.mxu0 0.0
        %5947 = vmatprep.subr.mxu0 0.0
        %5948 = vmatpush1.msra.mxu0 0.0
        %5949 = vmatprep.subr.mxu0 0.0
        %5950 = vmatpush1.msra.mxu0 0.0
        %5951 = vmatprep.subr.mxu0 0.0
        %5952 = vmatpush1.msra.mxu0 0.0
        %5953 = vmatprep.subr.mxu0 0.0
        %5954 = vmatpush1.msra.mxu0 0.0
        %5955 = vmatprep.subr.mxu0 0.0
        %5956 = vmatpush1.msra.mxu0 0.0
        %5957 = vmatprep.subr.mxu0 0.0
        %5958 = vmatpush1.msra.mxu0 0.0
        %5959 = vmatprep.subr.mxu0 0.0
        %5960 = vmatpush1.msra.mxu0 0.0
        %5961 = vmatprep.subr.mxu0 0.0
        %5962 = vmatpush1.msra.mxu0 0.0
        %5963 = vmatprep.subr.mxu0 0.0
        %5964 = vmatpush1.msra.mxu0 0.0
        %5965 = vmatprep.subr.mxu0 0.0
        %5966 = vmatpush1.msra.mxu0 0.0
        %5967 = vmatprep.subr.mxu0 0.0
        %5968 = vmatpush1.msra.mxu0 0.0
        %5969 = vmatprep.subr.mxu0 0.0
        %5970 = vmatpush1.msra.mxu0 0.0
        %5971 = vmatprep.subr.mxu0 0.0
        %5972 = vmatpush1.msra.mxu0 0.0
        %5973 = vmatprep.subr.mxu0 0.0
        %5974 = vmatpush1.msra.mxu0 0.0
        %5975 = vmatprep.subr.mxu0 0.0
        %5976 = vmatpush1.msra.mxu0 0.0
        %5977 = vmatprep.subr.mxu0 0.0
        %5978 = vmatpush1.msra.mxu0 0.0
        %5979 = vmatprep.subr.mxu0 0.0
        %5980 = vmatpush1.msra.mxu0 0.0
        %5981 = vmatprep.subr.mxu0 0.0
        %5982 = vmatpush1.msra.mxu0 0.0
        %5983 = vmatprep.mubr.f32.mxu0 0.0
        %v5984 = vand.u32 %v5577, 4294901760
        %v5985 = vsub.f32 %v5577, %v5984
        %v5986 = vand.u32 %v5985, 4294901760
        %5987 = vmatmul.mubr.f32.gmra.mrb[0].mxu0 %v5986
        %v5988 = vpop.f32.mrb[0].mxu0
        %v5989 = vadd.f32 %v5886, %v5988
        %v5990 = vpop.f32.mrb[0].mxu0
        %5991 = vmatprep.mubr.f32.mxu0 0.0
        %v5992 = vand.u32 %v5580, 4294901760
        %v5993 = vsub.f32 %v5580, %v5992
        %v5994 = vand.u32 %v5993, 4294901760
        %5995 = vmatmul.mubr.f32.gmra.mrb[0].mxu0 %v5994
        %v5996 = vpop.f32.mrb[0].mxu0
        %v5997 = vadd.f32 %v5893, %v5996
        %v5998 = vpop.f32.mrb[0].mxu0
        %5999 = vmatprep.mubr.f32.mxu0 0.0
        %v6000 = vand.u32 %v5583, 4294901760
        %v6001 = vsub.f32 %v5583, %v6000
        %v6002 = vand.u32 %v6001, 4294901760
        %6003 = vmatmul.mubr.f32.gmra.mrb[0].mxu0 %v6002
        %v6004 = vpop.f32.mrb[0].mxu0
        %v6005 = vadd.f32 %v5900, %v6004
        %v6006 = vpop.f32.mrb[0].mxu0
        %6007 = vmatprep.mubr.f32.mxu0 0.0
        %v6008 = vand.u32 %v5586, 4294901760
        %v6009 = vsub.f32 %v5586, %v6008
        %v6010 = vand.u32 %v6009, 4294901760
        %6011 = vmatmul.mubr.f32.gmra.mrb[0].mxu0 %v6010
        %v6012 = vpop.f32.mrb[0].mxu0
        %v6013 = vadd.f32 %v5907, %v6012
        %v6014 = vpop.f32.mrb[0].mxu0
        %6015 = vmatprep.mubr.f32.mxu0 0.0
        %v6016 = vand.u32 %v5589, 4294901760
        %v6017 = vsub.f32 %v5589, %v6016
        %v6018 = vand.u32 %v6017, 4294901760
        %6019 = vmatmul.mubr.f32.gmra.mrb[0].mxu0 %v6018
        %v6020 = vpop.f32.mrb[0].mxu0
        %v6021 = vadd.f32 %v5914, %v6020
        %v6022 = vpop.f32.mrb[0].mxu0
        %6023 = vdwg.mxu0
        %6024 = vmatprep.subr.mxu0 0.0
        %v6025 = vand.u32 %v5574, 4294901760
        %v6026 = vsub.f32 %v5574, %v6025
        %v6027 = vand.u32 %v6026, 4294901760
        %6028 = vmatpush1.msra.mxu0 %v6027
        %6029 = vmatprep.subr.mxu0 0.0
        %v6030 = vand.u32 %v5575, 4294901760
        %v6031 = vsub.f32 %v5575, %v6030
        %v6032 = vand.u32 %v6031, 4294901760
        %6033 = vmatpush1.msra.mxu0 %v6032
        %6034 = vmatprep.subr.mxu0 0.0
        %6035 = vmatpush1.msra.mxu0 0.0
        %6036 = vmatprep.subr.mxu0 0.0
        %6037 = vmatpush1.msra.mxu0 0.0
        %6038 = vmatprep.subr.mxu0 0.0
        %6039 = vmatpush1.msra.mxu0 0.0
        %6040 = vmatprep.subr.mxu0 0.0
        %6041 = vmatpush1.msra.mxu0 0.0
        %6042 = vmatprep.subr.mxu0 0.0
        %6043 = vmatpush1.msra.mxu0 0.0
        %6044 = vmatprep.subr.mxu0 0.0
        %6045 = vmatpush1.msra.mxu0 0.0
        %6046 = vmatprep.subr.mxu0 0.0
        %6047 = vmatpush1.msra.mxu0 0.0
        %6048 = vmatprep.subr.mxu0 0.0
        %6049 = vmatpush1.msra.mxu0 0.0
        %6050 = vmatprep.subr.mxu0 0.0
        %6051 = vmatpush1.msra.mxu0 0.0
        %6052 = vmatprep.subr.mxu0 0.0
        %6053 = vmatpush1.msra.mxu0 0.0
        %6054 = vmatprep.subr.mxu0 0.0
        %6055 = vmatpush1.msra.mxu0 0.0
        %6056 = vmatprep.subr.mxu0 0.0
        %6057 = vmatpush1.msra.mxu0 0.0
        %6058 = vmatprep.subr.mxu0 0.0
        %6059 = vmatpush1.msra.mxu0 0.0
        %6060 = vmatprep.subr.mxu0 0.0
        %6061 = vmatpush1.msra.mxu0 0.0
        %6062 = vmatprep.subr.mxu0 0.0
        %6063 = vmatpush1.msra.mxu0 0.0
        %6064 = vmatprep.subr.mxu0 0.0
        %6065 = vmatpush1.msra.mxu0 0.0
        %6066 = vmatprep.subr.mxu0 0.0
        %6067 = vmatpush1.msra.mxu0 0.0
        %6068 = vmatprep.subr.mxu0 0.0
        %6069 = vmatpush1.msra.mxu0 0.0
        %6070 = vmatprep.subr.mxu0 0.0
        %6071 = vmatpush1.msra.mxu0 0.0
        %6072 = vmatprep.subr.mxu0 0.0
        %6073 = vmatpush1.msra.mxu0 0.0
        %6074 = vmatprep.subr.mxu0 0.0
        %6075 = vmatpush1.msra.mxu0 0.0
        %6076 = vmatprep.subr.mxu0 0.0
        %6077 = vmatpush1.msra.mxu0 0.0
        %6078 = vmatprep.subr.mxu0 0.0
        %6079 = vmatpush1.msra.mxu0 0.0
        %6080 = vmatprep.subr.mxu0 0.0
        %6081 = vmatpush1.msra.mxu0 0.0
        %6082 = vmatprep.subr.mxu0 0.0
        %6083 = vmatpush1.msra.mxu0 0.0
        %6084 = vmatprep.subr.mxu0 0.0
        %6085 = vmatpush1.msra.mxu0 0.0
        %6086 = vmatprep.subr.mxu0 0.0
        %6087 = vmatpush1.msra.mxu0 0.0
        %6088 = vmatprep.subr.mxu0 0.0
        %6089 = vmatpush1.msra.mxu0 0.0
        %6090 = vmatprep.subr.mxu0 0.0
        %6091 = vmatpush1.msra.mxu0 0.0
        %6092 = vmatprep.subr.mxu0 0.0
        %6093 = vmatpush1.msra.mxu0 0.0
        %6094 = vmatprep.mubr.f32.mxu0 0.0
        %v6095 = vand.u32 %v5577, 4294901760
        %6096 = vmatmul.mubr.f32.gmra.mrb[0].mxu0 %v6095
        %v6097 = vpop.f32.mrb[0].mxu0
        %v6098 = vadd.f32 %v5989, %v6097
        %v6099 = vpop.f32.mrb[0].mxu0
        %6100 = vmatprep.mubr.f32.mxu0 0.0
        %v6101 = vand.u32 %v5580, 4294901760
        %6102 = vmatmul.mubr.f32.gmra.mrb[0].mxu0 %v6101
        %v6103 = vpop.f32.mrb[0].mxu0
        %v6104 = vadd.f32 %v5997, %v6103
        %v6105 = vpop.f32.mrb[0].mxu0
        %6106 = vmatprep.mubr.f32.mxu0 0.0
        %v6107 = vand.u32 %v5583, 4294901760
        %6108 = vmatmul.mubr.f32.gmra.mrb[0].mxu0 %v6107
        %v6109 = vpop.f32.mrb[0].mxu0
        %v6110 = vadd.f32 %v6005, %v6109
        %v6111 = vpop.f32.mrb[0].mxu0
        %6112 = vmatprep.mubr.f32.mxu0 0.0
        %v6113 = vand.u32 %v5586, 4294901760
        %6114 = vmatmul.mubr.f32.gmra.mrb[0].mxu0 %v6113
        %v6115 = vpop.f32.mrb[0].mxu0
        %v6116 = vadd.f32 %v6013, %v6115
        %v6117 = vpop.f32.mrb[0].mxu0
        %6118 = vmatprep.mubr.f32.mxu0 0.0
        %v6119 = vand.u32 %v5589, 4294901760
        %6120 = vmatmul.mubr.f32.gmra.mrb[0].mxu0 %v6119
        %v6121 = vpop.f32.mrb[0].mxu0
        %v6122 = vadd.f32 %v6021, %v6121
        %v6123 = vpop.f32.mrb[0].mxu0
        %6124 = vdwg.mxu0
        %6125 = vmatprep.subr.mxu0 0.0
        %v6126 = vand.u32 %v5574, 4294901760
        %6127 = vmatpush1.msra.mxu0 %v6126
        %6128 = vmatprep.subr.mxu0 0.0
        %v6129 = vand.u32 %v5575, 4294901760
        %6130 = vmatpush1.msra.mxu0 %v6129
        %6131 = vmatprep.subr.mxu0 0.0
        %6132 = vmatpush1.msra.mxu0 0.0
        %6133 = vmatprep.subr.mxu0 0.0
        %6134 = vmatpush1.msra.mxu0 0.0
        %6135 = vmatprep.subr.mxu0 0.0
        %6136 = vmatpush1.msra.mxu0 0.0
        %6137 = vmatprep.subr.mxu0 0.0
        %6138 = vmatpush1.msra.mxu0 0.0
        %6139 = vmatprep.subr.mxu0 0.0
        %6140 = vmatpush1.msra.mxu0 0.0
        %6141 = vmatprep.subr.mxu0 0.0
        %6142 = vmatpush1.msra.mxu0 0.0
        %6143 = vmatprep.subr.mxu0 0.0
        %6144 = vmatpush1.msra.mxu0 0.0
        %6145 = vmatprep.subr.mxu0 0.0
        %6146 = vmatpush1.msra.mxu0 0.0
        %6147 = vmatprep.subr.mxu0 0.0
        %6148 = vmatpush1.msra.mxu0 0.0
        %6149 = vmatprep.subr.mxu0 0.0
        %6150 = vmatpush1.msra.mxu0 0.0
        %6151 = vmatprep.subr.mxu0 0.0
        %6152 = vmatpush1.msra.mxu0 0.0
        %6153 = vmatprep.subr.mxu0 0.0
        %6154 = vmatpush1.msra.mxu0 0.0
        %6155 = vmatprep.subr.mxu0 0.0
        %6156 = vmatpush1.msra.mxu0 0.0
        %6157 = vmatprep.subr.mxu0 0.0
        %6158 = vmatpush1.msra.mxu0 0.0
        %6159 = vmatprep.subr.mxu0 0.0
        %6160 = vmatpush1.msra.mxu0 0.0
        %6161 = vmatprep.subr.mxu0 0.0
        %6162 = vmatpush1.msra.mxu0 0.0
        %6163 = vmatprep.subr.mxu0 0.0
        %6164 = vmatpush1.msra.mxu0 0.0
        %6165 = vmatprep.subr.mxu0 0.0
        %6166 = vmatpush1.msra.mxu0 0.0
        %6167 = vmatprep.subr.mxu0 0.0
        %6168 = vmatpush1.msra.mxu0 0.0
        %6169 = vmatprep.subr.mxu0 0.0
        %6170 = vmatpush1.msra.mxu0 0.0
        %6171 = vmatprep.subr.mxu0 0.0
        %6172 = vmatpush1.msra.mxu0 0.0
        %6173 = vmatprep.subr.mxu0 0.0
        %6174 = vmatpush1.msra.mxu0 0.0
        %6175 = vmatprep.subr.mxu0 0.0
        %6176 = vmatpush1.msra.mxu0 0.0
        %6177 = vmatprep.subr.mxu0 0.0
        %6178 = vmatpush1.msra.mxu0 0.0
        %6179 = vmatprep.subr.mxu0 0.0
        %6180 = vmatpush1.msra.mxu0 0.0
        %6181 = vmatprep.subr.mxu0 0.0
        %6182 = vmatpush1.msra.mxu0 0.0
        %6183 = vmatprep.subr.mxu0 0.0
        %6184 = vmatpush1.msra.mxu0 0.0
        %6185 = vmatprep.subr.mxu0 0.0
        %6186 = vmatpush1.msra.mxu0 0.0
        %6187 = vmatprep.subr.mxu0 0.0
        %6188 = vmatpush1.msra.mxu0 0.0
        %6189 = vmatprep.subr.mxu0 0.0
        %6190 = vmatpush1.msra.mxu0 0.0
        %6191 = vmatprep.mubr.f32.mxu0 0.0
        %v6192 = vand.u32 %v5577, 4294901760
        %6193 = vmatmul.mubr.f32.gmra.mrb[0].mxu0 %v6192
        %v6194 = vpop.f32.mrb[0].mxu0
        %v6195 = vadd.f32 %v6098, %v6194
        %v6196 = vpop.f32.mrb[0].mxu0
        %6197 = vmatprep.mubr.f32.mxu0 0.0
        %v6198 = vand.u32 %v5580, 4294901760
        %6199 = vmatmul.mubr.f32.gmra.mrb[0].mxu0 %v6198
        %v6200 = vpop.f32.mrb[0].mxu0
        %v6201 = vadd.f32 %v6104, %v6200
        %v6202 = vpop.f32.mrb[0].mxu0
        %6203 = vmatprep.mubr.f32.mxu0 0.0
        %v6204 = vand.u32 %v5583, 4294901760
        %6205 = vmatmul.mubr.f32.gmra.mrb[0].mxu0 %v6204
        %v6206 = vpop.f32.mrb[0].mxu0
        %v6207 = vadd.f32 %v6110, %v6206
        %v6208 = vpop.f32.mrb[0].mxu0
        %6209 = vmatprep.mubr.f32.mxu0 0.0
        %v6210 = vand.u32 %v5586, 4294901760
        %6211 = vmatmul.mubr.f32.gmra.mrb[0].mxu0 %v6210
        %v6212 = vpop.f32.mrb[0].mxu0
        %v6213 = vadd.f32 %v6116, %v6212
        %v6214 = vpop.f32.mrb[0].mxu0
        %6215 = vmatprep.mubr.f32.mxu0 0.0
        %v6216 = vand.u32 %v5589, 4294901760
        %6217 = vmatmul.mubr.f32.gmra.mrb[0].mxu0 %v6216
        %v6218 = vpop.f32.mrb[0].mxu0
        %v6219 = vadd.f32 %v6122, %v6218
        %v6220 = vpop.f32.mrb[0].mxu0
        %6221 = vdwg.mxu0
        %v6222 = vmul.f32 %v6195, %v6195
        %v6223 = vmul.f32 %v6201, %v6201
        %v6224 = vmul.f32 %v6195, %v6201
        %v6225 = vsub.f32 %v6207, %v6222
        %v6226 = vsub.f32 %v6213, %v6223
        %v6227 = vsub.f32 %v6219, %v6224
        %v6228 = vmul.f32 %v6227, 2.0
        %v6229 = vadd.f32 %v6228, %v4234
        %v6230 = vadd.f32 %v6225, %v6226
        %v6231 = vadd.f32 %v6230, %v4234
        %v6232 = vrcp.pop %v6231
        %v6233 = vmul.f32 %v6231, %v6232
        %v6234 = vsub.f32 2.0, %v6233
        %v6235 = vmul.f32 %v6232, %v6234
        %v6236 = vmul.f32 %v6229, %v6235
        %v6237 = vmul.f32 %v5572, %v6236
        %s6238 = scalar_lea.vmem [#allocation6], 64
        %v6239 = vld [vmem:[%s6238] sm:$0xff]
        %v6240 = vld [vmem:[%s6238 + $0x8] sm:$0xff]
        %v6242 = vsel %vm408, %v1052, 0
        %v6245 = vsel %vm408, %v1683, 0
        %v6248 = vsel %vm408, %v2314, 0
        %v6251 = vsel %vm408, %v2945, 0
        %v6254 = vsel %vm408, %v3576, 0
        %6256 = vmatprep.subr.mxu0 0.0
        %v6257 = vand.u32 %v6239, 4294901760
        %6258 = vmatpush1.msra.mxu0 %v6257
        %6259 = vmatprep.subr.mxu0 0.0
        %v6260 = vand.u32 %v6240, 4294901760
        %6261 = vmatpush1.msra.mxu0 %v6260
        %6262 = vmatprep.subr.mxu0 0.0
        %6263 = vmatpush1.msra.mxu0 0.0
        %6264 = vmatprep.subr.mxu0 0.0
        %6265 = vmatpush1.msra.mxu0 0.0
        %6266 = vmatprep.subr.mxu0 0.0
        %6267 = vmatpush1.msra.mxu0 0.0
        %6268 = vmatprep.subr.mxu0 0.0
        %6269 = vmatpush1.msra.mxu0 0.0
        %6270 = vmatprep.subr.mxu0 0.0
        %6271 = vmatpush1.msra.mxu0 0.0
        %6272 = vmatprep.subr.mxu0 0.0
        %6273 = vmatpush1.msra.mxu0 0.0
        %6274 = vmatprep.subr.mxu0 0.0
        %6275 = vmatpush1.msra.mxu0 0.0
        %6276 = vmatprep.subr.mxu0 0.0
        %6277 = vmatpush1.msra.mxu0 0.0
        %6278 = vmatprep.subr.mxu0 0.0
        %6279 = vmatpush1.msra.mxu0 0.0
        %6280 = vmatprep.subr.mxu0 0.0
        %6281 = vmatpush1.msra.mxu0 0.0
        %6282 = vmatprep.subr.mxu0 0.0
        %6283 = vmatpush1.msra.mxu0 0.0
        %6284 = vmatprep.subr.mxu0 0.0
        %6285 = vmatpush1.msra.mxu0 0.0
        %6286 = vmatprep.subr.mxu0 0.0
        %6287 = vmatpush1.msra.mxu0 0.0
        %6288 = vmatprep.subr.mxu0 0.0
        %6289 = vmatpush1.msra.mxu0 0.0
        %6290 = vmatprep.subr.mxu0 0.0
        %6291 = vmatpush1.msra.mxu0 0.0
        %6292 = vmatprep.subr.mxu0 0.0
        %6293 = vmatpush1.msra.mxu0 0.0
        %6294 = vmatprep.subr.mxu0 0.0
        %6295 = vmatpush1.msra.mxu0 0.0
        %6296 = vmatprep.subr.mxu0 0.0
        %6297 = vmatpush1.msra.mxu0 0.0
        %6298 = vmatprep.subr.mxu0 0.0
        %6299 = vmatpush1.msra.mxu0 0.0
        %6300 = vmatprep.subr.mxu0 0.0
        %6301 = vmatpush1.msra.mxu0 0.0
        %6302 = vmatprep.subr.mxu0 0.0
        %6303 = vmatpush1.msra.mxu0 0.0
        %6304 = vmatprep.subr.mxu0 0.0
        %6305 = vmatpush1.msra.mxu0 0.0
        %6306 = vmatprep.subr.mxu0 0.0
        %6307 = vmatpush1.msra.mxu0 0.0
        %6308 = vmatprep.subr.mxu0 0.0
        %6309 = vmatpush1.msra.mxu0 0.0
        %6310 = vmatprep.subr.mxu0 0.0
        %6311 = vmatpush1.msra.mxu0 0.0
        %6312 = vmatprep.subr.mxu0 0.0
        %6313 = vmatpush1.msra.mxu0 0.0
        %6314 = vmatprep.subr.mxu0 0.0
        %6315 = vmatpush1.msra.mxu0 0.0
        %6316 = vmatprep.subr.mxu0 0.0
        %6317 = vmatpush1.msra.mxu0 0.0
        %6318 = vmatprep.subr.mxu0 0.0
        %6319 = vmatpush1.msra.mxu0 0.0
        %6320 = vmatprep.subr.mxu0 0.0
        %6321 = vmatpush1.msra.mxu0 0.0
        %6322 = vmatprep.mubr.f32.mxu0 0.0
        %v6323 = vand.u32 %v6242, 4294901760
        %v6324 = vsub.f32 %v6242, %v6323
        %v6325 = vand.u32 %v6324, 4294901760
        %v6326 = vsub.f32 %v6324, %v6325
        %v6327 = vand.u32 %v6326, 4294901760
        %6328 = vmatmul.mubr.f32.gmra.mrb[0].mxu0 %v6327
        %v6329 = vpop.f32.mrb[0].mxu0
        %v6330 = vadd.f32 0.0, %v6329
        %v6331 = vpop.f32.mrb[0].mxu0
        %6332 = vmatprep.mubr.f32.mxu0 0.0
        %v6333 = vand.u32 %v6245, 4294901760
        %v6334 = vsub.f32 %v6245, %v6333
        %v6335 = vand.u32 %v6334, 4294901760
        %v6336 = vsub.f32 %v6334, %v6335
        %v6337 = vand.u32 %v6336, 4294901760
        %6338 = vmatmul.mubr.f32.gmra.mrb[0].mxu0 %v6337
        %v6339 = vpop.f32.mrb[0].mxu0
        %v6340 = vadd.f32 0.0, %v6339
        %v6341 = vpop.f32.mrb[0].mxu0
        %6342 = vmatprep.mubr.f32.mxu0 0.0
        %v6343 = vand.u32 %v6248, 4294901760
        %v6344 = vsub.f32 %v6248, %v6343
        %v6345 = vand.u32 %v6344, 4294901760
        %v6346 = vsub.f32 %v6344, %v6345
        %v6347 = vand.u32 %v6346, 4294901760
        %6348 = vmatmul.mubr.f32.gmra.mrb[0].mxu0 %v6347
        %v6349 = vpop.f32.mrb[0].mxu0
        %v6350 = vadd.f32 0.0, %v6349
        %v6351 = vpop.f32.mrb[0].mxu0
        %6352 = vmatprep.mubr.f32.mxu0 0.0
        %v6353 = vand.u32 %v6251, 4294901760
        %v6354 = vsub.f32 %v6251, %v6353
        %v6355 = vand.u32 %v6354, 4294901760
        %v6356 = vsub.f32 %v6354, %v6355
        %v6357 = vand.u32 %v6356, 4294901760
        %6358 = vmatmul.mubr.f32.gmra.mrb[0].mxu0 %v6357
        %v6359 = vpop.f32.mrb[0].mxu0
        %v6360 = vadd.f32 0.0, %v6359
        %v6361 = vpop.f32.mrb[0].mxu0
        %6362 = vmatprep.mubr.f32.mxu0 0.0
        %v6363 = vand.u32 %v6254, 4294901760
        %v6364 = vsub.f32 %v6254, %v6363
        %v6365 = vand.u32 %v6364, 4294901760
        %v6366 = vsub.f32 %v6364, %v6365
        %v6367 = vand.u32 %v6366, 4294901760
        %6368 = vmatmul.mubr.f32.gmra.mrb[0].mxu0 %v6367
        %v6369 = vpop.f32.mrb[0].mxu0
        %v6370 = vadd.f32 0.0, %v6369
        %v6371 = vpop.f32.mrb[0].mxu0
        %6372 = vdwg.mxu0
        %6373 = vmatprep.subr.mxu0 0.0
        %v6374 = vand.u32 %v6239, 4294901760
        %v6375 = vsub.f32 %v6239, %v6374
        %v6376 = vand.u32 %v6375, 4294901760
        %v6377 = vsub.f32 %v6375, %v6376
        %v6378 = vand.u32 %v6377, 4294901760
        %6379 = vmatpush1.msra.mxu0 %v6378
        %6380 = vmatprep.subr.mxu0 0.0
        %v6381 = vand.u32 %v6240, 4294901760
        %v6382 = vsub.f32 %v6240, %v6381
        %v6383 = vand.u32 %v6382, 4294901760
        %v6384 = vsub.f32 %v6382, %v6383
        %v6385 = vand.u32 %v6384, 4294901760
        %6386 = vmatpush1.msra.mxu0 %v6385
        %6387 = vmatprep.subr.mxu0 0.0
        %6388 = vmatpush1.msra.mxu0 0.0
        %6389 = vmatprep.subr.mxu0 0.0
        %6390 = vmatpush1.msra.mxu0 0.0
        %6391 = vmatprep.subr.mxu0 0.0
        %6392 = vmatpush1.msra.mxu0 0.0
        %6393 = vmatprep.subr.mxu0 0.0
        %6394 = vmatpush1.msra.mxu0 0.0
        %6395 = vmatprep.subr.mxu0 0.0
        %6396 = vmatpush1.msra.mxu0 0.0
        %6397 = vmatprep.subr.mxu0 0.0
        %6398 = vmatpush1.msra.mxu0 0.0
        %6399 = vmatprep.subr.mxu0 0.0
        %6400 = vmatpush1.msra.mxu0 0.0
        %6401 = vmatprep.subr.mxu0 0.0
        %6402 = vmatpush1.msra.mxu0 0.0
        %6403 = vmatprep.subr.mxu0 0.0
        %6404 = vmatpush1.msra.mxu0 0.0
        %6405 = vmatprep.subr.mxu0 0.0
        %6406 = vmatpush1.msra.mxu0 0.0
        %6407 = vmatprep.subr.mxu0 0.0
        %6408 = vmatpush1.msra.mxu0 0.0
        %6409 = vmatprep.subr.mxu0 0.0
        %6410 = vmatpush1.msra.mxu0 0.0
        %6411 = vmatprep.subr.mxu0 0.0
        %6412 = vmatpush1.msra.mxu0 0.0
        %6413 = vmatprep.subr.mxu0 0.0
        %6414 = vmatpush1.msra.mxu0 0.0
        %6415 = vmatprep.subr.mxu0 0.0
        %6416 = vmatpush1.msra.mxu0 0.0
        %6417 = vmatprep.subr.mxu0 0.0
        %6418 = vmatpush1.msra.mxu0 0.0
        %6419 = vmatprep.subr.mxu0 0.0
        %6420 = vmatpush1.msra.mxu0 0.0
        %6421 = vmatprep.subr.mxu0 0.0
        %6422 = vmatpush1.msra.mxu0 0.0
        %6423 = vmatprep.subr.mxu0 0.0
        %6424 = vmatpush1.msra.mxu0 0.0
        %6425 = vmatprep.subr.mxu0 0.0
        %6426 = vmatpush1.msra.mxu0 0.0
        %6427 = vmatprep.subr.mxu0 0.0
        %6428 = vmatpush1.msra.mxu0 0.0
        %6429 = vmatprep.subr.mxu0 0.0
        %6430 = vmatpush1.msra.mxu0 0.0
        %6431 = vmatprep.subr.mxu0 0.0
        %6432 = vmatpush1.msra.mxu0 0.0
        %6433 = vmatprep.subr.mxu0 0.0
        %6434 = vmatpush1.msra.mxu0 0.0
        %6435 = vmatprep.subr.mxu0 0.0
        %6436 = vmatpush1.msra.mxu0 0.0
        %6437 = vmatprep.subr.mxu0 0.0
        %6438 = vmatpush1.msra.mxu0 0.0
        %6439 = vmatprep.subr.mxu0 0.0
        %6440 = vmatpush1.msra.mxu0 0.0
        %6441 = vmatprep.subr.mxu0 0.0
        %6442 = vmatpush1.msra.mxu0 0.0
        %6443 = vmatprep.subr.mxu0 0.0
        %6444 = vmatpush1.msra.mxu0 0.0
        %6445 = vmatprep.subr.mxu0 0.0
        %6446 = vmatpush1.msra.mxu0 0.0
        %6447 = vmatprep.mubr.f32.mxu0 0.0
        %v6448 = vand.u32 %v6242, 4294901760
        %6449 = vmatmul.mubr.f32.gmra.mrb[0].mxu0 %v6448
        %v6450 = vpop.f32.mrb[0].mxu0
        %v6451 = vadd.f32 %v6330, %v6450
        %v6452 = vpop.f32.mrb[0].mxu0
        %6453 = vmatprep.mubr.f32.mxu0 0.0
        %v6454 = vand.u32 %v6245, 4294901760
        %6455 = vmatmul.mubr.f32.gmra.mrb[0].mxu0 %v6454
        %v6456 = vpop.f32.mrb[0].mxu0
        %v6457 = vadd.f32 %v6340, %v6456
        %v6458 = vpop.f32.mrb[0].mxu0
        %6459 = vmatprep.mubr.f32.mxu0 0.0
        %v6460 = vand.u32 %v6248, 4294901760
        %6461 = vmatmul.mubr.f32.gmra.mrb[0].mxu0 %v6460
        %v6462 = vpop.f32.mrb[0].mxu0
        %v6463 = vadd.f32 %v6350, %v6462
        %v6464 = vpop.f32.mrb[0].mxu0
        %6465 = vmatprep.mubr.f32.mxu0 0.0
        %v6466 = vand.u32 %v6251, 4294901760
        %6467 = vmatmul.mubr.f32.gmra.mrb[0].mxu0 %v6466
        %v6468 = vpop.f32.mrb[0].mxu0
        %v6469 = vadd.f32 %v6360, %v6468
        %v6470 = vpop.f32.mrb[0].mxu0
        %6471 = vmatprep.mubr.f32.mxu0 0.0
        %v6472 = vand.u32 %v6254, 4294901760
        %6473 = vmatmul.mubr.f32.gmra.mrb[0].mxu0 %v6472
        %v6474 = vpop.f32.mrb[0].mxu0
        %v6475 = vadd.f32 %v6370, %v6474
        %v6476 = vpop.f32.mrb[0].mxu0
        %6477 = vdwg.mxu0
        %6478 = vmatprep.subr.mxu0 0.0
        %v6479 = vand.u32 %v6239, 4294901760
        %v6480 = vsub.f32 %v6239, %v6479
        %6481 = vmatpush1.msra.mxu0 %v6480
        %6482 = vmatprep.subr.mxu0 0.0
        %v6483 = vand.u32 %v6240, 4294901760
        %v6484 = vsub.f32 %v6240, %v6483
        %6485 = vmatpush1.msra.mxu0 %v6484
        %6486 = vmatprep.subr.mxu0 0.0
        %6487 = vmatpush1.msra.mxu0 0.0
        %6488 = vmatprep.subr.mxu0 0.0
        %6489 = vmatpush1.msra.mxu0 0.0
        %6490 = vmatprep.subr.mxu0 0.0
        %6491 = vmatpush1.msra.mxu0 0.0
        %6492 = vmatprep.subr.mxu0 0.0
        %6493 = vmatpush1.msra.mxu0 0.0
        %6494 = vmatprep.subr.mxu0 0.0
        %6495 = vmatpush1.msra.mxu0 0.0
        %6496 = vmatprep.subr.mxu0 0.0
        %6497 = vmatpush1.msra.mxu0 0.0
        %6498 = vmatprep.subr.mxu0 0.0
        %6499 = vmatpush1.msra.mxu0 0.0
        %6500 = vmatprep.subr.mxu0 0.0
        %6501 = vmatpush1.msra.mxu0 0.0
        %6502 = vmatprep.subr.mxu0 0.0
        %6503 = vmatpush1.msra.mxu0 0.0
        %6504 = vmatprep.subr.mxu0 0.0
        %6505 = vmatpush1.msra.mxu0 0.0
        %6506 = vmatprep.subr.mxu0 0.0
        %6507 = vmatpush1.msra.mxu0 0.0
        %6508 = vmatprep.subr.mxu0 0.0
        %6509 = vmatpush1.msra.mxu0 0.0
        %6510 = vmatprep.subr.mxu0 0.0
        %6511 = vmatpush1.msra.mxu0 0.0
        %6512 = vmatprep.subr.mxu0 0.0
        %6513 = vmatpush1.msra.mxu0 0.0
        %6514 = vmatprep.subr.mxu0 0.0
        %6515 = vmatpush1.msra.mxu0 0.0
        %6516 = vmatprep.subr.mxu0 0.0
        %6517 = vmatpush1.msra.mxu0 0.0
        %6518 = vmatprep.subr.mxu0 0.0
        %6519 = vmatpush1.msra.mxu0 0.0
        %6520 = vmatprep.subr.mxu0 0.0
        %6521 = vmatpush1.msra.mxu0 0.0
        %6522 = vmatprep.subr.mxu0 0.0
        %6523 = vmatpush1.msra.mxu0 0.0
        %6524 = vmatprep.subr.mxu0 0.0
        %6525 = vmatpush1.msra.mxu0 0.0
        %6526 = vmatprep.subr.mxu0 0.0
        %6527 = vmatpush1.msra.mxu0 0.0
        %6528 = vmatprep.subr.mxu0 0.0
        %6529 = vmatpush1.msra.mxu0 0.0
        %6530 = vmatprep.subr.mxu0 0.0
        %6531 = vmatpush1.msra.mxu0 0.0
        %6532 = vmatprep.subr.mxu0 0.0
        %6533 = vmatpush1.msra.mxu0 0.0
        %6534 = vmatprep.subr.mxu0 0.0
        %6535 = vmatpush1.msra.mxu0 0.0
        %6536 = vmatprep.subr.mxu0 0.0
        %6537 = vmatpush1.msra.mxu0 0.0
        %6538 = vmatprep.subr.mxu0 0.0
        %6539 = vmatpush1.msra.mxu0 0.0
        %6540 = vmatprep.subr.mxu0 0.0
        %6541 = vmatpush1.msra.mxu0 0.0
        %6542 = vmatprep.subr.mxu0 0.0
        %6543 = vmatpush1.msra.mxu0 0.0
        %6544 = vmatprep.subr.mxu0 0.0
        %6545 = vmatpush1.msra.mxu0 0.0
        %6546 = vmatprep.mubr.f32.mxu0 0.0
        %v6547 = vand.u32 %v6242, 4294901760
        %v6548 = vsub.f32 %v6242, %v6547
        %6549 = vmatmul.mubr.f32.gmra.mrb[0].mxu0 %v6548
        %v6550 = vpop.f32.mrb[0].mxu0
        %v6551 = vadd.f32 %v6451, %v6550
        %v6552 = vpop.f32.mrb[0].mxu0
        %6553 = vmatprep.mubr.f32.mxu0 0.0
        %v6554 = vand.u32 %v6245, 4294901760
        %v6555 = vsub.f32 %v6245, %v6554
        %6556 = vmatmul.mubr.f32.gmra.mrb[0].mxu0 %v6555
        %v6557 = vpop.f32.mrb[0].mxu0
        %v6558 = vadd.f32 %v6457, %v6557
        %v6559 = vpop.f32.mrb[0].mxu0
        %6560 = vmatprep.mubr.f32.mxu0 0.0
        %v6561 = vand.u32 %v6248, 4294901760
        %v6562 = vsub.f32 %v6248, %v6561
        %6563 = vmatmul.mubr.f32.gmra.mrb[0].mxu0 %v6562
        %v6564 = vpop.f32.mrb[0].mxu0
        %v6565 = vadd.f32 %v6463, %v6564
        %v6566 = vpop.f32.mrb[0].mxu0
        %6567 = vmatprep.mubr.f32.mxu0 0.0
        %v6568 = vand.u32 %v6251, 4294901760
        %v6569 = vsub.f32 %v6251, %v6568
        %6570 = vmatmul.mubr.f32.gmra.mrb[0].mxu0 %v6569
        %v6571 = vpop.f32.mrb[0].mxu0
        %v6572 = vadd.f32 %v6469, %v6571
        %v6573 = vpop.f32.mrb[0].mxu0
        %6574 = vmatprep.mubr.f32.mxu0 0.0
        %v6575 = vand.u32 %v6254, 4294901760
        %v6576 = vsub.f32 %v6254, %v6575
        %6577 = vmatmul.mubr.f32.gmra.mrb[0].mxu0 %v6576
        %v6578 = vpop.f32.mrb[0].mxu0
        %v6579 = vadd.f32 %v6475, %v6578
        %v6580 = vpop.f32.mrb[0].mxu0
        %6581 = vdwg.mxu0
        %6582 = vmatprep.subr.mxu0 0.0
        %v6583 = vand.u32 %v6239, 4294901760
        %6584 = vmatpush1.msra.mxu0 %v6583
        %6585 = vmatprep.subr.mxu0 0.0
        %v6586 = vand.u32 %v6240, 4294901760
        %6587 = vmatpush1.msra.mxu0 %v6586
        %6588 = vmatprep.subr.mxu0 0.0
        %6589 = vmatpush1.msra.mxu0 0.0
        %6590 = vmatprep.subr.mxu0 0.0
        %6591 = vmatpush1.msra.mxu0 0.0
        %6592 = vmatprep.subr.mxu0 0.0
        %6593 = vmatpush1.msra.mxu0 0.0
        %6594 = vmatprep.subr.mxu0 0.0
        %6595 = vmatpush1.msra.mxu0 0.0
        %6596 = vmatprep.subr.mxu0 0.0
        %6597 = vmatpush1.msra.mxu0 0.0
        %6598 = vmatprep.subr.mxu0 0.0
        %6599 = vmatpush1.msra.mxu0 0.0
        %6600 = vmatprep.subr.mxu0 0.0
        %6601 = vmatpush1.msra.mxu0 0.0
        %6602 = vmatprep.subr.mxu0 0.0
        %6603 = vmatpush1.msra.mxu0 0.0
        %6604 = vmatprep.subr.mxu0 0.0
        %6605 = vmatpush1.msra.mxu0 0.0
        %6606 = vmatprep.subr.mxu0 0.0
        %6607 = vmatpush1.msra.mxu0 0.0
        %6608 = vmatprep.subr.mxu0 0.0
        %6609 = vmatpush1.msra.mxu0 0.0
        %6610 = vmatprep.subr.mxu0 0.0
        %6611 = vmatpush1.msra.mxu0 0.0
        %6612 = vmatprep.subr.mxu0 0.0
        %6613 = vmatpush1.msra.mxu0 0.0
        %6614 = vmatprep.subr.mxu0 0.0
        %6615 = vmatpush1.msra.mxu0 0.0
        %6616 = vmatprep.subr.mxu0 0.0
        %6617 = vmatpush1.msra.mxu0 0.0
        %6618 = vmatprep.subr.mxu0 0.0
        %6619 = vmatpush1.msra.mxu0 0.0
        %6620 = vmatprep.subr.mxu0 0.0
        %6621 = vmatpush1.msra.mxu0 0.0
        %6622 = vmatprep.subr.mxu0 0.0
        %6623 = vmatpush1.msra.mxu0 0.0
        %6624 = vmatprep.subr.mxu0 0.0
        %6625 = vmatpush1.msra.mxu0 0.0
        %6626 = vmatprep.subr.mxu0 0.0
        %6627 = vmatpush1.msra.mxu0 0.0
        %6628 = vmatprep.subr.mxu0 0.0
        %6629 = vmatpush1.msra.mxu0 0.0
        %6630 = vmatprep.subr.mxu0 0.0
        %6631 = vmatpush1.msra.mxu0 0.0
        %6632 = vmatprep.subr.mxu0 0.0
        %6633 = vmatpush1.msra.mxu0 0.0
        %6634 = vmatprep.subr.mxu0 0.0
        %6635 = vmatpush1.msra.mxu0 0.0
        %6636 = vmatprep.subr.mxu0 0.0
        %6637 = vmatpush1.msra.mxu0 0.0
        %6638 = vmatprep.subr.mxu0 0.0
        %6639 = vmatpush1.msra.mxu0 0.0
        %6640 = vmatprep.subr.mxu0 0.0
        %6641 = vmatpush1.msra.mxu0 0.0
        %6642 = vmatprep.subr.mxu0 0.0
        %6643 = vmatpush1.msra.mxu0 0.0
        %6644 = vmatprep.subr.mxu0 0.0
        %6645 = vmatpush1.msra.mxu0 0.0
        %6646 = vmatprep.subr.mxu0 0.0
        %6647 = vmatpush1.msra.mxu0 0.0
        %6648 = vmatprep.mubr.f32.mxu0 0.0
        %v6649 = vand.u32 %v6242, 4294901760
        %v6650 = vsub.f32 %v6242, %v6649
        %v6651 = vand.u32 %v6650, 4294901760
        %6652 = vmatmul.mubr.f32.gmra.mrb[0].mxu0 %v6651
        %v6653 = vpop.f32.mrb[0].mxu0
        %v6654 = vadd.f32 %v6551, %v6653
        %v6655 = vpop.f32.mrb[0].mxu0
        %6656 = vmatprep.mubr.f32.mxu0 0.0
        %v6657 = vand.u32 %v6245, 4294901760
        %v6658 = vsub.f32 %v6245, %v6657
        %v6659 = vand.u32 %v6658, 4294901760
        %6660 = vmatmul.mubr.f32.gmra.mrb[0].mxu0 %v6659
        %v6661 = vpop.f32.mrb[0].mxu0
        %v6662 = vadd.f32 %v6558, %v6661
        %v6663 = vpop.f32.mrb[0].mxu0
        %6664 = vmatprep.mubr.f32.mxu0 0.0
        %v6665 = vand.u32 %v6248, 4294901760
        %v6666 = vsub.f32 %v6248, %v6665
        %v6667 = vand.u32 %v6666, 4294901760
        %6668 = vmatmul.mubr.f32.gmra.mrb[0].mxu0 %v6667
        %v6669 = vpop.f32.mrb[0].mxu0
        %v6670 = vadd.f32 %v6565, %v6669
        %v6671 = vpop.f32.mrb[0].mxu0
        %6672 = vmatprep.mubr.f32.mxu0 0.0
        %v6673 = vand.u32 %v6251, 4294901760
        %v6674 = vsub.f32 %v6251, %v6673
        %v6675 = vand.u32 %v6674, 4294901760
        %6676 = vmatmul.mubr.f32.gmra.mrb[0].mxu0 %v6675
        %v6677 = vpop.f32.mrb[0].mxu0
        %v6678 = vadd.f32 %v6572, %v6677
        %v6679 = vpop.f32.mrb[0].mxu0
        %6680 = vmatprep.mubr.f32.mxu0 0.0
        %v6681 = vand.u32 %v6254, 4294901760
        %v6682 = vsub.f32 %v6254, %v6681
        %v6683 = vand.u32 %v6682, 4294901760
        %6684 = vmatmul.mubr.f32.gmra.mrb[0].mxu0 %v6683
        %v6685 = vpop.f32.mrb[0].mxu0
        %v6686 = vadd.f32 %v6579, %v6685
        %v6687 = vpop.f32.mrb[0].mxu0
        %6688 = vdwg.mxu0
        %6689 = vmatprep.subr.mxu0 0.0
        %v6690 = vand.u32 %v6239, 4294901760
        %v6691 = vsub.f32 %v6239, %v6690
        %v6692 = vand.u32 %v6691, 4294901760
        %6693 = vmatpush1.msra.mxu0 %v6692
        %6694 = vmatprep.subr.mxu0 0.0
        %v6695 = vand.u32 %v6240, 4294901760
        %v6696 = vsub.f32 %v6240, %v6695
        %v6697 = vand.u32 %v6696, 4294901760
        %6698 = vmatpush1.msra.mxu0 %v6697
        %6699 = vmatprep.subr.mxu0 0.0
        %6700 = vmatpush1.msra.mxu0 0.0
        %6701 = vmatprep.subr.mxu0 0.0
        %6702 = vmatpush1.msra.mxu0 0.0
        %6703 = vmatprep.subr.mxu0 0.0
        %6704 = vmatpush1.msra.mxu0 0.0
        %6705 = vmatprep.subr.mxu0 0.0
        %6706 = vmatpush1.msra.mxu0 0.0
        %6707 = vmatprep.subr.mxu0 0.0
        %6708 = vmatpush1.msra.mxu0 0.0
        %6709 = vmatprep.subr.mxu0 0.0
        %6710 = vmatpush1.msra.mxu0 0.0
        %6711 = vmatprep.subr.mxu0 0.0
        %6712 = vmatpush1.msra.mxu0 0.0
        %6713 = vmatprep.subr.mxu0 0.0
        %6714 = vmatpush1.msra.mxu0 0.0
        %6715 = vmatprep.subr.mxu0 0.0
        %6716 = vmatpush1.msra.mxu0 0.0
        %6717 = vmatprep.subr.mxu0 0.0
        %6718 = vmatpush1.msra.mxu0 0.0
        %6719 = vmatprep.subr.mxu0 0.0
        %6720 = vmatpush1.msra.mxu0 0.0
        %6721 = vmatprep.subr.mxu0 0.0
        %6722 = vmatpush1.msra.mxu0 0.0
        %6723 = vmatprep.subr.mxu0 0.0
        %6724 = vmatpush1.msra.mxu0 0.0
        %6725 = vmatprep.subr.mxu0 0.0
        %6726 = vmatpush1.msra.mxu0 0.0
        %6727 = vmatprep.subr.mxu0 0.0
        %6728 = vmatpush1.msra.mxu0 0.0
        %6729 = vmatprep.subr.mxu0 0.0
        %6730 = vmatpush1.msra.mxu0 0.0
        %6731 = vmatprep.subr.mxu0 0.0
        %6732 = vmatpush1.msra.mxu0 0.0
        %6733 = vmatprep.subr.mxu0 0.0
        %6734 = vmatpush1.msra.mxu0 0.0
        %6735 = vmatprep.subr.mxu0 0.0
        %6736 = vmatpush1.msra.mxu0 0.0
        %6737 = vmatprep.subr.mxu0 0.0
        %6738 = vmatpush1.msra.mxu0 0.0
        %6739 = vmatprep.subr.mxu0 0.0
        %6740 = vmatpush1.msra.mxu0 0.0
        %6741 = vmatprep.subr.mxu0 0.0
        %6742 = vmatpush1.msra.mxu0 0.0
        %6743 = vmatprep.subr.mxu0 0.0
        %6744 = vmatpush1.msra.mxu0 0.0
        %6745 = vmatprep.subr.mxu0 0.0
        %6746 = vmatpush1.msra.mxu0 0.0
        %6747 = vmatprep.subr.mxu0 0.0
        %6748 = vmatpush1.msra.mxu0 0.0
        %6749 = vmatprep.subr.mxu0 0.0
        %6750 = vmatpush1.msra.mxu0 0.0
        %6751 = vmatprep.subr.mxu0 0.0
        %6752 = vmatpush1.msra.mxu0 0.0
        %6753 = vmatprep.subr.mxu0 0.0
        %6754 = vmatpush1.msra.mxu0 0.0
        %6755 = vmatprep.subr.mxu0 0.0
        %6756 = vmatpush1.msra.mxu0 0.0
        %6757 = vmatprep.subr.mxu0 0.0
        %6758 = vmatpush1.msra.mxu0 0.0
        %6759 = vmatprep.mubr.f32.mxu0 0.0
        %v6760 = vand.u32 %v6242, 4294901760
        %6761 = vmatmul.mubr.f32.gmra.mrb[0].mxu0 %v6760
        %v6762 = vpop.f32.mrb[0].mxu0
        %v6763 = vadd.f32 %v6654, %v6762
        %v6764 = vpop.f32.mrb[0].mxu0
        %6765 = vmatprep.mubr.f32.mxu0 0.0
        %v6766 = vand.u32 %v6245, 4294901760
        %6767 = vmatmul.mubr.f32.gmra.mrb[0].mxu0 %v6766
        %v6768 = vpop.f32.mrb[0].mxu0
        %v6769 = vadd.f32 %v6662, %v6768
        %v6770 = vpop.f32.mrb[0].mxu0
        %6771 = vmatprep.mubr.f32.mxu0 0.0
        %v6772 = vand.u32 %v6248, 4294901760
        %6773 = vmatmul.mubr.f32.gmra.mrb[0].mxu0 %v6772
        %v6774 = vpop.f32.mrb[0].mxu0
        %v6775 = vadd.f32 %v6670, %v6774
        %v6776 = vpop.f32.mrb[0].mxu0
        %6777 = vmatprep.mubr.f32.mxu0 0.0
        %v6778 = vand.u32 %v6251, 4294901760
        %6779 = vmatmul.mubr.f32.gmra.mrb[0].mxu0 %v6778
        %v6780 = vpop.f32.mrb[0].mxu0
        %v6781 = vadd.f32 %v6678, %v6780
        %v6782 = vpop.f32.mrb[0].mxu0
        %6783 = vmatprep.mubr.f32.mxu0 0.0
        %v6784 = vand.u32 %v6254, 4294901760
        %6785 = vmatmul.mubr.f32.gmra.mrb[0].mxu0 %v6784
        %v6786 = vpop.f32.mrb[0].mxu0
        %v6787 = vadd.f32 %v6686, %v6786
        %v6788 = vpop.f32.mrb[0].mxu0
        %6789 = vdwg.mxu0
        %6790 = vmatprep.subr.mxu0 0.0
        %v6791 = vand.u32 %v6239, 4294901760
        %6792 = vmatpush1.msra.mxu0 %v6791
        %6793 = vmatprep.subr.mxu0 0.0
        %v6794 = vand.u32 %v6240, 4294901760
        %6795 = vmatpush1.msra.mxu0 %v6794
        %6796 = vmatprep.subr.mxu0 0.0
        %6797 = vmatpush1.msra.mxu0 0.0
        %6798 = vmatprep.subr.mxu0 0.0
        %6799 = vmatpush1.msra.mxu0 0.0
        %6800 = vmatprep.subr.mxu0 0.0
        %6801 = vmatpush1.msra.mxu0 0.0
        %6802 = vmatprep.subr.mxu0 0.0
        %6803 = vmatpush1.msra.mxu0 0.0
        %6804 = vmatprep.subr.mxu0 0.0
        %6805 = vmatpush1.msra.mxu0 0.0
        %6806 = vmatprep.subr.mxu0 0.0
        %6807 = vmatpush1.msra.mxu0 0.0
        %6808 = vmatprep.subr.mxu0 0.0
        %6809 = vmatpush1.msra.mxu0 0.0
        %6810 = vmatprep.subr.mxu0 0.0
        %6811 = vmatpush1.msra.mxu0 0.0
        %6812 = vmatprep.subr.mxu0 0.0
        %6813 = vmatpush1.msra.mxu0 0.0
        %6814 = vmatprep.subr.mxu0 0.0
        %6815 = vmatpush1.msra.mxu0 0.0
        %6816 = vmatprep.subr.mxu0 0.0
        %6817 = vmatpush1.msra.mxu0 0.0
        %6818 = vmatprep.subr.mxu0 0.0
        %6819 = vmatpush1.msra.mxu0 0.0
        %6820 = vmatprep.subr.mxu0 0.0
        %6821 = vmatpush1.msra.mxu0 0.0
        %6822 = vmatprep.subr.mxu0 0.0
        %6823 = vmatpush1.msra.mxu0 0.0
        %6824 = vmatprep.subr.mxu0 0.0
        %6825 = vmatpush1.msra.mxu0 0.0
        %6826 = vmatprep.subr.mxu0 0.0
        %6827 = vmatpush1.msra.mxu0 0.0
        %6828 = vmatprep.subr.mxu0 0.0
        %6829 = vmatpush1.msra.mxu0 0.0
        %6830 = vmatprep.subr.mxu0 0.0
        %6831 = vmatpush1.msra.mxu0 0.0
        %6832 = vmatprep.subr.mxu0 0.0
        %6833 = vmatpush1.msra.mxu0 0.0
        %6834 = vmatprep.subr.mxu0 0.0
        %6835 = vmatpush1.msra.mxu0 0.0
        %6836 = vmatprep.subr.mxu0 0.0
        %6837 = vmatpush1.msra.mxu0 0.0
        %6838 = vmatprep.subr.mxu0 0.0
        %6839 = vmatpush1.msra.mxu0 0.0
        %6840 = vmatprep.subr.mxu0 0.0
        %6841 = vmatpush1.msra.mxu0 0.0
        %6842 = vmatprep.subr.mxu0 0.0
        %6843 = vmatpush1.msra.mxu0 0.0
        %6844 = vmatprep.subr.mxu0 0.0
        %6845 = vmatpush1.msra.mxu0 0.0
        %6846 = vmatprep.subr.mxu0 0.0
        %6847 = vmatpush1.msra.mxu0 0.0
        %6848 = vmatprep.subr.mxu0 0.0
        %6849 = vmatpush1.msra.mxu0 0.0
        %6850 = vmatprep.subr.mxu0 0.0
        %6851 = vmatpush1.msra.mxu0 0.0
        %6852 = vmatprep.subr.mxu0 0.0
        %6853 = vmatpush1.msra.mxu0 0.0
        %6854 = vmatprep.subr.mxu0 0.0
        %6855 = vmatpush1.msra.mxu0 0.0
        %6856 = vmatprep.mubr.f32.mxu0 0.0
        %v6857 = vand.u32 %v6242, 4294901760
        %6858 = vmatmul.mubr.f32.gmra.mrb[0].mxu0 %v6857
        %v6859 = vpop.f32.mrb[0].mxu0
        %v6860 = vadd.f32 %v6763, %v6859
        %v6861 = vpop.f32.mrb[0].mxu0
        %6862 = vmatprep.mubr.f32.mxu0 0.0
        %v6863 = vand.u32 %v6245, 4294901760
        %6864 = vmatmul.mubr.f32.gmra.mrb[0].mxu0 %v6863
        %v6865 = vpop.f32.mrb[0].mxu0
        %v6866 = vadd.f32 %v6769, %v6865
        %v6867 = vpop.f32.mrb[0].mxu0
        %6868 = vmatprep.mubr.f32.mxu0 0.0
        %v6869 = vand.u32 %v6248, 4294901760
        %6870 = vmatmul.mubr.f32.gmra.mrb[0].mxu0 %v6869
        %v6871 = vpop.f32.mrb[0].mxu0
        %v6872 = vadd.f32 %v6775, %v6871
        %v6873 = vpop.f32.mrb[0].mxu0
        %6874 = vmatprep.mubr.f32.mxu0 0.0
        %v6875 = vand.u32 %v6251, 4294901760
        %6876 = vmatmul.mubr.f32.gmra.mrb[0].mxu0 %v6875
        %v6877 = vpop.f32.mrb[0].mxu0
        %v6878 = vadd.f32 %v6781, %v6877
        %v6879 = vpop.f32.mrb[0].mxu0
        %6880 = vmatprep.mubr.f32.mxu0 0.0
        %v6881 = vand.u32 %v6254, 4294901760
        %6882 = vmatmul.mubr.f32.gmra.mrb[0].mxu0 %v6881
        %v6883 = vpop.f32.mrb[0].mxu0
        %v6884 = vadd.f32 %v6787, %v6883
        %v6885 = vpop.f32.mrb[0].mxu0
        %6886 = vdwg.mxu0
        %v6887 = vmul.f32 %v6860, %v6860
        %v6888 = vmul.f32 %v6866, %v6866
        %v6889 = vmul.f32 %v6860, %v6866
        %v6890 = vsub.f32 %v6872, %v6887
        %v6891 = vsub.f32 %v6878, %v6888
        %v6892 = vsub.f32 %v6884, %v6889
        %v6893 = vmul.f32 %v6892, 2.0
        %v6894 = vadd.f32 %v6893, %v4234
        %v6895 = vadd.f32 %v6890, %v6891
        %v6896 = vadd.f32 %v6895, %v4234
        %v6897 = vrcp.pop %v6896
        %v6898 = vmul.f32 %v6896, %v6897
        %v6899 = vsub.f32 2.0, %v6898
        %v6900 = vmul.f32 %v6897, %v6899
        %v6901 = vmul.f32 %v6894, %v6900
        %v6902 = vmul.f32 %v6237, %v6901
        %v6903 = vmul.f32 %v6889, 2.0
        %v6904 = vstv %s347
        %v6905 = vadd.f32 %v6903, %v6904
        %v6906 = vadd.f32 %v6887, %v6888
        %v6907 = vadd.f32 %v6906, %v6904
        %v6908 = vrcp.pop %v6907
        %v6909 = vmul.f32 %v6907, %v6908
        %v6910 = vsub.f32 2.0, %v6909
        %v6911 = vmul.f32 %v6908, %v6910
        %v6912 = vmul.f32 %v6905, %v6911
        %6913 = vst [vmem:[%s339] sm:$0xff] %v6902
        %6914 = vst [vmem:[%s346] sm:$0xff] %v6912
        %s6915 = sand.u32 %s152, 1
        %s6916 = scalar_lea.sflag [#allocation4], %s6915
        %s6917 = sand.u32 %s152, 1
        %s6918 = smul.addr %s6917, 8
        %s6919 = scalar_lea.vmem [#allocation10], %s6918
        %s6920 = sand.u32 %s178, 1
        %s6921 = scalar_lea.sflag [#allocation12], %s6920
        %s6922 = sand.u32 %s178, 1
        %s6923 = smul.addr %s6922, 8
        %s6924 = scalar_lea.vmem [#allocation11], %s6923
        // Predicated region
        $region57: #{tpu_custom_call.1} parent=39 // pred_check
          %p6925 = pneg %p162
        $region58: #{tpu_custom_call.1} parent=39 // pred_check_branch
          %6927 = sbr.rel (%p6925) target = $region60
        $region59: #{tpu_custom_call.1} parent=39 // pred_region
          %s6929 = ssub.s32 128, 128
          %6930 = vsyncadd %s6916, %s6929
          %s6931 = smul.addr %s29, 128
          %s6932 = scalar_lea.hbm %s5, %s6931
          %s6934 = sshll.u32 %s6919, 4
          %s6935 = int_to_ptr.vmem [resolvable:$true] %s6934
          %6937 = dma.vmem_to_hbm [thread:$0]  %s6935, 128, %s6932, %s6916
        $region60: #{tpu_custom_call.1} parent=39 // pred_fallthru
          _
        // Predicated region
        $region61: #{tpu_custom_call.1} parent=39 // pred_check
          %p6938 = pneg %p188
        $region62: #{tpu_custom_call.1} parent=39 // pred_check_branch
          %6940 = sbr.rel (%p6938) target = $region64
        $region63: #{tpu_custom_call.1} parent=39 // pred_region
          %s6942 = ssub.s32 128, 128
          %6943 = vsyncadd %s6921, %s6942
          %s6944 = smul.addr %s29, 128
          %s6945 = scalar_lea.hbm %s6, %s6944
          %s6947 = sshll.u32 %s6924, 4
          %s6948 = int_to_ptr.vmem [resolvable:$true] %s6947
          %6950 = dma.vmem_to_hbm [thread:$0]  %s6948, 128, %s6945, %s6921
        $region64: #{tpu_custom_call.1} parent=39 // pred_fallthru
          _
      $region40: #{tpu_custom_call.1} parent=5 // pred_fallthru
        _
      %p6951 = scmp.le.s32.totalorder 2, %s24
      // Predicated region
      $region65: #{tpu_custom_call.1} parent=5 // pred_check
        %p6952 = pneg %p6951
      $region66: #{tpu_custom_call.1} parent=5 // pred_check_branch
        %6954 = sbr.rel (%p6952) target = $region68
      $region67: #{tpu_custom_call.1} parent=5 // pred_region
        %s6955 = ssub.s32 %s24, 2
        // Predicated region
        $region69: #{tpu_custom_call.1} parent=67 // pred_check
          %p6956 = pneg %p168
        $region70: #{tpu_custom_call.1} parent=67 // pred_check_branch
          %6958 = sbr.rel (%p6956) target = $region72
        $region71: #{tpu_custom_call.1} parent=67 // pred_region
          %s6959 = sand.u32 %s153, 1
          %s6960 = scalar_lea.sflag [#allocation4], %s6959
          %s6961 = sand.u32 %s153, 1
          %s6962 = smul.addr %s6961, 8
          %s6963 = scalar_lea.vmem [#allocation10], %s6962
          %6964 = dma.done %s6960, 128
        $region72: #{tpu_custom_call.1} parent=67 // pred_fallthru
          _
        // Predicated region
        $region73: #{tpu_custom_call.1} parent=67 // pred_check
          %p6965 = pneg %p194
        $region74: #{tpu_custom_call.1} parent=67 // pred_check_branch
          %6967 = sbr.rel (%p6965) target = $region76
        $region75: #{tpu_custom_call.1} parent=67 // pred_region
          %s6968 = sand.u32 %s179, 1
          %s6969 = scalar_lea.sflag [#allocation12], %s6968
          %s6970 = sand.u32 %s179, 1
          %s6971 = smul.addr %s6970, 8
          %s6972 = scalar_lea.vmem [#allocation11], %s6971
          %6973 = dma.done %s6969, 128
        $region76: #{tpu_custom_call.1} parent=67 // pred_fallthru
          _
      $region68: #{tpu_custom_call.1} parent=5 // pred_fallthru
        _
    $region6: #{tpu_custom_call.1} parent=1 // loop_footer
      %s28 = sadd.s32 1, %s24
    $region7: #{tpu_custom_call.1} parent=1 // loop_footer_branch
      %23 = sbr.rel target = $region3
    $region8: #{tpu_custom_call.1} parent=1 // loop_exit
      _
    %6974 = vsyncpa [#allocation3], 1
    %s6975 = scalar_lea.sflag [#allocation3], 1
    %6976 = vsyncpa %s6975, 1
    %6977 = vsyncpa [#allocation8], 1
    %s6978 = scalar_lea.sflag [#allocation8], 1
    %6979 = vsyncpa %s6978, 1
    %6980 = vsyncpa [#allocation4], 1
    %s6981 = scalar_lea.sflag [#allocation4], 1
    %6982 = vsyncpa %s6981, 1
    %6983 = vsyncpa [#allocation12], 1
    %s6984 = scalar_lea.sflag [#allocation12], 1
    %6985 = vsyncpa %s6984, 1
    %6986 = vsyncpa [#allocation5], 1
    %s6987 = scalar_lea.sflag [#allocation5], 1
    %6988 = vsyncpa %s6987, 1

</llo_original>
